<compile_context>
chip_gen: v5e
topology: v5e:2x2
jax: 0.10.0
libtpu: 0.0.40
codegen_flags: <defaults>
</compile_context>

<pallas_src>
import functools

import numpy as np

import jax
import jax.numpy as jnp
from jax.experimental import pallas as pl
from jax.experimental.pallas import tpu as pltpu

LRELU_SLOPE = 0.2
BN_EPS = 1e-5
LANE = 128
SUBLANE = 8

ROW_BLOCK_TARGET = 1024   # target M rows per conv grid step
COUT_TILE_MAX = 512       # cap on Cout tile (bounds per-step weight VMEM on v7x)
ELTWISE_ROW_TILE = 1024   # row tile for the BN-affine / leaky elementwise kernel


def _round_up(x, m):
    return (x + m - 1) // m * m


def _pick_image_block(n, r_pad):
    """Largest divisor of n with nb * r_pad <= ROW_BLOCK_TARGET (>=1)."""
    for cand in range(n, 0, -1):
        if n % cand == 0 and cand * r_pad <= ROW_BLOCK_TARGET:
            return cand
    return 1


def _pick_row_tile(m_tot):
    if m_tot <= ELTWISE_ROW_TILE:
        return m_tot
    tr = ELTWISE_ROW_TILE
    while m_tot % tr:
        tr -= SUBLANE
    return tr


# ---------------------------------------------------------------------------
# Pallas kernels
# ---------------------------------------------------------------------------
def _conv_s2d_kernel(x_ref, w_ref, b_ref, y_ref, *, shifts, act):
    """4x4/stride-2 conv as 4 tap-matmuls on the space-to-depth activation.

    x_ref: (TM, C') bf16   rows = s2d "home rows" (junk rows allowed)
    w_ref: (4, C', TN) bf16 per-tap weights
    b_ref: (1, TN) f32 bias
    y_ref: (TM, TN) bf16   conv output (+ fused activation), home-row layout
    """
    x = x_ref[...]
    tm = x.shape[0]
    tn = y_ref.shape[1]
    acc = jnp.zeros((tm, tn), jnp.float32)
    for t, s in enumerate(shifts):
        z = jnp.dot(x, w_ref[t], preferred_element_type=jnp.float32)
        if s:
            z = pltpu.roll(z, shift=tm - s, axis=0)   # z'[p] = z[p + s]
        acc = acc + z
    y = acc + b_ref[...]
    if act == "leaky":
        y = jnp.where(y >= 0.0, y, LRELU_SLOPE * y)
    y_ref[...] = y.astype(y_ref.dtype)


def _conv_s2d_stats_kernel(x_ref, w_ref, b_ref, m_ref, y_ref, s_ref, q_ref, *,
                           shifts):
    """Same conv + fused masked per-channel sum / sum-of-squares (BatchNorm)."""
    x = x_ref[...]
    tm = x.shape[0]
    tn = y_ref.shape[1]
    acc = jnp.zeros((tm, tn), jnp.float32)
    for t, s in enumerate(shifts):
        z = jnp.dot(x, w_ref[t], preferred_element_type=jnp.float32)
        if s:
            z = pltpu.roll(z, shift=tm - s, axis=0)
        acc = acc + z
    y = acc + b_ref[...]
    m = m_ref[...]                               # (TM, 1) valid-row mask (f32)
    ym = y * m
    s_ref[...] = jnp.broadcast_to(jnp.sum(ym, axis=0, keepdims=True), s_ref.shape)
    q_ref[...] = jnp.broadcast_to(jnp.sum(y * ym, axis=0, keepdims=True), q_ref.shape)
    y_ref[...] = y.astype(y_ref.dtype)


def _affine_leaky_kernel(x_ref, s_ref, t_ref, o_ref):
    """Per-channel affine (folded BatchNorm) + leaky_relu; bf16 in / bf16 out."""
    y = x_ref[...].astype(jnp.float32) * s_ref[...] + t_ref[...]
    o_ref[...] = jnp.where(y >= 0.0, y, LRELU_SLOPE * y).astype(o_ref.dtype)


def _head_kernel(x_ref, w_ref, b_ref, o_ref):
    """conv5 (4x4 valid) as a single full-K matmul + fused bias + sigmoid."""
    z = jnp.dot(x_ref[...], w_ref[...], preferred_element_type=jnp.float32)
    o_ref[...] = jax.nn.sigmoid(z + b_ref[...])


# ---------------------------------------------------------------------------
# JAX-side layout glue (single cheap passes, no patch blow-up)
# ---------------------------------------------------------------------------
def _space_to_depth(act_nhwc):
    """pad-1 + 2x2 space-to-depth: (N,H,W,C) -> (N, H/2+1, W/2+1, 4C) bf16."""
    n, h, w, c = act_nhwc.shape
    xp = jnp.pad(act_nhwc, ((0, 0), (1, 1), (1, 1), (0, 0)))
    a, b = (h + 2) // 2, (w + 2) // 2
    xs = xp.reshape(n, a, 2, b, 2, c).transpose(0, 1, 3, 2, 4, 5)
    return xs.reshape(n, a, b, 4 * c).astype(jnp.bfloat16)


def _conv_weights(w_oihw, cout_pad):
    """OIHW (Cout,Cin,4,4) -> per-tap (4, 4*Cin, Cout_pad) bf16, tap = 2*di+dj."""
    cout, cin, _, _ = w_oihw.shape
    w = jnp.transpose(w_oihw, (2, 3, 1, 0))                  # (ki, kj, ci, co)
    w = w.reshape(2, 2, 2, 2, cin, cout)                     # (di, pi, dj, pj, ci, co)
    w = w.transpose(0, 2, 1, 3, 4, 5).reshape(4, 4 * cin, cout)
    if cout_pad != cout:
        w = jnp.pad(w, ((0, 0), (0, 0), (0, cout_pad - cout)))
    return w.astype(jnp.bfloat16)


def _extract_nhwc(y_flat, meta):
    n, oh, ow, b = meta["n"], meta["oh"], meta["ow"], meta["b"]
    r_pad, cout = meta["r_pad"], meta["cout"]
    y = y_flat.reshape(n, r_pad, -1)[:, : oh * b, :cout]
    return y.reshape(n, oh, b, cout)[:, :, :ow, :]


# ---------------------------------------------------------------------------
# Layer wrappers
# ---------------------------------------------------------------------------
def conv4x4_s2d(act_nhwc, w_oihw, bias, *, act=None, bn_stats=False):
    """4x4 / stride-2 / pad-1 conv.  Returns bf16 output in home-row layout."""
    n, h, w_in, cin = act_nhwc.shape
    cout = w_oihw.shape[0]
    oh, ow = h // 2, w_in // 2
    a, b = oh + 1, ow + 1
    cprime = 4 * cin
    r_img = a * b
    r_pad = _round_up(r_img, SUBLANE)
    m_tot = n * r_pad
    cout_pad = _round_up(cout, LANE)

    # ---- single-pass layout glue (s2d + row padding) ----
    xs = _space_to_depth(act_nhwc)                            # (n, a, b, 4*cin)
    x_flat = jnp.zeros((n, r_pad, cprime), jnp.bfloat16)
    x_flat = x_flat.at[:, :r_img, :].set(xs.reshape(n, r_img, cprime))
    x_flat = x_flat.reshape(m_tot, cprime)

    wmat = _conv_weights(w_oihw, cout_pad)
    bmat = jnp.zeros((1, cout_pad), jnp.float32).at[0, :cout].set(
        bias.astype(jnp.float32))

    # ---- tiling ----
    nb = _pick_image_block(n, r_pad)
    tm = nb * r_pad
    tn = cout_pad
    while tn > COUT_TILE_MAX:
        tn //= 2
    grid = (m_tot // tm, cout_pad // tn)
    shifts = (0, 1, b, b + 1)                                 # tap row shifts

    x_spec = pl.BlockSpec((tm, cprime), lambda i, j: (i, 0))
    w_spec = pl.BlockSpec((4, cprime, tn), lambda i, j: (0, 0, j))
    b_spec = pl.BlockSpec((1, tn), lambda i, j: (0, j))
    y_spec = pl.BlockSpec((tm, tn), lambda i, j: (i, j))
    cparams = pltpu.CompilerParams(
        dimension_semantics=("parallel", "parallel"))

    meta = dict(n=n, oh=oh, ow=ow, b=b, r_pad=r_pad, cout=cout,
                cout_pad=cout_pad)

    if not bn_stats:
        y_flat = pl.pallas_call(
            functools.partial(_conv_s2d_kernel, shifts=shifts, act=act),
            out_shape=jax.ShapeDtypeStruct((m_tot, cout_pad), jnp.bfloat16),
            grid=grid,
            in_specs=[x_spec, w_spec, b_spec],
            out_specs=y_spec,
            compiler_params=cparams,
        )(x_flat, wmat, bmat)
        return y_flat, meta

    # valid "home row" mask (static) for the fused BN partial sums
    rows = np.arange(r_pad)
    valid = ((rows // b) < oh) & ((rows % b) < ow) & (rows < r_img)
    mask = jnp.asarray(np.tile(valid.astype(np.float32), n).reshape(m_tot, 1))

    m_blocks = m_tot // tm
    stat_shape = jax.ShapeDtypeStruct((m_blocks * SUBLANE, cout_pad), jnp.float32)
    stat_spec = pl.BlockSpec((SUBLANE, tn), lambda i, j: (i, j))

    y_flat, psum, psq = pl.pallas_call(
        functools.partial(_conv_s2d_stats_kernel, shifts=shifts),
        out_shape=(jax.ShapeDtypeStruct((m_tot, cout_pad), jnp.bfloat16),
                   stat_shape, stat_shape),
        grid=grid,
        in_specs=[x_spec, w_spec, b_spec,
                  pl.BlockSpec((tm, 1), lambda i, j: (i, 0))],
        out_specs=(y_spec, stat_spec, stat_spec),
        compiler_params=cparams,
    )(x_flat, wmat, bmat, mask)
    return y_flat, meta, psum, psq


def affine_leaky(y_flat, scale, shift, cout_pad):
    """y = leaky_relu(y * scale + shift) on the (M_tot, Cout_pad) activation."""
    m_tot, _ = y_flat.shape
    cout = scale.shape[0]
    sp = jnp.zeros((1, cout_pad), jnp.float32).at[0, :cout].set(scale)
    tp = jnp.zeros((1, cout_pad), jnp.float32).at[0, :cout].set(shift)
    tr = _pick_row_tile(m_tot)
    return pl.pallas_call(
        _affine_leaky_kernel,
        out_shape=jax.ShapeDtypeStruct((m_tot, cout_pad), jnp.bfloat16),
        grid=(m_tot // tr,),
        in_specs=[pl.BlockSpec((tr, cout_pad), lambda i: (i, 0)),
                  pl.BlockSpec((1, cout_pad), lambda i: (0, 0)),
                  pl.BlockSpec((1, cout_pad), lambda i: (0, 0))],
        out_specs=pl.BlockSpec((tr, cout_pad), lambda i: (i, 0)),
        compiler_params=pltpu.CompilerParams(dimension_semantics=("parallel",)),
    )(y_flat, sp, tp)


def conv_head(act_nhwc, w_oihw, bias):
    """conv5: 4x4 valid conv (Cout=1) + sigmoid as one grid step."""
    n, h, w_in, cin = act_nhwc.shape
    k = h * w_in * cin
    n_pad = _round_up(max(n, SUBLANE), SUBLANE)
    x = jnp.zeros((n_pad, k), jnp.bfloat16).at[:n].set(
        act_nhwc.reshape(n, k).astype(jnp.bfloat16))
    wm = jnp.transpose(w_oihw, (2, 3, 1, 0)).reshape(k, 1)    # (ki,kj,ci) order
    wm = jnp.pad(wm, ((0, 0), (0, LANE - 1))).astype(jnp.bfloat16)
    bm = jnp.pad(bias.reshape(1, 1), ((0, 0), (0, LANE - 1))).astype(jnp.float32)

    out = pl.pallas_call(
        _head_kernel,
        out_shape=jax.ShapeDtypeStruct((n_pad, LANE), jnp.float32),
        grid=(1,),
        in_specs=[pl.BlockSpec((n_pad, k), lambda i: (0, 0)),
                  pl.BlockSpec((k, LANE), lambda i: (0, 0)),
                  pl.BlockSpec((1, LANE), lambda i: (0, 0))],
        out_specs=pl.BlockSpec((n_pad, LANE), lambda i: (0, 0)),
    )(x, wm, bm)
    return out[:n, :1]


# ---------------------------------------------------------------------------
# Forward pass
# ---------------------------------------------------------------------------
def discriminator_forward(x_nchw, params):
    x = jnp.transpose(x_nchw, (0, 2, 3, 1)).astype(jnp.float32)   # NCHW -> NHWC

    # conv1 + leaky_relu fused in the matmul epilogue (no BN)
    y, meta = conv4x4_s2d(x, params["w1"], params["b1"], act="leaky")
    act = _extract_nhwc(y, meta)

    # conv2..conv4: conv (+ fused batch-stat partials) -> BN affine + leaky
    # (training-mode batch statistics, biased variance, matching nn.Module
    #  defaults; TODO(synk): use running stats for eval-mode semantics.)
    for idx in (2, 3, 4):
        y, meta, psum, psq = conv4x4_s2d(act, params[f"w{idx}"],
                                         params[f"b{idx}"], act=None,
                                         bn_stats=True)
        cout, cout_pad = meta["cout"], meta["cout_pad"]
        count = float(meta["n"] * meta["oh"] * meta["ow"])
        tot = psum.reshape(-1, SUBLANE, cout_pad)[:, 0, :cout].sum(axis=0)
        tot2 = psq.reshape(-1, SUBLANE, cout_pad)[:, 0, :cout].sum(axis=0)
        mean = tot / count
        var = jnp.maximum(tot2 / count - mean * mean, 0.0)
        scale = params[f"bn{idx}_g"] / jnp.sqrt(var + BN_EPS)
        shift = params[f"bn{idx}_b"] - mean * scale
        y = affine_leaky(y, scale, shift, cout_pad)
        act = _extract_nhwc(y, meta)

    # conv5 + sigmoid
    out = conv_head(act, params["w5"], params["b5"])               # (N, 1)
    return out.reshape(out.shape[0], 1, 1, 1)


# ---------------------------------------------------------------------------
# Reference (plain JAX, f32) and parameter init
# ---------------------------------------------------------------------------
def _reference_forward(x_nchw, params):
    def conv(x, w, bias, stride, pad):
        y = jax.lax.conv_general_dilated(
            x, w, (stride, stride), [(pad, pad), (pad, pad)],
            dimension_numbers=("NCHW", "OIHW", "NCHW"))
        return y + bias.reshape(1, -1, 1, 1)

    def bn(x, g, beta):
        mean = x.mean(axis=(0, 2, 3), keepdims=True)
        var = x.var(axis=(0, 2, 3), keepdims=True)
        return (x - mean) / jnp.sqrt(var + BN_EPS) * g.reshape(1, -1, 1, 1) \
            + beta.reshape(1, -1, 1, 1)

    lrelu = lambda v: jnp.where(v >= 0, v, LRELU_SLOPE * v)
    x = lrelu(conv(x_nchw, params["w1"], params["b1"], 2, 1))
    x = lrelu(bn(conv(x, params["w2"], params["b2"], 2, 1),
                 params["bn2_g"], params["bn2_b"]))
    x = lrelu(bn(conv(x, params["w3"], params["b3"], 2, 1),
                 params["bn3_g"], params["bn3_b"]))
    x = lrelu(bn(conv(x, params["w4"], params["b4"], 2, 1),
                 params["bn4_g"], params["bn4_b"]))
    return jax.nn.sigmoid(conv(x, params["w5"], params["b5"], 1, 0))


def init_params(key, d):
    ks = jax.random.split(key, 5)

    def conv_w(k, cout, cin):
        return 0.02 * jax.random.normal(k, (cout, cin, 4, 4), jnp.float32)

    return {
        "w1": conv_w(ks[0], d, 1),         "b1": jnp.zeros((d,), jnp.float32),
        "w2": conv_w(ks[1], 2 * d, d),     "b2": jnp.zeros((2 * d,), jnp.float32),
        "w3": conv_w(ks[2], 4 * d, 2 * d), "b3": jnp.zeros((4 * d,), jnp.float32),
        "w4": conv_w(ks[3], 8 * d, 4 * d), "b4": jnp.zeros((8 * d,), jnp.float32),
        "w5": conv_w(ks[4], 1, 8 * d),     "b5": jnp.zeros((1,), jnp.float32),
        "bn2_g": jnp.ones((2 * d,), jnp.float32), "bn2_b": jnp.zeros((2 * d,), jnp.float32),
        "bn3_g": jnp.ones((4 * d,), jnp.float32), "bn3_b": jnp.zeros((4 * d,), jnp.float32),
        "bn4_g": jnp.ones((8 * d,), jnp.float32), "bn4_b": jnp.zeros((8 * d,), jnp.float32),
    }


if __name__ == "__main__":
    key = jax.random.PRNGKey(0)
    kx, kp = jax.random.split(key)

    d = 8                        # small-d stand-in for the default d=128
    # Architecture (four stride-2 convs + a 4x4 valid conv) requires 64x64 input.
    x = jax.random.normal(kx, (2, 1, 64, 64), jnp.float32)
    params = init_params(kp, d)

    out = jax.jit(discriminator_forward)(x, params)
    jax.block_until_ready(out)

    assert out.shape == (2, 1, 1, 1), out.shape
    assert bool(jnp.all((out >= 0.0) & (out <= 1.0)))

    # bf16 matmul streams -> small expected deviation from the f32 reference.
    ref = _reference_forward(x, params)
    assert float(jnp.max(jnp.abs(out - ref))) < 5e-2

    print("KERNEL_OK")
</pallas_src>

<mosaic_0001>
module attributes {stable_mosaic.version = 11 : i64} {
  func.func @_conv_s2d_kernel(%arg0: i32, %arg1: i32, %arg2: memref<1096x4xbf16, #tpu.memory_space<vmem>>, %arg3: memref<4x4x128xbf16, #tpu.memory_space<vmem>>, %arg4: memref<1x128xf32, #tpu.memory_space<vmem>>, %arg5: memref<1096x128xbf16, #tpu.memory_space<vmem>>) attributes {dimension_semantics = [#tpu.dimension_semantics<parallel>, #tpu.dimension_semantics<parallel>], iteration_bounds = array<i64: 2, 1>, scalar_prefetch = 0 : i64, scratch_operands = 0 : i64, tpu.core_type = #tpu.core_type<tc>, window_params = [{transform_indices = @transform_0, window_bounds = array<i64: 1096, 4>}, {transform_indices = @transform_1, window_bounds = array<i64: 4, 4, 128>}, {transform_indices = @transform_2, window_bounds = array<i64: 1, 128>}, {transform_indices = @transform_3, window_bounds = array<i64: 1096, 128>}]} {
    %c0 = arith.constant 0 : index
    %c0_0 = arith.constant 0 : index
    %0 = vector.load %arg2[%c0, %c0_0] : memref<1096x4xbf16, #tpu.memory_space<vmem>>, vector<1096x4xbf16>
    %cst = arith.constant 0.000000e+00 : f32
    %1 = vector.broadcast %cst : f32 to vector<1096x128xf32>
    %c0_1 = arith.constant 0 : index
    %c0_2 = arith.constant 0 : index
    %c0_3 = arith.constant 0 : index
    %2 = vector.load %arg3[%c0_1, %c0_2, %c0_3] : memref<4x4x128xbf16, #tpu.memory_space<vmem>>, vector<1x4x128xbf16>
    %3 = vector.shape_cast %2 : vector<1x4x128xbf16> to vector<4x128xbf16>
    %cst_4 = arith.constant dense<0.000000e+00> : vector<1096x128xf32>
    %4 = tpu.matmul %0, %3, %cst_4 {dimension_numbers = #tpu.dot_dimension_numbers<[1], [0], [0], [1], [0, 0, 1, 1], [], []>} : vector<1096x4xbf16>, vector<4x128xbf16>, vector<1096x128xf32> -> vector<1096x128xf32>
    %5 = arith.addf %1, %4 : vector<1096x128xf32>
    %c1 = arith.constant 1 : index
    %c0_5 = arith.constant 0 : index
    %c0_6 = arith.constant 0 : index
    %6 = vector.load %arg3[%c1, %c0_5, %c0_6] : memref<4x4x128xbf16, #tpu.memory_space<vmem>>, vector<1x4x128xbf16>
    %7 = vector.shape_cast %6 : vector<1x4x128xbf16> to vector<4x128xbf16>
    %cst_7 = arith.constant dense<0.000000e+00> : vector<1096x128xf32>
    %8 = tpu.matmul %0, %7, %cst_7 {dimension_numbers = #tpu.dot_dimension_numbers<[1], [0], [0], [1], [0, 0, 1, 1], [], []>} : vector<1096x4xbf16>, vector<4x128xbf16>, vector<1096x128xf32> -> vector<1096x128xf32>
    %c1095_i32 = arith.constant 1095 : i32
    %9 = tpu.dynamic_rotate %8 by %c1095_i32 dim 0 : vector<1096x128xf32>, i32 -> vector<1096x128xf32>
    %10 = arith.addf %5, %9 : vector<1096x128xf32>
    %c2 = arith.constant 2 : index
    %c0_8 = arith.constant 0 : index
    %c0_9 = arith.constant 0 : index
    %11 = vector.load %arg3[%c2, %c0_8, %c0_9] : memref<4x4x128xbf16, #tpu.memory_space<vmem>>, vector<1x4x128xbf16>
    %12 = vector.shape_cast %11 : vector<1x4x128xbf16> to vector<4x128xbf16>
    %cst_10 = arith.constant dense<0.000000e+00> : vector<1096x128xf32>
    %13 = tpu.matmul %0, %12, %cst_10 {dimension_numbers = #tpu.dot_dimension_numbers<[1], [0], [0], [1], [0, 0, 1, 1], [], []>} : vector<1096x4xbf16>, vector<4x128xbf16>, vector<1096x128xf32> -> vector<1096x128xf32>
    %c1063_i32 = arith.constant 1063 : i32
    %14 = tpu.dynamic_rotate %13 by %c1063_i32 dim 0 : vector<1096x128xf32>, i32 -> vector<1096x128xf32>
    %15 = arith.addf %10, %14 : vector<1096x128xf32>
    %c3 = arith.constant 3 : index
    %c0_11 = arith.constant 0 : index
    %c0_12 = arith.constant 0 : index
    %16 = vector.load %arg3[%c3, %c0_11, %c0_12] : memref<4x4x128xbf16, #tpu.memory_space<vmem>>, vector<1x4x128xbf16>
    %17 = vector.shape_cast %16 : vector<1x4x128xbf16> to vector<4x128xbf16>
    %cst_13 = arith.constant dense<0.000000e+00> : vector<1096x128xf32>
    %18 = tpu.matmul %0, %17, %cst_13 {dimension_numbers = #tpu.dot_dimension_numbers<[1], [0], [0], [1], [0, 0, 1, 1], [], []>} : vector<1096x4xbf16>, vector<4x128xbf16>, vector<1096x128xf32> -> vector<1096x128xf32>
    %c1062_i32 = arith.constant 1062 : i32
    %19 = tpu.dynamic_rotate %18 by %c1062_i32 dim 0 : vector<1096x128xf32>, i32 -> vector<1096x128xf32>
    %20 = arith.addf %15, %19 : vector<1096x128xf32>
    %c0_14 = arith.constant 0 : index
    %c0_15 = arith.constant 0 : index
    %21 = vector.load %arg4[%c0_14, %c0_15] : memref<1x128xf32, #tpu.memory_space<vmem>>, vector<1x128xf32>
    %22 = vector.broadcast %21 : vector<1x128xf32> to vector<1096x128xf32>
    %23 = arith.addf %20, %22 : vector<1096x128xf32>
    %cst_16 = arith.constant 0.000000e+00 : f32
    %24 = vector.broadcast %cst_16 : f32 to vector<1096x128xf32>
    %25 = arith.cmpf oge, %23, %24 : vector<1096x128xf32>
    %cst_17 = arith.constant 2.000000e-01 : f32
    %26 = vector.broadcast %cst_17 : f32 to vector<1096x128xf32>
    %27 = arith.mulf %26, %23 : vector<1096x128xf32>
    %28 = arith.select %25, %23, %27 : vector<1096x128xi1>, vector<1096x128xf32>
    %29 = arith.truncf %28 : vector<1096x128xf32> to vector<1096x128xbf16>
    %c0_18 = arith.constant 0 : index
    %c0_19 = arith.constant 0 : index
    %30 = vector.load %arg5[%c0_18, %c0_19] : memref<1096x128xbf16, #tpu.memory_space<vmem>>, vector<1096x128xbf16>
    tpu.vector_store %arg5[%c0_18, %c0_19], %29 {strides = array<i32>} : memref<1096x128xbf16, #tpu.memory_space<vmem>>, vector<1096x128xbf16>,
    return
  }
  func.func @transform_0(%arg0: i32, %arg1: i32) -> (i32, i32) {
    %c0_i32 = arith.constant 0 : i32
    %c0_i32_0 = arith.constant 0 : i32
    return %arg0, %c0_i32 : i32, i32
  }
  func.func @transform_1(%arg0: i32, %arg1: i32) -> (i32, i32, i32) {
    %c0_i32 = arith.constant 0 : i32
    %c0_i32_0 = arith.constant 0 : i32
    %c0_i32_1 = arith.constant 0 : i32
    return %c0_i32, %c0_i32_0, %arg1 : i32, i32, i32
  }
  func.func @transform_2(%arg0: i32, %arg1: i32) -> (i32, i32) {
    %c0_i32 = arith.constant 0 : i32
    %c0_i32_0 = arith.constant 0 : i32
    return %c0_i32, %arg1 : i32, i32
  }
  func.func @transform_3(%arg0: i32, %arg1: i32) -> (i32, i32) {
    %c0_i32 = arith.constant 0 : i32
    return %arg0, %arg1 : i32, i32
  }
}

module attributes {stable_mosaic.version = 11 : i64} {
  func.func @_conv_s2d_stats_kernel(%arg0: i32, %arg1: i32, %arg2: memref<592x32xbf16, #tpu.memory_space<vmem>>, %arg3: memref<4x32x128xbf16, #tpu.memory_space<vmem>>, %arg4: memref<1x128xf32, #tpu.memory_space<vmem>>, %arg5: memref<592x1xf32, #tpu.memory_space<vmem>>, %arg6: memref<592x128xbf16, #tpu.memory_space<vmem>>, %arg7: memref<8x128xf32, #tpu.memory_space<vmem>>, %arg8: memref<8x128xf32, #tpu.memory_space<vmem>>) attributes {dimension_semantics = [#tpu.dimension_semantics<parallel>, #tpu.dimension_semantics<parallel>], iteration_bounds = array<i64: 1, 1>, scalar_prefetch = 0 : i64, scratch_operands = 0 : i64, tpu.core_type = #tpu.core_type<tc>, window_params = [{transform_indices = @transform_0, window_bounds = array<i64: 592, 32>}, {transform_indices = @transform_1, window_bounds = array<i64: 4, 32, 128>}, {transform_indices = @transform_2, window_bounds = array<i64: 1, 128>}, {transform_indices = @transform_3, window_bounds = array<i64: 592, 1>}, {transform_indices = @transform_4, window_bounds = array<i64: 592, 128>}, {transform_indices = @transform_5, window_bounds = array<i64: 8, 128>}, {transform_indices = @transform_6, window_bounds = array<i64: 8, 128>}]} {
    %c0 = arith.constant 0 : index
    %c0_0 = arith.constant 0 : index
    %0 = vector.load %arg2[%c0, %c0_0] : memref<592x32xbf16, #tpu.memory_space<vmem>>, vector<592x32xbf16>
    %cst = arith.constant 0.000000e+00 : f32
    %1 = vector.broadcast %cst : f32 to vector<592x128xf32>
    %c0_1 = arith.constant 0 : index
    %c0_2 = arith.constant 0 : index
    %c0_3 = arith.constant 0 : index
    %2 = vector.load %arg3[%c0_1, %c0_2, %c0_3] : memref<4x32x128xbf16, #tpu.memory_space<vmem>>, vector<1x32x128xbf16>
    %3 = vector.shape_cast %2 : vector<1x32x128xbf16> to vector<32x128xbf16>
    %cst_4 = arith.constant dense<0.000000e+00> : vector<592x128xf32>
    %4 = tpu.matmul %0, %3, %cst_4 {dimension_numbers = #tpu.dot_dimension_numbers<[1], [0], [0], [1], [0, 0, 1, 1], [], []>} : vector<592x32xbf16>, vector<32x128xbf16>, vector<592x128xf32> -> vector<592x128xf32>
    %5 = arith.addf %1, %4 : vector<592x128xf32>
    %c1 = arith.constant 1 : index
    %c0_5 = arith.constant 0 : index
    %c0_6 = arith.constant 0 : index
    %6 = vector.load %arg3[%c1, %c0_5, %c0_6] : memref<4x32x128xbf16, #tpu.memory_space<vmem>>, vector<1x32x128xbf16>
    %7 = vector.shape_cast %6 : vector<1x32x128xbf16> to vector<32x128xbf16>
    %cst_7 = arith.constant dense<0.000000e+00> : vector<592x128xf32>
    %8 = tpu.matmul %0, %7, %cst_7 {dimension_numbers = #tpu.dot_dimension_numbers<[1], [0], [0], [1], [0, 0, 1, 1], [], []>} : vector<592x32xbf16>, vector<32x128xbf16>, vector<592x128xf32> -> vector<592x128xf32>
    %c591_i32 = arith.constant 591 : i32
    %9 = tpu.dynamic_rotate %8 by %c591_i32 dim 0 : vector<592x128xf32>, i32 -> vector<592x128xf32>
    %10 = arith.addf %5, %9 : vector<592x128xf32>
    %c2 = arith.constant 2 : index
    %c0_8 = arith.constant 0 : index
    %c0_9 = arith.constant 0 : index
    %11 = vector.load %arg3[%c2, %c0_8, %c0_9] : memref<4x32x128xbf16, #tpu.memory_space<vmem>>, vector<1x32x128xbf16>
    %12 = vector.shape_cast %11 : vector<1x32x128xbf16> to vector<32x128xbf16>
    %cst_10 = arith.constant dense<0.000000e+00> : vector<592x128xf32>
    %13 = tpu.matmul %0, %12, %cst_10 {dimension_numbers = #tpu.dot_dimension_numbers<[1], [0], [0], [1], [0, 0, 1, 1], [], []>} : vector<592x32xbf16>, vector<32x128xbf16>, vector<592x128xf32> -> vector<592x128xf32>
    %c575_i32 = arith.constant 575 : i32
    %14 = tpu.dynamic_rotate %13 by %c575_i32 dim 0 : vector<592x128xf32>, i32 -> vector<592x128xf32>
    %15 = arith.addf %10, %14 : vector<592x128xf32>
    %c3 = arith.constant 3 : index
    %c0_11 = arith.constant 0 : index
    %c0_12 = arith.constant 0 : index
    %16 = vector.load %arg3[%c3, %c0_11, %c0_12] : memref<4x32x128xbf16, #tpu.memory_space<vmem>>, vector<1x32x128xbf16>
    %17 = vector.shape_cast %16 : vector<1x32x128xbf16> to vector<32x128xbf16>
    %cst_13 = arith.constant dense<0.000000e+00> : vector<592x128xf32>
    %18 = tpu.matmul %0, %17, %cst_13 {dimension_numbers = #tpu.dot_dimension_numbers<[1], [0], [0], [1], [0, 0, 1, 1], [], []>} : vector<592x32xbf16>, vector<32x128xbf16>, vector<592x128xf32> -> vector<592x128xf32>
    %c574_i32 = arith.constant 574 : i32
    %19 = tpu.dynamic_rotate %18 by %c574_i32 dim 0 : vector<592x128xf32>, i32 -> vector<592x128xf32>
    %20 = arith.addf %15, %19 : vector<592x128xf32>
    %c0_14 = arith.constant 0 : index
    %c0_15 = arith.constant 0 : index
    %21 = vector.load %arg4[%c0_14, %c0_15] : memref<1x128xf32, #tpu.memory_space<vmem>>, vector<1x128xf32>
    %22 = vector.broadcast %21 : vector<1x128xf32> to vector<592x128xf32>
    %23 = arith.addf %20, %22 : vector<592x128xf32>
    %c0_16 = arith.constant 0 : index
    %c0_17 = arith.constant 0 : index
    %24 = vector.load %arg5[%c0_16, %c0_17] : memref<592x1xf32, #tpu.memory_space<vmem>>, vector<592x1xf32>
    %25 = vector.broadcast %24 : vector<592x1xf32> to vector<592x128xf32>
    %26 = arith.mulf %23, %25 : vector<592x128xf32>
    %cst_18 = arith.constant dense<0.000000e+00> : vector<128xf32>
    %27 = vector.multi_reduction <add>, %26, %cst_18 [0] : vector<592x128xf32> to vector<128xf32>
    %28 = vector.shape_cast %27 : vector<128xf32> to vector<1x128xf32>
    %29 = vector.shape_cast %28 : vector<1x128xf32> to vector<1x128xf32>
    %30 = vector.broadcast %29 : vector<1x128xf32> to vector<8x128xf32>
    %c0_19 = arith.constant 0 : index
    %c0_20 = arith.constant 0 : index
    %31 = vector.load %arg7[%c0_19, %c0_20] : memref<8x128xf32, #tpu.memory_space<vmem>>, vector<8x128xf32>
    tpu.vector_store %arg7[%c0_19, %c0_20], %30 {strides = array<i32>} : memref<8x128xf32, #tpu.memory_space<vmem>>, vector<8x128xf32>,
    %32 = arith.mulf %23, %26 : vector<592x128xf32>
    %cst_21 = arith.constant dense<0.000000e+00> : vector<128xf32>
    %33 = vector.multi_reduction <add>, %32, %cst_21 [0] : vector<592x128xf32> to vector<128xf32>
    %34 = vector.shape_cast %33 : vector<128xf32> to vector<1x128xf32>
    %35 = vector.shape_cast %34 : vector<1x128xf32> to vector<1x128xf32>
    %36 = vector.broadcast %35 : vector<1x128xf32> to vector<8x128xf32>
    %c0_22 = arith.constant 0 : index
    %c0_23 = arith.constant 0 : index
    %37 = vector.load %arg8[%c0_22, %c0_23] : memref<8x128xf32, #tpu.memory_space<vmem>>, vector<8x128xf32>
    tpu.vector_store %arg8[%c0_22, %c0_23], %36 {strides = array<i32>} : memref<8x128xf32, #tpu.memory_space<vmem>>, vector<8x128xf32>,
    %38 = arith.truncf %23 : vector<592x128xf32> to vector<592x128xbf16>
    %c0_24 = arith.constant 0 : index
    %c0_25 = arith.constant 0 : index
    %39 = vector.load %arg6[%c0_24, %c0_25] : memref<592x128xbf16, #tpu.memory_space<vmem>>, vector<592x128xbf16>
    tpu.vector_store %arg6[%c0_24, %c0_25], %38 {strides = array<i32>} : memref<592x128xbf16, #tpu.memory_space<vmem>>, vector<592x128xbf16>,
    return
  }
  func.func @transform_0(%arg0: i32, %arg1: i32) -> (i32, i32) {
    %c0_i32 = arith.constant 0 : i32
    %c0_i32_0 = arith.constant 0 : i32
    return %arg0, %c0_i32 : i32, i32
  }
  func.func @transform_1(%arg0: i32, %arg1: i32) -> (i32, i32, i32) {
    %c0_i32 = arith.constant 0 : i32
    %c0_i32_0 = arith.constant 0 : i32
    %c0_i32_1 = arith.constant 0 : i32
    return %c0_i32, %c0_i32_0, %arg1 : i32, i32, i32
  }
  func.func @transform_2(%arg0: i32, %arg1: i32) -> (i32, i32) {
    %c0_i32 = arith.constant 0 : i32
    %c0_i32_0 = arith.constant 0 : i32
    return %c0_i32, %arg1 : i32, i32
  }
  func.func @transform_3(%arg0: i32, %arg1: i32) -> (i32, i32) {
    %c0_i32 = arith.constant 0 : i32
    %c0_i32_0 = arith.constant 0 : i32
    return %arg0, %c0_i32 : i32, i32
  }
  func.func @transform_4(%arg0: i32, %arg1: i32) -> (i32, i32) {
    %c0_i32 = arith.constant 0 : i32
    return %arg0, %arg1 : i32, i32
  }
  func.func @transform_5(%arg0: i32, %arg1: i32) -> (i32, i32) {
    %c0_i32 = arith.constant 0 : i32
    return %arg0, %arg1 : i32, i32
  }
  func.func @transform_6(%arg0: i32, %arg1: i32) -> (i32, i32) {
    %c0_i32 = arith.constant 0 : i32
    return %arg0, %arg1 : i32, i32
  }
}

module attributes {stable_mosaic.version = 11 : i64} {
  func.func @_affine_leaky_kernel(%arg0: i32, %arg1: memref<592x128xbf16, #tpu.memory_space<vmem>>, %arg2: memref<1x128xf32, #tpu.memory_space<vmem>>, %arg3: memref<1x128xf32, #tpu.memory_space<vmem>>, %arg4: memref<592x128xbf16, #tpu.memory_space<vmem>>) attributes {dimension_semantics = [#tpu.dimension_semantics<parallel>], iteration_bounds = array<i64: 1>, scalar_prefetch = 0 : i64, scratch_operands = 0 : i64, tpu.core_type = #tpu.core_type<tc>, window_params = [{transform_indices = @transform_0, window_bounds = array<i64: 592, 128>}, {pipeline_mode = #tpu.pipeline_mode<synchronous>, transform_indices = @transform_1, window_bounds = array<i64: 1, 128>}, {pipeline_mode = #tpu.pipeline_mode<synchronous>, transform_indices = @transform_2, window_bounds = array<i64: 1, 128>}, {transform_indices = @transform_3, window_bounds = array<i64: 592, 128>}]} {
    %c0 = arith.constant 0 : index
    %c0_0 = arith.constant 0 : index
    %0 = vector.load %arg1[%c0, %c0_0] : memref<592x128xbf16, #tpu.memory_space<vmem>>, vector<592x128xbf16>
    %1 = arith.extf %0 : vector<592x128xbf16> to vector<592x128xf32>
    %c0_1 = arith.constant 0 : index
    %c0_2 = arith.constant 0 : index
    %2 = vector.load %arg2[%c0_1, %c0_2] : memref<1x128xf32, #tpu.memory_space<vmem>>, vector<1x128xf32>
    %3 = vector.broadcast %2 : vector<1x128xf32> to vector<592x128xf32>
    %4 = arith.mulf %1, %3 : vector<592x128xf32>
    %c0_3 = arith.constant 0 : index
    %c0_4 = arith.constant 0 : index
    %5 = vector.load %arg3[%c0_3, %c0_4] : memref<1x128xf32, #tpu.memory_space<vmem>>, vector<1x128xf32>
    %6 = vector.broadcast %5 : vector<1x128xf32> to vector<592x128xf32>
    %7 = arith.addf %4, %6 : vector<592x128xf32>
    %cst = arith.constant 0.000000e+00 : f32
    %8 = vector.broadcast %cst : f32 to vector<592x128xf32>
    %9 = arith.cmpf oge, %7, %8 : vector<592x128xf32>
    %cst_5 = arith.constant 2.000000e-01 : f32
    %10 = vector.broadcast %cst_5 : f32 to vector<592x128xf32>
    %11 = arith.mulf %10, %7 : vector<592x128xf32>
    %12 = arith.select %9, %7, %11 : vector<592x128xi1>, vector<592x128xf32>
    %13 = arith.truncf %12 : vector<592x128xf32> to vector<592x128xbf16>
    %c0_6 = arith.constant 0 : index
    %c0_7 = arith.constant 0 : index
    %14 = vector.load %arg4[%c0_6, %c0_7] : memref<592x128xbf16, #tpu.memory_space<vmem>>, vector<592x128xbf16>
    tpu.vector_store %arg4[%c0_6, %c0_7], %13 {strides = array<i32>} : memref<592x128xbf16, #tpu.memory_space<vmem>>, vector<592x128xbf16>,
    return
  }
  func.func @transform_0(%arg0: i32) -> (i32, i32) {
    %c0_i32 = arith.constant 0 : i32
    %c0_i32_0 = arith.constant 0 : i32
    return %arg0, %c0_i32 : i32, i32
  }
  func.func @transform_1(%arg0: i32) -> (i32, i32) {
    %c0_i32 = arith.constant 0 : i32
    %c0_i32_0 = arith.constant 0 : i32
    %c0_i32_1 = arith.constant 0 : i32
    return %c0_i32, %c0_i32_0 : i32, i32
  }
  func.func @transform_2(%arg0: i32) -> (i32, i32) {
    %c0_i32 = arith.constant 0 : i32
    %c0_i32_0 = arith.constant 0 : i32
    %c0_i32_1 = arith.constant 0 : i32
    return %c0_i32, %c0_i32_0 : i32, i32
  }
  func.func @transform_3(%arg0: i32) -> (i32, i32) {
    %c0_i32 = arith.constant 0 : i32
    %c0_i32_0 = arith.constant 0 : i32
    return %arg0, %c0_i32 : i32, i32
  }
}

module attributes {stable_mosaic.version = 11 : i64} {
  func.func @_conv_s2d_stats_kernel(%arg0: i32, %arg1: i32, %arg2: memref<176x64xbf16, #tpu.memory_space<vmem>>, %arg3: memref<4x64x128xbf16, #tpu.memory_space<vmem>>, %arg4: memref<1x128xf32, #tpu.memory_space<vmem>>, %arg5: memref<176x1xf32, #tpu.memory_space<vmem>>, %arg6: memref<176x128xbf16, #tpu.memory_space<vmem>>, %arg7: memref<8x128xf32, #tpu.memory_space<vmem>>, %arg8: memref<8x128xf32, #tpu.memory_space<vmem>>) attributes {dimension_semantics = [#tpu.dimension_semantics<parallel>, #tpu.dimension_semantics<parallel>], iteration_bounds = array<i64: 1, 1>, scalar_prefetch = 0 : i64, scratch_operands = 0 : i64, tpu.core_type = #tpu.core_type<tc>, window_params = [{transform_indices = @transform_0, window_bounds = array<i64: 176, 64>}, {transform_indices = @transform_1, window_bounds = array<i64: 4, 64, 128>}, {transform_indices = @transform_2, window_bounds = array<i64: 1, 128>}, {transform_indices = @transform_3, window_bounds = array<i64: 176, 1>}, {transform_indices = @transform_4, window_bounds = array<i64: 176, 128>}, {transform_indices = @transform_5, window_bounds = array<i64: 8, 128>}, {transform_indices = @transform_6, window_bounds = array<i64: 8, 128>}]} {
    %c0 = arith.constant 0 : index
    %c0_0 = arith.constant 0 : index
    %0 = vector.load %arg2[%c0, %c0_0] : memref<176x64xbf16, #tpu.memory_space<vmem>>, vector<176x64xbf16>
    %cst = arith.constant 0.000000e+00 : f32
    %1 = vector.broadcast %cst : f32 to vector<176x128xf32>
    %c0_1 = arith.constant 0 : index
    %c0_2 = arith.constant 0 : index
    %c0_3 = arith.constant 0 : index
    %2 = vector.load %arg3[%c0_1, %c0_2, %c0_3] : memref<4x64x128xbf16, #tpu.memory_space<vmem>>, vector<1x64x128xbf16>
    %3 = vector.shape_cast %2 : vector<1x64x128xbf16> to vector<64x128xbf16>
    %cst_4 = arith.constant dense<0.000000e+00> : vector<176x128xf32>
    %4 = tpu.matmul %0, %3, %cst_4 {dimension_numbers = #tpu.dot_dimension_numbers<[1], [0], [0], [1], [0, 0, 1, 1], [], []>} : vector<176x64xbf16>, vector<64x128xbf16>, vector<176x128xf32> -> vector<176x128xf32>
    %5 = arith.addf %1, %4 : vector<176x128xf32>
    %c1 = arith.constant 1 : index
    %c0_5 = arith.constant 0 : index
    %c0_6 = arith.constant 0 : index
    %6 = vector.load %arg3[%c1, %c0_5, %c0_6] : memref<4x64x128xbf16, #tpu.memory_space<vmem>>, vector<1x64x128xbf16>
    %7 = vector.shape_cast %6 : vector<1x64x128xbf16> to vector<64x128xbf16>
    %cst_7 = arith.constant dense<0.000000e+00> : vector<176x128xf32>
    %8 = tpu.matmul %0, %7, %cst_7 {dimension_numbers = #tpu.dot_dimension_numbers<[1], [0], [0], [1], [0, 0, 1, 1], [], []>} : vector<176x64xbf16>, vector<64x128xbf16>, vector<176x128xf32> -> vector<176x128xf32>
    %c175_i32 = arith.constant 175 : i32
    %9 = tpu.dynamic_rotate %8 by %c175_i32 dim 0 : vector<176x128xf32>, i32 -> vector<176x128xf32>
    %10 = arith.addf %5, %9 : vector<176x128xf32>
    %c2 = arith.constant 2 : index
    %c0_8 = arith.constant 0 : index
    %c0_9 = arith.constant 0 : index
    %11 = vector.load %arg3[%c2, %c0_8, %c0_9] : memref<4x64x128xbf16, #tpu.memory_space<vmem>>, vector<1x64x128xbf16>
    %12 = vector.shape_cast %11 : vector<1x64x128xbf16> to vector<64x128xbf16>
    %cst_10 = arith.constant dense<0.000000e+00> : vector<176x128xf32>
    %13 = tpu.matmul %0, %12, %cst_10 {dimension_numbers = #tpu.dot_dimension_numbers<[1], [0], [0], [1], [0, 0, 1, 1], [], []>} : vector<176x64xbf16>, vector<64x128xbf16>, vector<176x128xf32> -> vector<176x128xf32>
    %c167_i32 = arith.constant 167 : i32
    %14 = tpu.dynamic_rotate %13 by %c167_i32 dim 0 : vector<176x128xf32>, i32 -> vector<176x128xf32>
    %15 = arith.addf %10, %14 : vector<176x128xf32>
    %c3 = arith.constant 3 : index
    %c0_11 = arith.constant 0 : index
    %c0_12 = arith.constant 0 : index
    %16 = vector.load %arg3[%c3, %c0_11, %c0_12] : memref<4x64x128xbf16, #tpu.memory_space<vmem>>, vector<1x64x128xbf16>
    %17 = vector.shape_cast %16 : vector<1x64x128xbf16> to vector<64x128xbf16>
    %cst_13 = arith.constant dense<0.000000e+00> : vector<176x128xf32>
    %18 = tpu.matmul %0, %17, %cst_13 {dimension_numbers = #tpu.dot_dimension_numbers<[1], [0], [0], [1], [0, 0, 1, 1], [], []>} : vector<176x64xbf16>, vector<64x128xbf16>, vector<176x128xf32> -> vector<176x128xf32>
    %c166_i32 = arith.constant 166 : i32
    %19 = tpu.dynamic_rotate %18 by %c166_i32 dim 0 : vector<176x128xf32>, i32 -> vector<176x128xf32>
    %20 = arith.addf %15, %19 : vector<176x128xf32>
    %c0_14 = arith.constant 0 : index
    %c0_15 = arith.constant 0 : index
    %21 = vector.load %arg4[%c0_14, %c0_15] : memref<1x128xf32, #tpu.memory_space<vmem>>, vector<1x128xf32>
    %22 = vector.broadcast %21 : vector<1x128xf32> to vector<176x128xf32>
    %23 = arith.addf %20, %22 : vector<176x128xf32>
    %c0_16 = arith.constant 0 : index
    %c0_17 = arith.constant 0 : index
    %24 = vector.load %arg5[%c0_16, %c0_17] : memref<176x1xf32, #tpu.memory_space<vmem>>, vector<176x1xf32>
    %25 = vector.broadcast %24 : vector<176x1xf32> to vector<176x128xf32>
    %26 = arith.mulf %23, %25 : vector<176x128xf32>
    %cst_18 = arith.constant dense<0.000000e+00> : vector<128xf32>
    %27 = vector.multi_reduction <add>, %26, %cst_18 [0] : vector<176x128xf32> to vector<128xf32>
    %28 = vector.shape_cast %27 : vector<128xf32> to vector<1x128xf32>
    %29 = vector.shape_cast %28 : vector<1x128xf32> to vector<1x128xf32>
    %30 = vector.broadcast %29 : vector<1x128xf32> to vector<8x128xf32>
    %c0_19 = arith.constant 0 : index
    %c0_20 = arith.constant 0 : index
    %31 = vector.load %arg7[%c0_19, %c0_20] : memref<8x128xf32, #tpu.memory_space<vmem>>, vector<8x128xf32>
    tpu.vector_store %arg7[%c0_19, %c0_20], %30 {strides = array<i32>} : memref<8x128xf32, #tpu.memory_space<vmem>>, vector<8x128xf32>,
    %32 = arith.mulf %23, %26 : vector<176x128xf32>
    %cst_21 = arith.constant dense<0.000000e+00> : vector<128xf32>
    %33 = vector.multi_reduction <add>, %32, %cst_21 [0] : vector<176x128xf32> to vector<128xf32>
    %34 = vector.shape_cast %33 : vector<128xf32> to vector<1x128xf32>
    %35 = vector.shape_cast %34 : vector<1x128xf32> to vector<1x128xf32>
    %36 = vector.broadcast %35 : vector<1x128xf32> to vector<8x128xf32>
    %c0_22 = arith.constant 0 : index
    %c0_23 = arith.constant 0 : index
    %37 = vector.load %arg8[%c0_22, %c0_23] : memref<8x128xf32, #tpu.memory_space<vmem>>, vector<8x128xf32>
    tpu.vector_store %arg8[%c0_22, %c0_23], %36 {strides = array<i32>} : memref<8x128xf32, #tpu.memory_space<vmem>>, vector<8x128xf32>,
    %38 = arith.truncf %23 : vector<176x128xf32> to vector<176x128xbf16>
    %c0_24 = arith.constant 0 : index
    %c0_25 = arith.constant 0 : index
    %39 = vector.load %arg6[%c0_24, %c0_25] : memref<176x128xbf16, #tpu.memory_space<vmem>>, vector<176x128xbf16>
    tpu.vector_store %arg6[%c0_24, %c0_25], %38 {strides = array<i32>} : memref<176x128xbf16, #tpu.memory_space<vmem>>, vector<176x128xbf16>,
    return
  }
  func.func @transform_0(%arg0: i32, %arg1: i32) -> (i32, i32) {
    %c0_i32 = arith.constant 0 : i32
    %c0_i32_0 = arith.constant 0 : i32
    return %arg0, %c0_i32 : i32, i32
  }
  func.func @transform_1(%arg0: i32, %arg1: i32) -> (i32, i32, i32) {
    %c0_i32 = arith.constant 0 : i32
    %c0_i32_0 = arith.constant 0 : i32
    %c0_i32_1 = arith.constant 0 : i32
    return %c0_i32, %c0_i32_0, %arg1 : i32, i32, i32
  }
  func.func @transform_2(%arg0: i32, %arg1: i32) -> (i32, i32) {
    %c0_i32 = arith.constant 0 : i32
    %c0_i32_0 = arith.constant 0 : i32
    return %c0_i32, %arg1 : i32, i32
  }
  func.func @transform_3(%arg0: i32, %arg1: i32) -> (i32, i32) {
    %c0_i32 = arith.constant 0 : i32
    %c0_i32_0 = arith.constant 0 : i32
    return %arg0, %c0_i32 : i32, i32
  }
  func.func @transform_4(%arg0: i32, %arg1: i32) -> (i32, i32) {
    %c0_i32 = arith.constant 0 : i32
    return %arg0, %arg1 : i32, i32
  }
  func.func @transform_5(%arg0: i32, %arg1: i32) -> (i32, i32) {
    %c0_i32 = arith.constant 0 : i32
    return %arg0, %arg1 : i32, i32
  }
  func.func @transform_6(%arg0: i32, %arg1: i32) -> (i32, i32) {
    %c0_i32 = arith.constant 0 : i32
    return %arg0, %arg1 : i32, i32
  }
}

module attributes {stable_mosaic.version = 11 : i64} {
  func.func @_affine_leaky_kernel(%arg0: i32, %arg1: memref<176x128xbf16, #tpu.memory_space<vmem>>, %arg2: memref<1x128xf32, #tpu.memory_space<vmem>>, %arg3: memref<1x128xf32, #tpu.memory_space<vmem>>, %arg4: memref<176x128xbf16, #tpu.memory_space<vmem>>) attributes {dimension_semantics = [#tpu.dimension_semantics<parallel>], iteration_bounds = array<i64: 1>, scalar_prefetch = 0 : i64, scratch_operands = 0 : i64, tpu.core_type = #tpu.core_type<tc>, window_params = [{transform_indices = @transform_0, window_bounds = array<i64: 176, 128>}, {pipeline_mode = #tpu.pipeline_mode<synchronous>, transform_indices = @transform_1, window_bounds = array<i64: 1, 128>}, {pipeline_mode = #tpu.pipeline_mode<synchronous>, transform_indices = @transform_2, window_bounds = array<i64: 1, 128>}, {transform_indices = @transform_3, window_bounds = array<i64: 176, 128>}]} {
    %c0 = arith.constant 0 : index
    %c0_0 = arith.constant 0 : index
    %0 = vector.load %arg1[%c0, %c0_0] : memref<176x128xbf16, #tpu.memory_space<vmem>>, vector<176x128xbf16>
    %1 = arith.extf %0 : vector<176x128xbf16> to vector<176x128xf32>
    %c0_1 = arith.constant 0 : index
    %c0_2 = arith.constant 0 : index
    %2 = vector.load %arg2[%c0_1, %c0_2] : memref<1x128xf32, #tpu.memory_space<vmem>>, vector<1x128xf32>
    %3 = vector.broadcast %2 : vector<1x128xf32> to vector<176x128xf32>
    %4 = arith.mulf %1, %3 : vector<176x128xf32>
    %c0_3 = arith.constant 0 : index
    %c0_4 = arith.constant 0 : index
    %5 = vector.load %arg3[%c0_3, %c0_4] : memref<1x128xf32, #tpu.memory_space<vmem>>, vector<1x128xf32>
    %6 = vector.broadcast %5 : vector<1x128xf32> to vector<176x128xf32>
    %7 = arith.addf %4, %6 : vector<176x128xf32>
    %cst = arith.constant 0.000000e+00 : f32
    %8 = vector.broadcast %cst : f32 to vector<176x128xf32>
    %9 = arith.cmpf oge, %7, %8 : vector<176x128xf32>
    %cst_5 = arith.constant 2.000000e-01 : f32
    %10 = vector.broadcast %cst_5 : f32 to vector<176x128xf32>
    %11 = arith.mulf %10, %7 : vector<176x128xf32>
    %12 = arith.select %9, %7, %11 : vector<176x128xi1>, vector<176x128xf32>
    %13 = arith.truncf %12 : vector<176x128xf32> to vector<176x128xbf16>
    %c0_6 = arith.constant 0 : index
    %c0_7 = arith.constant 0 : index
    %14 = vector.load %arg4[%c0_6, %c0_7] : memref<176x128xbf16, #tpu.memory_space<vmem>>, vector<176x128xbf16>
    tpu.vector_store %arg4[%c0_6, %c0_7], %13 {strides = array<i32>} : memref<176x128xbf16, #tpu.memory_space<vmem>>, vector<176x128xbf16>,
    return
  }
  func.func @transform_0(%arg0: i32) -> (i32, i32) {
    %c0_i32 = arith.constant 0 : i32
    %c0_i32_0 = arith.constant 0 : i32
    return %arg0, %c0_i32 : i32, i32
  }
  func.func @transform_1(%arg0: i32) -> (i32, i32) {
    %c0_i32 = arith.constant 0 : i32
    %c0_i32_0 = arith.constant 0 : i32
    %c0_i32_1 = arith.constant 0 : i32
    return %c0_i32, %c0_i32_0 : i32, i32
  }
  func.func @transform_2(%arg0: i32) -> (i32, i32) {
    %c0_i32 = arith.constant 0 : i32
    %c0_i32_0 = arith.constant 0 : i32
    %c0_i32_1 = arith.constant 0 : i32
    return %c0_i32, %c0_i32_0 : i32, i32
  }
  func.func @transform_3(%arg0: i32) -> (i32, i32) {
    %c0_i32 = arith.constant 0 : i32
    %c0_i32_0 = arith.constant 0 : i32
    return %arg0, %c0_i32 : i32, i32
  }
}

module attributes {stable_mosaic.version = 11 : i64} {
  func.func @_conv_s2d_stats_kernel(%arg0: i32, %arg1: i32, %arg2: memref<64x128xbf16, #tpu.memory_space<vmem>>, %arg3: memref<4x128x128xbf16, #tpu.memory_space<vmem>>, %arg4: memref<1x128xf32, #tpu.memory_space<vmem>>, %arg5: memref<64x1xf32, #tpu.memory_space<vmem>>, %arg6: memref<64x128xbf16, #tpu.memory_space<vmem>>, %arg7: memref<8x128xf32, #tpu.memory_space<vmem>>, %arg8: memref<8x128xf32, #tpu.memory_space<vmem>>) attributes {dimension_semantics = [#tpu.dimension_semantics<parallel>, #tpu.dimension_semantics<parallel>], iteration_bounds = array<i64: 1, 1>, scalar_prefetch = 0 : i64, scratch_operands = 0 : i64, tpu.core_type = #tpu.core_type<tc>, window_params = [{transform_indices = @transform_0, window_bounds = array<i64: 64, 128>}, {transform_indices = @transform_1, window_bounds = array<i64: 4, 128, 128>}, {transform_indices = @transform_2, window_bounds = array<i64: 1, 128>}, {transform_indices = @transform_3, window_bounds = array<i64: 64, 1>}, {transform_indices = @transform_4, window_bounds = array<i64: 64, 128>}, {transform_indices = @transform_5, window_bounds = array<i64: 8, 128>}, {transform_indices = @transform_6, window_bounds = array<i64: 8, 128>}]} {
    %c0 = arith.constant 0 : index
    %c0_0 = arith.constant 0 : index
    %0 = vector.load %arg2[%c0, %c0_0] : memref<64x128xbf16, #tpu.memory_space<vmem>>, vector<64x128xbf16>
    %cst = arith.constant 0.000000e+00 : f32
    %1 = vector.broadcast %cst : f32 to vector<64x128xf32>
    %c0_1 = arith.constant 0 : index
    %c0_2 = arith.constant 0 : index
    %c0_3 = arith.constant 0 : index
    %2 = vector.load %arg3[%c0_1, %c0_2, %c0_3] : memref<4x128x128xbf16, #tpu.memory_space<vmem>>, vector<1x128x128xbf16>
    %3 = vector.shape_cast %2 : vector<1x128x128xbf16> to vector<128x128xbf16>
    %cst_4 = arith.constant dense<0.000000e+00> : vector<64x128xf32>
    %4 = tpu.matmul %0, %3, %cst_4 {dimension_numbers = #tpu.dot_dimension_numbers<[1], [0], [0], [1], [0, 0, 1, 1], [], []>} : vector<64x128xbf16>, vector<128x128xbf16>, vector<64x128xf32> -> vector<64x128xf32>
    %5 = arith.addf %1, %4 : vector<64x128xf32>
    %c1 = arith.constant 1 : index
    %c0_5 = arith.constant 0 : index
    %c0_6 = arith.constant 0 : index
    %6 = vector.load %arg3[%c1, %c0_5, %c0_6] : memref<4x128x128xbf16, #tpu.memory_space<vmem>>, vector<1x128x128xbf16>
    %7 = vector.shape_cast %6 : vector<1x128x128xbf16> to vector<128x128xbf16>
    %cst_7 = arith.constant dense<0.000000e+00> : vector<64x128xf32>
    %8 = tpu.matmul %0, %7, %cst_7 {dimension_numbers = #tpu.dot_dimension_numbers<[1], [0], [0], [1], [0, 0, 1, 1], [], []>} : vector<64x128xbf16>, vector<128x128xbf16>, vector<64x128xf32> -> vector<64x128xf32>
    %c63_i32 = arith.constant 63 : i32
    %9 = tpu.dynamic_rotate %8 by %c63_i32 dim 0 : vector<64x128xf32>, i32 -> vector<64x128xf32>
    %10 = arith.addf %5, %9 : vector<64x128xf32>
    %c2 = arith.constant 2 : index
    %c0_8 = arith.constant 0 : index
    %c0_9 = arith.constant 0 : index
    %11 = vector.load %arg3[%c2, %c0_8, %c0_9] : memref<4x128x128xbf16, #tpu.memory_space<vmem>>, vector<1x128x128xbf16>
    %12 = vector.shape_cast %11 : vector<1x128x128xbf16> to vector<128x128xbf16>
    %cst_10 = arith.constant dense<0.000000e+00> : vector<64x128xf32>
    %13 = tpu.matmul %0, %12, %cst_10 {dimension_numbers = #tpu.dot_dimension_numbers<[1], [0], [0], [1], [0, 0, 1, 1], [], []>} : vector<64x128xbf16>, vector<128x128xbf16>, vector<64x128xf32> -> vector<64x128xf32>
    %c59_i32 = arith.constant 59 : i32
    %14 = tpu.dynamic_rotate %13 by %c59_i32 dim 0 : vector<64x128xf32>, i32 -> vector<64x128xf32>
    %15 = arith.addf %10, %14 : vector<64x128xf32>
    %c3 = arith.constant 3 : index
    %c0_11 = arith.constant 0 : index
    %c0_12 = arith.constant 0 : index
    %16 = vector.load %arg3[%c3, %c0_11, %c0_12] : memref<4x128x128xbf16, #tpu.memory_space<vmem>>, vector<1x128x128xbf16>
    %17 = vector.shape_cast %16 : vector<1x128x128xbf16> to vector<128x128xbf16>
    %cst_13 = arith.constant dense<0.000000e+00> : vector<64x128xf32>
    %18 = tpu.matmul %0, %17, %cst_13 {dimension_numbers = #tpu.dot_dimension_numbers<[1], [0], [0], [1], [0, 0, 1, 1], [], []>} : vector<64x128xbf16>, vector<128x128xbf16>, vector<64x128xf32> -> vector<64x128xf32>
    %c58_i32 = arith.constant 58 : i32
    %19 = tpu.dynamic_rotate %18 by %c58_i32 dim 0 : vector<64x128xf32>, i32 -> vector<64x128xf32>
    %20 = arith.addf %15, %19 : vector<64x128xf32>
    %c0_14 = arith.constant 0 : index
    %c0_15 = arith.constant 0 : index
    %21 = vector.load %arg4[%c0_14, %c0_15] : memref<1x128xf32, #tpu.memory_space<vmem>>, vector<1x128xf32>
    %22 = vector.broadcast %21 : vector<1x128xf32> to vector<64x128xf32>
    %23 = arith.addf %20, %22 : vector<64x128xf32>
    %c0_16 = arith.constant 0 : index
    %c0_17 = arith.constant 0 : index
    %24 = vector.load %arg5[%c0_16, %c0_17] : memref<64x1xf32, #tpu.memory_space<vmem>>, vector<64x1xf32>
    %25 = vector.broadcast %24 : vector<64x1xf32> to vector<64x128xf32>
    %26 = arith.mulf %23, %25 : vector<64x128xf32>
    %cst_18 = arith.constant dense<0.000000e+00> : vector<128xf32>
    %27 = vector.multi_reduction <add>, %26, %cst_18 [0] : vector<64x128xf32> to vector<128xf32>
    %28 = vector.shape_cast %27 : vector<128xf32> to vector<1x128xf32>
    %29 = vector.shape_cast %28 : vector<1x128xf32> to vector<1x128xf32>
    %30 = vector.broadcast %29 : vector<1x128xf32> to vector<8x128xf32>
    %c0_19 = arith.constant 0 : index
    %c0_20 = arith.constant 0 : index
    %31 = vector.load %arg7[%c0_19, %c0_20] : memref<8x128xf32, #tpu.memory_space<vmem>>, vector<8x128xf32>
    tpu.vector_store %arg7[%c0_19, %c0_20], %30 {strides = array<i32>} : memref<8x128xf32, #tpu.memory_space<vmem>>, vector<8x128xf32>,
    %32 = arith.mulf %23, %26 : vector<64x128xf32>
    %cst_21 = arith.constant dense<0.000000e+00> : vector<128xf32>
    %33 = vector.multi_reduction <add>, %32, %cst_21 [0] : vector<64x128xf32> to vector<128xf32>
    %34 = vector.shape_cast %33 : vector<128xf32> to vector<1x128xf32>
    %35 = vector.shape_cast %34 : vector<1x128xf32> to vector<1x128xf32>
    %36 = vector.broadcast %35 : vector<1x128xf32> to vector<8x128xf32>
    %c0_22 = arith.constant 0 : index
    %c0_23 = arith.constant 0 : index
    %37 = vector.load %arg8[%c0_22, %c0_23] : memref<8x128xf32, #tpu.memory_space<vmem>>, vector<8x128xf32>
    tpu.vector_store %arg8[%c0_22, %c0_23], %36 {strides = array<i32>} : memref<8x128xf32, #tpu.memory_space<vmem>>, vector<8x128xf32>,
    %38 = arith.truncf %23 : vector<64x128xf32> to vector<64x128xbf16>
    %c0_24 = arith.constant 0 : index
    %c0_25 = arith.constant 0 : index
    %39 = vector.load %arg6[%c0_24, %c0_25] : memref<64x128xbf16, #tpu.memory_space<vmem>>, vector<64x128xbf16>
    tpu.vector_store %arg6[%c0_24, %c0_25], %38 {strides = array<i32>} : memref<64x128xbf16, #tpu.memory_space<vmem>>, vector<64x128xbf16>,
    return
  }
  func.func @transform_0(%arg0: i32, %arg1: i32) -> (i32, i32) {
    %c0_i32 = arith.constant 0 : i32
    %c0_i32_0 = arith.constant 0 : i32
    return %arg0, %c0_i32 : i32, i32
  }
  func.func @transform_1(%arg0: i32, %arg1: i32) -> (i32, i32, i32) {
    %c0_i32 = arith.constant 0 : i32
    %c0_i32_0 = arith.constant 0 : i32
    %c0_i32_1 = arith.constant 0 : i32
    return %c0_i32, %c0_i32_0, %arg1 : i32, i32, i32
  }
  func.func @transform_2(%arg0: i32, %arg1: i32) -> (i32, i32) {
    %c0_i32 = arith.constant 0 : i32
    %c0_i32_0 = arith.constant 0 : i32
    return %c0_i32, %arg1 : i32, i32
  }
  func.func @transform_3(%arg0: i32, %arg1: i32) -> (i32, i32) {
    %c0_i32 = arith.constant 0 : i32
    %c0_i32_0 = arith.constant 0 : i32
    return %arg0, %c0_i32 : i32, i32
  }
  func.func @transform_4(%arg0: i32, %arg1: i32) -> (i32, i32) {
    %c0_i32 = arith.constant 0 : i32
    return %arg0, %arg1 : i32, i32
  }
  func.func @transform_5(%arg0: i32, %arg1: i32) -> (i32, i32) {
    %c0_i32 = arith.constant 0 : i32
    return %arg0, %arg1 : i32, i32
  }
  func.func @transform_6(%arg0: i32, %arg1: i32) -> (i32, i32) {
    %c0_i32 = arith.constant 0 : i32
    return %arg0, %arg1 : i32, i32
  }
}

module attributes {stable_mosaic.version = 11 : i64} {
  func.func @_affine_leaky_kernel(%arg0: i32, %arg1: memref<64x128xbf16, #tpu.memory_space<vmem>>, %arg2: memref<1x128xf32, #tpu.memory_space<vmem>>, %arg3: memref<1x128xf32, #tpu.memory_space<vmem>>, %arg4: memref<64x128xbf16, #tpu.memory_space<vmem>>) attributes {dimension_semantics = [#tpu.dimension_semantics<parallel>], iteration_bounds = array<i64: 1>, scalar_prefetch = 0 : i64, scratch_operands = 0 : i64, tpu.core_type = #tpu.core_type<tc>, window_params = [{transform_indices = @transform_0, window_bounds = array<i64: 64, 128>}, {pipeline_mode = #tpu.pipeline_mode<synchronous>, transform_indices = @transform_1, window_bounds = array<i64: 1, 128>}, {pipeline_mode = #tpu.pipeline_mode<synchronous>, transform_indices = @transform_2, window_bounds = array<i64: 1, 128>}, {transform_indices = @transform_3, window_bounds = array<i64: 64, 128>}]} {
    %c0 = arith.constant 0 : index
    %c0_0 = arith.constant 0 : index
    %0 = vector.load %arg1[%c0, %c0_0] : memref<64x128xbf16, #tpu.memory_space<vmem>>, vector<64x128xbf16>
    %1 = arith.extf %0 : vector<64x128xbf16> to vector<64x128xf32>
    %c0_1 = arith.constant 0 : index
    %c0_2 = arith.constant 0 : index
    %2 = vector.load %arg2[%c0_1, %c0_2] : memref<1x128xf32, #tpu.memory_space<vmem>>, vector<1x128xf32>
    %3 = vector.broadcast %2 : vector<1x128xf32> to vector<64x128xf32>
    %4 = arith.mulf %1, %3 : vector<64x128xf32>
    %c0_3 = arith.constant 0 : index
    %c0_4 = arith.constant 0 : index
    %5 = vector.load %arg3[%c0_3, %c0_4] : memref<1x128xf32, #tpu.memory_space<vmem>>, vector<1x128xf32>
    %6 = vector.broadcast %5 : vector<1x128xf32> to vector<64x128xf32>
    %7 = arith.addf %4, %6 : vector<64x128xf32>
    %cst = arith.constant 0.000000e+00 : f32
    %8 = vector.broadcast %cst : f32 to vector<64x128xf32>
    %9 = arith.cmpf oge, %7, %8 : vector<64x128xf32>
    %cst_5 = arith.constant 2.000000e-01 : f32
    %10 = vector.broadcast %cst_5 : f32 to vector<64x128xf32>
    %11 = arith.mulf %10, %7 : vector<64x128xf32>
    %12 = arith.select %9, %7, %11 : vector<64x128xi1>, vector<64x128xf32>
    %13 = arith.truncf %12 : vector<64x128xf32> to vector<64x128xbf16>
    %c0_6 = arith.constant 0 : index
    %c0_7 = arith.constant 0 : index
    %14 = vector.load %arg4[%c0_6, %c0_7] : memref<64x128xbf16, #tpu.memory_space<vmem>>, vector<64x128xbf16>
    tpu.vector_store %arg4[%c0_6, %c0_7], %13 {strides = array<i32>} : memref<64x128xbf16, #tpu.memory_space<vmem>>, vector<64x128xbf16>,
    return
  }
  func.func @transform_0(%arg0: i32) -> (i32, i32) {
    %c0_i32 = arith.constant 0 : i32
    %c0_i32_0 = arith.constant 0 : i32
    return %arg0, %c0_i32 : i32, i32
  }
  func.func @transform_1(%arg0: i32) -> (i32, i32) {
    %c0_i32 = arith.constant 0 : i32
    %c0_i32_0 = arith.constant 0 : i32
    %c0_i32_1 = arith.constant 0 : i32
    return %c0_i32, %c0_i32_0 : i32, i32
  }
  func.func @transform_2(%arg0: i32) -> (i32, i32) {
    %c0_i32 = arith.constant 0 : i32
    %c0_i32_0 = arith.constant 0 : i32
    %c0_i32_1 = arith.constant 0 : i32
    return %c0_i32, %c0_i32_0 : i32, i32
  }
  func.func @transform_3(%arg0: i32) -> (i32, i32) {
    %c0_i32 = arith.constant 0 : i32
    %c0_i32_0 = arith.constant 0 : i32
    return %arg0, %c0_i32 : i32, i32
  }
}

module attributes {stable_mosaic.version = 11 : i64} {
  func.func @_head_kernel(%arg0: i32, %arg1: memref<8x1024xbf16, #tpu.memory_space<vmem>>, %arg2: memref<1024x128xbf16, #tpu.memory_space<vmem>>, %arg3: memref<1x128xf32, #tpu.memory_space<vmem>>, %arg4: memref<8x128xf32, #tpu.memory_space<vmem>>) attributes {dimension_semantics = [#tpu.dimension_semantics<arbitrary>], iteration_bounds = array<i64: 1>, scalar_prefetch = 0 : i64, scratch_operands = 0 : i64, tpu.core_type = #tpu.core_type<tc>, window_params = [{pipeline_mode = #tpu.pipeline_mode<synchronous>, transform_indices = @transform_0, window_bounds = array<i64: 8, 1024>}, {pipeline_mode = #tpu.pipeline_mode<synchronous>, transform_indices = @transform_1, window_bounds = array<i64: 1024, 128>}, {pipeline_mode = #tpu.pipeline_mode<synchronous>, transform_indices = @transform_2, window_bounds = array<i64: 1, 128>}, {pipeline_mode = #tpu.pipeline_mode<synchronous>, transform_indices = @transform_3, window_bounds = array<i64: 8, 128>}]} {
    %c0 = arith.constant 0 : index
    %c0_0 = arith.constant 0 : index
    %0 = vector.load %arg1[%c0, %c0_0] : memref<8x1024xbf16, #tpu.memory_space<vmem>>, vector<8x1024xbf16>
    %c0_1 = arith.constant 0 : index
    %c0_2 = arith.constant 0 : index
    %1 = vector.load %arg2[%c0_1, %c0_2] : memref<1024x128xbf16, #tpu.memory_space<vmem>>, vector<1024x128xbf16>
    %cst = arith.constant dense<0.000000e+00> : vector<8x128xf32>
    %2 = tpu.matmul %0, %1, %cst {dimension_numbers = #tpu.dot_dimension_numbers<[1], [0], [0], [1], [0, 0, 1, 1], [], []>} : vector<8x1024xbf16>, vector<1024x128xbf16>, vector<8x128xf32> -> vector<8x128xf32>
    %c0_3 = arith.constant 0 : index
    %c0_4 = arith.constant 0 : index
    %3 = vector.load %arg3[%c0_3, %c0_4] : memref<1x128xf32, #tpu.memory_space<vmem>>, vector<1x128xf32>
    %4 = vector.broadcast %3 : vector<1x128xf32> to vector<8x128xf32>
    %5 = arith.addf %2, %4 : vector<8x128xf32>
    %6 = arith.negf %5 : vector<8x128xf32>
    %7 = math.exp %6 : vector<8x128xf32>
    %cst_5 = arith.constant 1.000000e+00 : f32
    %8 = vector.broadcast %cst_5 : f32 to vector<8x128xf32>
    %9 = arith.addf %8, %7 : vector<8x128xf32>
    %10 = arith.divf %8, %9 : vector<8x128xf32>
    %c0_6 = arith.constant 0 : index
    %c0_7 = arith.constant 0 : index
    %11 = vector.load %arg4[%c0_6, %c0_7] : memref<8x128xf32, #tpu.memory_space<vmem>>, vector<8x128xf32>
    tpu.vector_store %arg4[%c0_6, %c0_7], %10 {strides = array<i32>} : memref<8x128xf32, #tpu.memory_space<vmem>>, vector<8x128xf32>,
    return
  }
  func.func @transform_0(%arg0: i32) -> (i32, i32) {
    %c0_i32 = arith.constant 0 : i32
    %c0_i32_0 = arith.constant 0 : i32
    %c0_i32_1 = arith.constant 0 : i32
    return %c0_i32, %c0_i32_0 : i32, i32
  }
  func.func @transform_1(%arg0: i32) -> (i32, i32) {
    %c0_i32 = arith.constant 0 : i32
    %c0_i32_0 = arith.constant 0 : i32
    %c0_i32_1 = arith.constant 0 : i32
    return %c0_i32, %c0_i32_0 : i32, i32
  }
  func.func @transform_2(%arg0: i32) -> (i32, i32) {
    %c0_i32 = arith.constant 0 : i32
    %c0_i32_0 = arith.constant 0 : i32
    %c0_i32_1 = arith.constant 0 : i32
    return %c0_i32, %c0_i32_0 : i32, i32
  }
  func.func @transform_3(%arg0: i32) -> (i32, i32) {
    %c0_i32 = arith.constant 0 : i32
    %c0_i32_0 = arith.constant 0 : i32
    %c0_i32_1 = arith.constant 0 : i32
    return %c0_i32, %c0_i32_0 : i32, i32
  }
}

</mosaic_0001>

<llo_original>
// kernel: discriminator_forward.8
$region0: #{discriminator_forward.8}
  #allocation0 [shape = 'u32[]', space=smem, size = 0x4, offset = 0x4, fixed_abs, tag = 'smem constant byte address 0x4 - core index']
  #allocation1 [shape = 'u32[72,128]{1,0:T(1,128)}', space=vmem, size = 0x9000, scoped, tag = 'internal scratch']
  %s0 = inlined_call_operand.vmem [shape: bf16[2192,4], index: 0, kind: input, shape index: {}]
  %s1 = inlined_call_operand.vmem [shape: bf16[4,4,128], index: 1, kind: input, shape index: {}]
  %s2 = inlined_call_operand.vmem [shape: f32[1,128], index: 2, kind: input, shape index: {}]
  %s3 = inlined_call_operand.vmem [shape: bf16[2192,128], index: 3, kind: output, shape index: {}]
  %s4 = sld [smem:[#allocation0]]
  $region45: #{discriminator_forward.8} parent=0
    _
  %s6 = ssub.s32 1, %s4
  %s7 = scalar_select 0, %s6, %s4
  loop: start=0, step=1, limit=4
  $region2: #{discriminator_forward.8} parent=0 // loop_pre_header
    _
  $region3: #{discriminator_forward.8} parent=0 // loop_header
    %s9 = sphi 0, %s13
    %p10 = scmp.ge.s32.totalorder %s9, 4
    %s16 = sphi 0, %s28
    %s17 = sphi 0, %s24
    %s18 = sphi 0, %s16
    %s19 = sphi 0, %s17
    %s20 = sphi 0, %s18
    %s21 = sphi 0, %s19
    %s31 = sphi 0, %s33
    %s34 = sphi 0, %s31
    %s35 = sphi 0, %s34
    %s51 = sphi 0, %s35
    %s57 = sphi 0, %s59
    %s60 = sphi 0, %s57
    %s61 = sphi 0, %s60
    %s77 = sphi 0, %s61
    %s83 = sphi 0, %s85
    %s86 = sphi 0, %s83
    %s87 = sphi 0, %s86
    %s103 = sphi 0, %s87
    %s111 = sphi 0, %s113
    %s114 = sphi 0, %s111
    %s115 = sphi 0, %s114
    %s131 = sphi 0, %s115
  $region4: #{discriminator_forward.8} parent=0 // loop_header_branch
    %12 = sbr.rel (%p10) target = $region8
  $region5: #{discriminator_forward.8} parent=0 // loop_body
    %s14 = ssub.s32 %s9, 1
    %s15 = ssub.s32 %s9, 2
    %s22 = sadd.s32 1, %s17
    %p23 = scmp.ge.s32.totalorder %s22, 1
    %s24 = scalar_select %p23, 0, %s22
    %s25 = sadd.s32 1, %s16
    %s26 = scalar_select %p23, %s25, %s16
    %p27 = scmp.ge.s32.totalorder %s26, 2
    %s28 = scalar_select %p27, 0, %s26
    %s29 = ssub.s32 %s16, %s28
    %p30 = scmp.eq.s32.totalorder %s29, 0
    %s32 = sadd.s32 %s31, 1
    %s33 = scalar_select %p30, %s31, %s32
    %p36 = pneg %p30
    %p37 = scmp.eq.s32.totalorder %s9, 1
    %p38 = por %p36, %p37
    %p39 = scmp.ne.s32.totalorder %s31, %s34
    %p40 = scmp.eq.s32.totalorder %s9, 0
    %p41 = por %p39, %p40
    %p42 = scmp.ne.s32.totalorder %s31, %s34
    %p43 = scmp.eq.s32.totalorder %s14, 1
    %p44 = por %p42, %p43
    %p45 = scmp.ne.s32.totalorder %s34, %s35
    %p46 = scmp.eq.s32.totalorder %s14, 0
    %p47 = por %p45, %p46
    %p48 = scmp.ne.s32.totalorder %s34, %s35
    %p49 = scmp.eq.s32.totalorder %s15, 1
    %p50 = por %p48, %p49
    %p52 = scmp.ne.s32.totalorder %s35, %s51
    %p53 = scmp.eq.s32.totalorder %s15, 0
    %p54 = por %p52, %p53
    %s55 = ssub.s32 %s17, %s24
    %p56 = scmp.eq.s32.totalorder %s55, 0
    %s58 = sadd.s32 %s57, 1
    %s59 = scalar_select %p56, %s57, %s58
    %p62 = pneg %p56
    %p63 = scmp.eq.s32.totalorder %s9, 1
    %p64 = por %p62, %p63
    %p65 = scmp.ne.s32.totalorder %s57, %s60
    %p66 = scmp.eq.s32.totalorder %s9, 0
    %p67 = por %p65, %p66
    %p68 = scmp.ne.s32.totalorder %s57, %s60
    %p69 = scmp.eq.s32.totalorder %s14, 1
    %p70 = por %p68, %p69
    %p71 = scmp.ne.s32.totalorder %s60, %s61
    %p72 = scmp.eq.s32.totalorder %s14, 0
    %p73 = por %p71, %p72
    %p74 = scmp.ne.s32.totalorder %s60, %s61
    %p75 = scmp.eq.s32.totalorder %s15, 1
    %p76 = por %p74, %p75
    %p78 = scmp.ne.s32.totalorder %s61, %s77
    %p79 = scmp.eq.s32.totalorder %s15, 0
    %p80 = por %p78, %p79
    %s81 = ssub.s32 %s17, %s24
    %p82 = scmp.eq.s32.totalorder %s81, 0
    %s84 = sadd.s32 %s83, 1
    %s85 = scalar_select %p82, %s83, %s84
    %p88 = pneg %p82
    %p89 = scmp.eq.s32.totalorder %s9, 1
    %p90 = por %p88, %p89
    %p91 = scmp.ne.s32.totalorder %s83, %s86
    %p92 = scmp.eq.s32.totalorder %s9, 0
    %p93 = por %p91, %p92
    %p94 = scmp.ne.s32.totalorder %s83, %s86
    %p95 = scmp.eq.s32.totalorder %s14, 1
    %p96 = por %p94, %p95
    %p97 = scmp.ne.s32.totalorder %s86, %s87
    %p98 = scmp.eq.s32.totalorder %s14, 0
    %p99 = por %p97, %p98
    %p100 = scmp.ne.s32.totalorder %s86, %s87
    %p101 = scmp.eq.s32.totalorder %s15, 1
    %p102 = por %p100, %p101
    %p104 = scmp.ne.s32.totalorder %s87, %s103
    %p105 = scmp.eq.s32.totalorder %s15, 0
    %p106 = por %p104, %p105
    %s107 = ssub.s32 %s16, %s28
    %s108 = ssub.s32 %s17, %s24
    %s109 = sor.u32 %s107, %s108
    %p110 = scmp.eq.s32.totalorder %s109, 0
    %s112 = sadd.s32 %s111, 1
    %s113 = scalar_select %p110, %s111, %s112
    %p116 = pneg %p110
    %p117 = scmp.eq.s32.totalorder %s9, 1
    %p118 = por %p116, %p117
    %p119 = scmp.ne.s32.totalorder %s111, %s114
    %p120 = scmp.eq.s32.totalorder %s9, 0
    %p121 = por %p119, %p120
    %p122 = scmp.ne.s32.totalorder %s111, %s114
    %p123 = scmp.eq.s32.totalorder %s14, 1
    %p124 = por %p122, %p123
    %p125 = scmp.ne.s32.totalorder %s114, %s115
    %p126 = scmp.eq.s32.totalorder %s14, 0
    %p127 = por %p125, %p126
    %p128 = scmp.ne.s32.totalorder %s114, %s115
    %p129 = scmp.eq.s32.totalorder %s15, 1
    %p130 = por %p128, %p129
    %p132 = scmp.ne.s32.totalorder %s115, %s131
    %p133 = scmp.eq.s32.totalorder %s15, 0
    %p134 = por %p132, %p133
    %p135 = scmp.le.s32.totalorder 1, %s9
    %p136 = scmp.lt.s32.totalorder %s9, 3
    %p137 = pnand %p135, %p136
    %p138 = pneg %p137
    // Predicated region
    $region9: #{discriminator_forward.8} parent=5 // pred_check
      _
    $region10: #{discriminator_forward.8} parent=5 // pred_check_branch
      %140 = sbr.rel (%p137) target = $region12
    $region11: #{discriminator_forward.8} parent=5 // pred_region
      %s141 = ssub.s32 %s9, 1
      // Predicated region
      $region13: #{discriminator_forward.8} parent=11 // pred_check
        %p142 = pneg %p73
      $region14: #{discriminator_forward.8} parent=11 // pred_check_branch
        %144 = sbr.rel (%p142) target = $region16
      $region15: #{discriminator_forward.8} parent=11 // pred_region
        %p145 = scmp.lt.s32.totalorder %s19, 0
        %s146 = scalar_select %p145, %s19, 0
        %s147 = smul.addr %s146, 2
        %s148 = scalar_lea.vmem %s1, %s147
      $region16: #{discriminator_forward.8} parent=11 // pred_fallthru
        _
      // Predicated region
      $region17: #{discriminator_forward.8} parent=11 // pred_check
        %p149 = pneg %p99
      $region18: #{discriminator_forward.8} parent=11 // pred_check_branch
        %151 = sbr.rel (%p149) target = $region20
      $region19: #{discriminator_forward.8} parent=11 // pred_region
        %p152 = scmp.lt.s32.totalorder %s19, 0
        %s153 = scalar_select %p152, %s19, 0
        %s154 = scalar_lea.vmem %s2, %s153
      $region20: #{discriminator_forward.8} parent=11 // pred_fallthru
        _
    $region12: #{discriminator_forward.8} parent=5 // pred_fallthru
      _
    %p155 = scmp.lt.s32.totalorder %s9, 2
    // Predicated region
    $region21: #{discriminator_forward.8} parent=5 // pred_check
      %p156 = pneg %p155
    $region22: #{discriminator_forward.8} parent=5 // pred_check_branch
      %158 = sbr.rel (%p156) target = $region24
    $region23: #{discriminator_forward.8} parent=5 // pred_region
      // Predicated region
      $region25: #{discriminator_forward.8} parent=23 // pred_check
        %p159 = pneg %p41
      $region26: #{discriminator_forward.8} parent=23 // pred_check_branch
        %161 = sbr.rel (%p159) target = $region28
      $region27: #{discriminator_forward.8} parent=23 // pred_region
        %s162 = smul.u32 137, %s16
        %p163 = scmp.lt.s32.totalorder %s162, 273
        %s164 = scalar_select %p163, %s162, 273
        %s165 = smul.addr %s164, 4
        %s166 = scalar_lea.vmem %s0, %s165
        %s167 = smul.u32 137, %s16
      $region28: #{discriminator_forward.8} parent=23 // pred_fallthru
        _
    $region24: #{discriminator_forward.8} parent=5 // pred_fallthru
      _
    %p168 = scmp.le.s32.totalorder 1, %s9
    %p169 = scmp.lt.s32.totalorder %s9, 3
    %p170 = pnand %p168, %p169
    %p171 = pneg %p170
    // Predicated region
    $region29: #{discriminator_forward.8} parent=5 // pred_check
      _
    $region30: #{discriminator_forward.8} parent=5 // pred_check_branch
      %173 = sbr.rel (%p170) target = $region32
    $region31: #{discriminator_forward.8} parent=5 // pred_region
      %s174 = ssub.s32 %s9, 1
      %s175 = smul.u32 137, %s18
      %p176 = scmp.lt.s32.totalorder %s175, 273
      %s177 = scalar_select %p176, %s175, 273
      %s178 = smul.addr %s177, 4
      %s179 = scalar_lea.vmem %s0, %s178
      %p180 = pneg %p47
      %p181 = pneg %p44
      %p182 = scmp.lt.s32.totalorder %s19, 0
      %s183 = scalar_select %p182, %s19, 0
      %s184 = smul.addr %s183, 2
      %s185 = scalar_lea.vmem %s1, %s184
      %p186 = pneg %p73
      %p187 = pneg %p70
      %p188 = scmp.lt.s32.totalorder %s19, 0
      %s189 = scalar_select %p188, %s19, 0
      %s190 = scalar_lea.vmem %s2, %s189
      %p191 = pneg %p99
      %p192 = pneg %p96
      %p193 = pneg %p127
      %p194 = pneg %p124
      %s195 = smul.u32 137, %s18
      %p196 = scmp.lt.s32.totalorder %s195, 273
      %s197 = scalar_select %p196, %s195, 273
      %p198 = scmp.lt.s32.totalorder %s19, 0
      %s199 = scalar_select %p198, %s19, 0
      %s200 = sadd.s32 %s199, %s197
      %s201 = smul.addr %s200, 4
      %s202 = scalar_lea.vmem %s3, %s201
      %s203 = smul.u32 137, %s18
      %p204 = scmp.lt.s32.totalorder %s203, 273
      %s205 = scalar_select %p204, %s203, 273
      %s206 = smul.addr %s205, 4
      %s207 = scalar_lea.vmem %s0, %s206
      %s208 = smul.u32 137, %s18
      %p209 = scmp.lt.s32.totalorder %s19, 0
      %s210 = scalar_select %p209, %s19, 0
      %s211 = smul.addr %s210, 2
      %s212 = scalar_lea.vmem %s1, %s211
      %p213 = scmp.lt.s32.totalorder %s19, 0
      %s214 = scalar_select %p213, %s19, 0
      %s215 = scalar_lea.vmem %s2, %s214
      %s216 = smul.u32 137, %s18
      %p217 = scmp.lt.s32.totalorder %s216, 273
      %s218 = scalar_select %p217, %s216, 273
      %p219 = scmp.lt.s32.totalorder %s19, 0
      %s220 = scalar_select %p219, %s19, 0
      %s221 = sadd.s32 %s220, %s218
      %s222 = smul.addr %s221, 4
      %s223 = scalar_lea.vmem %s3, %s222
      %s224 = smul.u32 137, %s18
      %v226 = vld [vmem:[%s207] sm:$0xf]
      %v227 = vld [vmem:[%s207 + $0x4] sm:$0xf]
      %v228 = vld [vmem:[%s207 + $0x8] sm:$0xf]
      %v229 = vld [vmem:[%s207 + $0xc] sm:$0xf]
      %v230 = vld [vmem:[%s207 + $0x10] sm:$0xf]
      %v231 = vld [vmem:[%s207 + $0x14] sm:$0xf]
      %v232 = vld [vmem:[%s207 + $0x18] sm:$0xf]
      %v233 = vld [vmem:[%s207 + $0x1c] sm:$0xf]
      %v234 = vld [vmem:[%s207 + $0x20] sm:$0xf]
      %v235 = vld [vmem:[%s207 + $0x24] sm:$0xf]
      %v236 = vld [vmem:[%s207 + $0x28] sm:$0xf]
      %v237 = vld [vmem:[%s207 + $0x2c] sm:$0xf]
      %v238 = vld [vmem:[%s207 + $0x30] sm:$0xf]
      %v239 = vld [vmem:[%s207 + $0x34] sm:$0xf]
      %v240 = vld [vmem:[%s207 + $0x38] sm:$0xf]
      %v241 = vld [vmem:[%s207 + $0x3c] sm:$0xf]
      %v242 = vld [vmem:[%s207 + $0x40] sm:$0xf]
      %v243 = vld [vmem:[%s207 + $0x44] sm:$0xf]
      %v244 = vld [vmem:[%s207 + $0x48] sm:$0xf]
      %v245 = vld [vmem:[%s207 + $0x4c] sm:$0xf]
      %v246 = vld [vmem:[%s207 + $0x50] sm:$0xf]
      %v247 = vld [vmem:[%s207 + $0x54] sm:$0xf]
      %v248 = vld [vmem:[%s207 + $0x58] sm:$0xf]
      %v249 = vld [vmem:[%s207 + $0x5c] sm:$0xf]
      %v250 = vld [vmem:[%s207 + $0x60] sm:$0xf]
      %v251 = vld [vmem:[%s207 + $0x64] sm:$0xf]
      %v252 = vld [vmem:[%s207 + $0x68] sm:$0xf]
      %v253 = vld [vmem:[%s207 + $0x6c] sm:$0xf]
      %v254 = vld [vmem:[%s207 + $0x70] sm:$0xf]
      %v255 = vld [vmem:[%s207 + $0x74] sm:$0xf]
      %v256 = vld [vmem:[%s207 + $0x78] sm:$0xf]
      %v257 = vld [vmem:[%s207 + $0x7c] sm:$0xf]
      %v258 = vld [vmem:[%s207 + $0x80] sm:$0xf]
      %v259 = vld [vmem:[%s207 + $0x84] sm:$0xf]
      %v260 = vld [vmem:[%s207 + $0x88] sm:$0xf]
      %v261 = vld [vmem:[%s207 + $0x8c] sm:$0xf]
      %v262 = vld [vmem:[%s207 + $0x90] sm:$0xf]
      %v263 = vld [vmem:[%s207 + $0x94] sm:$0xf]
      %v264 = vld [vmem:[%s207 + $0x98] sm:$0xf]
      %v265 = vld [vmem:[%s207 + $0x9c] sm:$0xf]
      %v266 = vld [vmem:[%s207 + $0xa0] sm:$0xf]
      %v267 = vld [vmem:[%s207 + $0xa4] sm:$0xf]
      %v268 = vld [vmem:[%s207 + $0xa8] sm:$0xf]
      %v269 = vld [vmem:[%s207 + $0xac] sm:$0xf]
      %v270 = vld [vmem:[%s207 + $0xb0] sm:$0xf]
      %v271 = vld [vmem:[%s207 + $0xb4] sm:$0xf]
      %v272 = vld [vmem:[%s207 + $0xb8] sm:$0xf]
      %v273 = vld [vmem:[%s207 + $0xbc] sm:$0xf]
      %v274 = vld [vmem:[%s207 + $0xc0] sm:$0xf]
      %v275 = vld [vmem:[%s207 + $0xc4] sm:$0xf]
      %v276 = vld [vmem:[%s207 + $0xc8] sm:$0xf]
      %v277 = vld [vmem:[%s207 + $0xcc] sm:$0xf]
      %v278 = vld [vmem:[%s207 + $0xd0] sm:$0xf]
      %v279 = vld [vmem:[%s207 + $0xd4] sm:$0xf]
      %v280 = vld [vmem:[%s207 + $0xd8] sm:$0xf]
      %v281 = vld [vmem:[%s207 + $0xdc] sm:$0xf]
      %v282 = vld [vmem:[%s207 + $0xe0] sm:$0xf]
      %v283 = vld [vmem:[%s207 + $0xe4] sm:$0xf]
      %v284 = vld [vmem:[%s207 + $0xe8] sm:$0xf]
      %v285 = vld [vmem:[%s207 + $0xec] sm:$0xf]
      %v286 = vld [vmem:[%s207 + $0xf0] sm:$0xf]
      %v287 = vld [vmem:[%s207 + $0xf4] sm:$0xf]
      %v288 = vld [vmem:[%s207 + $0xf8] sm:$0xf]
      %v289 = vld [vmem:[%s207 + $0xfc] sm:$0xf]
      %v290 = vld [vmem:[%s207 + $0x100] sm:$0xf]
      %v291 = vld [vmem:[%s207 + $0x104] sm:$0xf]
      %v292 = vld [vmem:[%s207 + $0x108] sm:$0xf]
      %v293 = vld [vmem:[%s207 + $0x10c] sm:$0xf]
      %v294 = vld [vmem:[%s207 + $0x110] sm:$0xf]
      %v295 = vld [vmem:[%s207 + $0x114] sm:$0xf]
      %v296 = vld [vmem:[%s207 + $0x118] sm:$0xf]
      %v297 = vld [vmem:[%s207 + $0x11c] sm:$0xf]
      %v298 = vld [vmem:[%s207 + $0x120] sm:$0xf]
      %v299 = vld [vmem:[%s207 + $0x124] sm:$0xf]
      %v300 = vld [vmem:[%s207 + $0x128] sm:$0xf]
      %v301 = vld [vmem:[%s207 + $0x12c] sm:$0xf]
      %v302 = vld [vmem:[%s207 + $0x130] sm:$0xf]
      %v303 = vld [vmem:[%s207 + $0x134] sm:$0xf]
      %v304 = vld [vmem:[%s207 + $0x138] sm:$0xf]
      %v305 = vld [vmem:[%s207 + $0x13c] sm:$0xf]
      %v306 = vld [vmem:[%s207 + $0x140] sm:$0xf]
      %v307 = vld [vmem:[%s207 + $0x144] sm:$0xf]
      %v308 = vld [vmem:[%s207 + $0x148] sm:$0xf]
      %v309 = vld [vmem:[%s207 + $0x14c] sm:$0xf]
      %v310 = vld [vmem:[%s207 + $0x150] sm:$0xf]
      %v311 = vld [vmem:[%s207 + $0x154] sm:$0xf]
      %v312 = vld [vmem:[%s207 + $0x158] sm:$0xf]
      %v313 = vld [vmem:[%s207 + $0x15c] sm:$0xf]
      %v314 = vld [vmem:[%s207 + $0x160] sm:$0xf]
      %v315 = vld [vmem:[%s207 + $0x164] sm:$0xf]
      %v316 = vld [vmem:[%s207 + $0x168] sm:$0xf]
      %v317 = vld [vmem:[%s207 + $0x16c] sm:$0xf]
      %v318 = vld [vmem:[%s207 + $0x170] sm:$0xf]
      %v319 = vld [vmem:[%s207 + $0x174] sm:$0xf]
      %v320 = vld [vmem:[%s207 + $0x178] sm:$0xf]
      %v321 = vld [vmem:[%s207 + $0x17c] sm:$0xf]
      %v322 = vld [vmem:[%s207 + $0x180] sm:$0xf]
      %v323 = vld [vmem:[%s207 + $0x184] sm:$0xf]
      %v324 = vld [vmem:[%s207 + $0x188] sm:$0xf]
      %v325 = vld [vmem:[%s207 + $0x18c] sm:$0xf]
      %v326 = vld [vmem:[%s207 + $0x190] sm:$0xf]
      %v327 = vld [vmem:[%s207 + $0x194] sm:$0xf]
      %v328 = vld [vmem:[%s207 + $0x198] sm:$0xf]
      %v329 = vld [vmem:[%s207 + $0x19c] sm:$0xf]
      %v330 = vld [vmem:[%s207 + $0x1a0] sm:$0xf]
      %v331 = vld [vmem:[%s207 + $0x1a4] sm:$0xf]
      %v332 = vld [vmem:[%s207 + $0x1a8] sm:$0xf]
      %v333 = vld [vmem:[%s207 + $0x1ac] sm:$0xf]
      %v334 = vld [vmem:[%s207 + $0x1b0] sm:$0xf]
      %v335 = vld [vmem:[%s207 + $0x1b4] sm:$0xf]
      %v336 = vld [vmem:[%s207 + $0x1b8] sm:$0xf]
      %v337 = vld [vmem:[%s207 + $0x1bc] sm:$0xf]
      %v338 = vld [vmem:[%s207 + $0x1c0] sm:$0xf]
      %v339 = vld [vmem:[%s207 + $0x1c4] sm:$0xf]
      %v340 = vld [vmem:[%s207 + $0x1c8] sm:$0xf]
      %v341 = vld [vmem:[%s207 + $0x1cc] sm:$0xf]
      %v342 = vld [vmem:[%s207 + $0x1d0] sm:$0xf]
      %v343 = vld [vmem:[%s207 + $0x1d4] sm:$0xf]
      %v344 = vld [vmem:[%s207 + $0x1d8] sm:$0xf]
      %v345 = vld [vmem:[%s207 + $0x1dc] sm:$0xf]
      %v346 = vld [vmem:[%s207 + $0x1e0] sm:$0xf]
      %v347 = vld [vmem:[%s207 + $0x1e4] sm:$0xf]
      %v348 = vld [vmem:[%s207 + $0x1e8] sm:$0xf]
      %v349 = vld [vmem:[%s207 + $0x1ec] sm:$0xf]
      %v350 = vld [vmem:[%s207 + $0x1f0] sm:$0xf]
      %v351 = vld [vmem:[%s207 + $0x1f4] sm:$0xf]
      %v352 = vld [vmem:[%s207 + $0x1f8] sm:$0xf]
      %v353 = vld [vmem:[%s207 + $0x1fc] sm:$0xf]
      %v354 = vld [vmem:[%s207 + $0x200] sm:$0xf]
      %v355 = vld [vmem:[%s207 + $0x204] sm:$0xf]
      %v356 = vld [vmem:[%s207 + $0x208] sm:$0xf]
      %v357 = vld [vmem:[%s207 + $0x20c] sm:$0xf]
      %v358 = vld [vmem:[%s207 + $0x210] sm:$0xf]
      %v359 = vld [vmem:[%s207 + $0x214] sm:$0xf]
      %v360 = vld [vmem:[%s207 + $0x218] sm:$0xf]
      %v361 = vld [vmem:[%s207 + $0x21c] sm:$0xf]
      %v362 = vld [vmem:[%s207 + $0x220] sm:$0xf]
      %v363 = vld [vmem:[%s212] sm:$0x3]
      %s364 = scalar_lea.vmem %s212, 2
      %v365 = vld [vmem:[%s364] sm:$0x3]
      %v503 = vunpack.c.l.b16 %v226
      %v504 = vunpack.c.l.b16 %v227
      %v505 = vunpack.c.l.b16 %v228
      %v506 = vunpack.c.l.b16 %v229
      %v507 = vunpack.c.l.b16 %v230
      %v508 = vunpack.c.l.b16 %v231
      %v509 = vunpack.c.l.b16 %v232
      %v510 = vunpack.c.l.b16 %v233
      %v511 = vunpack.c.l.b16 %v234
      %v512 = vunpack.c.l.b16 %v235
      %v513 = vunpack.c.l.b16 %v236
      %v514 = vunpack.c.l.b16 %v237
      %v515 = vunpack.c.l.b16 %v238
      %v516 = vunpack.c.l.b16 %v239
      %v517 = vunpack.c.l.b16 %v240
      %v518 = vunpack.c.l.b16 %v241
      %v519 = vunpack.c.l.b16 %v242
      %v520 = vunpack.c.l.b16 %v243
      %v521 = vunpack.c.l.b16 %v244
      %v522 = vunpack.c.l.b16 %v245
      %v523 = vunpack.c.l.b16 %v246
      %v524 = vunpack.c.l.b16 %v247
      %v525 = vunpack.c.l.b16 %v248
      %v526 = vunpack.c.l.b16 %v249
      %v527 = vunpack.c.l.b16 %v250
      %v528 = vunpack.c.l.b16 %v251
      %v529 = vunpack.c.l.b16 %v252
      %v530 = vunpack.c.l.b16 %v253
      %v531 = vunpack.c.l.b16 %v254
      %v532 = vunpack.c.l.b16 %v255
      %v533 = vunpack.c.l.b16 %v256
      %v534 = vunpack.c.l.b16 %v257
      %v535 = vunpack.c.l.b16 %v258
      %v536 = vunpack.c.l.b16 %v259
      %v537 = vunpack.c.l.b16 %v260
      %v538 = vunpack.c.l.b16 %v261
      %v539 = vunpack.c.l.b16 %v262
      %v540 = vunpack.c.l.b16 %v263
      %v541 = vunpack.c.l.b16 %v264
      %v542 = vunpack.c.l.b16 %v265
      %v543 = vunpack.c.l.b16 %v266
      %v544 = vunpack.c.l.b16 %v267
      %v545 = vunpack.c.l.b16 %v268
      %v546 = vunpack.c.l.b16 %v269
      %v547 = vunpack.c.l.b16 %v270
      %v548 = vunpack.c.l.b16 %v271
      %v549 = vunpack.c.l.b16 %v272
      %v550 = vunpack.c.l.b16 %v273
      %v551 = vunpack.c.l.b16 %v274
      %v552 = vunpack.c.l.b16 %v275
      %v553 = vunpack.c.l.b16 %v276
      %v554 = vunpack.c.l.b16 %v277
      %v555 = vunpack.c.l.b16 %v278
      %v556 = vunpack.c.l.b16 %v279
      %v557 = vunpack.c.l.b16 %v280
      %v558 = vunpack.c.l.b16 %v281
      %v559 = vunpack.c.l.b16 %v282
      %v560 = vunpack.c.l.b16 %v283
      %v561 = vunpack.c.l.b16 %v284
      %v562 = vunpack.c.l.b16 %v285
      %v563 = vunpack.c.l.b16 %v286
      %v564 = vunpack.c.l.b16 %v287
      %v565 = vunpack.c.l.b16 %v288
      %v566 = vunpack.c.l.b16 %v289
      %v567 = vunpack.c.l.b16 %v290
      %v568 = vunpack.c.l.b16 %v291
      %v569 = vunpack.c.l.b16 %v292
      %v570 = vunpack.c.l.b16 %v293
      %v571 = vunpack.c.l.b16 %v294
      %v572 = vunpack.c.l.b16 %v295
      %v573 = vunpack.c.l.b16 %v296
      %v574 = vunpack.c.l.b16 %v297
      %v575 = vunpack.c.l.b16 %v298
      %v576 = vunpack.c.l.b16 %v299
      %v577 = vunpack.c.l.b16 %v300
      %v578 = vunpack.c.l.b16 %v301
      %v579 = vunpack.c.l.b16 %v302
      %v580 = vunpack.c.l.b16 %v303
      %v581 = vunpack.c.l.b16 %v304
      %v582 = vunpack.c.l.b16 %v305
      %v583 = vunpack.c.l.b16 %v306
      %v584 = vunpack.c.l.b16 %v307
      %v585 = vunpack.c.l.b16 %v308
      %v586 = vunpack.c.l.b16 %v309
      %v587 = vunpack.c.l.b16 %v310
      %v588 = vunpack.c.l.b16 %v311
      %v589 = vunpack.c.l.b16 %v312
      %v590 = vunpack.c.l.b16 %v313
      %v591 = vunpack.c.l.b16 %v314
      %v592 = vunpack.c.l.b16 %v315
      %v593 = vunpack.c.l.b16 %v316
      %v594 = vunpack.c.l.b16 %v317
      %v595 = vunpack.c.l.b16 %v318
      %v596 = vunpack.c.l.b16 %v319
      %v597 = vunpack.c.l.b16 %v320
      %v598 = vunpack.c.l.b16 %v321
      %v599 = vunpack.c.l.b16 %v322
      %v600 = vunpack.c.l.b16 %v323
      %v601 = vunpack.c.l.b16 %v324
      %v602 = vunpack.c.l.b16 %v325
      %v603 = vunpack.c.l.b16 %v326
      %v604 = vunpack.c.l.b16 %v327
      %v605 = vunpack.c.l.b16 %v328
      %v606 = vunpack.c.l.b16 %v329
      %v607 = vunpack.c.l.b16 %v330
      %v608 = vunpack.c.l.b16 %v331
      %v609 = vunpack.c.l.b16 %v332
      %v610 = vunpack.c.l.b16 %v333
      %v611 = vunpack.c.l.b16 %v334
      %v612 = vunpack.c.l.b16 %v335
      %v613 = vunpack.c.l.b16 %v336
      %v614 = vunpack.c.l.b16 %v337
      %v615 = vunpack.c.l.b16 %v338
      %v616 = vunpack.c.l.b16 %v339
      %v617 = vunpack.c.l.b16 %v340
      %v618 = vunpack.c.l.b16 %v341
      %v619 = vunpack.c.l.b16 %v342
      %v620 = vunpack.c.l.b16 %v343
      %v621 = vunpack.c.l.b16 %v344
      %v622 = vunpack.c.l.b16 %v345
      %v623 = vunpack.c.l.b16 %v346
      %v624 = vunpack.c.l.b16 %v347
      %v625 = vunpack.c.l.b16 %v348
      %v626 = vunpack.c.l.b16 %v349
      %v627 = vunpack.c.l.b16 %v350
      %v628 = vunpack.c.l.b16 %v351
      %v629 = vunpack.c.l.b16 %v352
      %v630 = vunpack.c.l.b16 %v353
      %v631 = vunpack.c.l.b16 %v354
      %v632 = vunpack.c.l.b16 %v355
      %v633 = vunpack.c.l.b16 %v356
      %v634 = vunpack.c.l.b16 %v357
      %v635 = vunpack.c.l.b16 %v358
      %v636 = vunpack.c.l.b16 %v359
      %v637 = vunpack.c.l.b16 %v360
      %v638 = vunpack.c.l.b16 %v361
      %v639 = vunpack.c.l.b16 %v362
      %v640 = vpack.c.b16 %v504, %v503
      %v641 = vpack.c.b16 %v506, %v505
      %v642 = vpack.c.b16 %v508, %v507
      %v643 = vpack.c.b16 %v510, %v509
      %v644 = vpack.c.b16 %v512, %v511
      %v645 = vpack.c.b16 %v514, %v513
      %v646 = vpack.c.b16 %v516, %v515
      %v647 = vpack.c.b16 %v518, %v517
      %v648 = vpack.c.b16 %v520, %v519
      %v649 = vpack.c.b16 %v522, %v521
      %v650 = vpack.c.b16 %v524, %v523
      %v651 = vpack.c.b16 %v526, %v525
      %v652 = vpack.c.b16 %v528, %v527
      %v653 = vpack.c.b16 %v530, %v529
      %v654 = vpack.c.b16 %v532, %v531
      %v655 = vpack.c.b16 %v534, %v533
      %v656 = vpack.c.b16 %v536, %v535
      %v657 = vpack.c.b16 %v538, %v537
      %v658 = vpack.c.b16 %v540, %v539
      %v659 = vpack.c.b16 %v542, %v541
      %v660 = vpack.c.b16 %v544, %v543
      %v661 = vpack.c.b16 %v546, %v545
      %v662 = vpack.c.b16 %v548, %v547
      %v663 = vpack.c.b16 %v550, %v549
      %v664 = vpack.c.b16 %v552, %v551
      %v665 = vpack.c.b16 %v554, %v553
      %v666 = vpack.c.b16 %v556, %v555
      %v667 = vpack.c.b16 %v558, %v557
      %v668 = vpack.c.b16 %v560, %v559
      %v669 = vpack.c.b16 %v562, %v561
      %v670 = vpack.c.b16 %v564, %v563
      %v671 = vpack.c.b16 %v566, %v565
      %v672 = vpack.c.b16 %v568, %v567
      %v673 = vpack.c.b16 %v570, %v569
      %v674 = vpack.c.b16 %v572, %v571
      %v675 = vpack.c.b16 %v574, %v573
      %v676 = vpack.c.b16 %v576, %v575
      %v677 = vpack.c.b16 %v578, %v577
      %v678 = vpack.c.b16 %v580, %v579
      %v679 = vpack.c.b16 %v582, %v581
      %v680 = vpack.c.b16 %v584, %v583
      %v681 = vpack.c.b16 %v586, %v585
      %v682 = vpack.c.b16 %v588, %v587
      %v683 = vpack.c.b16 %v590, %v589
      %v684 = vpack.c.b16 %v592, %v591
      %v685 = vpack.c.b16 %v594, %v593
      %v686 = vpack.c.b16 %v596, %v595
      %v687 = vpack.c.b16 %v598, %v597
      %v688 = vpack.c.b16 %v600, %v599
      %v689 = vpack.c.b16 %v602, %v601
      %v690 = vpack.c.b16 %v604, %v603
      %v691 = vpack.c.b16 %v606, %v605
      %v692 = vpack.c.b16 %v608, %v607
      %v693 = vpack.c.b16 %v610, %v609
      %v694 = vpack.c.b16 %v612, %v611
      %v695 = vpack.c.b16 %v614, %v613
      %v696 = vpack.c.b16 %v616, %v615
      %v697 = vpack.c.b16 %v618, %v617
      %v698 = vpack.c.b16 %v620, %v619
      %v699 = vpack.c.b16 %v622, %v621
      %v700 = vpack.c.b16 %v624, %v623
      %v701 = vpack.c.b16 %v626, %v625
      %v702 = vpack.c.b16 %v628, %v627
      %v703 = vpack.c.b16 %v630, %v629
      %v704 = vpack.c.b16 %v632, %v631
      %v705 = vpack.c.b16 %v634, %v633
      %v706 = vpack.c.b16 %v636, %v635
      %v707 = vpack.c.b16 %v638, %v637
      %v708 = vpack.c.b16 %v639, %v639
      %vm709 = vcmask 31744
      %v711 = vsel %vm709, %v640, 0
      %v714 = vsel %vm709, %v641, 0
      %v717 = vsel %vm709, %v642, 0
      %v720 = vsel %vm709, %v643, 0
      %v723 = vsel %vm709, %v644, 0
      %v726 = vsel %vm709, %v645, 0
      %v729 = vsel %vm709, %v646, 0
      %v732 = vsel %vm709, %v647, 0
      %v735 = vsel %vm709, %v648, 0
      %v738 = vsel %vm709, %v649, 0
      %v741 = vsel %vm709, %v650, 0
      %v744 = vsel %vm709, %v651, 0
      %v747 = vsel %vm709, %v652, 0
      %v750 = vsel %vm709, %v653, 0
      %v753 = vsel %vm709, %v654, 0
      %v756 = vsel %vm709, %v655, 0
      %v759 = vsel %vm709, %v656, 0
      %v762 = vsel %vm709, %v657, 0
      %v765 = vsel %vm709, %v658, 0
      %v768 = vsel %vm709, %v659, 0
      %v771 = vsel %vm709, %v660, 0
      %v774 = vsel %vm709, %v661, 0
      %v777 = vsel %vm709, %v662, 0
      %v780 = vsel %vm709, %v663, 0
      %v783 = vsel %vm709, %v664, 0
      %v786 = vsel %vm709, %v665, 0
      %v789 = vsel %vm709, %v666, 0
      %v792 = vsel %vm709, %v667, 0
      %v795 = vsel %vm709, %v668, 0
      %v798 = vsel %vm709, %v669, 0
      %v801 = vsel %vm709, %v670, 0
      %v804 = vsel %vm709, %v671, 0
      %v807 = vsel %vm709, %v672, 0
      %v810 = vsel %vm709, %v673, 0
      %v813 = vsel %vm709, %v674, 0
      %v816 = vsel %vm709, %v675, 0
      %v819 = vsel %vm709, %v676, 0
      %v822 = vsel %vm709, %v677, 0
      %v825 = vsel %vm709, %v678, 0
      %v828 = vsel %vm709, %v679, 0
      %v831 = vsel %vm709, %v680, 0
      %v834 = vsel %vm709, %v681, 0
      %v837 = vsel %vm709, %v682, 0
      %v840 = vsel %vm709, %v683, 0
      %v843 = vsel %vm709, %v684, 0
      %v846 = vsel %vm709, %v685, 0
      %v849 = vsel %vm709, %v686, 0
      %v852 = vsel %vm709, %v687, 0
      %v855 = vsel %vm709, %v688, 0
      %v858 = vsel %vm709, %v689, 0
      %v861 = vsel %vm709, %v690, 0
      %v864 = vsel %vm709, %v691, 0
      %v867 = vsel %vm709, %v692, 0
      %v870 = vsel %vm709, %v693, 0
      %v873 = vsel %vm709, %v694, 0
      %v876 = vsel %vm709, %v695, 0
      %v879 = vsel %vm709, %v696, 0
      %v882 = vsel %vm709, %v697, 0
      %v885 = vsel %vm709, %v698, 0
      %v888 = vsel %vm709, %v699, 0
      %v891 = vsel %vm709, %v700, 0
      %v894 = vsel %vm709, %v701, 0
      %v897 = vsel %vm709, %v702, 0
      %v900 = vsel %vm709, %v703, 0
      %v903 = vsel %vm709, %v704, 0
      %v906 = vsel %vm709, %v705, 0
      %v909 = vsel %vm709, %v706, 0
      %v912 = vsel %vm709, %v707, 0
      %v915 = vsel %vm709, %v708, 0
      %vm917 = vcmask 1041408
      %v919 = vsel %vm917, %v365, 0
      %921 = vmatpush.bf16.msra.mxu0 0
      %922 = vmatpush.bf16.msra.mxu0 0
      %923 = vmatpush.bf16.msra.mxu0 0
      %924 = vmatpush.bf16.msra.mxu0 0
      %925 = vmatpush.bf16.msra.mxu0 0
      %926 = vmatpush.bf16.msra.mxu0 0
      %927 = vmatpush.bf16.msra.mxu0 0
      %928 = vmatpush.bf16.msra.mxu0 %v919
      %929 = vmatmul.bf16.gmra.mxu0 %v711
      %v930 = vpop.f32.mrf.mxu0
      %v931 = vadd.f32 0.0, %v930
      %v932 = vpop.f32.mrf.mxu0
      %v933 = vadd.f32 0.0, %v932
      %934 = vmatmul.bf16.gmra.mxu0 %v714
      %v935 = vpop.f32.mrf.mxu0
      %v936 = vadd.f32 0.0, %v935
      %v937 = vpop.f32.mrf.mxu0
      %v938 = vadd.f32 0.0, %v937
      %939 = vmatmul.bf16.gmra.mxu0 %v717
      %v940 = vpop.f32.mrf.mxu0
      %v941 = vadd.f32 0.0, %v940
      %v942 = vpop.f32.mrf.mxu0
      %v943 = vadd.f32 0.0, %v942
      %944 = vmatmul.bf16.gmra.mxu0 %v720
      %v945 = vpop.f32.mrf.mxu0
      %v946 = vadd.f32 0.0, %v945
      %v947 = vpop.f32.mrf.mxu0
      %v948 = vadd.f32 0.0, %v947
      %949 = vmatmul.bf16.gmra.mxu0 %v723
      %v950 = vpop.f32.mrf.mxu0
      %v951 = vadd.f32 0.0, %v950
      %v952 = vpop.f32.mrf.mxu0
      %v953 = vadd.f32 0.0, %v952
      %954 = vmatmul.bf16.gmra.mxu0 %v726
      %v955 = vpop.f32.mrf.mxu0
      %v956 = vadd.f32 0.0, %v955
      %v957 = vpop.f32.mrf.mxu0
      %v958 = vadd.f32 0.0, %v957
      %959 = vmatmul.bf16.gmra.mxu0 %v729
      %v960 = vpop.f32.mrf.mxu0
      %v961 = vadd.f32 0.0, %v960
      %v962 = vpop.f32.mrf.mxu0
      %v963 = vadd.f32 0.0, %v962
      %964 = vmatmul.bf16.gmra.mxu0 %v732
      %v965 = vpop.f32.mrf.mxu0
      %v966 = vadd.f32 0.0, %v965
      %v967 = vpop.f32.mrf.mxu0
      %v968 = vadd.f32 0.0, %v967
      %969 = vmatmul.bf16.gmra.mxu0 %v735
      %v970 = vpop.f32.mrf.mxu0
      %v971 = vadd.f32 0.0, %v970
      %v972 = vpop.f32.mrf.mxu0
      %v973 = vadd.f32 0.0, %v972
      %974 = vmatmul.bf16.gmra.mxu0 %v738
      %v975 = vpop.f32.mrf.mxu0
      %v976 = vadd.f32 0.0, %v975
      %v977 = vpop.f32.mrf.mxu0
      %v978 = vadd.f32 0.0, %v977
      %979 = vmatmul.bf16.gmra.mxu0 %v741
      %v980 = vpop.f32.mrf.mxu0
      %v981 = vadd.f32 0.0, %v980
      %v982 = vpop.f32.mrf.mxu0
      %v983 = vadd.f32 0.0, %v982
      %984 = vmatmul.bf16.gmra.mxu0 %v744
      %v985 = vpop.f32.mrf.mxu0
      %v986 = vadd.f32 0.0, %v985
      %v987 = vpop.f32.mrf.mxu0
      %v988 = vadd.f32 0.0, %v987
      %989 = vmatmul.bf16.gmra.mxu0 %v747
      %v990 = vpop.f32.mrf.mxu0
      %v991 = vadd.f32 0.0, %v990
      %v992 = vpop.f32.mrf.mxu0
      %v993 = vadd.f32 0.0, %v992
      %994 = vmatmul.bf16.gmra.mxu0 %v750
      %v995 = vpop.f32.mrf.mxu0
      %v996 = vadd.f32 0.0, %v995
      %v997 = vpop.f32.mrf.mxu0
      %v998 = vadd.f32 0.0, %v997
      %999 = vmatmul.bf16.gmra.mxu0 %v753
      %v1000 = vpop.f32.mrf.mxu0
      %v1001 = vadd.f32 0.0, %v1000
      %v1002 = vpop.f32.mrf.mxu0
      %v1003 = vadd.f32 0.0, %v1002
      %1004 = vmatmul.bf16.gmra.mxu0 %v756
      %v1005 = vpop.f32.mrf.mxu0
      %v1006 = vadd.f32 0.0, %v1005
      %v1007 = vpop.f32.mrf.mxu0
      %v1008 = vadd.f32 0.0, %v1007
      %1009 = vmatmul.bf16.gmra.mxu0 %v759
      %v1010 = vpop.f32.mrf.mxu0
      %v1011 = vadd.f32 0.0, %v1010
      %v1012 = vpop.f32.mrf.mxu0
      %v1013 = vadd.f32 0.0, %v1012
      %1014 = vmatmul.bf16.gmra.mxu0 %v762
      %v1015 = vpop.f32.mrf.mxu0
      %v1016 = vadd.f32 0.0, %v1015
      %v1017 = vpop.f32.mrf.mxu0
      %v1018 = vadd.f32 0.0, %v1017
      %1019 = vmatmul.bf16.gmra.mxu0 %v765
      %v1020 = vpop.f32.mrf.mxu0
      %v1021 = vadd.f32 0.0, %v1020
      %v1022 = vpop.f32.mrf.mxu0
      %v1023 = vadd.f32 0.0, %v1022
      %1024 = vmatmul.bf16.gmra.mxu0 %v768
      %v1025 = vpop.f32.mrf.mxu0
      %v1026 = vadd.f32 0.0, %v1025
      %v1027 = vpop.f32.mrf.mxu0
      %v1028 = vadd.f32 0.0, %v1027
      %1029 = vmatmul.bf16.gmra.mxu0 %v771
      %v1030 = vpop.f32.mrf.mxu0
      %v1031 = vadd.f32 0.0, %v1030
      %v1032 = vpop.f32.mrf.mxu0
      %v1033 = vadd.f32 0.0, %v1032
      %1034 = vmatmul.bf16.gmra.mxu0 %v774
      %v1035 = vpop.f32.mrf.mxu0
      %v1036 = vadd.f32 0.0, %v1035
      %v1037 = vpop.f32.mrf.mxu0
      %v1038 = vadd.f32 0.0, %v1037
      %1039 = vmatmul.bf16.gmra.mxu0 %v777
      %v1040 = vpop.f32.mrf.mxu0
      %v1041 = vadd.f32 0.0, %v1040
      %v1042 = vpop.f32.mrf.mxu0
      %v1043 = vadd.f32 0.0, %v1042
      %1044 = vmatmul.bf16.gmra.mxu0 %v780
      %v1045 = vpop.f32.mrf.mxu0
      %v1046 = vadd.f32 0.0, %v1045
      %v1047 = vpop.f32.mrf.mxu0
      %v1048 = vadd.f32 0.0, %v1047
      %1049 = vmatmul.bf16.gmra.mxu0 %v783
      %v1050 = vpop.f32.mrf.mxu0
      %v1051 = vadd.f32 0.0, %v1050
      %v1052 = vpop.f32.mrf.mxu0
      %v1053 = vadd.f32 0.0, %v1052
      %1054 = vmatmul.bf16.gmra.mxu0 %v786
      %v1055 = vpop.f32.mrf.mxu0
      %v1056 = vadd.f32 0.0, %v1055
      %v1057 = vpop.f32.mrf.mxu0
      %v1058 = vadd.f32 0.0, %v1057
      %1059 = vmatmul.bf16.gmra.mxu0 %v789
      %v1060 = vpop.f32.mrf.mxu0
      %v1061 = vadd.f32 0.0, %v1060
      %v1062 = vpop.f32.mrf.mxu0
      %v1063 = vadd.f32 0.0, %v1062
      %1064 = vmatmul.bf16.gmra.mxu0 %v792
      %v1065 = vpop.f32.mrf.mxu0
      %v1066 = vadd.f32 0.0, %v1065
      %v1067 = vpop.f32.mrf.mxu0
      %v1068 = vadd.f32 0.0, %v1067
      %1069 = vmatmul.bf16.gmra.mxu0 %v795
      %v1070 = vpop.f32.mrf.mxu0
      %v1071 = vadd.f32 0.0, %v1070
      %v1072 = vpop.f32.mrf.mxu0
      %v1073 = vadd.f32 0.0, %v1072
      %1074 = vmatmul.bf16.gmra.mxu0 %v798
      %v1075 = vpop.f32.mrf.mxu0
      %v1076 = vadd.f32 0.0, %v1075
      %v1077 = vpop.f32.mrf.mxu0
      %v1078 = vadd.f32 0.0, %v1077
      %1079 = vmatmul.bf16.gmra.mxu0 %v801
      %v1080 = vpop.f32.mrf.mxu0
      %v1081 = vadd.f32 0.0, %v1080
      %v1082 = vpop.f32.mrf.mxu0
      %v1083 = vadd.f32 0.0, %v1082
      %1084 = vmatmul.bf16.gmra.mxu0 %v804
      %v1085 = vpop.f32.mrf.mxu0
      %v1086 = vadd.f32 0.0, %v1085
      %v1087 = vpop.f32.mrf.mxu0
      %v1088 = vadd.f32 0.0, %v1087
      %1089 = vmatmul.bf16.gmra.mxu0 %v807
      %v1090 = vpop.f32.mrf.mxu0
      %v1091 = vadd.f32 0.0, %v1090
      %v1092 = vpop.f32.mrf.mxu0
      %v1093 = vadd.f32 0.0, %v1092
      %1094 = vmatmul.bf16.gmra.mxu0 %v810
      %v1095 = vpop.f32.mrf.mxu0
      %v1096 = vadd.f32 0.0, %v1095
      %v1097 = vpop.f32.mrf.mxu0
      %v1098 = vadd.f32 0.0, %v1097
      %1099 = vmatmul.bf16.gmra.mxu0 %v813
      %v1100 = vpop.f32.mrf.mxu0
      %v1101 = vadd.f32 0.0, %v1100
      %v1102 = vpop.f32.mrf.mxu0
      %v1103 = vadd.f32 0.0, %v1102
      %1104 = vmatmul.bf16.gmra.mxu0 %v816
      %v1105 = vpop.f32.mrf.mxu0
      %v1106 = vadd.f32 0.0, %v1105
      %v1107 = vpop.f32.mrf.mxu0
      %v1108 = vadd.f32 0.0, %v1107
      %1109 = vmatmul.bf16.gmra.mxu0 %v819
      %v1110 = vpop.f32.mrf.mxu0
      %v1111 = vadd.f32 0.0, %v1110
      %v1112 = vpop.f32.mrf.mxu0
      %v1113 = vadd.f32 0.0, %v1112
      %1114 = vmatmul.bf16.gmra.mxu0 %v822
      %v1115 = vpop.f32.mrf.mxu0
      %v1116 = vadd.f32 0.0, %v1115
      %v1117 = vpop.f32.mrf.mxu0
      %v1118 = vadd.f32 0.0, %v1117
      %1119 = vmatmul.bf16.gmra.mxu0 %v825
      %v1120 = vpop.f32.mrf.mxu0
      %v1121 = vadd.f32 0.0, %v1120
      %v1122 = vpop.f32.mrf.mxu0
      %v1123 = vadd.f32 0.0, %v1122
      %1124 = vmatmul.bf16.gmra.mxu0 %v828
      %v1125 = vpop.f32.mrf.mxu0
      %v1126 = vadd.f32 0.0, %v1125
      %v1127 = vpop.f32.mrf.mxu0
      %v1128 = vadd.f32 0.0, %v1127
      %1129 = vmatmul.bf16.gmra.mxu0 %v831
      %v1130 = vpop.f32.mrf.mxu0
      %v1131 = vadd.f32 0.0, %v1130
      %v1132 = vpop.f32.mrf.mxu0
      %v1133 = vadd.f32 0.0, %v1132
      %1134 = vmatmul.bf16.gmra.mxu0 %v834
      %v1135 = vpop.f32.mrf.mxu0
      %v1136 = vadd.f32 0.0, %v1135
      %v1137 = vpop.f32.mrf.mxu0
      %v1138 = vadd.f32 0.0, %v1137
      %1139 = vmatmul.bf16.gmra.mxu0 %v837
      %v1140 = vpop.f32.mrf.mxu0
      %v1141 = vadd.f32 0.0, %v1140
      %v1142 = vpop.f32.mrf.mxu0
      %v1143 = vadd.f32 0.0, %v1142
      %1144 = vmatmul.bf16.gmra.mxu0 %v840
      %v1145 = vpop.f32.mrf.mxu0
      %v1146 = vadd.f32 0.0, %v1145
      %v1147 = vpop.f32.mrf.mxu0
      %v1148 = vadd.f32 0.0, %v1147
      %1149 = vmatmul.bf16.gmra.mxu0 %v843
      %v1150 = vpop.f32.mrf.mxu0
      %v1151 = vadd.f32 0.0, %v1150
      %v1152 = vpop.f32.mrf.mxu0
      %v1153 = vadd.f32 0.0, %v1152
      %1154 = vmatmul.bf16.gmra.mxu0 %v846
      %v1155 = vpop.f32.mrf.mxu0
      %v1156 = vadd.f32 0.0, %v1155
      %v1157 = vpop.f32.mrf.mxu0
      %v1158 = vadd.f32 0.0, %v1157
      %1159 = vmatmul.bf16.gmra.mxu0 %v849
      %v1160 = vpop.f32.mrf.mxu0
      %v1161 = vadd.f32 0.0, %v1160
      %v1162 = vpop.f32.mrf.mxu0
      %v1163 = vadd.f32 0.0, %v1162
      %1164 = vmatmul.bf16.gmra.mxu0 %v852
      %v1165 = vpop.f32.mrf.mxu0
      %v1166 = vadd.f32 0.0, %v1165
      %v1167 = vpop.f32.mrf.mxu0
      %v1168 = vadd.f32 0.0, %v1167
      %1169 = vmatmul.bf16.gmra.mxu0 %v855
      %v1170 = vpop.f32.mrf.mxu0
      %v1171 = vadd.f32 0.0, %v1170
      %v1172 = vpop.f32.mrf.mxu0
      %v1173 = vadd.f32 0.0, %v1172
      %1174 = vmatmul.bf16.gmra.mxu0 %v858
      %v1175 = vpop.f32.mrf.mxu0
      %v1176 = vadd.f32 0.0, %v1175
      %v1177 = vpop.f32.mrf.mxu0
      %v1178 = vadd.f32 0.0, %v1177
      %1179 = vmatmul.bf16.gmra.mxu0 %v861
      %v1180 = vpop.f32.mrf.mxu0
      %v1181 = vadd.f32 0.0, %v1180
      %v1182 = vpop.f32.mrf.mxu0
      %v1183 = vadd.f32 0.0, %v1182
      %1184 = vmatmul.bf16.gmra.mxu0 %v864
      %v1185 = vpop.f32.mrf.mxu0
      %v1186 = vadd.f32 0.0, %v1185
      %v1187 = vpop.f32.mrf.mxu0
      %v1188 = vadd.f32 0.0, %v1187
      %1189 = vmatmul.bf16.gmra.mxu0 %v867
      %v1190 = vpop.f32.mrf.mxu0
      %v1191 = vadd.f32 0.0, %v1190
      %v1192 = vpop.f32.mrf.mxu0
      %v1193 = vadd.f32 0.0, %v1192
      %1194 = vmatmul.bf16.gmra.mxu0 %v870
      %v1195 = vpop.f32.mrf.mxu0
      %v1196 = vadd.f32 0.0, %v1195
      %v1197 = vpop.f32.mrf.mxu0
      %v1198 = vadd.f32 0.0, %v1197
      %1199 = vmatmul.bf16.gmra.mxu0 %v873
      %v1200 = vpop.f32.mrf.mxu0
      %v1201 = vadd.f32 0.0, %v1200
      %v1202 = vpop.f32.mrf.mxu0
      %v1203 = vadd.f32 0.0, %v1202
      %1204 = vmatmul.bf16.gmra.mxu0 %v876
      %v1205 = vpop.f32.mrf.mxu0
      %v1206 = vadd.f32 0.0, %v1205
      %v1207 = vpop.f32.mrf.mxu0
      %v1208 = vadd.f32 0.0, %v1207
      %1209 = vmatmul.bf16.gmra.mxu0 %v879
      %v1210 = vpop.f32.mrf.mxu0
      %v1211 = vadd.f32 0.0, %v1210
      %v1212 = vpop.f32.mrf.mxu0
      %v1213 = vadd.f32 0.0, %v1212
      %1214 = vmatmul.bf16.gmra.mxu0 %v882
      %v1215 = vpop.f32.mrf.mxu0
      %v1216 = vadd.f32 0.0, %v1215
      %v1217 = vpop.f32.mrf.mxu0
      %v1218 = vadd.f32 0.0, %v1217
      %1219 = vmatmul.bf16.gmra.mxu0 %v885
      %v1220 = vpop.f32.mrf.mxu0
      %v1221 = vadd.f32 0.0, %v1220
      %v1222 = vpop.f32.mrf.mxu0
      %v1223 = vadd.f32 0.0, %v1222
      %1224 = vmatmul.bf16.gmra.mxu0 %v888
      %v1225 = vpop.f32.mrf.mxu0
      %v1226 = vadd.f32 0.0, %v1225
      %v1227 = vpop.f32.mrf.mxu0
      %v1228 = vadd.f32 0.0, %v1227
      %1229 = vmatmul.bf16.gmra.mxu0 %v891
      %v1230 = vpop.f32.mrf.mxu0
      %v1231 = vadd.f32 0.0, %v1230
      %v1232 = vpop.f32.mrf.mxu0
      %v1233 = vadd.f32 0.0, %v1232
      %1234 = vmatmul.bf16.gmra.mxu0 %v894
      %v1235 = vpop.f32.mrf.mxu0
      %v1236 = vadd.f32 0.0, %v1235
      %v1237 = vpop.f32.mrf.mxu0
      %v1238 = vadd.f32 0.0, %v1237
      %1239 = vmatmul.bf16.gmra.mxu0 %v897
      %v1240 = vpop.f32.mrf.mxu0
      %v1241 = vadd.f32 0.0, %v1240
      %v1242 = vpop.f32.mrf.mxu0
      %v1243 = vadd.f32 0.0, %v1242
      %1244 = vmatmul.bf16.gmra.mxu0 %v900
      %v1245 = vpop.f32.mrf.mxu0
      %v1246 = vadd.f32 0.0, %v1245
      %v1247 = vpop.f32.mrf.mxu0
      %v1248 = vadd.f32 0.0, %v1247
      %1249 = vmatmul.bf16.gmra.mxu0 %v903
      %v1250 = vpop.f32.mrf.mxu0
      %v1251 = vadd.f32 0.0, %v1250
      %v1252 = vpop.f32.mrf.mxu0
      %v1253 = vadd.f32 0.0, %v1252
      %1254 = vmatmul.bf16.gmra.mxu0 %v906
      %v1255 = vpop.f32.mrf.mxu0
      %v1256 = vadd.f32 0.0, %v1255
      %v1257 = vpop.f32.mrf.mxu0
      %v1258 = vadd.f32 0.0, %v1257
      %1259 = vmatmul.bf16.gmra.mxu0 %v909
      %v1260 = vpop.f32.mrf.mxu0
      %v1261 = vadd.f32 0.0, %v1260
      %v1262 = vpop.f32.mrf.mxu0
      %v1263 = vadd.f32 0.0, %v1262
      %1264 = vmatmul.bf16.gmra.mxu0 %v912
      %v1265 = vpop.f32.mrf.mxu0
      %v1266 = vadd.f32 0.0, %v1265
      %v1267 = vpop.f32.mrf.mxu0
      %v1268 = vadd.f32 0.0, %v1267
      %1269 = vmatmul.bf16.gmra.mxu0 %v915
      %v1270 = vpop.f32.mrf.mxu0
      %v1271 = vadd.f32 0.0, %v1270
      %v1272 = vpop.f32.mrf.mxu0
      %1273 = vdwg.mxu0
      %v1274 = vrot.slane %v931, 1
      %v1275 = vrot.slane %v933, 1
      %v1276 = vrot.slane %v936, 1
      %v1277 = vrot.slane %v938, 1
      %v1278 = vrot.slane %v941, 1
      %v1279 = vrot.slane %v943, 1
      %v1280 = vrot.slane %v946, 1
      %v1281 = vrot.slane %v948, 1
      %v1282 = vrot.slane %v951, 1
      %v1283 = vrot.slane %v953, 1
      %v1284 = vrot.slane %v956, 1
      %v1285 = vrot.slane %v958, 1
      %v1286 = vrot.slane %v961, 1
      %v1287 = vrot.slane %v963, 1
      %v1288 = vrot.slane %v966, 1
      %v1289 = vrot.slane %v968, 1
      %v1290 = vrot.slane %v971, 1
      %v1291 = vrot.slane %v973, 1
      %v1292 = vrot.slane %v976, 1
      %v1293 = vrot.slane %v978, 1
      %v1294 = vrot.slane %v981, 1
      %v1295 = vrot.slane %v983, 1
      %v1296 = vrot.slane %v986, 1
      %v1297 = vrot.slane %v988, 1
      %v1298 = vrot.slane %v991, 1
      %v1299 = vrot.slane %v993, 1
      %v1300 = vrot.slane %v996, 1
      %v1301 = vrot.slane %v998, 1
      %v1302 = vrot.slane %v1001, 1
      %v1303 = vrot.slane %v1003, 1
      %v1304 = vrot.slane %v1006, 1
      %v1305 = vrot.slane %v1008, 1
      %v1306 = vrot.slane %v1011, 1
      %v1307 = vrot.slane %v1013, 1
      %v1308 = vrot.slane %v1016, 1
      %v1309 = vrot.slane %v1018, 1
      %v1310 = vrot.slane %v1021, 1
      %v1311 = vrot.slane %v1023, 1
      %v1312 = vrot.slane %v1026, 1
      %v1313 = vrot.slane %v1028, 1
      %v1314 = vrot.slane %v1031, 1
      %v1315 = vrot.slane %v1033, 1
      %v1316 = vrot.slane %v1036, 1
      %v1317 = vrot.slane %v1038, 1
      %v1318 = vrot.slane %v1041, 1
      %v1319 = vrot.slane %v1043, 1
      %v1320 = vrot.slane %v1046, 1
      %v1321 = vrot.slane %v1048, 1
      %v1322 = vrot.slane %v1051, 1
      %v1323 = vrot.slane %v1053, 1
      %v1324 = vrot.slane %v1056, 1
      %v1325 = vrot.slane %v1058, 1
      %v1326 = vrot.slane %v1061, 1
      %v1327 = vrot.slane %v1063, 1
      %v1328 = vrot.slane %v1066, 1
      %v1329 = vrot.slane %v1068, 1
      %v1330 = vrot.slane %v1071, 1
      %v1331 = vrot.slane %v1073, 1
      %v1332 = vrot.slane %v1076, 1
      %v1333 = vrot.slane %v1078, 1
      %v1334 = vrot.slane %v1081, 1
      %v1335 = vrot.slane %v1083, 1
      %v1336 = vrot.slane %v1086, 1
      %v1337 = vrot.slane %v1088, 1
      %v1338 = vrot.slane %v1091, 1
      %v1339 = vrot.slane %v1093, 1
      %v1340 = vrot.slane %v1096, 1
      %v1341 = vrot.slane %v1098, 1
      %v1342 = vrot.slane %v1101, 1
      %v1343 = vrot.slane %v1103, 1
      %v1344 = vrot.slane %v1106, 1
      %v1345 = vrot.slane %v1108, 1
      %v1346 = vrot.slane %v1111, 1
      %v1347 = vrot.slane %v1113, 1
      %v1348 = vrot.slane %v1116, 1
      %v1349 = vrot.slane %v1118, 1
      %v1350 = vrot.slane %v1121, 1
      %v1351 = vrot.slane %v1123, 1
      %v1352 = vrot.slane %v1126, 1
      %v1353 = vrot.slane %v1128, 1
      %v1354 = vrot.slane %v1131, 1
      %v1355 = vrot.slane %v1133, 1
      %v1356 = vrot.slane %v1136, 1
      %v1357 = vrot.slane %v1138, 1
      %v1358 = vrot.slane %v1141, 1
      %v1359 = vrot.slane %v1143, 1
      %v1360 = vrot.slane %v1146, 1
      %v1361 = vrot.slane %v1148, 1
      %v1362 = vrot.slane %v1151, 1
      %v1363 = vrot.slane %v1153, 1
      %v1364 = vrot.slane %v1156, 1
      %v1365 = vrot.slane %v1158, 1
      %v1366 = vrot.slane %v1161, 1
      %v1367 = vrot.slane %v1163, 1
      %v1368 = vrot.slane %v1166, 1
      %v1369 = vrot.slane %v1168, 1
      %v1370 = vrot.slane %v1171, 1
      %v1371 = vrot.slane %v1173, 1
      %v1372 = vrot.slane %v1176, 1
      %v1373 = vrot.slane %v1178, 1
      %v1374 = vrot.slane %v1181, 1
      %v1375 = vrot.slane %v1183, 1
      %v1376 = vrot.slane %v1186, 1
      %v1377 = vrot.slane %v1188, 1
      %v1378 = vrot.slane %v1191, 1
      %v1379 = vrot.slane %v1193, 1
      %v1380 = vrot.slane %v1196, 1
      %v1381 = vrot.slane %v1198, 1
      %v1382 = vrot.slane %v1201, 1
      %v1383 = vrot.slane %v1203, 1
      %v1384 = vrot.slane %v1206, 1
      %v1385 = vrot.slane %v1208, 1
      %v1386 = vrot.slane %v1211, 1
      %v1387 = vrot.slane %v1213, 1
      %v1388 = vrot.slane %v1216, 1
      %v1389 = vrot.slane %v1218, 1
      %v1390 = vrot.slane %v1221, 1
      %v1391 = vrot.slane %v1223, 1
      %v1392 = vrot.slane %v1226, 1
      %v1393 = vrot.slane %v1228, 1
      %v1394 = vrot.slane %v1231, 1
      %v1395 = vrot.slane %v1233, 1
      %v1396 = vrot.slane %v1236, 1
      %v1397 = vrot.slane %v1238, 1
      %v1398 = vrot.slane %v1241, 1
      %v1399 = vrot.slane %v1243, 1
      %v1400 = vrot.slane %v1246, 1
      %v1401 = vrot.slane %v1248, 1
      %v1402 = vrot.slane %v1251, 1
      %v1403 = vrot.slane %v1253, 1
      %v1404 = vrot.slane %v1256, 1
      %v1405 = vrot.slane %v1258, 1
      %v1406 = vrot.slane %v1261, 1
      %v1407 = vrot.slane %v1263, 1
      %v1408 = vrot.slane %v1266, 1
      %v1409 = vrot.slane %v1268, 1
      %v1410 = vrot.slane %v1271, 1
      %v1411 = vlaneseq
      %v1412 = vshrl.u32 %v1411, 7
      %vm1413 = vcmp.lt.s32.totalorder %v1412, 7
      %v1414 = vsel %vm1413, %v1409, %v1410
      %v1415 = vsel %vm1413, %v1408, %v1409
      %v1416 = vsel %vm1413, %v1407, %v1408
      %v1417 = vsel %vm1413, %v1406, %v1407
      %v1418 = vsel %vm1413, %v1405, %v1406
      %v1419 = vsel %vm1413, %v1404, %v1405
      %v1420 = vsel %vm1413, %v1403, %v1404
      %v1421 = vsel %vm1413, %v1402, %v1403
      %v1422 = vsel %vm1413, %v1401, %v1402
      %v1423 = vsel %vm1413, %v1400, %v1401
      %v1424 = vsel %vm1413, %v1399, %v1400
      %v1425 = vsel %vm1413, %v1398, %v1399
      %v1426 = vsel %vm1413, %v1397, %v1398
      %v1427 = vsel %vm1413, %v1396, %v1397
      %v1428 = vsel %vm1413, %v1395, %v1396
      %v1429 = vsel %vm1413, %v1394, %v1395
      %v1430 = vsel %vm1413, %v1393, %v1394
      %v1431 = vsel %vm1413, %v1392, %v1393
      %v1432 = vsel %vm1413, %v1391, %v1392
      %v1433 = vsel %vm1413, %v1390, %v1391
      %v1434 = vsel %vm1413, %v1389, %v1390
      %v1435 = vsel %vm1413, %v1388, %v1389
      %v1436 = vsel %vm1413, %v1387, %v1388
      %v1437 = vsel %vm1413, %v1386, %v1387
      %v1438 = vsel %vm1413, %v1385, %v1386
      %v1439 = vsel %vm1413, %v1384, %v1385
      %v1440 = vsel %vm1413, %v1383, %v1384
      %v1441 = vsel %vm1413, %v1382, %v1383
      %v1442 = vsel %vm1413, %v1381, %v1382
      %v1443 = vsel %vm1413, %v1380, %v1381
      %v1444 = vsel %vm1413, %v1379, %v1380
      %v1445 = vsel %vm1413, %v1378, %v1379
      %v1446 = vsel %vm1413, %v1377, %v1378
      %v1447 = vsel %vm1413, %v1376, %v1377
      %v1448 = vsel %vm1413, %v1375, %v1376
      %v1449 = vsel %vm1413, %v1374, %v1375
      %v1450 = vsel %vm1413, %v1373, %v1374
      %v1451 = vsel %vm1413, %v1372, %v1373
      %v1452 = vsel %vm1413, %v1371, %v1372
      %v1453 = vsel %vm1413, %v1370, %v1371
      %v1454 = vsel %vm1413, %v1369, %v1370
      %v1455 = vsel %vm1413, %v1368, %v1369
      %v1456 = vsel %vm1413, %v1367, %v1368
      %v1457 = vsel %vm1413, %v1366, %v1367
      %v1458 = vsel %vm1413, %v1365, %v1366
      %v1459 = vsel %vm1413, %v1364, %v1365
      %v1460 = vsel %vm1413, %v1363, %v1364
      %v1461 = vsel %vm1413, %v1362, %v1363
      %v1462 = vsel %vm1413, %v1361, %v1362
      %v1463 = vsel %vm1413, %v1360, %v1361
      %v1464 = vsel %vm1413, %v1359, %v1360
      %v1465 = vsel %vm1413, %v1358, %v1359
      %v1466 = vsel %vm1413, %v1357, %v1358
      %v1467 = vsel %vm1413, %v1356, %v1357
      %v1468 = vsel %vm1413, %v1355, %v1356
      %v1469 = vsel %vm1413, %v1354, %v1355
      %v1470 = vsel %vm1413, %v1353, %v1354
      %v1471 = vsel %vm1413, %v1352, %v1353
      %v1472 = vsel %vm1413, %v1351, %v1352
      %v1473 = vsel %vm1413, %v1350, %v1351
      %v1474 = vsel %vm1413, %v1349, %v1350
      %v1475 = vsel %vm1413, %v1348, %v1349
      %v1476 = vsel %vm1413, %v1347, %v1348
      %v1477 = vsel %vm1413, %v1346, %v1347
      %v1478 = vsel %vm1413, %v1345, %v1346
      %v1479 = vsel %vm1413, %v1344, %v1345
      %v1480 = vsel %vm1413, %v1343, %v1344
      %v1481 = vsel %vm1413, %v1342, %v1343
      %v1482 = vsel %vm1413, %v1341, %v1342
      %v1483 = vsel %vm1413, %v1340, %v1341
      %v1484 = vsel %vm1413, %v1339, %v1340
      %v1485 = vsel %vm1413, %v1338, %v1339
      %v1486 = vsel %vm1413, %v1337, %v1338
      %v1487 = vsel %vm1413, %v1336, %v1337
      %v1488 = vsel %vm1413, %v1335, %v1336
      %v1489 = vsel %vm1413, %v1334, %v1335
      %v1490 = vsel %vm1413, %v1333, %v1334
      %v1491 = vsel %vm1413, %v1332, %v1333
      %v1492 = vsel %vm1413, %v1331, %v1332
      %v1493 = vsel %vm1413, %v1330, %v1331
      %v1494 = vsel %vm1413, %v1329, %v1330
      %v1495 = vsel %vm1413, %v1328, %v1329
      %v1496 = vsel %vm1413, %v1327, %v1328
      %v1497 = vsel %vm1413, %v1326, %v1327
      %v1498 = vsel %vm1413, %v1325, %v1326
      %v1499 = vsel %vm1413, %v1324, %v1325
      %v1500 = vsel %vm1413, %v1323, %v1324
      %v1501 = vsel %vm1413, %v1322, %v1323
      %v1502 = vsel %vm1413, %v1321, %v1322
      %v1503 = vsel %vm1413, %v1320, %v1321
      %v1504 = vsel %vm1413, %v1319, %v1320
      %v1505 = vsel %vm1413, %v1318, %v1319
      %v1506 = vsel %vm1413, %v1317, %v1318
      %v1507 = vsel %vm1413, %v1316, %v1317
      %v1508 = vsel %vm1413, %v1315, %v1316
      %v1509 = vsel %vm1413, %v1314, %v1315
      %v1510 = vsel %vm1413, %v1313, %v1314
      %v1511 = vsel %vm1413, %v1312, %v1313
      %v1512 = vsel %vm1413, %v1311, %v1312
      %v1513 = vsel %vm1413, %v1310, %v1311
      %v1514 = vsel %vm1413, %v1309, %v1310
      %v1515 = vsel %vm1413, %v1308, %v1309
      %v1516 = vsel %vm1413, %v1307, %v1308
      %v1517 = vsel %vm1413, %v1306, %v1307
      %v1518 = vsel %vm1413, %v1305, %v1306
      %v1519 = vsel %vm1413, %v1304, %v1305
      %v1520 = vsel %vm1413, %v1303, %v1304
      %v1521 = vsel %vm1413, %v1302, %v1303
      %v1522 = vsel %vm1413, %v1301, %v1302
      %v1523 = vsel %vm1413, %v1300, %v1301
      %v1524 = vsel %vm1413, %v1299, %v1300
      %v1525 = vsel %vm1413, %v1298, %v1299
      %v1526 = vsel %vm1413, %v1297, %v1298
      %v1527 = vsel %vm1413, %v1296, %v1297
      %v1528 = vsel %vm1413, %v1295, %v1296
      %v1529 = vsel %vm1413, %v1294, %v1295
      %v1530 = vsel %vm1413, %v1293, %v1294
      %v1531 = vsel %vm1413, %v1292, %v1293
      %v1532 = vsel %vm1413, %v1291, %v1292
      %v1533 = vsel %vm1413, %v1290, %v1291
      %v1534 = vsel %vm1413, %v1289, %v1290
      %v1535 = vsel %vm1413, %v1288, %v1289
      %v1536 = vsel %vm1413, %v1287, %v1288
      %v1537 = vsel %vm1413, %v1286, %v1287
      %v1538 = vsel %vm1413, %v1285, %v1286
      %v1539 = vsel %vm1413, %v1284, %v1285
      %v1540 = vsel %vm1413, %v1283, %v1284
      %v1541 = vsel %vm1413, %v1282, %v1283
      %v1542 = vsel %vm1413, %v1281, %v1282
      %v1543 = vsel %vm1413, %v1280, %v1281
      %v1544 = vsel %vm1413, %v1279, %v1280
      %v1545 = vsel %vm1413, %v1278, %v1279
      %v1546 = vsel %vm1413, %v1277, %v1278
      %v1547 = vsel %vm1413, %v1276, %v1277
      %v1548 = vsel %vm1413, %v1275, %v1276
      %v1549 = vsel %vm1413, %v1274, %v1275
      %v1550 = vsel %vm1413, %v1410, %v1274
      %v1552 = vsel %vm917, %v363, 0
      %1554 = vmatpush.bf16.msra.mxu0 0
      %1555 = vmatpush.bf16.msra.mxu0 0
      %1556 = vmatpush.bf16.msra.mxu0 0
      %1557 = vmatpush.bf16.msra.mxu0 0
      %1558 = vmatpush.bf16.msra.mxu0 0
      %1559 = vmatpush.bf16.msra.mxu0 0
      %1560 = vmatpush.bf16.msra.mxu0 0
      %1561 = vmatpush.bf16.msra.mxu0 %v1552
      %1562 = vmatmul.bf16.gmra.mxu0 %v711
      %v1563 = vpop.f32.mrf.mxu0
      %v1564 = vadd.f32 %v1549, %v1563
      %v1565 = vpop.f32.mrf.mxu0
      %v1566 = vadd.f32 %v1548, %v1565
      %1567 = vmatmul.bf16.gmra.mxu0 %v714
      %v1568 = vpop.f32.mrf.mxu0
      %v1569 = vadd.f32 %v1547, %v1568
      %v1570 = vpop.f32.mrf.mxu0
      %v1571 = vadd.f32 %v1546, %v1570
      %1572 = vmatmul.bf16.gmra.mxu0 %v717
      %v1573 = vpop.f32.mrf.mxu0
      %v1574 = vadd.f32 %v1545, %v1573
      %v1575 = vpop.f32.mrf.mxu0
      %v1576 = vadd.f32 %v1544, %v1575
      %1577 = vmatmul.bf16.gmra.mxu0 %v720
      %v1578 = vpop.f32.mrf.mxu0
      %v1579 = vadd.f32 %v1543, %v1578
      %v1580 = vpop.f32.mrf.mxu0
      %v1581 = vadd.f32 %v1542, %v1580
      %1582 = vmatmul.bf16.gmra.mxu0 %v723
      %v1583 = vpop.f32.mrf.mxu0
      %v1584 = vadd.f32 %v1541, %v1583
      %v1585 = vpop.f32.mrf.mxu0
      %v1586 = vadd.f32 %v1540, %v1585
      %1587 = vmatmul.bf16.gmra.mxu0 %v726
      %v1588 = vpop.f32.mrf.mxu0
      %v1589 = vadd.f32 %v1539, %v1588
      %v1590 = vpop.f32.mrf.mxu0
      %v1591 = vadd.f32 %v1538, %v1590
      %1592 = vmatmul.bf16.gmra.mxu0 %v729
      %v1593 = vpop.f32.mrf.mxu0
      %v1594 = vadd.f32 %v1537, %v1593
      %v1595 = vpop.f32.mrf.mxu0
      %v1596 = vadd.f32 %v1536, %v1595
      %1597 = vmatmul.bf16.gmra.mxu0 %v732
      %v1598 = vpop.f32.mrf.mxu0
      %v1599 = vadd.f32 %v1535, %v1598
      %v1600 = vpop.f32.mrf.mxu0
      %v1601 = vadd.f32 %v1534, %v1600
      %1602 = vmatmul.bf16.gmra.mxu0 %v735
      %v1603 = vpop.f32.mrf.mxu0
      %v1604 = vadd.f32 %v1533, %v1603
      %v1605 = vpop.f32.mrf.mxu0
      %v1606 = vadd.f32 %v1532, %v1605
      %1607 = vmatmul.bf16.gmra.mxu0 %v738
      %v1608 = vpop.f32.mrf.mxu0
      %v1609 = vadd.f32 %v1531, %v1608
      %v1610 = vpop.f32.mrf.mxu0
      %v1611 = vadd.f32 %v1530, %v1610
      %1612 = vmatmul.bf16.gmra.mxu0 %v741
      %v1613 = vpop.f32.mrf.mxu0
      %v1614 = vadd.f32 %v1529, %v1613
      %v1615 = vpop.f32.mrf.mxu0
      %v1616 = vadd.f32 %v1528, %v1615
      %1617 = vmatmul.bf16.gmra.mxu0 %v744
      %v1618 = vpop.f32.mrf.mxu0
      %v1619 = vadd.f32 %v1527, %v1618
      %v1620 = vpop.f32.mrf.mxu0
      %v1621 = vadd.f32 %v1526, %v1620
      %1622 = vmatmul.bf16.gmra.mxu0 %v747
      %v1623 = vpop.f32.mrf.mxu0
      %v1624 = vadd.f32 %v1525, %v1623
      %v1625 = vpop.f32.mrf.mxu0
      %v1626 = vadd.f32 %v1524, %v1625
      %1627 = vmatmul.bf16.gmra.mxu0 %v750
      %v1628 = vpop.f32.mrf.mxu0
      %v1629 = vadd.f32 %v1523, %v1628
      %v1630 = vpop.f32.mrf.mxu0
      %v1631 = vadd.f32 %v1522, %v1630
      %1632 = vmatmul.bf16.gmra.mxu0 %v753
      %v1633 = vpop.f32.mrf.mxu0
      %v1634 = vadd.f32 %v1521, %v1633
      %v1635 = vpop.f32.mrf.mxu0
      %v1636 = vadd.f32 %v1520, %v1635
      %1637 = vmatmul.bf16.gmra.mxu0 %v756
      %v1638 = vpop.f32.mrf.mxu0
      %v1639 = vadd.f32 %v1519, %v1638
      %v1640 = vpop.f32.mrf.mxu0
      %v1641 = vadd.f32 %v1518, %v1640
      %1642 = vmatmul.bf16.gmra.mxu0 %v759
      %v1643 = vpop.f32.mrf.mxu0
      %v1644 = vadd.f32 %v1517, %v1643
      %v1645 = vpop.f32.mrf.mxu0
      %v1646 = vadd.f32 %v1516, %v1645
      %1647 = vmatmul.bf16.gmra.mxu0 %v762
      %v1648 = vpop.f32.mrf.mxu0
      %v1649 = vadd.f32 %v1515, %v1648
      %v1650 = vpop.f32.mrf.mxu0
      %v1651 = vadd.f32 %v1514, %v1650
      %1652 = vmatmul.bf16.gmra.mxu0 %v765
      %v1653 = vpop.f32.mrf.mxu0
      %v1654 = vadd.f32 %v1513, %v1653
      %v1655 = vpop.f32.mrf.mxu0
      %v1656 = vadd.f32 %v1512, %v1655
      %1657 = vmatmul.bf16.gmra.mxu0 %v768
      %v1658 = vpop.f32.mrf.mxu0
      %v1659 = vadd.f32 %v1511, %v1658
      %v1660 = vpop.f32.mrf.mxu0
      %v1661 = vadd.f32 %v1510, %v1660
      %1662 = vmatmul.bf16.gmra.mxu0 %v771
      %v1663 = vpop.f32.mrf.mxu0
      %v1664 = vadd.f32 %v1509, %v1663
      %v1665 = vpop.f32.mrf.mxu0
      %v1666 = vadd.f32 %v1508, %v1665
      %1667 = vmatmul.bf16.gmra.mxu0 %v774
      %v1668 = vpop.f32.mrf.mxu0
      %v1669 = vadd.f32 %v1507, %v1668
      %v1670 = vpop.f32.mrf.mxu0
      %v1671 = vadd.f32 %v1506, %v1670
      %1672 = vmatmul.bf16.gmra.mxu0 %v777
      %v1673 = vpop.f32.mrf.mxu0
      %v1674 = vadd.f32 %v1505, %v1673
      %v1675 = vpop.f32.mrf.mxu0
      %v1676 = vadd.f32 %v1504, %v1675
      %1677 = vmatmul.bf16.gmra.mxu0 %v780
      %v1678 = vpop.f32.mrf.mxu0
      %v1679 = vadd.f32 %v1503, %v1678
      %v1680 = vpop.f32.mrf.mxu0
      %v1681 = vadd.f32 %v1502, %v1680
      %1682 = vmatmul.bf16.gmra.mxu0 %v783
      %v1683 = vpop.f32.mrf.mxu0
      %v1684 = vadd.f32 %v1501, %v1683
      %v1685 = vpop.f32.mrf.mxu0
      %v1686 = vadd.f32 %v1500, %v1685
      %1687 = vmatmul.bf16.gmra.mxu0 %v786
      %v1688 = vpop.f32.mrf.mxu0
      %v1689 = vadd.f32 %v1499, %v1688
      %v1690 = vpop.f32.mrf.mxu0
      %v1691 = vadd.f32 %v1498, %v1690
      %1692 = vmatmul.bf16.gmra.mxu0 %v789
      %v1693 = vpop.f32.mrf.mxu0
      %v1694 = vadd.f32 %v1497, %v1693
      %v1695 = vpop.f32.mrf.mxu0
      %v1696 = vadd.f32 %v1496, %v1695
      %1697 = vmatmul.bf16.gmra.mxu0 %v792
      %v1698 = vpop.f32.mrf.mxu0
      %v1699 = vadd.f32 %v1495, %v1698
      %v1700 = vpop.f32.mrf.mxu0
      %v1701 = vadd.f32 %v1494, %v1700
      %1702 = vmatmul.bf16.gmra.mxu0 %v795
      %v1703 = vpop.f32.mrf.mxu0
      %v1704 = vadd.f32 %v1493, %v1703
      %v1705 = vpop.f32.mrf.mxu0
      %v1706 = vadd.f32 %v1492, %v1705
      %1707 = vmatmul.bf16.gmra.mxu0 %v798
      %v1708 = vpop.f32.mrf.mxu0
      %v1709 = vadd.f32 %v1491, %v1708
      %v1710 = vpop.f32.mrf.mxu0
      %v1711 = vadd.f32 %v1490, %v1710
      %1712 = vmatmul.bf16.gmra.mxu0 %v801
      %v1713 = vpop.f32.mrf.mxu0
      %v1714 = vadd.f32 %v1489, %v1713
      %v1715 = vpop.f32.mrf.mxu0
      %v1716 = vadd.f32 %v1488, %v1715
      %1717 = vmatmul.bf16.gmra.mxu0 %v804
      %v1718 = vpop.f32.mrf.mxu0
      %v1719 = vadd.f32 %v1487, %v1718
      %v1720 = vpop.f32.mrf.mxu0
      %v1721 = vadd.f32 %v1486, %v1720
      %1722 = vmatmul.bf16.gmra.mxu0 %v807
      %v1723 = vpop.f32.mrf.mxu0
      %v1724 = vadd.f32 %v1485, %v1723
      %v1725 = vpop.f32.mrf.mxu0
      %v1726 = vadd.f32 %v1484, %v1725
      %1727 = vmatmul.bf16.gmra.mxu0 %v810
      %v1728 = vpop.f32.mrf.mxu0
      %v1729 = vadd.f32 %v1483, %v1728
      %v1730 = vpop.f32.mrf.mxu0
      %v1731 = vadd.f32 %v1482, %v1730
      %1732 = vmatmul.bf16.gmra.mxu0 %v813
      %v1733 = vpop.f32.mrf.mxu0
      %v1734 = vadd.f32 %v1481, %v1733
      %v1735 = vpop.f32.mrf.mxu0
      %v1736 = vadd.f32 %v1480, %v1735
      %1737 = vmatmul.bf16.gmra.mxu0 %v816
      %v1738 = vpop.f32.mrf.mxu0
      %v1739 = vadd.f32 %v1479, %v1738
      %v1740 = vpop.f32.mrf.mxu0
      %v1741 = vadd.f32 %v1478, %v1740
      %1742 = vmatmul.bf16.gmra.mxu0 %v819
      %v1743 = vpop.f32.mrf.mxu0
      %v1744 = vadd.f32 %v1477, %v1743
      %v1745 = vpop.f32.mrf.mxu0
      %v1746 = vadd.f32 %v1476, %v1745
      %1747 = vmatmul.bf16.gmra.mxu0 %v822
      %v1748 = vpop.f32.mrf.mxu0
      %v1749 = vadd.f32 %v1475, %v1748
      %v1750 = vpop.f32.mrf.mxu0
      %v1751 = vadd.f32 %v1474, %v1750
      %1752 = vmatmul.bf16.gmra.mxu0 %v825
      %v1753 = vpop.f32.mrf.mxu0
      %v1754 = vadd.f32 %v1473, %v1753
      %v1755 = vpop.f32.mrf.mxu0
      %v1756 = vadd.f32 %v1472, %v1755
      %1757 = vmatmul.bf16.gmra.mxu0 %v828
      %v1758 = vpop.f32.mrf.mxu0
      %v1759 = vadd.f32 %v1471, %v1758
      %v1760 = vpop.f32.mrf.mxu0
      %v1761 = vadd.f32 %v1470, %v1760
      %1762 = vmatmul.bf16.gmra.mxu0 %v831
      %v1763 = vpop.f32.mrf.mxu0
      %v1764 = vadd.f32 %v1469, %v1763
      %v1765 = vpop.f32.mrf.mxu0
      %v1766 = vadd.f32 %v1468, %v1765
      %1767 = vmatmul.bf16.gmra.mxu0 %v834
      %v1768 = vpop.f32.mrf.mxu0
      %v1769 = vadd.f32 %v1467, %v1768
      %v1770 = vpop.f32.mrf.mxu0
      %v1771 = vadd.f32 %v1466, %v1770
      %1772 = vmatmul.bf16.gmra.mxu0 %v837
      %v1773 = vpop.f32.mrf.mxu0
      %v1774 = vadd.f32 %v1465, %v1773
      %v1775 = vpop.f32.mrf.mxu0
      %v1776 = vadd.f32 %v1464, %v1775
      %1777 = vmatmul.bf16.gmra.mxu0 %v840
      %v1778 = vpop.f32.mrf.mxu0
      %v1779 = vadd.f32 %v1463, %v1778
      %v1780 = vpop.f32.mrf.mxu0
      %v1781 = vadd.f32 %v1462, %v1780
      %1782 = vmatmul.bf16.gmra.mxu0 %v843
      %v1783 = vpop.f32.mrf.mxu0
      %v1784 = vadd.f32 %v1461, %v1783
      %v1785 = vpop.f32.mrf.mxu0
      %v1786 = vadd.f32 %v1460, %v1785
      %1787 = vmatmul.bf16.gmra.mxu0 %v846
      %v1788 = vpop.f32.mrf.mxu0
      %v1789 = vadd.f32 %v1459, %v1788
      %v1790 = vpop.f32.mrf.mxu0
      %v1791 = vadd.f32 %v1458, %v1790
      %1792 = vmatmul.bf16.gmra.mxu0 %v849
      %v1793 = vpop.f32.mrf.mxu0
      %v1794 = vadd.f32 %v1457, %v1793
      %v1795 = vpop.f32.mrf.mxu0
      %v1796 = vadd.f32 %v1456, %v1795
      %1797 = vmatmul.bf16.gmra.mxu0 %v852
      %v1798 = vpop.f32.mrf.mxu0
      %v1799 = vadd.f32 %v1455, %v1798
      %v1800 = vpop.f32.mrf.mxu0
      %v1801 = vadd.f32 %v1454, %v1800
      %1802 = vmatmul.bf16.gmra.mxu0 %v855
      %v1803 = vpop.f32.mrf.mxu0
      %v1804 = vadd.f32 %v1453, %v1803
      %v1805 = vpop.f32.mrf.mxu0
      %v1806 = vadd.f32 %v1452, %v1805
      %1807 = vmatmul.bf16.gmra.mxu0 %v858
      %v1808 = vpop.f32.mrf.mxu0
      %v1809 = vadd.f32 %v1451, %v1808
      %v1810 = vpop.f32.mrf.mxu0
      %v1811 = vadd.f32 %v1450, %v1810
      %1812 = vmatmul.bf16.gmra.mxu0 %v861
      %v1813 = vpop.f32.mrf.mxu0
      %v1814 = vadd.f32 %v1449, %v1813
      %v1815 = vpop.f32.mrf.mxu0
      %v1816 = vadd.f32 %v1448, %v1815
      %1817 = vmatmul.bf16.gmra.mxu0 %v864
      %v1818 = vpop.f32.mrf.mxu0
      %v1819 = vadd.f32 %v1447, %v1818
      %v1820 = vpop.f32.mrf.mxu0
      %v1821 = vadd.f32 %v1446, %v1820
      %1822 = vmatmul.bf16.gmra.mxu0 %v867
      %v1823 = vpop.f32.mrf.mxu0
      %v1824 = vadd.f32 %v1445, %v1823
      %v1825 = vpop.f32.mrf.mxu0
      %v1826 = vadd.f32 %v1444, %v1825
      %1827 = vmatmul.bf16.gmra.mxu0 %v870
      %v1828 = vpop.f32.mrf.mxu0
      %v1829 = vadd.f32 %v1443, %v1828
      %v1830 = vpop.f32.mrf.mxu0
      %v1831 = vadd.f32 %v1442, %v1830
      %1832 = vmatmul.bf16.gmra.mxu0 %v873
      %v1833 = vpop.f32.mrf.mxu0
      %v1834 = vadd.f32 %v1441, %v1833
      %v1835 = vpop.f32.mrf.mxu0
      %v1836 = vadd.f32 %v1440, %v1835
      %1837 = vmatmul.bf16.gmra.mxu0 %v876
      %v1838 = vpop.f32.mrf.mxu0
      %v1839 = vadd.f32 %v1439, %v1838
      %v1840 = vpop.f32.mrf.mxu0
      %v1841 = vadd.f32 %v1438, %v1840
      %1842 = vmatmul.bf16.gmra.mxu0 %v879
      %v1843 = vpop.f32.mrf.mxu0
      %v1844 = vadd.f32 %v1437, %v1843
      %v1845 = vpop.f32.mrf.mxu0
      %v1846 = vadd.f32 %v1436, %v1845
      %1847 = vmatmul.bf16.gmra.mxu0 %v882
      %v1848 = vpop.f32.mrf.mxu0
      %v1849 = vadd.f32 %v1435, %v1848
      %v1850 = vpop.f32.mrf.mxu0
      %v1851 = vadd.f32 %v1434, %v1850
      %1852 = vmatmul.bf16.gmra.mxu0 %v885
      %v1853 = vpop.f32.mrf.mxu0
      %v1854 = vadd.f32 %v1433, %v1853
      %v1855 = vpop.f32.mrf.mxu0
      %v1856 = vadd.f32 %v1432, %v1855
      %1857 = vmatmul.bf16.gmra.mxu0 %v888
      %v1858 = vpop.f32.mrf.mxu0
      %v1859 = vadd.f32 %v1431, %v1858
      %v1860 = vpop.f32.mrf.mxu0
      %v1861 = vadd.f32 %v1430, %v1860
      %1862 = vmatmul.bf16.gmra.mxu0 %v891
      %v1863 = vpop.f32.mrf.mxu0
      %v1864 = vadd.f32 %v1429, %v1863
      %v1865 = vpop.f32.mrf.mxu0
      %v1866 = vadd.f32 %v1428, %v1865
      %1867 = vmatmul.bf16.gmra.mxu0 %v894
      %v1868 = vpop.f32.mrf.mxu0
      %v1869 = vadd.f32 %v1427, %v1868
      %v1870 = vpop.f32.mrf.mxu0
      %v1871 = vadd.f32 %v1426, %v1870
      %1872 = vmatmul.bf16.gmra.mxu0 %v897
      %v1873 = vpop.f32.mrf.mxu0
      %v1874 = vadd.f32 %v1425, %v1873
      %v1875 = vpop.f32.mrf.mxu0
      %v1876 = vadd.f32 %v1424, %v1875
      %1877 = vmatmul.bf16.gmra.mxu0 %v900
      %v1878 = vpop.f32.mrf.mxu0
      %v1879 = vadd.f32 %v1423, %v1878
      %v1880 = vpop.f32.mrf.mxu0
      %v1881 = vadd.f32 %v1422, %v1880
      %1882 = vmatmul.bf16.gmra.mxu0 %v903
      %v1883 = vpop.f32.mrf.mxu0
      %v1884 = vadd.f32 %v1421, %v1883
      %v1885 = vpop.f32.mrf.mxu0
      %v1886 = vadd.f32 %v1420, %v1885
      %1887 = vmatmul.bf16.gmra.mxu0 %v906
      %v1888 = vpop.f32.mrf.mxu0
      %v1889 = vadd.f32 %v1419, %v1888
      %v1890 = vpop.f32.mrf.mxu0
      %v1891 = vadd.f32 %v1418, %v1890
      %1892 = vmatmul.bf16.gmra.mxu0 %v909
      %v1893 = vpop.f32.mrf.mxu0
      %v1894 = vadd.f32 %v1417, %v1893
      %v1895 = vpop.f32.mrf.mxu0
      %v1896 = vadd.f32 %v1416, %v1895
      %1897 = vmatmul.bf16.gmra.mxu0 %v912
      %v1898 = vpop.f32.mrf.mxu0
      %v1899 = vadd.f32 %v1415, %v1898
      %v1900 = vpop.f32.mrf.mxu0
      %v1901 = vadd.f32 %v1414, %v1900
      %1902 = vmatmul.bf16.gmra.mxu0 %v915
      %v1903 = vpop.f32.mrf.mxu0
      %v1904 = vadd.f32 %v1550, %v1903
      %v1905 = vpop.f32.mrf.mxu0
      %1906 = vdwg.mxu0
      %s1907 = scalar_lea.vmem %s212, 4
      %v1908 = vld [vmem:[%s1907] sm:$0x3]
      %v1910 = vsel %vm917, %v1908, 0
      %1912 = vmatpush.bf16.msra.mxu0 0
      %1913 = vmatpush.bf16.msra.mxu0 0
      %1914 = vmatpush.bf16.msra.mxu0 0
      %1915 = vmatpush.bf16.msra.mxu0 0
      %1916 = vmatpush.bf16.msra.mxu0 0
      %1917 = vmatpush.bf16.msra.mxu0 0
      %1918 = vmatpush.bf16.msra.mxu0 0
      %1919 = vmatpush.bf16.msra.mxu0 %v1910
      %1920 = vmatmul.bf16.gmra.mxu0 %v711
      %v1921 = vpop.f32.mrf.mxu0
      %v1922 = vadd.f32 0.0, %v1921
      %v1923 = vpop.f32.mrf.mxu0
      %v1924 = vadd.f32 0.0, %v1923
      %1925 = vmatmul.bf16.gmra.mxu0 %v714
      %v1926 = vpop.f32.mrf.mxu0
      %v1927 = vadd.f32 0.0, %v1926
      %v1928 = vpop.f32.mrf.mxu0
      %v1929 = vadd.f32 0.0, %v1928
      %1930 = vmatmul.bf16.gmra.mxu0 %v717
      %v1931 = vpop.f32.mrf.mxu0
      %v1932 = vadd.f32 0.0, %v1931
      %v1933 = vpop.f32.mrf.mxu0
      %v1934 = vadd.f32 0.0, %v1933
      %1935 = vmatmul.bf16.gmra.mxu0 %v720
      %v1936 = vpop.f32.mrf.mxu0
      %v1937 = vadd.f32 0.0, %v1936
      %v1938 = vpop.f32.mrf.mxu0
      %v1939 = vadd.f32 0.0, %v1938
      %1940 = vmatmul.bf16.gmra.mxu0 %v723
      %v1941 = vpop.f32.mrf.mxu0
      %v1942 = vadd.f32 0.0, %v1941
      %v1943 = vpop.f32.mrf.mxu0
      %v1944 = vadd.f32 0.0, %v1943
      %1945 = vmatmul.bf16.gmra.mxu0 %v726
      %v1946 = vpop.f32.mrf.mxu0
      %v1947 = vadd.f32 0.0, %v1946
      %v1948 = vpop.f32.mrf.mxu0
      %v1949 = vadd.f32 0.0, %v1948
      %1950 = vmatmul.bf16.gmra.mxu0 %v729
      %v1951 = vpop.f32.mrf.mxu0
      %v1952 = vadd.f32 0.0, %v1951
      %v1953 = vpop.f32.mrf.mxu0
      %v1954 = vadd.f32 0.0, %v1953
      %1955 = vmatmul.bf16.gmra.mxu0 %v732
      %v1956 = vpop.f32.mrf.mxu0
      %v1957 = vadd.f32 0.0, %v1956
      %v1958 = vpop.f32.mrf.mxu0
      %v1959 = vadd.f32 0.0, %v1958
      %1960 = vmatmul.bf16.gmra.mxu0 %v735
      %v1961 = vpop.f32.mrf.mxu0
      %v1962 = vadd.f32 0.0, %v1961
      %v1963 = vpop.f32.mrf.mxu0
      %v1964 = vadd.f32 0.0, %v1963
      %1965 = vmatmul.bf16.gmra.mxu0 %v738
      %v1966 = vpop.f32.mrf.mxu0
      %v1967 = vadd.f32 0.0, %v1966
      %v1968 = vpop.f32.mrf.mxu0
      %v1969 = vadd.f32 0.0, %v1968
      %1970 = vmatmul.bf16.gmra.mxu0 %v741
      %v1971 = vpop.f32.mrf.mxu0
      %v1972 = vadd.f32 0.0, %v1971
      %v1973 = vpop.f32.mrf.mxu0
      %v1974 = vadd.f32 0.0, %v1973
      %1975 = vmatmul.bf16.gmra.mxu0 %v744
      %v1976 = vpop.f32.mrf.mxu0
      %v1977 = vadd.f32 0.0, %v1976
      %v1978 = vpop.f32.mrf.mxu0
      %v1979 = vadd.f32 0.0, %v1978
      %1980 = vmatmul.bf16.gmra.mxu0 %v747
      %v1981 = vpop.f32.mrf.mxu0
      %v1982 = vadd.f32 0.0, %v1981
      %v1983 = vpop.f32.mrf.mxu0
      %v1984 = vadd.f32 0.0, %v1983
      %1985 = vmatmul.bf16.gmra.mxu0 %v750
      %v1986 = vpop.f32.mrf.mxu0
      %v1987 = vadd.f32 0.0, %v1986
      %v1988 = vpop.f32.mrf.mxu0
      %v1989 = vadd.f32 0.0, %v1988
      %1990 = vmatmul.bf16.gmra.mxu0 %v753
      %v1991 = vpop.f32.mrf.mxu0
      %v1992 = vadd.f32 0.0, %v1991
      %v1993 = vpop.f32.mrf.mxu0
      %v1994 = vadd.f32 0.0, %v1993
      %1995 = vmatmul.bf16.gmra.mxu0 %v756
      %v1996 = vpop.f32.mrf.mxu0
      %v1997 = vadd.f32 0.0, %v1996
      %v1998 = vpop.f32.mrf.mxu0
      %v1999 = vadd.f32 0.0, %v1998
      %2000 = vmatmul.bf16.gmra.mxu0 %v759
      %v2001 = vpop.f32.mrf.mxu0
      %v2002 = vadd.f32 0.0, %v2001
      %v2003 = vpop.f32.mrf.mxu0
      %v2004 = vadd.f32 0.0, %v2003
      %2005 = vmatmul.bf16.gmra.mxu0 %v762
      %v2006 = vpop.f32.mrf.mxu0
      %v2007 = vadd.f32 0.0, %v2006
      %v2008 = vpop.f32.mrf.mxu0
      %v2009 = vadd.f32 0.0, %v2008
      %2010 = vmatmul.bf16.gmra.mxu0 %v765
      %v2011 = vpop.f32.mrf.mxu0
      %v2012 = vadd.f32 0.0, %v2011
      %v2013 = vpop.f32.mrf.mxu0
      %v2014 = vadd.f32 0.0, %v2013
      %2015 = vmatmul.bf16.gmra.mxu0 %v768
      %v2016 = vpop.f32.mrf.mxu0
      %v2017 = vadd.f32 0.0, %v2016
      %v2018 = vpop.f32.mrf.mxu0
      %v2019 = vadd.f32 0.0, %v2018
      %2020 = vmatmul.bf16.gmra.mxu0 %v771
      %v2021 = vpop.f32.mrf.mxu0
      %v2022 = vadd.f32 0.0, %v2021
      %v2023 = vpop.f32.mrf.mxu0
      %v2024 = vadd.f32 0.0, %v2023
      %2025 = vmatmul.bf16.gmra.mxu0 %v774
      %v2026 = vpop.f32.mrf.mxu0
      %v2027 = vadd.f32 0.0, %v2026
      %v2028 = vpop.f32.mrf.mxu0
      %v2029 = vadd.f32 0.0, %v2028
      %2030 = vmatmul.bf16.gmra.mxu0 %v777
      %v2031 = vpop.f32.mrf.mxu0
      %v2032 = vadd.f32 0.0, %v2031
      %v2033 = vpop.f32.mrf.mxu0
      %v2034 = vadd.f32 0.0, %v2033
      %2035 = vmatmul.bf16.gmra.mxu0 %v780
      %v2036 = vpop.f32.mrf.mxu0
      %v2037 = vadd.f32 0.0, %v2036
      %v2038 = vpop.f32.mrf.mxu0
      %v2039 = vadd.f32 0.0, %v2038
      %2040 = vmatmul.bf16.gmra.mxu0 %v783
      %v2041 = vpop.f32.mrf.mxu0
      %v2042 = vadd.f32 0.0, %v2041
      %v2043 = vpop.f32.mrf.mxu0
      %v2044 = vadd.f32 0.0, %v2043
      %2045 = vmatmul.bf16.gmra.mxu0 %v786
      %v2046 = vpop.f32.mrf.mxu0
      %v2047 = vadd.f32 0.0, %v2046
      %v2048 = vpop.f32.mrf.mxu0
      %v2049 = vadd.f32 0.0, %v2048
      %2050 = vmatmul.bf16.gmra.mxu0 %v789
      %v2051 = vpop.f32.mrf.mxu0
      %v2052 = vadd.f32 0.0, %v2051
      %v2053 = vpop.f32.mrf.mxu0
      %v2054 = vadd.f32 0.0, %v2053
      %2055 = vmatmul.bf16.gmra.mxu0 %v792
      %v2056 = vpop.f32.mrf.mxu0
      %v2057 = vadd.f32 0.0, %v2056
      %v2058 = vpop.f32.mrf.mxu0
      %v2059 = vadd.f32 0.0, %v2058
      %2060 = vmatmul.bf16.gmra.mxu0 %v795
      %v2061 = vpop.f32.mrf.mxu0
      %v2062 = vadd.f32 0.0, %v2061
      %v2063 = vpop.f32.mrf.mxu0
      %v2064 = vadd.f32 0.0, %v2063
      %2065 = vmatmul.bf16.gmra.mxu0 %v798
      %v2066 = vpop.f32.mrf.mxu0
      %v2067 = vadd.f32 0.0, %v2066
      %v2068 = vpop.f32.mrf.mxu0
      %v2069 = vadd.f32 0.0, %v2068
      %2070 = vmatmul.bf16.gmra.mxu0 %v801
      %v2071 = vpop.f32.mrf.mxu0
      %v2072 = vadd.f32 0.0, %v2071
      %v2073 = vpop.f32.mrf.mxu0
      %v2074 = vadd.f32 0.0, %v2073
      %2075 = vmatmul.bf16.gmra.mxu0 %v804
      %v2076 = vpop.f32.mrf.mxu0
      %v2077 = vadd.f32 0.0, %v2076
      %v2078 = vpop.f32.mrf.mxu0
      %v2079 = vadd.f32 0.0, %v2078
      %2080 = vmatmul.bf16.gmra.mxu0 %v807
      %v2081 = vpop.f32.mrf.mxu0
      %v2082 = vadd.f32 0.0, %v2081
      %v2083 = vpop.f32.mrf.mxu0
      %v2084 = vadd.f32 0.0, %v2083
      %2085 = vmatmul.bf16.gmra.mxu0 %v810
      %v2086 = vpop.f32.mrf.mxu0
      %v2087 = vadd.f32 0.0, %v2086
      %v2088 = vpop.f32.mrf.mxu0
      %v2089 = vadd.f32 0.0, %v2088
      %2090 = vmatmul.bf16.gmra.mxu0 %v813
      %v2091 = vpop.f32.mrf.mxu0
      %v2092 = vadd.f32 0.0, %v2091
      %v2093 = vpop.f32.mrf.mxu0
      %v2094 = vadd.f32 0.0, %v2093
      %2095 = vmatmul.bf16.gmra.mxu0 %v816
      %v2096 = vpop.f32.mrf.mxu0
      %v2097 = vadd.f32 0.0, %v2096
      %v2098 = vpop.f32.mrf.mxu0
      %v2099 = vadd.f32 0.0, %v2098
      %2100 = vmatmul.bf16.gmra.mxu0 %v819
      %v2101 = vpop.f32.mrf.mxu0
      %v2102 = vadd.f32 0.0, %v2101
      %v2103 = vpop.f32.mrf.mxu0
      %v2104 = vadd.f32 0.0, %v2103
      %2105 = vmatmul.bf16.gmra.mxu0 %v822
      %v2106 = vpop.f32.mrf.mxu0
      %v2107 = vadd.f32 0.0, %v2106
      %v2108 = vpop.f32.mrf.mxu0
      %v2109 = vadd.f32 0.0, %v2108
      %2110 = vmatmul.bf16.gmra.mxu0 %v825
      %v2111 = vpop.f32.mrf.mxu0
      %v2112 = vadd.f32 0.0, %v2111
      %v2113 = vpop.f32.mrf.mxu0
      %v2114 = vadd.f32 0.0, %v2113
      %2115 = vmatmul.bf16.gmra.mxu0 %v828
      %v2116 = vpop.f32.mrf.mxu0
      %v2117 = vadd.f32 0.0, %v2116
      %v2118 = vpop.f32.mrf.mxu0
      %v2119 = vadd.f32 0.0, %v2118
      %2120 = vmatmul.bf16.gmra.mxu0 %v831
      %v2121 = vpop.f32.mrf.mxu0
      %v2122 = vadd.f32 0.0, %v2121
      %v2123 = vpop.f32.mrf.mxu0
      %v2124 = vadd.f32 0.0, %v2123
      %2125 = vmatmul.bf16.gmra.mxu0 %v834
      %v2126 = vpop.f32.mrf.mxu0
      %v2127 = vadd.f32 0.0, %v2126
      %v2128 = vpop.f32.mrf.mxu0
      %v2129 = vadd.f32 0.0, %v2128
      %2130 = vmatmul.bf16.gmra.mxu0 %v837
      %v2131 = vpop.f32.mrf.mxu0
      %v2132 = vadd.f32 0.0, %v2131
      %v2133 = vpop.f32.mrf.mxu0
      %v2134 = vadd.f32 0.0, %v2133
      %2135 = vmatmul.bf16.gmra.mxu0 %v840
      %v2136 = vpop.f32.mrf.mxu0
      %v2137 = vadd.f32 0.0, %v2136
      %v2138 = vpop.f32.mrf.mxu0
      %v2139 = vadd.f32 0.0, %v2138
      %2140 = vmatmul.bf16.gmra.mxu0 %v843
      %v2141 = vpop.f32.mrf.mxu0
      %v2142 = vadd.f32 0.0, %v2141
      %v2143 = vpop.f32.mrf.mxu0
      %v2144 = vadd.f32 0.0, %v2143
      %2145 = vmatmul.bf16.gmra.mxu0 %v846
      %v2146 = vpop.f32.mrf.mxu0
      %v2147 = vadd.f32 0.0, %v2146
      %v2148 = vpop.f32.mrf.mxu0
      %v2149 = vadd.f32 0.0, %v2148
      %2150 = vmatmul.bf16.gmra.mxu0 %v849
      %v2151 = vpop.f32.mrf.mxu0
      %v2152 = vadd.f32 0.0, %v2151
      %v2153 = vpop.f32.mrf.mxu0
      %v2154 = vadd.f32 0.0, %v2153
      %2155 = vmatmul.bf16.gmra.mxu0 %v852
      %v2156 = vpop.f32.mrf.mxu0
      %v2157 = vadd.f32 0.0, %v2156
      %v2158 = vpop.f32.mrf.mxu0
      %v2159 = vadd.f32 0.0, %v2158
      %2160 = vmatmul.bf16.gmra.mxu0 %v855
      %v2161 = vpop.f32.mrf.mxu0
      %v2162 = vadd.f32 0.0, %v2161
      %v2163 = vpop.f32.mrf.mxu0
      %v2164 = vadd.f32 0.0, %v2163
      %2165 = vmatmul.bf16.gmra.mxu0 %v858
      %v2166 = vpop.f32.mrf.mxu0
      %v2167 = vadd.f32 0.0, %v2166
      %v2168 = vpop.f32.mrf.mxu0
      %v2169 = vadd.f32 0.0, %v2168
      %2170 = vmatmul.bf16.gmra.mxu0 %v861
      %v2171 = vpop.f32.mrf.mxu0
      %v2172 = vadd.f32 0.0, %v2171
      %v2173 = vpop.f32.mrf.mxu0
      %v2174 = vadd.f32 0.0, %v2173
      %2175 = vmatmul.bf16.gmra.mxu0 %v864
      %v2176 = vpop.f32.mrf.mxu0
      %v2177 = vadd.f32 0.0, %v2176
      %v2178 = vpop.f32.mrf.mxu0
      %v2179 = vadd.f32 0.0, %v2178
      %2180 = vmatmul.bf16.gmra.mxu0 %v867
      %v2181 = vpop.f32.mrf.mxu0
      %v2182 = vadd.f32 0.0, %v2181
      %v2183 = vpop.f32.mrf.mxu0
      %v2184 = vadd.f32 0.0, %v2183
      %2185 = vmatmul.bf16.gmra.mxu0 %v870
      %v2186 = vpop.f32.mrf.mxu0
      %v2187 = vadd.f32 0.0, %v2186
      %v2188 = vpop.f32.mrf.mxu0
      %v2189 = vadd.f32 0.0, %v2188
      %2190 = vmatmul.bf16.gmra.mxu0 %v873
      %v2191 = vpop.f32.mrf.mxu0
      %v2192 = vadd.f32 0.0, %v2191
      %v2193 = vpop.f32.mrf.mxu0
      %v2194 = vadd.f32 0.0, %v2193
      %2195 = vmatmul.bf16.gmra.mxu0 %v876
      %v2196 = vpop.f32.mrf.mxu0
      %v2197 = vadd.f32 0.0, %v2196
      %v2198 = vpop.f32.mrf.mxu0
      %v2199 = vadd.f32 0.0, %v2198
      %2200 = vmatmul.bf16.gmra.mxu0 %v879
      %v2201 = vpop.f32.mrf.mxu0
      %v2202 = vadd.f32 0.0, %v2201
      %v2203 = vpop.f32.mrf.mxu0
      %v2204 = vadd.f32 0.0, %v2203
      %2205 = vmatmul.bf16.gmra.mxu0 %v882
      %v2206 = vpop.f32.mrf.mxu0
      %v2207 = vadd.f32 0.0, %v2206
      %v2208 = vpop.f32.mrf.mxu0
      %v2209 = vadd.f32 0.0, %v2208
      %2210 = vmatmul.bf16.gmra.mxu0 %v885
      %v2211 = vpop.f32.mrf.mxu0
      %v2212 = vadd.f32 0.0, %v2211
      %v2213 = vpop.f32.mrf.mxu0
      %v2214 = vadd.f32 0.0, %v2213
      %2215 = vmatmul.bf16.gmra.mxu0 %v888
      %v2216 = vpop.f32.mrf.mxu0
      %v2217 = vadd.f32 0.0, %v2216
      %v2218 = vpop.f32.mrf.mxu0
      %v2219 = vadd.f32 0.0, %v2218
      %2220 = vmatmul.bf16.gmra.mxu0 %v891
      %v2221 = vpop.f32.mrf.mxu0
      %v2222 = vadd.f32 0.0, %v2221
      %v2223 = vpop.f32.mrf.mxu0
      %v2224 = vadd.f32 0.0, %v2223
      %2225 = vmatmul.bf16.gmra.mxu0 %v894
      %v2226 = vpop.f32.mrf.mxu0
      %v2227 = vadd.f32 0.0, %v2226
      %v2228 = vpop.f32.mrf.mxu0
      %v2229 = vadd.f32 0.0, %v2228
      %2230 = vmatmul.bf16.gmra.mxu0 %v897
      %v2231 = vpop.f32.mrf.mxu0
      %v2232 = vadd.f32 0.0, %v2231
      %v2233 = vpop.f32.mrf.mxu0
      %v2234 = vadd.f32 0.0, %v2233
      %2235 = vmatmul.bf16.gmra.mxu0 %v900
      %v2236 = vpop.f32.mrf.mxu0
      %v2237 = vadd.f32 0.0, %v2236
      %v2238 = vpop.f32.mrf.mxu0
      %v2239 = vadd.f32 0.0, %v2238
      %2240 = vmatmul.bf16.gmra.mxu0 %v903
      %v2241 = vpop.f32.mrf.mxu0
      %v2242 = vadd.f32 0.0, %v2241
      %v2243 = vpop.f32.mrf.mxu0
      %v2244 = vadd.f32 0.0, %v2243
      %2245 = vmatmul.bf16.gmra.mxu0 %v906
      %v2246 = vpop.f32.mrf.mxu0
      %v2247 = vadd.f32 0.0, %v2246
      %v2248 = vpop.f32.mrf.mxu0
      %v2249 = vadd.f32 0.0, %v2248
      %2250 = vmatmul.bf16.gmra.mxu0 %v909
      %v2251 = vpop.f32.mrf.mxu0
      %v2252 = vadd.f32 0.0, %v2251
      %v2253 = vpop.f32.mrf.mxu0
      %v2254 = vadd.f32 0.0, %v2253
      %2255 = vmatmul.bf16.gmra.mxu0 %v912
      %v2256 = vpop.f32.mrf.mxu0
      %v2257 = vadd.f32 0.0, %v2256
      %v2258 = vpop.f32.mrf.mxu0
      %v2259 = vadd.f32 0.0, %v2258
      %2260 = vmatmul.bf16.gmra.mxu0 %v915
      %v2261 = vpop.f32.mrf.mxu0
      %v2262 = vadd.f32 0.0, %v2261
      %v2263 = vpop.f32.mrf.mxu0
      %2264 = vdwg.mxu0
      %v2265 = vrot.slane %v1922, 1
      %v2266 = vrot.slane %v1924, 1
      %v2267 = vrot.slane %v1927, 1
      %v2268 = vrot.slane %v1929, 1
      %v2269 = vrot.slane %v1932, 1
      %v2270 = vrot.slane %v1934, 1
      %v2271 = vrot.slane %v1937, 1
      %v2272 = vrot.slane %v1939, 1
      %v2273 = vrot.slane %v1942, 1
      %v2274 = vrot.slane %v1944, 1
      %v2275 = vrot.slane %v1947, 1
      %v2276 = vrot.slane %v1949, 1
      %v2277 = vrot.slane %v1952, 1
      %v2278 = vrot.slane %v1954, 1
      %v2279 = vrot.slane %v1957, 1
      %v2280 = vrot.slane %v1959, 1
      %v2281 = vrot.slane %v1962, 1
      %v2282 = vrot.slane %v1964, 1
      %v2283 = vrot.slane %v1967, 1
      %v2284 = vrot.slane %v1969, 1
      %v2285 = vrot.slane %v1972, 1
      %v2286 = vrot.slane %v1974, 1
      %v2287 = vrot.slane %v1977, 1
      %v2288 = vrot.slane %v1979, 1
      %v2289 = vrot.slane %v1982, 1
      %v2290 = vrot.slane %v1984, 1
      %v2291 = vrot.slane %v1987, 1
      %v2292 = vrot.slane %v1989, 1
      %v2293 = vrot.slane %v1992, 1
      %v2294 = vrot.slane %v1994, 1
      %v2295 = vrot.slane %v1997, 1
      %v2296 = vrot.slane %v1999, 1
      %v2297 = vrot.slane %v2002, 1
      %v2298 = vrot.slane %v2004, 1
      %v2299 = vrot.slane %v2007, 1
      %v2300 = vrot.slane %v2009, 1
      %v2301 = vrot.slane %v2012, 1
      %v2302 = vrot.slane %v2014, 1
      %v2303 = vrot.slane %v2017, 1
      %v2304 = vrot.slane %v2019, 1
      %v2305 = vrot.slane %v2022, 1
      %v2306 = vrot.slane %v2024, 1
      %v2307 = vrot.slane %v2027, 1
      %v2308 = vrot.slane %v2029, 1
      %v2309 = vrot.slane %v2032, 1
      %v2310 = vrot.slane %v2034, 1
      %v2311 = vrot.slane %v2037, 1
      %v2312 = vrot.slane %v2039, 1
      %v2313 = vrot.slane %v2042, 1
      %v2314 = vrot.slane %v2044, 1
      %v2315 = vrot.slane %v2047, 1
      %v2316 = vrot.slane %v2049, 1
      %v2317 = vrot.slane %v2052, 1
      %v2318 = vrot.slane %v2054, 1
      %v2319 = vrot.slane %v2057, 1
      %v2320 = vrot.slane %v2059, 1
      %v2321 = vrot.slane %v2062, 1
      %v2322 = vrot.slane %v2064, 1
      %v2323 = vrot.slane %v2067, 1
      %v2324 = vrot.slane %v2069, 1
      %v2325 = vrot.slane %v2072, 1
      %v2326 = vrot.slane %v2074, 1
      %v2327 = vrot.slane %v2077, 1
      %v2328 = vrot.slane %v2079, 1
      %v2329 = vrot.slane %v2082, 1
      %v2330 = vrot.slane %v2084, 1
      %v2331 = vrot.slane %v2087, 1
      %v2332 = vrot.slane %v2089, 1
      %v2333 = vrot.slane %v2092, 1
      %v2334 = vrot.slane %v2094, 1
      %v2335 = vrot.slane %v2097, 1
      %v2336 = vrot.slane %v2099, 1
      %v2337 = vrot.slane %v2102, 1
      %v2338 = vrot.slane %v2104, 1
      %v2339 = vrot.slane %v2107, 1
      %v2340 = vrot.slane %v2109, 1
      %v2341 = vrot.slane %v2112, 1
      %v2342 = vrot.slane %v2114, 1
      %v2343 = vrot.slane %v2117, 1
      %v2344 = vrot.slane %v2119, 1
      %v2345 = vrot.slane %v2122, 1
      %v2346 = vrot.slane %v2124, 1
      %v2347 = vrot.slane %v2127, 1
      %v2348 = vrot.slane %v2129, 1
      %v2349 = vrot.slane %v2132, 1
      %v2350 = vrot.slane %v2134, 1
      %v2351 = vrot.slane %v2137, 1
      %v2352 = vrot.slane %v2139, 1
      %v2353 = vrot.slane %v2142, 1
      %v2354 = vrot.slane %v2144, 1
      %v2355 = vrot.slane %v2147, 1
      %v2356 = vrot.slane %v2149, 1
      %v2357 = vrot.slane %v2152, 1
      %v2358 = vrot.slane %v2154, 1
      %v2359 = vrot.slane %v2157, 1
      %v2360 = vrot.slane %v2159, 1
      %v2361 = vrot.slane %v2162, 1
      %v2362 = vrot.slane %v2164, 1
      %v2363 = vrot.slane %v2167, 1
      %v2364 = vrot.slane %v2169, 1
      %v2365 = vrot.slane %v2172, 1
      %v2366 = vrot.slane %v2174, 1
      %v2367 = vrot.slane %v2177, 1
      %v2368 = vrot.slane %v2179, 1
      %v2369 = vrot.slane %v2182, 1
      %v2370 = vrot.slane %v2184, 1
      %v2371 = vrot.slane %v2187, 1
      %v2372 = vrot.slane %v2189, 1
      %v2373 = vrot.slane %v2192, 1
      %v2374 = vrot.slane %v2194, 1
      %v2375 = vrot.slane %v2197, 1
      %v2376 = vrot.slane %v2199, 1
      %v2377 = vrot.slane %v2202, 1
      %v2378 = vrot.slane %v2204, 1
      %v2379 = vrot.slane %v2207, 1
      %v2380 = vrot.slane %v2209, 1
      %v2381 = vrot.slane %v2212, 1
      %v2382 = vrot.slane %v2214, 1
      %v2383 = vrot.slane %v2217, 1
      %v2384 = vrot.slane %v2219, 1
      %v2385 = vrot.slane %v2222, 1
      %v2386 = vrot.slane %v2224, 1
      %v2387 = vrot.slane %v2227, 1
      %v2388 = vrot.slane %v2229, 1
      %v2389 = vrot.slane %v2232, 1
      %v2390 = vrot.slane %v2234, 1
      %v2391 = vrot.slane %v2237, 1
      %v2392 = vrot.slane %v2239, 1
      %v2393 = vrot.slane %v2242, 1
      %v2394 = vrot.slane %v2244, 1
      %v2395 = vrot.slane %v2247, 1
      %v2396 = vrot.slane %v2249, 1
      %v2397 = vrot.slane %v2252, 1
      %v2398 = vrot.slane %v2254, 1
      %v2399 = vrot.slane %v2257, 1
      %v2400 = vrot.slane %v2259, 1
      %v2401 = vrot.slane %v2262, 1
      %v2402 = vsel %vm1413, %v2400, %v2401
      %v2403 = vsel %vm1413, %v2399, %v2400
      %v2404 = vsel %vm1413, %v2398, %v2399
      %v2405 = vsel %vm1413, %v2397, %v2398
      %v2406 = vsel %vm1413, %v2396, %v2397
      %v2407 = vsel %vm1413, %v2395, %v2396
      %v2408 = vsel %vm1413, %v2394, %v2395
      %v2409 = vsel %vm1413, %v2393, %v2394
      %v2410 = vsel %vm1413, %v2392, %v2393
      %v2411 = vsel %vm1413, %v2391, %v2392
      %v2412 = vsel %vm1413, %v2390, %v2391
      %v2413 = vsel %vm1413, %v2389, %v2390
      %v2414 = vsel %vm1413, %v2388, %v2389
      %v2415 = vsel %vm1413, %v2387, %v2388
      %v2416 = vsel %vm1413, %v2386, %v2387
      %v2417 = vsel %vm1413, %v2385, %v2386
      %v2418 = vsel %vm1413, %v2384, %v2385
      %v2419 = vsel %vm1413, %v2383, %v2384
      %v2420 = vsel %vm1413, %v2382, %v2383
      %v2421 = vsel %vm1413, %v2381, %v2382
      %v2422 = vsel %vm1413, %v2380, %v2381
      %v2423 = vsel %vm1413, %v2379, %v2380
      %v2424 = vsel %vm1413, %v2378, %v2379
      %v2425 = vsel %vm1413, %v2377, %v2378
      %v2426 = vsel %vm1413, %v2376, %v2377
      %v2427 = vsel %vm1413, %v2375, %v2376
      %v2428 = vsel %vm1413, %v2374, %v2375
      %v2429 = vsel %vm1413, %v2373, %v2374
      %v2430 = vsel %vm1413, %v2372, %v2373
      %v2431 = vsel %vm1413, %v2371, %v2372
      %v2432 = vsel %vm1413, %v2370, %v2371
      %v2433 = vsel %vm1413, %v2369, %v2370
      %v2434 = vsel %vm1413, %v2368, %v2369
      %v2435 = vsel %vm1413, %v2367, %v2368
      %v2436 = vsel %vm1413, %v2366, %v2367
      %v2437 = vsel %vm1413, %v2365, %v2366
      %v2438 = vsel %vm1413, %v2364, %v2365
      %v2439 = vsel %vm1413, %v2363, %v2364
      %v2440 = vsel %vm1413, %v2362, %v2363
      %v2441 = vsel %vm1413, %v2361, %v2362
      %v2442 = vsel %vm1413, %v2360, %v2361
      %v2443 = vsel %vm1413, %v2359, %v2360
      %v2444 = vsel %vm1413, %v2358, %v2359
      %v2445 = vsel %vm1413, %v2357, %v2358
      %v2446 = vsel %vm1413, %v2356, %v2357
      %v2447 = vsel %vm1413, %v2355, %v2356
      %v2448 = vsel %vm1413, %v2354, %v2355
      %v2449 = vsel %vm1413, %v2353, %v2354
      %v2450 = vsel %vm1413, %v2352, %v2353
      %v2451 = vsel %vm1413, %v2351, %v2352
      %v2452 = vsel %vm1413, %v2350, %v2351
      %v2453 = vsel %vm1413, %v2349, %v2350
      %v2454 = vsel %vm1413, %v2348, %v2349
      %v2455 = vsel %vm1413, %v2347, %v2348
      %v2456 = vsel %vm1413, %v2346, %v2347
      %v2457 = vsel %vm1413, %v2345, %v2346
      %v2458 = vsel %vm1413, %v2344, %v2345
      %v2459 = vsel %vm1413, %v2343, %v2344
      %v2460 = vsel %vm1413, %v2342, %v2343
      %v2461 = vsel %vm1413, %v2341, %v2342
      %v2462 = vsel %vm1413, %v2340, %v2341
      %v2463 = vsel %vm1413, %v2339, %v2340
      %v2464 = vsel %vm1413, %v2338, %v2339
      %v2465 = vsel %vm1413, %v2337, %v2338
      %v2466 = vsel %vm1413, %v2336, %v2337
      %v2467 = vsel %vm1413, %v2335, %v2336
      %v2468 = vsel %vm1413, %v2334, %v2335
      %v2469 = vsel %vm1413, %v2333, %v2334
      %v2470 = vsel %vm1413, %v2332, %v2333
      %v2471 = vsel %vm1413, %v2331, %v2332
      %v2472 = vsel %vm1413, %v2330, %v2331
      %v2473 = vsel %vm1413, %v2329, %v2330
      %v2474 = vsel %vm1413, %v2328, %v2329
      %v2475 = vsel %vm1413, %v2327, %v2328
      %v2476 = vsel %vm1413, %v2326, %v2327
      %v2477 = vsel %vm1413, %v2325, %v2326
      %v2478 = vsel %vm1413, %v2324, %v2325
      %v2479 = vsel %vm1413, %v2323, %v2324
      %v2480 = vsel %vm1413, %v2322, %v2323
      %v2481 = vsel %vm1413, %v2321, %v2322
      %v2482 = vsel %vm1413, %v2320, %v2321
      %v2483 = vsel %vm1413, %v2319, %v2320
      %v2484 = vsel %vm1413, %v2318, %v2319
      %v2485 = vsel %vm1413, %v2317, %v2318
      %v2486 = vsel %vm1413, %v2316, %v2317
      %v2487 = vsel %vm1413, %v2315, %v2316
      %v2488 = vsel %vm1413, %v2314, %v2315
      %v2489 = vsel %vm1413, %v2313, %v2314
      %v2490 = vsel %vm1413, %v2312, %v2313
      %v2491 = vsel %vm1413, %v2311, %v2312
      %v2492 = vsel %vm1413, %v2310, %v2311
      %v2493 = vsel %vm1413, %v2309, %v2310
      %v2494 = vsel %vm1413, %v2308, %v2309
      %v2495 = vsel %vm1413, %v2307, %v2308
      %v2496 = vsel %vm1413, %v2306, %v2307
      %v2497 = vsel %vm1413, %v2305, %v2306
      %v2498 = vsel %vm1413, %v2304, %v2305
      %v2499 = vsel %vm1413, %v2303, %v2304
      %v2500 = vsel %vm1413, %v2302, %v2303
      %v2501 = vsel %vm1413, %v2301, %v2302
      %v2502 = vsel %vm1413, %v2300, %v2301
      %v2503 = vsel %vm1413, %v2299, %v2300
      %v2504 = vsel %vm1413, %v2298, %v2299
      %v2505 = vsel %vm1413, %v2297, %v2298
      %v2506 = vsel %vm1413, %v2296, %v2297
      %v2507 = vsel %vm1413, %v2295, %v2296
      %v2508 = vsel %vm1413, %v2294, %v2295
      %v2509 = vsel %vm1413, %v2293, %v2294
      %v2510 = vsel %vm1413, %v2292, %v2293
      %v2511 = vsel %vm1413, %v2291, %v2292
      %v2512 = vsel %vm1413, %v2290, %v2291
      %v2513 = vsel %vm1413, %v2289, %v2290
      %v2514 = vsel %vm1413, %v2288, %v2289
      %v2515 = vsel %vm1413, %v2287, %v2288
      %v2516 = vsel %vm1413, %v2286, %v2287
      %v2517 = vsel %vm1413, %v2285, %v2286
      %v2518 = vsel %vm1413, %v2284, %v2285
      %v2519 = vsel %vm1413, %v2283, %v2284
      %v2520 = vsel %vm1413, %v2282, %v2283
      %v2521 = vsel %vm1413, %v2281, %v2282
      %v2522 = vsel %vm1413, %v2280, %v2281
      %v2523 = vsel %vm1413, %v2279, %v2280
      %v2524 = vsel %vm1413, %v2278, %v2279
      %v2525 = vsel %vm1413, %v2277, %v2278
      %v2526 = vsel %vm1413, %v2276, %v2277
      %v2527 = vsel %vm1413, %v2275, %v2276
      %v2528 = vsel %vm1413, %v2274, %v2275
      %v2529 = vsel %vm1413, %v2273, %v2274
      %v2530 = vsel %vm1413, %v2272, %v2273
      %v2531 = vsel %vm1413, %v2271, %v2272
      %v2532 = vsel %vm1413, %v2270, %v2271
      %v2533 = vsel %vm1413, %v2269, %v2270
      %v2534 = vsel %vm1413, %v2268, %v2269
      %v2535 = vsel %vm1413, %v2267, %v2268
      %v2536 = vsel %vm1413, %v2266, %v2267
      %v2537 = vsel %vm1413, %v2265, %v2266
      %v2538 = vsel %vm1413, %v2401, %v2265
      %v2539 = vadd.f32 %v1564, %v2533
      %v2540 = vadd.f32 %v1566, %v2532
      %v2541 = vadd.f32 %v1569, %v2531
      %v2542 = vadd.f32 %v1571, %v2530
      %v2543 = vadd.f32 %v1574, %v2529
      %v2544 = vadd.f32 %v1576, %v2528
      %v2545 = vadd.f32 %v1579, %v2527
      %v2546 = vadd.f32 %v1581, %v2526
      %v2547 = vadd.f32 %v1584, %v2525
      %v2548 = vadd.f32 %v1586, %v2524
      %v2549 = vadd.f32 %v1589, %v2523
      %v2550 = vadd.f32 %v1591, %v2522
      %v2551 = vadd.f32 %v1594, %v2521
      %v2552 = vadd.f32 %v1596, %v2520
      %v2553 = vadd.f32 %v1599, %v2519
      %v2554 = vadd.f32 %v1601, %v2518
      %v2555 = vadd.f32 %v1604, %v2517
      %v2556 = vadd.f32 %v1606, %v2516
      %v2557 = vadd.f32 %v1609, %v2515
      %v2558 = vadd.f32 %v1611, %v2514
      %v2559 = vadd.f32 %v1614, %v2513
      %v2560 = vadd.f32 %v1616, %v2512
      %v2561 = vadd.f32 %v1619, %v2511
      %v2562 = vadd.f32 %v1621, %v2510
      %v2563 = vadd.f32 %v1624, %v2509
      %v2564 = vadd.f32 %v1626, %v2508
      %v2565 = vadd.f32 %v1629, %v2507
      %v2566 = vadd.f32 %v1631, %v2506
      %v2567 = vadd.f32 %v1634, %v2505
      %v2568 = vadd.f32 %v1636, %v2504
      %v2569 = vadd.f32 %v1639, %v2503
      %v2570 = vadd.f32 %v1641, %v2502
      %v2571 = vadd.f32 %v1644, %v2501
      %v2572 = vadd.f32 %v1646, %v2500
      %v2573 = vadd.f32 %v1649, %v2499
      %v2574 = vadd.f32 %v1651, %v2498
      %v2575 = vadd.f32 %v1654, %v2497
      %v2576 = vadd.f32 %v1656, %v2496
      %v2577 = vadd.f32 %v1659, %v2495
      %v2578 = vadd.f32 %v1661, %v2494
      %v2579 = vadd.f32 %v1664, %v2493
      %v2580 = vadd.f32 %v1666, %v2492
      %v2581 = vadd.f32 %v1669, %v2491
      %v2582 = vadd.f32 %v1671, %v2490
      %v2583 = vadd.f32 %v1674, %v2489
      %v2584 = vadd.f32 %v1676, %v2488
      %v2585 = vadd.f32 %v1679, %v2487
      %v2586 = vadd.f32 %v1681, %v2486
      %v2587 = vadd.f32 %v1684, %v2485
      %v2588 = vadd.f32 %v1686, %v2484
      %v2589 = vadd.f32 %v1689, %v2483
      %v2590 = vadd.f32 %v1691, %v2482
      %v2591 = vadd.f32 %v1694, %v2481
      %v2592 = vadd.f32 %v1696, %v2480
      %v2593 = vadd.f32 %v1699, %v2479
      %v2594 = vadd.f32 %v1701, %v2478
      %v2595 = vadd.f32 %v1704, %v2477
      %v2596 = vadd.f32 %v1706, %v2476
      %v2597 = vadd.f32 %v1709, %v2475
      %v2598 = vadd.f32 %v1711, %v2474
      %v2599 = vadd.f32 %v1714, %v2473
      %v2600 = vadd.f32 %v1716, %v2472
      %v2601 = vadd.f32 %v1719, %v2471
      %v2602 = vadd.f32 %v1721, %v2470
      %v2603 = vadd.f32 %v1724, %v2469
      %v2604 = vadd.f32 %v1726, %v2468
      %v2605 = vadd.f32 %v1729, %v2467
      %v2606 = vadd.f32 %v1731, %v2466
      %v2607 = vadd.f32 %v1734, %v2465
      %v2608 = vadd.f32 %v1736, %v2464
      %v2609 = vadd.f32 %v1739, %v2463
      %v2610 = vadd.f32 %v1741, %v2462
      %v2611 = vadd.f32 %v1744, %v2461
      %v2612 = vadd.f32 %v1746, %v2460
      %v2613 = vadd.f32 %v1749, %v2459
      %v2614 = vadd.f32 %v1751, %v2458
      %v2615 = vadd.f32 %v1754, %v2457
      %v2616 = vadd.f32 %v1756, %v2456
      %v2617 = vadd.f32 %v1759, %v2455
      %v2618 = vadd.f32 %v1761, %v2454
      %v2619 = vadd.f32 %v1764, %v2453
      %v2620 = vadd.f32 %v1766, %v2452
      %v2621 = vadd.f32 %v1769, %v2451
      %v2622 = vadd.f32 %v1771, %v2450
      %v2623 = vadd.f32 %v1774, %v2449
      %v2624 = vadd.f32 %v1776, %v2448
      %v2625 = vadd.f32 %v1779, %v2447
      %v2626 = vadd.f32 %v1781, %v2446
      %v2627 = vadd.f32 %v1784, %v2445
      %v2628 = vadd.f32 %v1786, %v2444
      %v2629 = vadd.f32 %v1789, %v2443
      %v2630 = vadd.f32 %v1791, %v2442
      %v2631 = vadd.f32 %v1794, %v2441
      %v2632 = vadd.f32 %v1796, %v2440
      %v2633 = vadd.f32 %v1799, %v2439
      %v2634 = vadd.f32 %v1801, %v2438
      %v2635 = vadd.f32 %v1804, %v2437
      %v2636 = vadd.f32 %v1806, %v2436
      %v2637 = vadd.f32 %v1809, %v2435
      %v2638 = vadd.f32 %v1811, %v2434
      %v2639 = vadd.f32 %v1814, %v2433
      %v2640 = vadd.f32 %v1816, %v2432
      %v2641 = vadd.f32 %v1819, %v2431
      %v2642 = vadd.f32 %v1821, %v2430
      %v2643 = vadd.f32 %v1824, %v2429
      %v2644 = vadd.f32 %v1826, %v2428
      %v2645 = vadd.f32 %v1829, %v2427
      %v2646 = vadd.f32 %v1831, %v2426
      %v2647 = vadd.f32 %v1834, %v2425
      %v2648 = vadd.f32 %v1836, %v2424
      %v2649 = vadd.f32 %v1839, %v2423
      %v2650 = vadd.f32 %v1841, %v2422
      %v2651 = vadd.f32 %v1844, %v2421
      %v2652 = vadd.f32 %v1846, %v2420
      %v2653 = vadd.f32 %v1849, %v2419
      %v2654 = vadd.f32 %v1851, %v2418
      %v2655 = vadd.f32 %v1854, %v2417
      %v2656 = vadd.f32 %v1856, %v2416
      %v2657 = vadd.f32 %v1859, %v2415
      %v2658 = vadd.f32 %v1861, %v2414
      %v2659 = vadd.f32 %v1864, %v2413
      %v2660 = vadd.f32 %v1866, %v2412
      %v2661 = vadd.f32 %v1869, %v2411
      %v2662 = vadd.f32 %v1871, %v2410
      %v2663 = vadd.f32 %v1874, %v2409
      %v2664 = vadd.f32 %v1876, %v2408
      %v2665 = vadd.f32 %v1879, %v2407
      %v2666 = vadd.f32 %v1881, %v2406
      %v2667 = vadd.f32 %v1884, %v2405
      %v2668 = vadd.f32 %v1886, %v2404
      %v2669 = vadd.f32 %v1889, %v2403
      %v2670 = vadd.f32 %v1891, %v2402
      %v2671 = vadd.f32 %v1894, %v2538
      %v2672 = vadd.f32 %v1896, %v2537
      %v2673 = vadd.f32 %v1899, %v2536
      %v2674 = vadd.f32 %v1901, %v2535
      %v2675 = vadd.f32 %v1904, %v2534
      %s2676 = scalar_lea.vmem %s212, 6
      %v2677 = vld [vmem:[%s2676] sm:$0x3]
      %v2679 = vsel %vm917, %v2677, 0
      %2681 = vmatpush.bf16.msra.mxu0 0
      %2682 = vmatpush.bf16.msra.mxu0 0
      %2683 = vmatpush.bf16.msra.mxu0 0
      %2684 = vmatpush.bf16.msra.mxu0 0
      %2685 = vmatpush.bf16.msra.mxu0 0
      %2686 = vmatpush.bf16.msra.mxu0 0
      %2687 = vmatpush.bf16.msra.mxu0 0
      %2688 = vmatpush.bf16.msra.mxu0 %v2679
      %2689 = vmatmul.bf16.gmra.mxu0 %v711
      %v2690 = vpop.f32.mrf.mxu0
      %v2691 = vadd.f32 0.0, %v2690
      %v2692 = vpop.f32.mrf.mxu0
      %v2693 = vadd.f32 0.0, %v2692
      %2694 = vmatmul.bf16.gmra.mxu0 %v714
      %v2695 = vpop.f32.mrf.mxu0
      %v2696 = vadd.f32 0.0, %v2695
      %v2697 = vpop.f32.mrf.mxu0
      %v2698 = vadd.f32 0.0, %v2697
      %2699 = vmatmul.bf16.gmra.mxu0 %v717
      %v2700 = vpop.f32.mrf.mxu0
      %v2701 = vadd.f32 0.0, %v2700
      %v2702 = vpop.f32.mrf.mxu0
      %v2703 = vadd.f32 0.0, %v2702
      %2704 = vmatmul.bf16.gmra.mxu0 %v720
      %v2705 = vpop.f32.mrf.mxu0
      %v2706 = vadd.f32 0.0, %v2705
      %v2707 = vpop.f32.mrf.mxu0
      %v2708 = vadd.f32 0.0, %v2707
      %2709 = vmatmul.bf16.gmra.mxu0 %v723
      %v2710 = vpop.f32.mrf.mxu0
      %v2711 = vadd.f32 0.0, %v2710
      %v2712 = vpop.f32.mrf.mxu0
      %v2713 = vadd.f32 0.0, %v2712
      %2714 = vmatmul.bf16.gmra.mxu0 %v726
      %v2715 = vpop.f32.mrf.mxu0
      %v2716 = vadd.f32 0.0, %v2715
      %v2717 = vpop.f32.mrf.mxu0
      %v2718 = vadd.f32 0.0, %v2717
      %2719 = vmatmul.bf16.gmra.mxu0 %v729
      %v2720 = vpop.f32.mrf.mxu0
      %v2721 = vadd.f32 0.0, %v2720
      %v2722 = vpop.f32.mrf.mxu0
      %v2723 = vadd.f32 0.0, %v2722
      %2724 = vmatmul.bf16.gmra.mxu0 %v732
      %v2725 = vpop.f32.mrf.mxu0
      %v2726 = vadd.f32 0.0, %v2725
      %v2727 = vpop.f32.mrf.mxu0
      %v2728 = vadd.f32 0.0, %v2727
      %2729 = vmatmul.bf16.gmra.mxu0 %v735
      %v2730 = vpop.f32.mrf.mxu0
      %v2731 = vadd.f32 0.0, %v2730
      %v2732 = vpop.f32.mrf.mxu0
      %v2733 = vadd.f32 0.0, %v2732
      %2734 = vmatmul.bf16.gmra.mxu0 %v738
      %v2735 = vpop.f32.mrf.mxu0
      %v2736 = vadd.f32 0.0, %v2735
      %v2737 = vpop.f32.mrf.mxu0
      %v2738 = vadd.f32 0.0, %v2737
      %2739 = vmatmul.bf16.gmra.mxu0 %v741
      %v2740 = vpop.f32.mrf.mxu0
      %v2741 = vadd.f32 0.0, %v2740
      %v2742 = vpop.f32.mrf.mxu0
      %v2743 = vadd.f32 0.0, %v2742
      %2744 = vmatmul.bf16.gmra.mxu0 %v744
      %v2745 = vpop.f32.mrf.mxu0
      %v2746 = vadd.f32 0.0, %v2745
      %v2747 = vpop.f32.mrf.mxu0
      %v2748 = vadd.f32 0.0, %v2747
      %2749 = vmatmul.bf16.gmra.mxu0 %v747
      %v2750 = vpop.f32.mrf.mxu0
      %v2751 = vadd.f32 0.0, %v2750
      %v2752 = vpop.f32.mrf.mxu0
      %v2753 = vadd.f32 0.0, %v2752
      %2754 = vmatmul.bf16.gmra.mxu0 %v750
      %v2755 = vpop.f32.mrf.mxu0
      %v2756 = vadd.f32 0.0, %v2755
      %v2757 = vpop.f32.mrf.mxu0
      %v2758 = vadd.f32 0.0, %v2757
      %2759 = vmatmul.bf16.gmra.mxu0 %v753
      %v2760 = vpop.f32.mrf.mxu0
      %v2761 = vadd.f32 0.0, %v2760
      %v2762 = vpop.f32.mrf.mxu0
      %v2763 = vadd.f32 0.0, %v2762
      %2764 = vmatmul.bf16.gmra.mxu0 %v756
      %v2765 = vpop.f32.mrf.mxu0
      %v2766 = vadd.f32 0.0, %v2765
      %v2767 = vpop.f32.mrf.mxu0
      %v2768 = vadd.f32 0.0, %v2767
      %2769 = vmatmul.bf16.gmra.mxu0 %v759
      %v2770 = vpop.f32.mrf.mxu0
      %v2771 = vadd.f32 0.0, %v2770
      %v2772 = vpop.f32.mrf.mxu0
      %v2773 = vadd.f32 0.0, %v2772
      %2774 = vmatmul.bf16.gmra.mxu0 %v762
      %v2775 = vpop.f32.mrf.mxu0
      %v2776 = vadd.f32 0.0, %v2775
      %v2777 = vpop.f32.mrf.mxu0
      %v2778 = vadd.f32 0.0, %v2777
      %2779 = vmatmul.bf16.gmra.mxu0 %v765
      %v2780 = vpop.f32.mrf.mxu0
      %v2781 = vadd.f32 0.0, %v2780
      %v2782 = vpop.f32.mrf.mxu0
      %v2783 = vadd.f32 0.0, %v2782
      %2784 = vmatmul.bf16.gmra.mxu0 %v768
      %v2785 = vpop.f32.mrf.mxu0
      %v2786 = vadd.f32 0.0, %v2785
      %v2787 = vpop.f32.mrf.mxu0
      %v2788 = vadd.f32 0.0, %v2787
      %2789 = vmatmul.bf16.gmra.mxu0 %v771
      %v2790 = vpop.f32.mrf.mxu0
      %v2791 = vadd.f32 0.0, %v2790
      %v2792 = vpop.f32.mrf.mxu0
      %v2793 = vadd.f32 0.0, %v2792
      %2794 = vmatmul.bf16.gmra.mxu0 %v774
      %v2795 = vpop.f32.mrf.mxu0
      %v2796 = vadd.f32 0.0, %v2795
      %v2797 = vpop.f32.mrf.mxu0
      %v2798 = vadd.f32 0.0, %v2797
      %2799 = vmatmul.bf16.gmra.mxu0 %v777
      %v2800 = vpop.f32.mrf.mxu0
      %v2801 = vadd.f32 0.0, %v2800
      %v2802 = vpop.f32.mrf.mxu0
      %v2803 = vadd.f32 0.0, %v2802
      %2804 = vmatmul.bf16.gmra.mxu0 %v780
      %v2805 = vpop.f32.mrf.mxu0
      %v2806 = vadd.f32 0.0, %v2805
      %v2807 = vpop.f32.mrf.mxu0
      %v2808 = vadd.f32 0.0, %v2807
      %2809 = vmatmul.bf16.gmra.mxu0 %v783
      %v2810 = vpop.f32.mrf.mxu0
      %v2811 = vadd.f32 0.0, %v2810
      %v2812 = vpop.f32.mrf.mxu0
      %v2813 = vadd.f32 0.0, %v2812
      %2814 = vmatmul.bf16.gmra.mxu0 %v786
      %v2815 = vpop.f32.mrf.mxu0
      %v2816 = vadd.f32 0.0, %v2815
      %v2817 = vpop.f32.mrf.mxu0
      %v2818 = vadd.f32 0.0, %v2817
      %2819 = vmatmul.bf16.gmra.mxu0 %v789
      %v2820 = vpop.f32.mrf.mxu0
      %v2821 = vadd.f32 0.0, %v2820
      %v2822 = vpop.f32.mrf.mxu0
      %v2823 = vadd.f32 0.0, %v2822
      %2824 = vmatmul.bf16.gmra.mxu0 %v792
      %v2825 = vpop.f32.mrf.mxu0
      %v2826 = vadd.f32 0.0, %v2825
      %v2827 = vpop.f32.mrf.mxu0
      %v2828 = vadd.f32 0.0, %v2827
      %2829 = vmatmul.bf16.gmra.mxu0 %v795
      %v2830 = vpop.f32.mrf.mxu0
      %v2831 = vadd.f32 0.0, %v2830
      %v2832 = vpop.f32.mrf.mxu0
      %v2833 = vadd.f32 0.0, %v2832
      %2834 = vmatmul.bf16.gmra.mxu0 %v798
      %v2835 = vpop.f32.mrf.mxu0
      %v2836 = vadd.f32 0.0, %v2835
      %v2837 = vpop.f32.mrf.mxu0
      %v2838 = vadd.f32 0.0, %v2837
      %2839 = vmatmul.bf16.gmra.mxu0 %v801
      %v2840 = vpop.f32.mrf.mxu0
      %v2841 = vadd.f32 0.0, %v2840
      %v2842 = vpop.f32.mrf.mxu0
      %v2843 = vadd.f32 0.0, %v2842
      %2844 = vmatmul.bf16.gmra.mxu0 %v804
      %v2845 = vpop.f32.mrf.mxu0
      %v2846 = vadd.f32 0.0, %v2845
      %v2847 = vpop.f32.mrf.mxu0
      %v2848 = vadd.f32 0.0, %v2847
      %2849 = vmatmul.bf16.gmra.mxu0 %v807
      %v2850 = vpop.f32.mrf.mxu0
      %v2851 = vadd.f32 0.0, %v2850
      %v2852 = vpop.f32.mrf.mxu0
      %v2853 = vadd.f32 0.0, %v2852
      %2854 = vmatmul.bf16.gmra.mxu0 %v810
      %v2855 = vpop.f32.mrf.mxu0
      %v2856 = vadd.f32 0.0, %v2855
      %v2857 = vpop.f32.mrf.mxu0
      %v2858 = vadd.f32 0.0, %v2857
      %2859 = vmatmul.bf16.gmra.mxu0 %v813
      %v2860 = vpop.f32.mrf.mxu0
      %v2861 = vadd.f32 0.0, %v2860
      %v2862 = vpop.f32.mrf.mxu0
      %v2863 = vadd.f32 0.0, %v2862
      %2864 = vmatmul.bf16.gmra.mxu0 %v816
      %v2865 = vpop.f32.mrf.mxu0
      %v2866 = vadd.f32 0.0, %v2865
      %v2867 = vpop.f32.mrf.mxu0
      %v2868 = vadd.f32 0.0, %v2867
      %2869 = vmatmul.bf16.gmra.mxu0 %v819
      %v2870 = vpop.f32.mrf.mxu0
      %v2871 = vadd.f32 0.0, %v2870
      %v2872 = vpop.f32.mrf.mxu0
      %v2873 = vadd.f32 0.0, %v2872
      %2874 = vmatmul.bf16.gmra.mxu0 %v822
      %v2875 = vpop.f32.mrf.mxu0
      %v2876 = vadd.f32 0.0, %v2875
      %v2877 = vpop.f32.mrf.mxu0
      %v2878 = vadd.f32 0.0, %v2877
      %2879 = vmatmul.bf16.gmra.mxu0 %v825
      %v2880 = vpop.f32.mrf.mxu0
      %v2881 = vadd.f32 0.0, %v2880
      %v2882 = vpop.f32.mrf.mxu0
      %v2883 = vadd.f32 0.0, %v2882
      %2884 = vmatmul.bf16.gmra.mxu0 %v828
      %v2885 = vpop.f32.mrf.mxu0
      %v2886 = vadd.f32 0.0, %v2885
      %v2887 = vpop.f32.mrf.mxu0
      %v2888 = vadd.f32 0.0, %v2887
      %2889 = vmatmul.bf16.gmra.mxu0 %v831
      %v2890 = vpop.f32.mrf.mxu0
      %v2891 = vadd.f32 0.0, %v2890
      %v2892 = vpop.f32.mrf.mxu0
      %v2893 = vadd.f32 0.0, %v2892
      %2894 = vmatmul.bf16.gmra.mxu0 %v834
      %v2895 = vpop.f32.mrf.mxu0
      %v2896 = vadd.f32 0.0, %v2895
      %v2897 = vpop.f32.mrf.mxu0
      %v2898 = vadd.f32 0.0, %v2897
      %2899 = vmatmul.bf16.gmra.mxu0 %v837
      %v2900 = vpop.f32.mrf.mxu0
      %v2901 = vadd.f32 0.0, %v2900
      %v2902 = vpop.f32.mrf.mxu0
      %v2903 = vadd.f32 0.0, %v2902
      %2904 = vmatmul.bf16.gmra.mxu0 %v840
      %v2905 = vpop.f32.mrf.mxu0
      %v2906 = vadd.f32 0.0, %v2905
      %v2907 = vpop.f32.mrf.mxu0
      %v2908 = vadd.f32 0.0, %v2907
      %2909 = vmatmul.bf16.gmra.mxu0 %v843
      %v2910 = vpop.f32.mrf.mxu0
      %v2911 = vadd.f32 0.0, %v2910
      %v2912 = vpop.f32.mrf.mxu0
      %v2913 = vadd.f32 0.0, %v2912
      %2914 = vmatmul.bf16.gmra.mxu0 %v846
      %v2915 = vpop.f32.mrf.mxu0
      %v2916 = vadd.f32 0.0, %v2915
      %v2917 = vpop.f32.mrf.mxu0
      %v2918 = vadd.f32 0.0, %v2917
      %2919 = vmatmul.bf16.gmra.mxu0 %v849
      %v2920 = vpop.f32.mrf.mxu0
      %v2921 = vadd.f32 0.0, %v2920
      %v2922 = vpop.f32.mrf.mxu0
      %v2923 = vadd.f32 0.0, %v2922
      %2924 = vmatmul.bf16.gmra.mxu0 %v852
      %v2925 = vpop.f32.mrf.mxu0
      %v2926 = vadd.f32 0.0, %v2925
      %v2927 = vpop.f32.mrf.mxu0
      %v2928 = vadd.f32 0.0, %v2927
      %2929 = vmatmul.bf16.gmra.mxu0 %v855
      %v2930 = vpop.f32.mrf.mxu0
      %v2931 = vadd.f32 0.0, %v2930
      %v2932 = vpop.f32.mrf.mxu0
      %v2933 = vadd.f32 0.0, %v2932
      %2934 = vmatmul.bf16.gmra.mxu0 %v858
      %v2935 = vpop.f32.mrf.mxu0
      %v2936 = vadd.f32 0.0, %v2935
      %v2937 = vpop.f32.mrf.mxu0
      %v2938 = vadd.f32 0.0, %v2937
      %2939 = vmatmul.bf16.gmra.mxu0 %v861
      %v2940 = vpop.f32.mrf.mxu0
      %v2941 = vadd.f32 0.0, %v2940
      %v2942 = vpop.f32.mrf.mxu0
      %v2943 = vadd.f32 0.0, %v2942
      %2944 = vmatmul.bf16.gmra.mxu0 %v864
      %v2945 = vpop.f32.mrf.mxu0
      %v2946 = vadd.f32 0.0, %v2945
      %v2947 = vpop.f32.mrf.mxu0
      %v2948 = vadd.f32 0.0, %v2947
      %2949 = vmatmul.bf16.gmra.mxu0 %v867
      %v2950 = vpop.f32.mrf.mxu0
      %v2951 = vadd.f32 0.0, %v2950
      %v2952 = vpop.f32.mrf.mxu0
      %v2953 = vadd.f32 0.0, %v2952
      %2954 = vmatmul.bf16.gmra.mxu0 %v870
      %v2955 = vpop.f32.mrf.mxu0
      %v2956 = vadd.f32 0.0, %v2955
      %v2957 = vpop.f32.mrf.mxu0
      %v2958 = vadd.f32 0.0, %v2957
      %2959 = vmatmul.bf16.gmra.mxu0 %v873
      %v2960 = vpop.f32.mrf.mxu0
      %v2961 = vadd.f32 0.0, %v2960
      %v2962 = vpop.f32.mrf.mxu0
      %v2963 = vadd.f32 0.0, %v2962
      %2964 = vmatmul.bf16.gmra.mxu0 %v876
      %v2965 = vpop.f32.mrf.mxu0
      %v2966 = vadd.f32 0.0, %v2965
      %v2967 = vpop.f32.mrf.mxu0
      %v2968 = vadd.f32 0.0, %v2967
      %2969 = vmatmul.bf16.gmra.mxu0 %v879
      %v2970 = vpop.f32.mrf.mxu0
      %v2971 = vadd.f32 0.0, %v2970
      %v2972 = vpop.f32.mrf.mxu0
      %v2973 = vadd.f32 0.0, %v2972
      %2974 = vmatmul.bf16.gmra.mxu0 %v882
      %v2975 = vpop.f32.mrf.mxu0
      %v2976 = vadd.f32 0.0, %v2975
      %v2977 = vpop.f32.mrf.mxu0
      %v2978 = vadd.f32 0.0, %v2977
      %2979 = vmatmul.bf16.gmra.mxu0 %v885
      %v2980 = vpop.f32.mrf.mxu0
      %v2981 = vadd.f32 0.0, %v2980
      %v2982 = vpop.f32.mrf.mxu0
      %v2983 = vadd.f32 0.0, %v2982
      %2984 = vmatmul.bf16.gmra.mxu0 %v888
      %v2985 = vpop.f32.mrf.mxu0
      %v2986 = vadd.f32 0.0, %v2985
      %v2987 = vpop.f32.mrf.mxu0
      %v2988 = vadd.f32 0.0, %v2987
      %2989 = vmatmul.bf16.gmra.mxu0 %v891
      %v2990 = vpop.f32.mrf.mxu0
      %v2991 = vadd.f32 0.0, %v2990
      %v2992 = vpop.f32.mrf.mxu0
      %v2993 = vadd.f32 0.0, %v2992
      %2994 = vmatmul.bf16.gmra.mxu0 %v894
      %v2995 = vpop.f32.mrf.mxu0
      %v2996 = vadd.f32 0.0, %v2995
      %v2997 = vpop.f32.mrf.mxu0
      %v2998 = vadd.f32 0.0, %v2997
      %2999 = vmatmul.bf16.gmra.mxu0 %v897
      %v3000 = vpop.f32.mrf.mxu0
      %v3001 = vadd.f32 0.0, %v3000
      %v3002 = vpop.f32.mrf.mxu0
      %v3003 = vadd.f32 0.0, %v3002
      %3004 = vmatmul.bf16.gmra.mxu0 %v900
      %v3005 = vpop.f32.mrf.mxu0
      %v3006 = vadd.f32 0.0, %v3005
      %v3007 = vpop.f32.mrf.mxu0
      %v3008 = vadd.f32 0.0, %v3007
      %3009 = vmatmul.bf16.gmra.mxu0 %v903
      %v3010 = vpop.f32.mrf.mxu0
      %v3011 = vadd.f32 0.0, %v3010
      %v3012 = vpop.f32.mrf.mxu0
      %v3013 = vadd.f32 0.0, %v3012
      %3014 = vmatmul.bf16.gmra.mxu0 %v906
      %v3015 = vpop.f32.mrf.mxu0
      %v3016 = vadd.f32 0.0, %v3015
      %v3017 = vpop.f32.mrf.mxu0
      %v3018 = vadd.f32 0.0, %v3017
      %3019 = vmatmul.bf16.gmra.mxu0 %v909
      %v3020 = vpop.f32.mrf.mxu0
      %v3021 = vadd.f32 0.0, %v3020
      %v3022 = vpop.f32.mrf.mxu0
      %v3023 = vadd.f32 0.0, %v3022
      %3024 = vmatmul.bf16.gmra.mxu0 %v912
      %v3025 = vpop.f32.mrf.mxu0
      %v3026 = vadd.f32 0.0, %v3025
      %v3027 = vpop.f32.mrf.mxu0
      %v3028 = vadd.f32 0.0, %v3027
      %3029 = vmatmul.bf16.gmra.mxu0 %v915
      %v3030 = vpop.f32.mrf.mxu0
      %v3031 = vadd.f32 0.0, %v3030
      %v3032 = vpop.f32.mrf.mxu0
      %3033 = vdwg.mxu0
      %v3034 = vrot.slane %v2691, 2
      %v3035 = vrot.slane %v2693, 2
      %v3036 = vrot.slane %v2696, 2
      %v3037 = vrot.slane %v2698, 2
      %v3038 = vrot.slane %v2701, 2
      %v3039 = vrot.slane %v2703, 2
      %v3040 = vrot.slane %v2706, 2
      %v3041 = vrot.slane %v2708, 2
      %v3042 = vrot.slane %v2711, 2
      %v3043 = vrot.slane %v2713, 2
      %v3044 = vrot.slane %v2716, 2
      %v3045 = vrot.slane %v2718, 2
      %v3046 = vrot.slane %v2721, 2
      %v3047 = vrot.slane %v2723, 2
      %v3048 = vrot.slane %v2726, 2
      %v3049 = vrot.slane %v2728, 2
      %v3050 = vrot.slane %v2731, 2
      %v3051 = vrot.slane %v2733, 2
      %v3052 = vrot.slane %v2736, 2
      %v3053 = vrot.slane %v2738, 2
      %v3054 = vrot.slane %v2741, 2
      %v3055 = vrot.slane %v2743, 2
      %v3056 = vrot.slane %v2746, 2
      %v3057 = vrot.slane %v2748, 2
      %v3058 = vrot.slane %v2751, 2
      %v3059 = vrot.slane %v2753, 2
      %v3060 = vrot.slane %v2756, 2
      %v3061 = vrot.slane %v2758, 2
      %v3062 = vrot.slane %v2761, 2
      %v3063 = vrot.slane %v2763, 2
      %v3064 = vrot.slane %v2766, 2
      %v3065 = vrot.slane %v2768, 2
      %v3066 = vrot.slane %v2771, 2
      %v3067 = vrot.slane %v2773, 2
      %v3068 = vrot.slane %v2776, 2
      %v3069 = vrot.slane %v2778, 2
      %v3070 = vrot.slane %v2781, 2
      %v3071 = vrot.slane %v2783, 2
      %v3072 = vrot.slane %v2786, 2
      %v3073 = vrot.slane %v2788, 2
      %v3074 = vrot.slane %v2791, 2
      %v3075 = vrot.slane %v2793, 2
      %v3076 = vrot.slane %v2796, 2
      %v3077 = vrot.slane %v2798, 2
      %v3078 = vrot.slane %v2801, 2
      %v3079 = vrot.slane %v2803, 2
      %v3080 = vrot.slane %v2806, 2
      %v3081 = vrot.slane %v2808, 2
      %v3082 = vrot.slane %v2811, 2
      %v3083 = vrot.slane %v2813, 2
      %v3084 = vrot.slane %v2816, 2
      %v3085 = vrot.slane %v2818, 2
      %v3086 = vrot.slane %v2821, 2
      %v3087 = vrot.slane %v2823, 2
      %v3088 = vrot.slane %v2826, 2
      %v3089 = vrot.slane %v2828, 2
      %v3090 = vrot.slane %v2831, 2
      %v3091 = vrot.slane %v2833, 2
      %v3092 = vrot.slane %v2836, 2
      %v3093 = vrot.slane %v2838, 2
      %v3094 = vrot.slane %v2841, 2
      %v3095 = vrot.slane %v2843, 2
      %v3096 = vrot.slane %v2846, 2
      %v3097 = vrot.slane %v2848, 2
      %v3098 = vrot.slane %v2851, 2
      %v3099 = vrot.slane %v2853, 2
      %v3100 = vrot.slane %v2856, 2
      %v3101 = vrot.slane %v2858, 2
      %v3102 = vrot.slane %v2861, 2
      %v3103 = vrot.slane %v2863, 2
      %v3104 = vrot.slane %v2866, 2
      %v3105 = vrot.slane %v2868, 2
      %v3106 = vrot.slane %v2871, 2
      %v3107 = vrot.slane %v2873, 2
      %v3108 = vrot.slane %v2876, 2
      %v3109 = vrot.slane %v2878, 2
      %v3110 = vrot.slane %v2881, 2
      %v3111 = vrot.slane %v2883, 2
      %v3112 = vrot.slane %v2886, 2
      %v3113 = vrot.slane %v2888, 2
      %v3114 = vrot.slane %v2891, 2
      %v3115 = vrot.slane %v2893, 2
      %v3116 = vrot.slane %v2896, 2
      %v3117 = vrot.slane %v2898, 2
      %v3118 = vrot.slane %v2901, 2
      %v3119 = vrot.slane %v2903, 2
      %v3120 = vrot.slane %v2906, 2
      %v3121 = vrot.slane %v2908, 2
      %v3122 = vrot.slane %v2911, 2
      %v3123 = vrot.slane %v2913, 2
      %v3124 = vrot.slane %v2916, 2
      %v3125 = vrot.slane %v2918, 2
      %v3126 = vrot.slane %v2921, 2
      %v3127 = vrot.slane %v2923, 2
      %v3128 = vrot.slane %v2926, 2
      %v3129 = vrot.slane %v2928, 2
      %v3130 = vrot.slane %v2931, 2
      %v3131 = vrot.slane %v2933, 2
      %v3132 = vrot.slane %v2936, 2
      %v3133 = vrot.slane %v2938, 2
      %v3134 = vrot.slane %v2941, 2
      %v3135 = vrot.slane %v2943, 2
      %v3136 = vrot.slane %v2946, 2
      %v3137 = vrot.slane %v2948, 2
      %v3138 = vrot.slane %v2951, 2
      %v3139 = vrot.slane %v2953, 2
      %v3140 = vrot.slane %v2956, 2
      %v3141 = vrot.slane %v2958, 2
      %v3142 = vrot.slane %v2961, 2
      %v3143 = vrot.slane %v2963, 2
      %v3144 = vrot.slane %v2966, 2
      %v3145 = vrot.slane %v2968, 2
      %v3146 = vrot.slane %v2971, 2
      %v3147 = vrot.slane %v2973, 2
      %v3148 = vrot.slane %v2976, 2
      %v3149 = vrot.slane %v2978, 2
      %v3150 = vrot.slane %v2981, 2
      %v3151 = vrot.slane %v2983, 2
      %v3152 = vrot.slane %v2986, 2
      %v3153 = vrot.slane %v2988, 2
      %v3154 = vrot.slane %v2991, 2
      %v3155 = vrot.slane %v2993, 2
      %v3156 = vrot.slane %v2996, 2
      %v3157 = vrot.slane %v2998, 2
      %v3158 = vrot.slane %v3001, 2
      %v3159 = vrot.slane %v3003, 2
      %v3160 = vrot.slane %v3006, 2
      %v3161 = vrot.slane %v3008, 2
      %v3162 = vrot.slane %v3011, 2
      %v3163 = vrot.slane %v3013, 2
      %v3164 = vrot.slane %v3016, 2
      %v3165 = vrot.slane %v3018, 2
      %v3166 = vrot.slane %v3021, 2
      %v3167 = vrot.slane %v3023, 2
      %v3168 = vrot.slane %v3026, 2
      %v3169 = vrot.slane %v3028, 2
      %v3170 = vrot.slane %v3031, 2
      %vm3171 = vcmp.lt.s32.totalorder %v1412, 6
      %v3172 = vsel %vm3171, %v3169, %v3170
      %v3173 = vsel %vm3171, %v3168, %v3169
      %v3174 = vsel %vm3171, %v3167, %v3168
      %v3175 = vsel %vm3171, %v3166, %v3167
      %v3176 = vsel %vm3171, %v3165, %v3166
      %v3177 = vsel %vm3171, %v3164, %v3165
      %v3178 = vsel %vm3171, %v3163, %v3164
      %v3179 = vsel %vm3171, %v3162, %v3163
      %v3180 = vsel %vm3171, %v3161, %v3162
      %v3181 = vsel %vm3171, %v3160, %v3161
      %v3182 = vsel %vm3171, %v3159, %v3160
      %v3183 = vsel %vm3171, %v3158, %v3159
      %v3184 = vsel %vm3171, %v3157, %v3158
      %v3185 = vsel %vm3171, %v3156, %v3157
      %v3186 = vsel %vm3171, %v3155, %v3156
      %v3187 = vsel %vm3171, %v3154, %v3155
      %v3188 = vsel %vm3171, %v3153, %v3154
      %v3189 = vsel %vm3171, %v3152, %v3153
      %v3190 = vsel %vm3171, %v3151, %v3152
      %v3191 = vsel %vm3171, %v3150, %v3151
      %v3192 = vsel %vm3171, %v3149, %v3150
      %v3193 = vsel %vm3171, %v3148, %v3149
      %v3194 = vsel %vm3171, %v3147, %v3148
      %v3195 = vsel %vm3171, %v3146, %v3147
      %v3196 = vsel %vm3171, %v3145, %v3146
      %v3197 = vsel %vm3171, %v3144, %v3145
      %v3198 = vsel %vm3171, %v3143, %v3144
      %v3199 = vsel %vm3171, %v3142, %v3143
      %v3200 = vsel %vm3171, %v3141, %v3142
      %v3201 = vsel %vm3171, %v3140, %v3141
      %v3202 = vsel %vm3171, %v3139, %v3140
      %v3203 = vsel %vm3171, %v3138, %v3139
      %v3204 = vsel %vm3171, %v3137, %v3138
      %v3205 = vsel %vm3171, %v3136, %v3137
      %v3206 = vsel %vm3171, %v3135, %v3136
      %v3207 = vsel %vm3171, %v3134, %v3135
      %v3208 = vsel %vm3171, %v3133, %v3134
      %v3209 = vsel %vm3171, %v3132, %v3133
      %v3210 = vsel %vm3171, %v3131, %v3132
      %v3211 = vsel %vm3171, %v3130, %v3131
      %v3212 = vsel %vm3171, %v3129, %v3130
      %v3213 = vsel %vm3171, %v3128, %v3129
      %v3214 = vsel %vm3171, %v3127, %v3128
      %v3215 = vsel %vm3171, %v3126, %v3127
      %v3216 = vsel %vm3171, %v3125, %v3126
      %v3217 = vsel %vm3171, %v3124, %v3125
      %v3218 = vsel %vm3171, %v3123, %v3124
      %v3219 = vsel %vm3171, %v3122, %v3123
      %v3220 = vsel %vm3171, %v3121, %v3122
      %v3221 = vsel %vm3171, %v3120, %v3121
      %v3222 = vsel %vm3171, %v3119, %v3120
      %v3223 = vsel %vm3171, %v3118, %v3119
      %v3224 = vsel %vm3171, %v3117, %v3118
      %v3225 = vsel %vm3171, %v3116, %v3117
      %v3226 = vsel %vm3171, %v3115, %v3116
      %v3227 = vsel %vm3171, %v3114, %v3115
      %v3228 = vsel %vm3171, %v3113, %v3114
      %v3229 = vsel %vm3171, %v3112, %v3113
      %v3230 = vsel %vm3171, %v3111, %v3112
      %v3231 = vsel %vm3171, %v3110, %v3111
      %v3232 = vsel %vm3171, %v3109, %v3110
      %v3233 = vsel %vm3171, %v3108, %v3109
      %v3234 = vsel %vm3171, %v3107, %v3108
      %v3235 = vsel %vm3171, %v3106, %v3107
      %v3236 = vsel %vm3171, %v3105, %v3106
      %v3237 = vsel %vm3171, %v3104, %v3105
      %v3238 = vsel %vm3171, %v3103, %v3104
      %v3239 = vsel %vm3171, %v3102, %v3103
      %v3240 = vsel %vm3171, %v3101, %v3102
      %v3241 = vsel %vm3171, %v3100, %v3101
      %v3242 = vsel %vm3171, %v3099, %v3100
      %v3243 = vsel %vm3171, %v3098, %v3099
      %v3244 = vsel %vm3171, %v3097, %v3098
      %v3245 = vsel %vm3171, %v3096, %v3097
      %v3246 = vsel %vm3171, %v3095, %v3096
      %v3247 = vsel %vm3171, %v3094, %v3095
      %v3248 = vsel %vm3171, %v3093, %v3094
      %v3249 = vsel %vm3171, %v3092, %v3093
      %v3250 = vsel %vm3171, %v3091, %v3092
      %v3251 = vsel %vm3171, %v3090, %v3091
      %v3252 = vsel %vm3171, %v3089, %v3090
      %v3253 = vsel %vm3171, %v3088, %v3089
      %v3254 = vsel %vm3171, %v3087, %v3088
      %v3255 = vsel %vm3171, %v3086, %v3087
      %v3256 = vsel %vm3171, %v3085, %v3086
      %v3257 = vsel %vm3171, %v3084, %v3085
      %v3258 = vsel %vm3171, %v3083, %v3084
      %v3259 = vsel %vm3171, %v3082, %v3083
      %v3260 = vsel %vm3171, %v3081, %v3082
      %v3261 = vsel %vm3171, %v3080, %v3081
      %v3262 = vsel %vm3171, %v3079, %v3080
      %v3263 = vsel %vm3171, %v3078, %v3079
      %v3264 = vsel %vm3171, %v3077, %v3078
      %v3265 = vsel %vm3171, %v3076, %v3077
      %v3266 = vsel %vm3171, %v3075, %v3076
      %v3267 = vsel %vm3171, %v3074, %v3075
      %v3268 = vsel %vm3171, %v3073, %v3074
      %v3269 = vsel %vm3171, %v3072, %v3073
      %v3270 = vsel %vm3171, %v3071, %v3072
      %v3271 = vsel %vm3171, %v3070, %v3071
      %v3272 = vsel %vm3171, %v3069, %v3070
      %v3273 = vsel %vm3171, %v3068, %v3069
      %v3274 = vsel %vm3171, %v3067, %v3068
      %v3275 = vsel %vm3171, %v3066, %v3067
      %v3276 = vsel %vm3171, %v3065, %v3066
      %v3277 = vsel %vm3171, %v3064, %v3065
      %v3278 = vsel %vm3171, %v3063, %v3064
      %v3279 = vsel %vm3171, %v3062, %v3063
      %v3280 = vsel %vm3171, %v3061, %v3062
      %v3281 = vsel %vm3171, %v3060, %v3061
      %v3282 = vsel %vm3171, %v3059, %v3060
      %v3283 = vsel %vm3171, %v3058, %v3059
      %v3284 = vsel %vm3171, %v3057, %v3058
      %v3285 = vsel %vm3171, %v3056, %v3057
      %v3286 = vsel %vm3171, %v3055, %v3056
      %v3287 = vsel %vm3171, %v3054, %v3055
      %v3288 = vsel %vm3171, %v3053, %v3054
      %v3289 = vsel %vm3171, %v3052, %v3053
      %v3290 = vsel %vm3171, %v3051, %v3052
      %v3291 = vsel %vm3171, %v3050, %v3051
      %v3292 = vsel %vm3171, %v3049, %v3050
      %v3293 = vsel %vm3171, %v3048, %v3049
      %v3294 = vsel %vm3171, %v3047, %v3048
      %v3295 = vsel %vm3171, %v3046, %v3047
      %v3296 = vsel %vm3171, %v3045, %v3046
      %v3297 = vsel %vm3171, %v3044, %v3045
      %v3298 = vsel %vm3171, %v3043, %v3044
      %v3299 = vsel %vm3171, %v3042, %v3043
      %v3300 = vsel %vm3171, %v3041, %v3042
      %v3301 = vsel %vm3171, %v3040, %v3041
      %v3302 = vsel %vm3171, %v3039, %v3040
      %v3303 = vsel %vm3171, %v3038, %v3039
      %v3304 = vsel %vm3171, %v3037, %v3038
      %v3305 = vsel %vm3171, %v3036, %v3037
      %v3306 = vsel %vm3171, %v3035, %v3036
      %v3307 = vsel %vm3171, %v3034, %v3035
      %v3308 = vsel %vm3171, %v3170, %v3034
      %v3309 = vadd.f32 %v2539, %v3303
      %v3310 = vadd.f32 %v2540, %v3302
      %v3311 = vadd.f32 %v2541, %v3301
      %v3312 = vadd.f32 %v2542, %v3300
      %v3313 = vadd.f32 %v2543, %v3299
      %v3314 = vadd.f32 %v2544, %v3298
      %v3315 = vadd.f32 %v2545, %v3297
      %v3316 = vadd.f32 %v2546, %v3296
      %v3317 = vadd.f32 %v2547, %v3295
      %v3318 = vadd.f32 %v2548, %v3294
      %v3319 = vadd.f32 %v2549, %v3293
      %v3320 = vadd.f32 %v2550, %v3292
      %v3321 = vadd.f32 %v2551, %v3291
      %v3322 = vadd.f32 %v2552, %v3290
      %v3323 = vadd.f32 %v2553, %v3289
      %v3324 = vadd.f32 %v2554, %v3288
      %v3325 = vadd.f32 %v2555, %v3287
      %v3326 = vadd.f32 %v2556, %v3286
      %v3327 = vadd.f32 %v2557, %v3285
      %v3328 = vadd.f32 %v2558, %v3284
      %v3329 = vadd.f32 %v2559, %v3283
      %v3330 = vadd.f32 %v2560, %v3282
      %v3331 = vadd.f32 %v2561, %v3281
      %v3332 = vadd.f32 %v2562, %v3280
      %v3333 = vadd.f32 %v2563, %v3279
      %v3334 = vadd.f32 %v2564, %v3278
      %v3335 = vadd.f32 %v2565, %v3277
      %v3336 = vadd.f32 %v2566, %v3276
      %v3337 = vadd.f32 %v2567, %v3275
      %v3338 = vadd.f32 %v2568, %v3274
      %v3339 = vadd.f32 %v2569, %v3273
      %v3340 = vadd.f32 %v2570, %v3272
      %v3341 = vadd.f32 %v2571, %v3271
      %v3342 = vadd.f32 %v2572, %v3270
      %v3343 = vadd.f32 %v2573, %v3269
      %v3344 = vadd.f32 %v2574, %v3268
      %v3345 = vadd.f32 %v2575, %v3267
      %v3346 = vadd.f32 %v2576, %v3266
      %v3347 = vadd.f32 %v2577, %v3265
      %v3348 = vadd.f32 %v2578, %v3264
      %v3349 = vadd.f32 %v2579, %v3263
      %v3350 = vadd.f32 %v2580, %v3262
      %v3351 = vadd.f32 %v2581, %v3261
      %v3352 = vadd.f32 %v2582, %v3260
      %v3353 = vadd.f32 %v2583, %v3259
      %v3354 = vadd.f32 %v2584, %v3258
      %v3355 = vadd.f32 %v2585, %v3257
      %v3356 = vadd.f32 %v2586, %v3256
      %v3357 = vadd.f32 %v2587, %v3255
      %v3358 = vadd.f32 %v2588, %v3254
      %v3359 = vadd.f32 %v2589, %v3253
      %v3360 = vadd.f32 %v2590, %v3252
      %v3361 = vadd.f32 %v2591, %v3251
      %v3362 = vadd.f32 %v2592, %v3250
      %v3363 = vadd.f32 %v2593, %v3249
      %v3364 = vadd.f32 %v2594, %v3248
      %v3365 = vadd.f32 %v2595, %v3247
      %v3366 = vadd.f32 %v2596, %v3246
      %v3367 = vadd.f32 %v2597, %v3245
      %v3368 = vadd.f32 %v2598, %v3244
      %v3369 = vadd.f32 %v2599, %v3243
      %v3370 = vadd.f32 %v2600, %v3242
      %v3371 = vadd.f32 %v2601, %v3241
      %v3372 = vadd.f32 %v2602, %v3240
      %v3373 = vadd.f32 %v2603, %v3239
      %v3374 = vadd.f32 %v2604, %v3238
      %v3375 = vadd.f32 %v2605, %v3237
      %v3376 = vadd.f32 %v2606, %v3236
      %v3377 = vadd.f32 %v2607, %v3235
      %v3378 = vadd.f32 %v2608, %v3234
      %v3379 = vadd.f32 %v2609, %v3233
      %v3380 = vadd.f32 %v2610, %v3232
      %v3381 = vadd.f32 %v2611, %v3231
      %v3382 = vadd.f32 %v2612, %v3230
      %v3383 = vadd.f32 %v2613, %v3229
      %v3384 = vadd.f32 %v2614, %v3228
      %v3385 = vadd.f32 %v2615, %v3227
      %v3386 = vadd.f32 %v2616, %v3226
      %v3387 = vadd.f32 %v2617, %v3225
      %v3388 = vadd.f32 %v2618, %v3224
      %v3389 = vadd.f32 %v2619, %v3223
      %v3390 = vadd.f32 %v2620, %v3222
      %v3391 = vadd.f32 %v2621, %v3221
      %v3392 = vadd.f32 %v2622, %v3220
      %v3393 = vadd.f32 %v2623, %v3219
      %v3394 = vadd.f32 %v2624, %v3218
      %v3395 = vadd.f32 %v2625, %v3217
      %v3396 = vadd.f32 %v2626, %v3216
      %v3397 = vadd.f32 %v2627, %v3215
      %v3398 = vadd.f32 %v2628, %v3214
      %v3399 = vadd.f32 %v2629, %v3213
      %v3400 = vadd.f32 %v2630, %v3212
      %v3401 = vadd.f32 %v2631, %v3211
      %v3402 = vadd.f32 %v2632, %v3210
      %v3403 = vadd.f32 %v2633, %v3209
      %v3404 = vadd.f32 %v2634, %v3208
      %v3405 = vadd.f32 %v2635, %v3207
      %v3406 = vadd.f32 %v2636, %v3206
      %v3407 = vadd.f32 %v2637, %v3205
      %v3408 = vadd.f32 %v2638, %v3204
      %v3409 = vadd.f32 %v2639, %v3203
      %v3410 = vadd.f32 %v2640, %v3202
      %v3411 = vadd.f32 %v2641, %v3201
      %v3412 = vadd.f32 %v2642, %v3200
      %v3413 = vadd.f32 %v2643, %v3199
      %v3414 = vadd.f32 %v2644, %v3198
      %v3415 = vadd.f32 %v2645, %v3197
      %v3416 = vadd.f32 %v2646, %v3196
      %v3417 = vadd.f32 %v2647, %v3195
      %v3418 = vadd.f32 %v2648, %v3194
      %v3419 = vadd.f32 %v2649, %v3193
      %v3420 = vadd.f32 %v2650, %v3192
      %v3421 = vadd.f32 %v2651, %v3191
      %v3422 = vadd.f32 %v2652, %v3190
      %v3423 = vadd.f32 %v2653, %v3189
      %v3424 = vadd.f32 %v2654, %v3188
      %v3425 = vadd.f32 %v2655, %v3187
      %v3426 = vadd.f32 %v2656, %v3186
      %v3427 = vadd.f32 %v2657, %v3185
      %v3428 = vadd.f32 %v2658, %v3184
      %v3429 = vadd.f32 %v2659, %v3183
      %v3430 = vadd.f32 %v2660, %v3182
      %v3431 = vadd.f32 %v2661, %v3181
      %v3432 = vadd.f32 %v2662, %v3180
      %v3433 = vadd.f32 %v2663, %v3179
      %v3434 = vadd.f32 %v2664, %v3178
      %v3435 = vadd.f32 %v2665, %v3177
      %v3436 = vadd.f32 %v2666, %v3176
      %v3437 = vadd.f32 %v2667, %v3175
      %v3438 = vadd.f32 %v2668, %v3174
      %v3439 = vadd.f32 %v2669, %v3173
      %v3440 = vadd.f32 %v2670, %v3172
      %v3441 = vadd.f32 %v2671, %v3308
      %v3442 = vadd.f32 %v2672, %v3307
      %v3443 = vadd.f32 %v2673, %v3306
      %v3444 = vadd.f32 %v2674, %v3305
      %v3445 = vadd.f32 %v2675, %v3304
      %v3446 = vld [vmem:[%s215] sm:$0x1]
      %v3448 = vperm.slane %v3446, 0
      %v3450 = vadd.f32 %v3309, %v3448
      %v3451 = vadd.f32 %v3310, %v3448
      %v3452 = vadd.f32 %v3311, %v3448
      %v3453 = vadd.f32 %v3312, %v3448
      %v3454 = vadd.f32 %v3313, %v3448
      %v3455 = vadd.f32 %v3314, %v3448
      %v3456 = vadd.f32 %v3315, %v3448
      %v3457 = vadd.f32 %v3316, %v3448
      %v3458 = vadd.f32 %v3317, %v3448
      %v3459 = vadd.f32 %v3318, %v3448
      %v3460 = vadd.f32 %v3319, %v3448
      %v3461 = vadd.f32 %v3320, %v3448
      %v3462 = vadd.f32 %v3321, %v3448
      %v3463 = vadd.f32 %v3322, %v3448
      %v3464 = vadd.f32 %v3323, %v3448
      %v3465 = vadd.f32 %v3324, %v3448
      %v3466 = vadd.f32 %v3325, %v3448
      %v3467 = vadd.f32 %v3326, %v3448
      %v3468 = vadd.f32 %v3327, %v3448
      %v3469 = vadd.f32 %v3328, %v3448
      %v3470 = vadd.f32 %v3329, %v3448
      %v3471 = vadd.f32 %v3330, %v3448
      %v3472 = vadd.f32 %v3331, %v3448
      %v3473 = vadd.f32 %v3332, %v3448
      %v3474 = vadd.f32 %v3333, %v3448
      %v3475 = vadd.f32 %v3334, %v3448
      %v3476 = vadd.f32 %v3335, %v3448
      %v3477 = vadd.f32 %v3336, %v3448
      %v3478 = vadd.f32 %v3337, %v3448
      %v3479 = vadd.f32 %v3338, %v3448
      %v3480 = vadd.f32 %v3339, %v3448
      %v3481 = vadd.f32 %v3340, %v3448
      %v3482 = vadd.f32 %v3341, %v3448
      %v3483 = vadd.f32 %v3342, %v3448
      %v3484 = vadd.f32 %v3343, %v3448
      %v3485 = vadd.f32 %v3344, %v3448
      %v3486 = vadd.f32 %v3345, %v3448
      %v3487 = vadd.f32 %v3346, %v3448
      %v3488 = vadd.f32 %v3347, %v3448
      %v3489 = vadd.f32 %v3348, %v3448
      %v3490 = vadd.f32 %v3349, %v3448
      %v3491 = vadd.f32 %v3350, %v3448
      %v3492 = vadd.f32 %v3351, %v3448
      %v3493 = vadd.f32 %v3352, %v3448
      %v3494 = vadd.f32 %v3353, %v3448
      %v3495 = vadd.f32 %v3354, %v3448
      %v3496 = vadd.f32 %v3355, %v3448
      %v3497 = vadd.f32 %v3356, %v3448
      %v3498 = vadd.f32 %v3357, %v3448
      %v3499 = vadd.f32 %v3358, %v3448
      %v3500 = vadd.f32 %v3359, %v3448
      %v3501 = vadd.f32 %v3360, %v3448
      %v3502 = vadd.f32 %v3361, %v3448
      %v3503 = vadd.f32 %v3362, %v3448
      %v3504 = vadd.f32 %v3363, %v3448
      %v3505 = vadd.f32 %v3364, %v3448
      %v3506 = vadd.f32 %v3365, %v3448
      %v3507 = vadd.f32 %v3366, %v3448
      %v3508 = vadd.f32 %v3367, %v3448
      %v3509 = vadd.f32 %v3368, %v3448
      %v3510 = vadd.f32 %v3369, %v3448
      %v3511 = vadd.f32 %v3370, %v3448
      %v3512 = vadd.f32 %v3371, %v3448
      %v3513 = vadd.f32 %v3372, %v3448
      %v3514 = vadd.f32 %v3373, %v3448
      %v3515 = vadd.f32 %v3374, %v3448
      %v3516 = vadd.f32 %v3375, %v3448
      %v3517 = vadd.f32 %v3376, %v3448
      %v3518 = vadd.f32 %v3377, %v3448
      %v3519 = vadd.f32 %v3378, %v3448
      %v3520 = vadd.f32 %v3379, %v3448
      %v3521 = vadd.f32 %v3380, %v3448
      %v3522 = vadd.f32 %v3381, %v3448
      %v3523 = vadd.f32 %v3382, %v3448
      %v3524 = vadd.f32 %v3383, %v3448
      %v3525 = vadd.f32 %v3384, %v3448
      %v3526 = vadd.f32 %v3385, %v3448
      %v3527 = vadd.f32 %v3386, %v3448
      %v3528 = vadd.f32 %v3387, %v3448
      %v3529 = vadd.f32 %v3388, %v3448
      %v3530 = vadd.f32 %v3389, %v3448
      %v3531 = vadd.f32 %v3390, %v3448
      %v3532 = vadd.f32 %v3391, %v3448
      %v3533 = vadd.f32 %v3392, %v3448
      %v3534 = vadd.f32 %v3393, %v3448
      %v3535 = vadd.f32 %v3394, %v3448
      %v3536 = vadd.f32 %v3395, %v3448
      %v3537 = vadd.f32 %v3396, %v3448
      %v3538 = vadd.f32 %v3397, %v3448
      %v3539 = vadd.f32 %v3398, %v3448
      %v3540 = vadd.f32 %v3399, %v3448
      %v3541 = vadd.f32 %v3400, %v3448
      %v3542 = vadd.f32 %v3401, %v3448
      %v3543 = vadd.f32 %v3402, %v3448
      %v3544 = vadd.f32 %v3403, %v3448
      %v3545 = vadd.f32 %v3404, %v3448
      %v3546 = vadd.f32 %v3405, %v3448
      %v3547 = vadd.f32 %v3406, %v3448
      %v3548 = vadd.f32 %v3407, %v3448
      %v3549 = vadd.f32 %v3408, %v3448
      %v3550 = vadd.f32 %v3409, %v3448
      %v3551 = vadd.f32 %v3410, %v3448
      %v3552 = vadd.f32 %v3411, %v3448
      %v3553 = vadd.f32 %v3412, %v3448
      %v3554 = vadd.f32 %v3413, %v3448
      %v3555 = vadd.f32 %v3414, %v3448
      %v3556 = vadd.f32 %v3415, %v3448
      %v3557 = vadd.f32 %v3416, %v3448
      %v3558 = vadd.f32 %v3417, %v3448
      %v3559 = vadd.f32 %v3418, %v3448
      %v3560 = vadd.f32 %v3419, %v3448
      %v3561 = vadd.f32 %v3420, %v3448
      %v3562 = vadd.f32 %v3421, %v3448
      %v3563 = vadd.f32 %v3422, %v3448
      %v3564 = vadd.f32 %v3423, %v3448
      %v3565 = vadd.f32 %v3424, %v3448
      %v3566 = vadd.f32 %v3425, %v3448
      %v3567 = vadd.f32 %v3426, %v3448
      %v3568 = vadd.f32 %v3427, %v3448
      %v3569 = vadd.f32 %v3428, %v3448
      %v3570 = vadd.f32 %v3429, %v3448
      %v3571 = vadd.f32 %v3430, %v3448
      %v3572 = vadd.f32 %v3431, %v3448
      %v3573 = vadd.f32 %v3432, %v3448
      %v3574 = vadd.f32 %v3433, %v3448
      %v3575 = vadd.f32 %v3434, %v3448
      %v3576 = vadd.f32 %v3435, %v3448
      %v3577 = vadd.f32 %v3436, %v3448
      %v3578 = vadd.f32 %v3437, %v3448
      %v3579 = vadd.f32 %v3438, %v3448
      %v3580 = vadd.f32 %v3439, %v3448
      %v3581 = vadd.f32 %v3440, %v3448
      %v3582 = vadd.f32 %v3441, %v3448
      %v3583 = vadd.f32 %v3442, %v3448
      %v3584 = vadd.f32 %v3443, %v3448
      %v3585 = vadd.f32 %v3444, %v3448
      %v3586 = vadd.f32 %v3445, %v3448
      %vm3587 = vcmp.ge.f32.partialorder %v3450, 0.0
      %vm3588 = vcmp.ge.f32.partialorder %v3451, 0.0
      %vm3589 = vcmp.ge.f32.partialorder %v3452, 0.0
      %vm3590 = vcmp.ge.f32.partialorder %v3453, 0.0
      %vm3591 = vcmp.ge.f32.partialorder %v3454, 0.0
      %vm3592 = vcmp.ge.f32.partialorder %v3455, 0.0
      %vm3593 = vcmp.ge.f32.partialorder %v3456, 0.0
      %vm3594 = vcmp.ge.f32.partialorder %v3457, 0.0
      %vm3595 = vcmp.ge.f32.partialorder %v3458, 0.0
      %vm3596 = vcmp.ge.f32.partialorder %v3459, 0.0
      %vm3597 = vcmp.ge.f32.partialorder %v3460, 0.0
      %vm3598 = vcmp.ge.f32.partialorder %v3461, 0.0
      %vm3599 = vcmp.ge.f32.partialorder %v3462, 0.0
      %vm3600 = vcmp.ge.f32.partialorder %v3463, 0.0
      %vm3601 = vcmp.ge.f32.partialorder %v3464, 0.0
      %vm3602 = vcmp.ge.f32.partialorder %v3465, 0.0
      %vm3603 = vcmp.ge.f32.partialorder %v3466, 0.0
      %vm3604 = vcmp.ge.f32.partialorder %v3467, 0.0
      %vm3605 = vcmp.ge.f32.partialorder %v3468, 0.0
      %vm3606 = vcmp.ge.f32.partialorder %v3469, 0.0
      %vm3607 = vcmp.ge.f32.partialorder %v3470, 0.0
      %vm3608 = vcmp.ge.f32.partialorder %v3471, 0.0
      %vm3609 = vcmp.ge.f32.partialorder %v3472, 0.0
      %vm3610 = vcmp.ge.f32.partialorder %v3473, 0.0
      %vm3611 = vcmp.ge.f32.partialorder %v3474, 0.0
      %vm3612 = vcmp.ge.f32.partialorder %v3475, 0.0
      %vm3613 = vcmp.ge.f32.partialorder %v3476, 0.0
      %vm3614 = vcmp.ge.f32.partialorder %v3477, 0.0
      %vm3615 = vcmp.ge.f32.partialorder %v3478, 0.0
      %vm3616 = vcmp.ge.f32.partialorder %v3479, 0.0
      %vm3617 = vcmp.ge.f32.partialorder %v3480, 0.0
      %vm3618 = vcmp.ge.f32.partialorder %v3481, 0.0
      %vm3619 = vcmp.ge.f32.partialorder %v3482, 0.0
      %vm3620 = vcmp.ge.f32.partialorder %v3483, 0.0
      %vm3621 = vcmp.ge.f32.partialorder %v3484, 0.0
      %vm3622 = vcmp.ge.f32.partialorder %v3485, 0.0
      %vm3623 = vcmp.ge.f32.partialorder %v3486, 0.0
      %vm3624 = vcmp.ge.f32.partialorder %v3487, 0.0
      %vm3625 = vcmp.ge.f32.partialorder %v3488, 0.0
      %vm3626 = vcmp.ge.f32.partialorder %v3489, 0.0
      %vm3627 = vcmp.ge.f32.partialorder %v3490, 0.0
      %vm3628 = vcmp.ge.f32.partialorder %v3491, 0.0
      %vm3629 = vcmp.ge.f32.partialorder %v3492, 0.0
      %vm3630 = vcmp.ge.f32.partialorder %v3493, 0.0
      %vm3631 = vcmp.ge.f32.partialorder %v3494, 0.0
      %vm3632 = vcmp.ge.f32.partialorder %v3495, 0.0
      %vm3633 = vcmp.ge.f32.partialorder %v3496, 0.0
      %vm3634 = vcmp.ge.f32.partialorder %v3497, 0.0
      %vm3635 = vcmp.ge.f32.partialorder %v3498, 0.0
      %vm3636 = vcmp.ge.f32.partialorder %v3499, 0.0
      %vm3637 = vcmp.ge.f32.partialorder %v3500, 0.0
      %vm3638 = vcmp.ge.f32.partialorder %v3501, 0.0
      %vm3639 = vcmp.ge.f32.partialorder %v3502, 0.0
      %vm3640 = vcmp.ge.f32.partialorder %v3503, 0.0
      %vm3641 = vcmp.ge.f32.partialorder %v3504, 0.0
      %vm3642 = vcmp.ge.f32.partialorder %v3505, 0.0
      %vm3643 = vcmp.ge.f32.partialorder %v3506, 0.0
      %vm3644 = vcmp.ge.f32.partialorder %v3507, 0.0
      %vm3645 = vcmp.ge.f32.partialorder %v3508, 0.0
      %vm3646 = vcmp.ge.f32.partialorder %v3509, 0.0
      %vm3647 = vcmp.ge.f32.partialorder %v3510, 0.0
      %vm3648 = vcmp.ge.f32.partialorder %v3511, 0.0
      %vm3649 = vcmp.ge.f32.partialorder %v3512, 0.0
      %vm3650 = vcmp.ge.f32.partialorder %v3513, 0.0
      %vm3651 = vcmp.ge.f32.partialorder %v3514, 0.0
      %vm3652 = vcmp.ge.f32.partialorder %v3515, 0.0
      %vm3653 = vcmp.ge.f32.partialorder %v3516, 0.0
      %vm3654 = vcmp.ge.f32.partialorder %v3517, 0.0
      %vm3655 = vcmp.ge.f32.partialorder %v3518, 0.0
      %vm3656 = vcmp.ge.f32.partialorder %v3519, 0.0
      %vm3657 = vcmp.ge.f32.partialorder %v3520, 0.0
      %vm3658 = vcmp.ge.f32.partialorder %v3521, 0.0
      %vm3659 = vcmp.ge.f32.partialorder %v3522, 0.0
      %vm3660 = vcmp.ge.f32.partialorder %v3523, 0.0
      %vm3661 = vcmp.ge.f32.partialorder %v3524, 0.0
      %vm3662 = vcmp.ge.f32.partialorder %v3525, 0.0
      %vm3663 = vcmp.ge.f32.partialorder %v3526, 0.0
      %vm3664 = vcmp.ge.f32.partialorder %v3527, 0.0
      %vm3665 = vcmp.ge.f32.partialorder %v3528, 0.0
      %vm3666 = vcmp.ge.f32.partialorder %v3529, 0.0
      %vm3667 = vcmp.ge.f32.partialorder %v3530, 0.0
      %vm3668 = vcmp.ge.f32.partialorder %v3531, 0.0
      %vm3669 = vcmp.ge.f32.partialorder %v3532, 0.0
      %vm3670 = vcmp.ge.f32.partialorder %v3533, 0.0
      %vm3671 = vcmp.ge.f32.partialorder %v3534, 0.0
      %vm3672 = vcmp.ge.f32.partialorder %v3535, 0.0
      %vm3673 = vcmp.ge.f32.partialorder %v3536, 0.0
      %vm3674 = vcmp.ge.f32.partialorder %v3537, 0.0
      %vm3675 = vcmp.ge.f32.partialorder %v3538, 0.0
      %vm3676 = vcmp.ge.f32.partialorder %v3539, 0.0
      %vm3677 = vcmp.ge.f32.partialorder %v3540, 0.0
      %vm3678 = vcmp.ge.f32.partialorder %v3541, 0.0
      %vm3679 = vcmp.ge.f32.partialorder %v3542, 0.0
      %vm3680 = vcmp.ge.f32.partialorder %v3543, 0.0
      %vm3681 = vcmp.ge.f32.partialorder %v3544, 0.0
      %vm3682 = vcmp.ge.f32.partialorder %v3545, 0.0
      %vm3683 = vcmp.ge.f32.partialorder %v3546, 0.0
      %vm3684 = vcmp.ge.f32.partialorder %v3547, 0.0
      %vm3685 = vcmp.ge.f32.partialorder %v3548, 0.0
      %vm3686 = vcmp.ge.f32.partialorder %v3549, 0.0
      %vm3687 = vcmp.ge.f32.partialorder %v3550, 0.0
      %vm3688 = vcmp.ge.f32.partialorder %v3551, 0.0
      %vm3689 = vcmp.ge.f32.partialorder %v3552, 0.0
      %vm3690 = vcmp.ge.f32.partialorder %v3553, 0.0
      %vm3691 = vcmp.ge.f32.partialorder %v3554, 0.0
      %vm3692 = vcmp.ge.f32.partialorder %v3555, 0.0
      %vm3693 = vcmp.ge.f32.partialorder %v3556, 0.0
      %vm3694 = vcmp.ge.f32.partialorder %v3557, 0.0
      %vm3695 = vcmp.ge.f32.partialorder %v3558, 0.0
      %vm3696 = vcmp.ge.f32.partialorder %v3559, 0.0
      %vm3697 = vcmp.ge.f32.partialorder %v3560, 0.0
      %vm3698 = vcmp.ge.f32.partialorder %v3561, 0.0
      %vm3699 = vcmp.ge.f32.partialorder %v3562, 0.0
      %vm3700 = vcmp.ge.f32.partialorder %v3563, 0.0
      %vm3701 = vcmp.ge.f32.partialorder %v3564, 0.0
      %vm3702 = vcmp.ge.f32.partialorder %v3565, 0.0
      %vm3703 = vcmp.ge.f32.partialorder %v3566, 0.0
      %vm3704 = vcmp.ge.f32.partialorder %v3567, 0.0
      %vm3705 = vcmp.ge.f32.partialorder %v3568, 0.0
      %vm3706 = vcmp.ge.f32.partialorder %v3569, 0.0
      %vm3707 = vcmp.ge.f32.partialorder %v3570, 0.0
      %vm3708 = vcmp.ge.f32.partialorder %v3571, 0.0
      %vm3709 = vcmp.ge.f32.partialorder %v3572, 0.0
      %vm3710 = vcmp.ge.f32.partialorder %v3573, 0.0
      %vm3711 = vcmp.ge.f32.partialorder %v3574, 0.0
      %vm3712 = vcmp.ge.f32.partialorder %v3575, 0.0
      %vm3713 = vcmp.ge.f32.partialorder %v3576, 0.0
      %vm3714 = vcmp.ge.f32.partialorder %v3577, 0.0
      %vm3715 = vcmp.ge.f32.partialorder %v3578, 0.0
      %vm3716 = vcmp.ge.f32.partialorder %v3579, 0.0
      %vm3717 = vcmp.ge.f32.partialorder %v3580, 0.0
      %vm3718 = vcmp.ge.f32.partialorder %v3581, 0.0
      %vm3719 = vcmp.ge.f32.partialorder %v3582, 0.0
      %vm3720 = vcmp.ge.f32.partialorder %v3583, 0.0
      %vm3721 = vcmp.ge.f32.partialorder %v3584, 0.0
      %vm3722 = vcmp.ge.f32.partialorder %v3585, 0.0
      %vm3723 = vcmp.ge.f32.partialorder %v3586, 0.0
      %v3724 = vmul.f32 %v3450, 0.2
      %v3725 = vmul.f32 %v3451, 0.2
      %v3726 = vmul.f32 %v3452, 0.2
      %v3727 = vmul.f32 %v3453, 0.2
      %v3728 = vmul.f32 %v3454, 0.2
      %v3729 = vmul.f32 %v3455, 0.2
      %v3730 = vmul.f32 %v3456, 0.2
      %v3731 = vmul.f32 %v3457, 0.2
      %v3732 = vmul.f32 %v3458, 0.2
      %v3733 = vmul.f32 %v3459, 0.2
      %v3734 = vmul.f32 %v3460, 0.2
      %v3735 = vmul.f32 %v3461, 0.2
      %v3736 = vmul.f32 %v3462, 0.2
      %v3737 = vmul.f32 %v3463, 0.2
      %v3738 = vmul.f32 %v3464, 0.2
      %v3739 = vmul.f32 %v3465, 0.2
      %v3740 = vmul.f32 %v3466, 0.2
      %v3741 = vmul.f32 %v3467, 0.2
      %v3742 = vmul.f32 %v3468, 0.2
      %v3743 = vmul.f32 %v3469, 0.2
      %v3744 = vmul.f32 %v3470, 0.2
      %v3745 = vmul.f32 %v3471, 0.2
      %v3746 = vmul.f32 %v3472, 0.2
      %v3747 = vmul.f32 %v3473, 0.2
      %v3748 = vmul.f32 %v3474, 0.2
      %v3749 = vmul.f32 %v3475, 0.2
      %v3750 = vmul.f32 %v3476, 0.2
      %v3751 = vmul.f32 %v3477, 0.2
      %v3752 = vmul.f32 %v3478, 0.2
      %v3753 = vmul.f32 %v3479, 0.2
      %v3754 = vmul.f32 %v3480, 0.2
      %v3755 = vmul.f32 %v3481, 0.2
      %v3756 = vmul.f32 %v3482, 0.2
      %v3757 = vmul.f32 %v3483, 0.2
      %v3758 = vmul.f32 %v3484, 0.2
      %v3759 = vmul.f32 %v3485, 0.2
      %v3760 = vmul.f32 %v3486, 0.2
      %v3761 = vmul.f32 %v3487, 0.2
      %v3762 = vmul.f32 %v3488, 0.2
      %v3763 = vmul.f32 %v3489, 0.2
      %v3764 = vmul.f32 %v3490, 0.2
      %v3765 = vmul.f32 %v3491, 0.2
      %v3766 = vmul.f32 %v3492, 0.2
      %v3767 = vmul.f32 %v3493, 0.2
      %v3768 = vmul.f32 %v3494, 0.2
      %v3769 = vmul.f32 %v3495, 0.2
      %v3770 = vmul.f32 %v3496, 0.2
      %v3771 = vmul.f32 %v3497, 0.2
      %v3772 = vmul.f32 %v3498, 0.2
      %v3773 = vmul.f32 %v3499, 0.2
      %v3774 = vmul.f32 %v3500, 0.2
      %v3775 = vmul.f32 %v3501, 0.2
      %v3776 = vmul.f32 %v3502, 0.2
      %v3777 = vmul.f32 %v3503, 0.2
      %v3778 = vmul.f32 %v3504, 0.2
      %v3779 = vmul.f32 %v3505, 0.2
      %v3780 = vmul.f32 %v3506, 0.2
      %v3781 = vmul.f32 %v3507, 0.2
      %v3782 = vmul.f32 %v3508, 0.2
      %v3783 = vmul.f32 %v3509, 0.2
      %v3784 = vmul.f32 %v3510, 0.2
      %v3785 = vmul.f32 %v3511, 0.2
      %v3786 = vmul.f32 %v3512, 0.2
      %v3787 = vmul.f32 %v3513, 0.2
      %v3788 = vmul.f32 %v3514, 0.2
      %v3789 = vmul.f32 %v3515, 0.2
      %v3790 = vmul.f32 %v3516, 0.2
      %v3791 = vmul.f32 %v3517, 0.2
      %v3792 = vmul.f32 %v3518, 0.2
      %v3793 = vmul.f32 %v3519, 0.2
      %v3794 = vmul.f32 %v3520, 0.2
      %v3795 = vmul.f32 %v3521, 0.2
      %v3796 = vmul.f32 %v3522, 0.2
      %v3797 = vmul.f32 %v3523, 0.2
      %v3798 = vmul.f32 %v3524, 0.2
      %v3799 = vmul.f32 %v3525, 0.2
      %v3800 = vmul.f32 %v3526, 0.2
      %v3801 = vmul.f32 %v3527, 0.2
      %v3802 = vmul.f32 %v3528, 0.2
      %v3803 = vmul.f32 %v3529, 0.2
      %v3804 = vmul.f32 %v3530, 0.2
      %v3805 = vmul.f32 %v3531, 0.2
      %v3806 = vmul.f32 %v3532, 0.2
      %v3807 = vmul.f32 %v3533, 0.2
      %v3808 = vmul.f32 %v3534, 0.2
      %v3809 = vmul.f32 %v3535, 0.2
      %v3810 = vmul.f32 %v3536, 0.2
      %v3811 = vmul.f32 %v3537, 0.2
      %v3812 = vmul.f32 %v3538, 0.2
      %v3813 = vmul.f32 %v3539, 0.2
      %v3814 = vmul.f32 %v3540, 0.2
      %v3815 = vmul.f32 %v3541, 0.2
      %v3816 = vmul.f32 %v3542, 0.2
      %v3817 = vmul.f32 %v3543, 0.2
      %v3818 = vmul.f32 %v3544, 0.2
      %v3819 = vmul.f32 %v3545, 0.2
      %v3820 = vmul.f32 %v3546, 0.2
      %v3821 = vmul.f32 %v3547, 0.2
      %v3822 = vmul.f32 %v3548, 0.2
      %v3823 = vmul.f32 %v3549, 0.2
      %v3824 = vmul.f32 %v3550, 0.2
      %v3825 = vmul.f32 %v3551, 0.2
      %v3826 = vmul.f32 %v3552, 0.2
      %v3827 = vmul.f32 %v3553, 0.2
      %v3828 = vmul.f32 %v3554, 0.2
      %v3829 = vmul.f32 %v3555, 0.2
      %v3830 = vmul.f32 %v3556, 0.2
      %v3831 = vmul.f32 %v3557, 0.2
      %v3832 = vmul.f32 %v3558, 0.2
      %v3833 = vmul.f32 %v3559, 0.2
      %v3834 = vmul.f32 %v3560, 0.2
      %v3835 = vmul.f32 %v3561, 0.2
      %v3836 = vmul.f32 %v3562, 0.2
      %v3837 = vmul.f32 %v3563, 0.2
      %v3838 = vmul.f32 %v3564, 0.2
      %v3839 = vmul.f32 %v3565, 0.2
      %v3840 = vmul.f32 %v3566, 0.2
      %v3841 = vmul.f32 %v3567, 0.2
      %v3842 = vmul.f32 %v3568, 0.2
      %v3843 = vmul.f32 %v3569, 0.2
      %v3844 = vmul.f32 %v3570, 0.2
      %v3845 = vmul.f32 %v3571, 0.2
      %v3846 = vmul.f32 %v3572, 0.2
      %v3847 = vmul.f32 %v3573, 0.2
      %v3848 = vmul.f32 %v3574, 0.2
      %v3849 = vmul.f32 %v3575, 0.2
      %v3850 = vmul.f32 %v3576, 0.2
      %v3851 = vmul.f32 %v3577, 0.2
      %v3852 = vmul.f32 %v3578, 0.2
      %v3853 = vmul.f32 %v3579, 0.2
      %v3854 = vmul.f32 %v3580, 0.2
      %v3855 = vmul.f32 %v3581, 0.2
      %v3856 = vmul.f32 %v3582, 0.2
      %v3857 = vmul.f32 %v3583, 0.2
      %v3858 = vmul.f32 %v3584, 0.2
      %v3859 = vmul.f32 %v3585, 0.2
      %v3860 = vmul.f32 %v3586, 0.2
      %v3861 = vsel %vm3587, %v3450, %v3724
      %v3862 = vsel %vm3588, %v3451, %v3725
      %v3863 = vsel %vm3589, %v3452, %v3726
      %v3864 = vsel %vm3590, %v3453, %v3727
      %v3865 = vsel %vm3591, %v3454, %v3728
      %v3866 = vsel %vm3592, %v3455, %v3729
      %v3867 = vsel %vm3593, %v3456, %v3730
      %v3868 = vsel %vm3594, %v3457, %v3731
      %v3869 = vsel %vm3595, %v3458, %v3732
      %v3870 = vsel %vm3596, %v3459, %v3733
      %v3871 = vsel %vm3597, %v3460, %v3734
      %v3872 = vsel %vm3598, %v3461, %v3735
      %v3873 = vsel %vm3599, %v3462, %v3736
      %v3874 = vsel %vm3600, %v3463, %v3737
      %v3875 = vsel %vm3601, %v3464, %v3738
      %v3876 = vsel %vm3602, %v3465, %v3739
      %v3877 = vsel %vm3603, %v3466, %v3740
      %v3878 = vsel %vm3604, %v3467, %v3741
      %v3879 = vsel %vm3605, %v3468, %v3742
      %v3880 = vsel %vm3606, %v3469, %v3743
      %v3881 = vsel %vm3607, %v3470, %v3744
      %v3882 = vsel %vm3608, %v3471, %v3745
      %v3883 = vsel %vm3609, %v3472, %v3746
      %v3884 = vsel %vm3610, %v3473, %v3747
      %v3885 = vsel %vm3611, %v3474, %v3748
      %v3886 = vsel %vm3612, %v3475, %v3749
      %v3887 = vsel %vm3613, %v3476, %v3750
      %v3888 = vsel %vm3614, %v3477, %v3751
      %v3889 = vsel %vm3615, %v3478, %v3752
      %v3890 = vsel %vm3616, %v3479, %v3753
      %v3891 = vsel %vm3617, %v3480, %v3754
      %v3892 = vsel %vm3618, %v3481, %v3755
      %v3893 = vsel %vm3619, %v3482, %v3756
      %v3894 = vsel %vm3620, %v3483, %v3757
      %v3895 = vsel %vm3621, %v3484, %v3758
      %v3896 = vsel %vm3622, %v3485, %v3759
      %v3897 = vsel %vm3623, %v3486, %v3760
      %v3898 = vsel %vm3624, %v3487, %v3761
      %v3899 = vsel %vm3625, %v3488, %v3762
      %v3900 = vsel %vm3626, %v3489, %v3763
      %v3901 = vsel %vm3627, %v3490, %v3764
      %v3902 = vsel %vm3628, %v3491, %v3765
      %v3903 = vsel %vm3629, %v3492, %v3766
      %v3904 = vsel %vm3630, %v3493, %v3767
      %v3905 = vsel %vm3631, %v3494, %v3768
      %v3906 = vsel %vm3632, %v3495, %v3769
      %v3907 = vsel %vm3633, %v3496, %v3770
      %v3908 = vsel %vm3634, %v3497, %v3771
      %v3909 = vsel %vm3635, %v3498, %v3772
      %v3910 = vsel %vm3636, %v3499, %v3773
      %v3911 = vsel %vm3637, %v3500, %v3774
      %v3912 = vsel %vm3638, %v3501, %v3775
      %v3913 = vsel %vm3639, %v3502, %v3776
      %v3914 = vsel %vm3640, %v3503, %v3777
      %v3915 = vsel %vm3641, %v3504, %v3778
      %v3916 = vsel %vm3642, %v3505, %v3779
      %v3917 = vsel %vm3643, %v3506, %v3780
      %v3918 = vsel %vm3644, %v3507, %v3781
      %v3919 = vsel %vm3645, %v3508, %v3782
      %v3920 = vsel %vm3646, %v3509, %v3783
      %v3921 = vsel %vm3647, %v3510, %v3784
      %v3922 = vsel %vm3648, %v3511, %v3785
      %v3923 = vsel %vm3649, %v3512, %v3786
      %v3924 = vsel %vm3650, %v3513, %v3787
      %v3925 = vsel %vm3651, %v3514, %v3788
      %v3926 = vsel %vm3652, %v3515, %v3789
      %v3927 = vsel %vm3653, %v3516, %v3790
      %v3928 = vsel %vm3654, %v3517, %v3791
      %v3929 = vsel %vm3655, %v3518, %v3792
      %v3930 = vsel %vm3656, %v3519, %v3793
      %v3931 = vsel %vm3657, %v3520, %v3794
      %v3932 = vsel %vm3658, %v3521, %v3795
      %v3933 = vsel %vm3659, %v3522, %v3796
      %v3934 = vsel %vm3660, %v3523, %v3797
      %v3935 = vsel %vm3661, %v3524, %v3798
      %v3936 = vsel %vm3662, %v3525, %v3799
      %v3937 = vsel %vm3663, %v3526, %v3800
      %v3938 = vsel %vm3664, %v3527, %v3801
      %v3939 = vsel %vm3665, %v3528, %v3802
      %v3940 = vsel %vm3666, %v3529, %v3803
      %v3941 = vsel %vm3667, %v3530, %v3804
      %v3942 = vsel %vm3668, %v3531, %v3805
      %v3943 = vsel %vm3669, %v3532, %v3806
      %v3944 = vsel %vm3670, %v3533, %v3807
      %v3945 = vsel %vm3671, %v3534, %v3808
      %v3946 = vsel %vm3672, %v3535, %v3809
      %v3947 = vsel %vm3673, %v3536, %v3810
      %v3948 = vsel %vm3674, %v3537, %v3811
      %v3949 = vsel %vm3675, %v3538, %v3812
      %v3950 = vsel %vm3676, %v3539, %v3813
      %v3951 = vsel %vm3677, %v3540, %v3814
      %v3952 = vsel %vm3678, %v3541, %v3815
      %v3953 = vsel %vm3679, %v3542, %v3816
      %v3954 = vsel %vm3680, %v3543, %v3817
      %v3955 = vsel %vm3681, %v3544, %v3818
      %v3956 = vsel %vm3682, %v3545, %v3819
      %v3957 = vsel %vm3683, %v3546, %v3820
      %v3958 = vsel %vm3684, %v3547, %v3821
      %v3959 = vsel %vm3685, %v3548, %v3822
      %v3960 = vsel %vm3686, %v3549, %v3823
      %v3961 = vsel %vm3687, %v3550, %v3824
      %v3962 = vsel %vm3688, %v3551, %v3825
      %v3963 = vsel %vm3689, %v3552, %v3826
      %v3964 = vsel %vm3690, %v3553, %v3827
      %v3965 = vsel %vm3691, %v3554, %v3828
      %v3966 = vsel %vm3692, %v3555, %v3829
      %v3967 = vsel %vm3693, %v3556, %v3830
      %v3968 = vsel %vm3694, %v3557, %v3831
      %v3969 = vsel %vm3695, %v3558, %v3832
      %v3970 = vsel %vm3696, %v3559, %v3833
      %v3971 = vsel %vm3697, %v3560, %v3834
      %v3972 = vsel %vm3698, %v3561, %v3835
      %v3973 = vsel %vm3699, %v3562, %v3836
      %v3974 = vsel %vm3700, %v3563, %v3837
      %v3975 = vsel %vm3701, %v3564, %v3838
      %v3976 = vsel %vm3702, %v3565, %v3839
      %v3977 = vsel %vm3703, %v3566, %v3840
      %v3978 = vsel %vm3704, %v3567, %v3841
      %v3979 = vsel %vm3705, %v3568, %v3842
      %v3980 = vsel %vm3706, %v3569, %v3843
      %v3981 = vsel %vm3707, %v3570, %v3844
      %v3982 = vsel %vm3708, %v3571, %v3845
      %v3983 = vsel %vm3709, %v3572, %v3846
      %v3984 = vsel %vm3710, %v3573, %v3847
      %v3985 = vsel %vm3711, %v3574, %v3848
      %v3986 = vsel %vm3712, %v3575, %v3849
      %v3987 = vsel %vm3713, %v3576, %v3850
      %v3988 = vsel %vm3714, %v3577, %v3851
      %v3989 = vsel %vm3715, %v3578, %v3852
      %v3990 = vsel %vm3716, %v3579, %v3853
      %v3991 = vsel %vm3717, %v3580, %v3854
      %v3992 = vsel %vm3718, %v3581, %v3855
      %v3993 = vsel %vm3719, %v3582, %v3856
      %v3994 = vsel %vm3720, %v3583, %v3857
      %v3995 = vsel %vm3721, %v3584, %v3858
      %v3996 = vsel %vm3722, %v3585, %v3859
      %v3997 = vsel %vm3723, %v3586, %v3860
      %v3998 = vpack.c.bf16 %v3861, %v3861
      %v3999 = vpack.c.bf16 %v3862, %v3862
      %v4000 = vpack.c.bf16 %v3863, %v3863
      %v4001 = vpack.c.bf16 %v3864, %v3864
      %v4002 = vpack.c.bf16 %v3865, %v3865
      %v4003 = vpack.c.bf16 %v3866, %v3866
      %v4004 = vpack.c.bf16 %v3867, %v3867
      %v4005 = vpack.c.bf16 %v3868, %v3868
      %v4006 = vpack.c.bf16 %v3869, %v3869
      %v4007 = vpack.c.bf16 %v3870, %v3870
      %v4008 = vpack.c.bf16 %v3871, %v3871
      %v4009 = vpack.c.bf16 %v3872, %v3872
      %v4010 = vpack.c.bf16 %v3873, %v3873
      %v4011 = vpack.c.bf16 %v3874, %v3874
      %v4012 = vpack.c.bf16 %v3875, %v3875
      %v4013 = vpack.c.bf16 %v3876, %v3876
      %v4014 = vpack.c.bf16 %v3877, %v3877
      %v4015 = vpack.c.bf16 %v3878, %v3878
      %v4016 = vpack.c.bf16 %v3879, %v3879
      %v4017 = vpack.c.bf16 %v3880, %v3880
      %v4018 = vpack.c.bf16 %v3881, %v3881
      %v4019 = vpack.c.bf16 %v3882, %v3882
      %v4020 = vpack.c.bf16 %v3883, %v3883
      %v4021 = vpack.c.bf16 %v3884, %v3884
      %v4022 = vpack.c.bf16 %v3885, %v3885
      %v4023 = vpack.c.bf16 %v3886, %v3886
      %v4024 = vpack.c.bf16 %v3887, %v3887
      %v4025 = vpack.c.bf16 %v3888, %v3888
      %v4026 = vpack.c.bf16 %v3889, %v3889
      %v4027 = vpack.c.bf16 %v3890, %v3890
      %v4028 = vpack.c.bf16 %v3891, %v3891
      %v4029 = vpack.c.bf16 %v3892, %v3892
      %v4030 = vpack.c.bf16 %v3893, %v3893
      %v4031 = vpack.c.bf16 %v3894, %v3894
      %v4032 = vpack.c.bf16 %v3895, %v3895
      %v4033 = vpack.c.bf16 %v3896, %v3896
      %v4034 = vpack.c.bf16 %v3897, %v3897
      %v4035 = vpack.c.bf16 %v3898, %v3898
      %v4036 = vpack.c.bf16 %v3899, %v3899
      %v4037 = vpack.c.bf16 %v3900, %v3900
      %v4038 = vpack.c.bf16 %v3901, %v3901
      %v4039 = vpack.c.bf16 %v3902, %v3902
      %v4040 = vpack.c.bf16 %v3903, %v3903
      %v4041 = vpack.c.bf16 %v3904, %v3904
      %v4042 = vpack.c.bf16 %v3905, %v3905
      %v4043 = vpack.c.bf16 %v3906, %v3906
      %v4044 = vpack.c.bf16 %v3907, %v3907
      %v4045 = vpack.c.bf16 %v3908, %v3908
      %v4046 = vpack.c.bf16 %v3909, %v3909
      %v4047 = vpack.c.bf16 %v3910, %v3910
      %v4048 = vpack.c.bf16 %v3911, %v3911
      %v4049 = vpack.c.bf16 %v3912, %v3912
      %v4050 = vpack.c.bf16 %v3913, %v3913
      %v4051 = vpack.c.bf16 %v3914, %v3914
      %v4052 = vpack.c.bf16 %v3915, %v3915
      %v4053 = vpack.c.bf16 %v3916, %v3916
      %v4054 = vpack.c.bf16 %v3917, %v3917
      %v4055 = vpack.c.bf16 %v3918, %v3918
      %v4056 = vpack.c.bf16 %v3919, %v3919
      %v4057 = vpack.c.bf16 %v3920, %v3920
      %v4058 = vpack.c.bf16 %v3921, %v3921
      %v4059 = vpack.c.bf16 %v3922, %v3922
      %v4060 = vpack.c.bf16 %v3923, %v3923
      %v4061 = vpack.c.bf16 %v3924, %v3924
      %v4062 = vpack.c.bf16 %v3925, %v3925
      %v4063 = vpack.c.bf16 %v3926, %v3926
      %v4064 = vpack.c.bf16 %v3927, %v3927
      %v4065 = vpack.c.bf16 %v3928, %v3928
      %v4066 = vpack.c.bf16 %v3929, %v3929
      %v4067 = vpack.c.bf16 %v3930, %v3930
      %v4068 = vpack.c.bf16 %v3931, %v3931
      %v4069 = vpack.c.bf16 %v3932, %v3932
      %v4070 = vpack.c.bf16 %v3933, %v3933
      %v4071 = vpack.c.bf16 %v3934, %v3934
      %v4072 = vpack.c.bf16 %v3935, %v3935
      %v4073 = vpack.c.bf16 %v3936, %v3936
      %v4074 = vpack.c.bf16 %v3937, %v3937
      %v4075 = vpack.c.bf16 %v3938, %v3938
      %v4076 = vpack.c.bf16 %v3939, %v3939
      %v4077 = vpack.c.bf16 %v3940, %v3940
      %v4078 = vpack.c.bf16 %v3941, %v3941
      %v4079 = vpack.c.bf16 %v3942, %v3942
      %v4080 = vpack.c.bf16 %v3943, %v3943
      %v4081 = vpack.c.bf16 %v3944, %v3944
      %v4082 = vpack.c.bf16 %v3945, %v3945
      %v4083 = vpack.c.bf16 %v3946, %v3946
      %v4084 = vpack.c.bf16 %v3947, %v3947
      %v4085 = vpack.c.bf16 %v3948, %v3948
      %v4086 = vpack.c.bf16 %v3949, %v3949
      %v4087 = vpack.c.bf16 %v3950, %v3950
      %v4088 = vpack.c.bf16 %v3951, %v3951
      %v4089 = vpack.c.bf16 %v3952, %v3952
      %v4090 = vpack.c.bf16 %v3953, %v3953
      %v4091 = vpack.c.bf16 %v3954, %v3954
      %v4092 = vpack.c.bf16 %v3955, %v3955
      %v4093 = vpack.c.bf16 %v3956, %v3956
      %v4094 = vpack.c.bf16 %v3957, %v3957
      %v4095 = vpack.c.bf16 %v3958, %v3958
      %v4096 = vpack.c.bf16 %v3959, %v3959
      %v4097 = vpack.c.bf16 %v3960, %v3960
      %v4098 = vpack.c.bf16 %v3961, %v3961
      %v4099 = vpack.c.bf16 %v3962, %v3962
      %v4100 = vpack.c.bf16 %v3963, %v3963
      %v4101 = vpack.c.bf16 %v3964, %v3964
      %v4102 = vpack.c.bf16 %v3965, %v3965
      %v4103 = vpack.c.bf16 %v3966, %v3966
      %v4104 = vpack.c.bf16 %v3967, %v3967
      %v4105 = vpack.c.bf16 %v3968, %v3968
      %v4106 = vpack.c.bf16 %v3969, %v3969
      %v4107 = vpack.c.bf16 %v3970, %v3970
      %v4108 = vpack.c.bf16 %v3971, %v3971
      %v4109 = vpack.c.bf16 %v3972, %v3972
      %v4110 = vpack.c.bf16 %v3973, %v3973
      %v4111 = vpack.c.bf16 %v3974, %v3974
      %v4112 = vpack.c.bf16 %v3975, %v3975
      %v4113 = vpack.c.bf16 %v3976, %v3976
      %v4114 = vpack.c.bf16 %v3977, %v3977
      %v4115 = vpack.c.bf16 %v3978, %v3978
      %v4116 = vpack.c.bf16 %v3979, %v3979
      %v4117 = vpack.c.bf16 %v3980, %v3980
      %v4118 = vpack.c.bf16 %v3981, %v3981
      %v4119 = vpack.c.bf16 %v3982, %v3982
      %v4120 = vpack.c.bf16 %v3983, %v3983
      %v4121 = vpack.c.bf16 %v3984, %v3984
      %v4122 = vpack.c.bf16 %v3985, %v3985
      %v4123 = vpack.c.bf16 %v3986, %v3986
      %v4124 = vpack.c.bf16 %v3987, %v3987
      %v4125 = vpack.c.bf16 %v3988, %v3988
      %v4126 = vpack.c.bf16 %v3989, %v3989
      %v4127 = vpack.c.bf16 %v3990, %v3990
      %v4128 = vpack.c.bf16 %v3991, %v3991
      %v4129 = vpack.c.bf16 %v3992, %v3992
      %v4130 = vpack.c.bf16 %v3993, %v3993
      %v4131 = vpack.c.bf16 %v3994, %v3994
      %v4132 = vpack.c.bf16 %v3995, %v3995
      %v4133 = vpack.c.bf16 %v3996, %v3996
      %v4134 = vpack.c.bf16 %v3997, %v3997
      %4135 = vst [vmem:[%s223] sm:$0xf] %v3998
      %4136 = vst [vmem:[%s223 + $0x4] sm:$0xf] %v3999
      %4137 = vst [vmem:[%s223 + $0x8] sm:$0xf] %v4000
      %4138 = vst [vmem:[%s223 + $0xc] sm:$0xf] %v4001
      %4139 = vst [vmem:[%s223 + $0x10] sm:$0xf] %v4002
      %4140 = vst [vmem:[%s223 + $0x14] sm:$0xf] %v4003
      %4141 = vst [vmem:[%s223 + $0x18] sm:$0xf] %v4004
      %4142 = vst [vmem:[%s223 + $0x1c] sm:$0xf] %v4005
      %4143 = vst [vmem:[%s223 + $0x20] sm:$0xf] %v4006
      %4144 = vst [vmem:[%s223 + $0x24] sm:$0xf] %v4007
      %4145 = vst [vmem:[%s223 + $0x28] sm:$0xf] %v4008
      %4146 = vst [vmem:[%s223 + $0x2c] sm:$0xf] %v4009
      %4147 = vst [vmem:[%s223 + $0x30] sm:$0xf] %v4010
      %4148 = vst [vmem:[%s223 + $0x34] sm:$0xf] %v4011
      %4149 = vst [vmem:[%s223 + $0x38] sm:$0xf] %v4012
      %4150 = vst [vmem:[%s223 + $0x3c] sm:$0xf] %v4013
      %4151 = vst [vmem:[%s223 + $0x40] sm:$0xf] %v4014
      %4152 = vst [vmem:[%s223 + $0x44] sm:$0xf] %v4015
      %4153 = vst [vmem:[%s223 + $0x48] sm:$0xf] %v4016
      %4154 = vst [vmem:[%s223 + $0x4c] sm:$0xf] %v4017
      %4155 = vst [vmem:[%s223 + $0x50] sm:$0xf] %v4018
      %4156 = vst [vmem:[%s223 + $0x54] sm:$0xf] %v4019
      %4157 = vst [vmem:[%s223 + $0x58] sm:$0xf] %v4020
      %4158 = vst [vmem:[%s223 + $0x5c] sm:$0xf] %v4021
      %4159 = vst [vmem:[%s223 + $0x60] sm:$0xf] %v4022
      %4160 = vst [vmem:[%s223 + $0x64] sm:$0xf] %v4023
      %4161 = vst [vmem:[%s223 + $0x68] sm:$0xf] %v4024
      %4162 = vst [vmem:[%s223 + $0x6c] sm:$0xf] %v4025
      %4163 = vst [vmem:[%s223 + $0x70] sm:$0xf] %v4026
      %4164 = vst [vmem:[%s223 + $0x74] sm:$0xf] %v4027
      %4165 = vst [vmem:[%s223 + $0x78] sm:$0xf] %v4028
      %4166 = vst [vmem:[%s223 + $0x7c] sm:$0xf] %v4029
      %4167 = vst [vmem:[%s223 + $0x80] sm:$0xf] %v4030
      %4168 = vst [vmem:[%s223 + $0x84] sm:$0xf] %v4031
      %4169 = vst [vmem:[%s223 + $0x88] sm:$0xf] %v4032
      %4170 = vst [vmem:[%s223 + $0x8c] sm:$0xf] %v4033
      %4171 = vst [vmem:[%s223 + $0x90] sm:$0xf] %v4034
      %4172 = vst [vmem:[%s223 + $0x94] sm:$0xf] %v4035
      %4173 = vst [vmem:[%s223 + $0x98] sm:$0xf] %v4036
      %4174 = vst [vmem:[%s223 + $0x9c] sm:$0xf] %v4037
      %4175 = vst [vmem:[%s223 + $0xa0] sm:$0xf] %v4038
      %4176 = vst [vmem:[%s223 + $0xa4] sm:$0xf] %v4039
      %4177 = vst [vmem:[%s223 + $0xa8] sm:$0xf] %v4040
      %4178 = vst [vmem:[%s223 + $0xac] sm:$0xf] %v4041
      %4179 = vst [vmem:[%s223 + $0xb0] sm:$0xf] %v4042
      %4180 = vst [vmem:[%s223 + $0xb4] sm:$0xf] %v4043
      %4181 = vst [vmem:[%s223 + $0xb8] sm:$0xf] %v4044
      %4182 = vst [vmem:[%s223 + $0xbc] sm:$0xf] %v4045
      %4183 = vst [vmem:[%s223 + $0xc0] sm:$0xf] %v4046
      %4184 = vst [vmem:[%s223 + $0xc4] sm:$0xf] %v4047
      %4185 = vst [vmem:[%s223 + $0xc8] sm:$0xf] %v4048
      %4186 = vst [vmem:[%s223 + $0xcc] sm:$0xf] %v4049
      %4187 = vst [vmem:[%s223 + $0xd0] sm:$0xf] %v4050
      %4188 = vst [vmem:[%s223 + $0xd4] sm:$0xf] %v4051
      %4189 = vst [vmem:[%s223 + $0xd8] sm:$0xf] %v4052
      %4190 = vst [vmem:[%s223 + $0xdc] sm:$0xf] %v4053
      %4191 = vst [vmem:[%s223 + $0xe0] sm:$0xf] %v4054
      %4192 = vst [vmem:[%s223 + $0xe4] sm:$0xf] %v4055
      %4193 = vst [vmem:[%s223 + $0xe8] sm:$0xf] %v4056
      %4194 = vst [vmem:[%s223 + $0xec] sm:$0xf] %v4057
      %4195 = vst [vmem:[%s223 + $0xf0] sm:$0xf] %v4058
      %4196 = vst [vmem:[%s223 + $0xf4] sm:$0xf] %v4059
      %4197 = vst [vmem:[%s223 + $0xf8] sm:$0xf] %v4060
      %4198 = vst [vmem:[%s223 + $0xfc] sm:$0xf] %v4061
      %4199 = vst [vmem:[%s223 + $0x100] sm:$0xf] %v4062
      %4200 = vst [vmem:[%s223 + $0x104] sm:$0xf] %v4063
      %4201 = vst [vmem:[%s223 + $0x108] sm:$0xf] %v4064
      %4202 = vst [vmem:[%s223 + $0x10c] sm:$0xf] %v4065
      %4203 = vst [vmem:[%s223 + $0x110] sm:$0xf] %v4066
      %4204 = vst [vmem:[%s223 + $0x114] sm:$0xf] %v4067
      %4205 = vst [vmem:[%s223 + $0x118] sm:$0xf] %v4068
      %4206 = vst [vmem:[%s223 + $0x11c] sm:$0xf] %v4069
      %4207 = vst [vmem:[%s223 + $0x120] sm:$0xf] %v4070
      %4208 = vst [vmem:[%s223 + $0x124] sm:$0xf] %v4071
      %4209 = vst [vmem:[%s223 + $0x128] sm:$0xf] %v4072
      %4210 = vst [vmem:[%s223 + $0x12c] sm:$0xf] %v4073
      %4211 = vst [vmem:[%s223 + $0x130] sm:$0xf] %v4074
      %4212 = vst [vmem:[%s223 + $0x134] sm:$0xf] %v4075
      %4213 = vst [vmem:[%s223 + $0x138] sm:$0xf] %v4076
      %4214 = vst [vmem:[%s223 + $0x13c] sm:$0xf] %v4077
      %4215 = vst [vmem:[%s223 + $0x140] sm:$0xf] %v4078
      %4216 = vst [vmem:[%s223 + $0x144] sm:$0xf] %v4079
      %4217 = vst [vmem:[%s223 + $0x148] sm:$0xf] %v4080
      %4218 = vst [vmem:[%s223 + $0x14c] sm:$0xf] %v4081
      %4219 = vst [vmem:[%s223 + $0x150] sm:$0xf] %v4082
      %4220 = vst [vmem:[%s223 + $0x154] sm:$0xf] %v4083
      %4221 = vst [vmem:[%s223 + $0x158] sm:$0xf] %v4084
      %4222 = vst [vmem:[%s223 + $0x15c] sm:$0xf] %v4085
      %4223 = vst [vmem:[%s223 + $0x160] sm:$0xf] %v4086
      %4224 = vst [vmem:[%s223 + $0x164] sm:$0xf] %v4087
      %4225 = vst [vmem:[%s223 + $0x168] sm:$0xf] %v4088
      %4226 = vst [vmem:[%s223 + $0x16c] sm:$0xf] %v4089
      %4227 = vst [vmem:[%s223 + $0x170] sm:$0xf] %v4090
      %4228 = vst [vmem:[%s223 + $0x174] sm:$0xf] %v4091
      %4229 = vst [vmem:[%s223 + $0x178] sm:$0xf] %v4092
      %4230 = vst [vmem:[%s223 + $0x17c] sm:$0xf] %v4093
      %4231 = vst [vmem:[%s223 + $0x180] sm:$0xf] %v4094
      %4232 = vst [vmem:[%s223 + $0x184] sm:$0xf] %v4095
      %4233 = vst [vmem:[%s223 + $0x188] sm:$0xf] %v4096
      %4234 = vst [vmem:[%s223 + $0x18c] sm:$0xf] %v4097
      %4235 = vst [vmem:[%s223 + $0x190] sm:$0xf] %v4098
      %4236 = vst [vmem:[%s223 + $0x194] sm:$0xf] %v4099
      %4237 = vst [vmem:[%s223 + $0x198] sm:$0xf] %v4100
      %4238 = vst [vmem:[%s223 + $0x19c] sm:$0xf] %v4101
      %4239 = vst [vmem:[%s223 + $0x1a0] sm:$0xf] %v4102
      %4240 = vst [vmem:[%s223 + $0x1a4] sm:$0xf] %v4103
      %4241 = vst [vmem:[%s223 + $0x1a8] sm:$0xf] %v4104
      %4242 = vst [vmem:[%s223 + $0x1ac] sm:$0xf] %v4105
      %4243 = vst [vmem:[%s223 + $0x1b0] sm:$0xf] %v4106
      %4244 = vst [vmem:[%s223 + $0x1b4] sm:$0xf] %v4107
      %4245 = vst [vmem:[%s223 + $0x1b8] sm:$0xf] %v4108
      %4246 = vst [vmem:[%s223 + $0x1bc] sm:$0xf] %v4109
      %4247 = vst [vmem:[%s223 + $0x1c0] sm:$0xf] %v4110
      %4248 = vst [vmem:[%s223 + $0x1c4] sm:$0xf] %v4111
      %4249 = vst [vmem:[%s223 + $0x1c8] sm:$0xf] %v4112
      %4250 = vst [vmem:[%s223 + $0x1cc] sm:$0xf] %v4113
      %4251 = vst [vmem:[%s223 + $0x1d0] sm:$0xf] %v4114
      %4252 = vst [vmem:[%s223 + $0x1d4] sm:$0xf] %v4115
      %4253 = vst [vmem:[%s223 + $0x1d8] sm:$0xf] %v4116
      %4254 = vst [vmem:[%s223 + $0x1dc] sm:$0xf] %v4117
      %4255 = vst [vmem:[%s223 + $0x1e0] sm:$0xf] %v4118
      %4256 = vst [vmem:[%s223 + $0x1e4] sm:$0xf] %v4119
      %4257 = vst [vmem:[%s223 + $0x1e8] sm:$0xf] %v4120
      %4258 = vst [vmem:[%s223 + $0x1ec] sm:$0xf] %v4121
      %4259 = vst [vmem:[%s223 + $0x1f0] sm:$0xf] %v4122
      %4260 = vst [vmem:[%s223 + $0x1f4] sm:$0xf] %v4123
      %4261 = vst [vmem:[%s223 + $0x1f8] sm:$0xf] %v4124
      %4262 = vst [vmem:[%s223 + $0x1fc] sm:$0xf] %v4125
      %4263 = vst [vmem:[%s223 + $0x200] sm:$0xf] %v4126
      %4264 = vst [vmem:[%s223 + $0x204] sm:$0xf] %v4127
      %4265 = vst [vmem:[%s223 + $0x208] sm:$0xf] %v4128
      %4266 = vst [vmem:[%s223 + $0x20c] sm:$0xf] %v4129
      %4267 = vst [vmem:[%s223 + $0x210] sm:$0xf] %v4130
      %4268 = vst [vmem:[%s223 + $0x214] sm:$0xf] %v4131
      %4269 = vst [vmem:[%s223 + $0x218] sm:$0xf] %v4132
      %4270 = vst [vmem:[%s223 + $0x21c] sm:$0xf] %v4133
      %4271 = vst [vmem:[%s223 + $0x220] sm:$0xf] %v4134
      %s4272 = smul.u32 137, %s18
      %p4273 = scmp.lt.s32.totalorder %s4272, 273
      %s4274 = scalar_select %p4273, %s4272, 273
      %p4275 = scmp.lt.s32.totalorder %s19, 0
      %s4276 = scalar_select %p4275, %s19, 0
      %s4277 = sadd.s32 %s4276, %s4274
      %s4278 = smul.addr %s4277, 4
      %s4279 = scalar_lea.vmem %s3, %s4278
      // Predicated region
      $region33: #{discriminator_forward.8} parent=31 // pred_check
        %p4280 = pneg %p124
      $region34: #{discriminator_forward.8} parent=31 // pred_check_branch
        %4282 = sbr.rel (%p4280) target = $region36
      $region35: #{discriminator_forward.8} parent=31 // pred_region
        %s4283 = smul.u32 137, %s18
      $region36: #{discriminator_forward.8} parent=31 // pred_fallthru
        _
    $region32: #{discriminator_forward.8} parent=5 // pred_fallthru
      _
    %p4284 = scmp.le.s32.totalorder 2, %s9
    // Predicated region
    $region37: #{discriminator_forward.8} parent=5 // pred_check
      %p4285 = pneg %p4284
    $region38: #{discriminator_forward.8} parent=5 // pred_check_branch
      %4287 = sbr.rel (%p4285) target = $region40
    $region39: #{discriminator_forward.8} parent=5 // pred_region
      %s4288 = ssub.s32 %s9, 2
      // Predicated region
      $region41: #{discriminator_forward.8} parent=39 // pred_check
        %p4289 = pneg %p130
      $region42: #{discriminator_forward.8} parent=39 // pred_check_branch
        %4291 = sbr.rel (%p4289) target = $region44
      $region43: #{discriminator_forward.8} parent=39 // pred_region
        %s4292 = smul.u32 137, %s20
        %p4293 = scmp.lt.s32.totalorder %s4292, 273
        %s4294 = scalar_select %p4293, %s4292, 273
        %p4295 = scmp.lt.s32.totalorder %s21, 0
        %s4296 = scalar_select %p4295, %s21, 0
        %s4297 = sadd.s32 %s4296, %s4294
        %s4298 = smul.addr %s4297, 4
        %s4299 = scalar_lea.vmem %s3, %s4298
      $region44: #{discriminator_forward.8} parent=39 // pred_fallthru
        _
    $region40: #{discriminator_forward.8} parent=5 // pred_fallthru
      _
  $region6: #{discriminator_forward.8} parent=0 // loop_footer
    %s13 = sadd.s32 1, %s9
  $region7: #{discriminator_forward.8} parent=0 // loop_footer_branch
    %8 = sbr.rel target = $region3
  $region8: #{discriminator_forward.8} parent=0 // loop_exit
    _

// kernel: discriminator_forward.10
$region0: #{discriminator_forward.10}
  #allocation0 [shape = 'u32[]', space=smem, size = 0x4, offset = 0x4, fixed_abs, tag = 'smem constant byte address 0x4 - core index']
  #allocation1 [shape = 'u32[72,128]{1,0:T(1,128)}', space=vmem, size = 0x9000, scoped, tag = 'internal scratch']
  %s0 = inlined_call_operand.vmem [shape: bf16[592,128], index: 0, kind: input, shape index: {}]
  %s1 = inlined_call_operand.vmem [shape: f32[1,128], index: 1, kind: input, shape index: {}]
  %s2 = inlined_call_operand.vmem [shape: f32[1,128], index: 2, kind: input, shape index: {}]
  %s3 = inlined_call_operand.vmem [shape: bf16[592,128], index: 3, kind: output, shape index: {}]
  %s4 = sld [smem:[#allocation0]]
  $region22: #{discriminator_forward.10} parent=0
    _
  %s6 = ssub.s32 1, %s4
  %s7 = scalar_select 0, %s6, %s4
  // Predicated region
  $region2: #{discriminator_forward.10} parent=0 // pred_check
    _
  $region3: #{discriminator_forward.10} parent=0 // pred_check_branch
    %9 = sbr.rel (0) target = $region5
  $region4: #{discriminator_forward.10} parent=0 // pred_region
    _
  $region5: #{discriminator_forward.10} parent=0 // pred_fallthru
    _
  // Predicated region
  $region6: #{discriminator_forward.10} parent=0 // pred_check
    _
  $region7: #{discriminator_forward.10} parent=0 // pred_check_branch
    %11 = sbr.rel (0) target = $region9
  $region8: #{discriminator_forward.10} parent=0 // pred_region
    _
  $region9: #{discriminator_forward.10} parent=0 // pred_fallthru
    _
  // Predicated region
  $region10: #{discriminator_forward.10} parent=0 // pred_check
    _
  $region11: #{discriminator_forward.10} parent=0 // pred_check_branch
    %13 = sbr.rel (0) target = $region13
  $region12: #{discriminator_forward.10} parent=0 // pred_region
    _
  $region13: #{discriminator_forward.10} parent=0 // pred_fallthru
    _
  %v14 = vld [vmem:[%s0] sm:$0xf]
  %v15 = vld [vmem:[%s0 + $0x4] sm:$0xf]
  %v16 = vld [vmem:[%s0 + $0x8] sm:$0xf]
  %v17 = vld [vmem:[%s0 + $0xc] sm:$0xf]
  %v18 = vld [vmem:[%s0 + $0x10] sm:$0xf]
  %v19 = vld [vmem:[%s0 + $0x14] sm:$0xf]
  %v20 = vld [vmem:[%s0 + $0x18] sm:$0xf]
  %v21 = vld [vmem:[%s0 + $0x1c] sm:$0xf]
  %v22 = vld [vmem:[%s0 + $0x20] sm:$0xf]
  %v23 = vld [vmem:[%s0 + $0x24] sm:$0xf]
  %v24 = vld [vmem:[%s0 + $0x28] sm:$0xf]
  %v25 = vld [vmem:[%s0 + $0x2c] sm:$0xf]
  %v26 = vld [vmem:[%s0 + $0x30] sm:$0xf]
  %v27 = vld [vmem:[%s0 + $0x34] sm:$0xf]
  %v28 = vld [vmem:[%s0 + $0x38] sm:$0xf]
  %v29 = vld [vmem:[%s0 + $0x3c] sm:$0xf]
  %v30 = vld [vmem:[%s0 + $0x40] sm:$0xf]
  %v31 = vld [vmem:[%s0 + $0x44] sm:$0xf]
  %v32 = vld [vmem:[%s0 + $0x48] sm:$0xf]
  %v33 = vld [vmem:[%s0 + $0x4c] sm:$0xf]
  %v34 = vld [vmem:[%s0 + $0x50] sm:$0xf]
  %v35 = vld [vmem:[%s0 + $0x54] sm:$0xf]
  %v36 = vld [vmem:[%s0 + $0x58] sm:$0xf]
  %v37 = vld [vmem:[%s0 + $0x5c] sm:$0xf]
  %v38 = vld [vmem:[%s0 + $0x60] sm:$0xf]
  %v39 = vld [vmem:[%s0 + $0x64] sm:$0xf]
  %v40 = vld [vmem:[%s0 + $0x68] sm:$0xf]
  %v41 = vld [vmem:[%s0 + $0x6c] sm:$0xf]
  %v42 = vld [vmem:[%s0 + $0x70] sm:$0xf]
  %v43 = vld [vmem:[%s0 + $0x74] sm:$0xf]
  %v44 = vld [vmem:[%s0 + $0x78] sm:$0xf]
  %v45 = vld [vmem:[%s0 + $0x7c] sm:$0xf]
  %v46 = vld [vmem:[%s0 + $0x80] sm:$0xf]
  %v47 = vld [vmem:[%s0 + $0x84] sm:$0xf]
  %v48 = vld [vmem:[%s0 + $0x88] sm:$0xf]
  %v49 = vld [vmem:[%s0 + $0x8c] sm:$0xf]
  %v50 = vld [vmem:[%s0 + $0x90] sm:$0xf]
  %v51 = vld [vmem:[%s0 + $0x94] sm:$0xf]
  %v52 = vld [vmem:[%s0 + $0x98] sm:$0xf]
  %v53 = vld [vmem:[%s0 + $0x9c] sm:$0xf]
  %v54 = vld [vmem:[%s0 + $0xa0] sm:$0xf]
  %v55 = vld [vmem:[%s0 + $0xa4] sm:$0xf]
  %v56 = vld [vmem:[%s0 + $0xa8] sm:$0xf]
  %v57 = vld [vmem:[%s0 + $0xac] sm:$0xf]
  %v58 = vld [vmem:[%s0 + $0xb0] sm:$0xf]
  %v59 = vld [vmem:[%s0 + $0xb4] sm:$0xf]
  %v60 = vld [vmem:[%s0 + $0xb8] sm:$0xf]
  %v61 = vld [vmem:[%s0 + $0xbc] sm:$0xf]
  %v62 = vld [vmem:[%s0 + $0xc0] sm:$0xf]
  %v63 = vld [vmem:[%s0 + $0xc4] sm:$0xf]
  %v64 = vld [vmem:[%s0 + $0xc8] sm:$0xf]
  %v65 = vld [vmem:[%s0 + $0xcc] sm:$0xf]
  %v66 = vld [vmem:[%s0 + $0xd0] sm:$0xf]
  %v67 = vld [vmem:[%s0 + $0xd4] sm:$0xf]
  %v68 = vld [vmem:[%s0 + $0xd8] sm:$0xf]
  %v69 = vld [vmem:[%s0 + $0xdc] sm:$0xf]
  %v70 = vld [vmem:[%s0 + $0xe0] sm:$0xf]
  %v71 = vld [vmem:[%s0 + $0xe4] sm:$0xf]
  %v72 = vld [vmem:[%s0 + $0xe8] sm:$0xf]
  %v73 = vld [vmem:[%s0 + $0xec] sm:$0xf]
  %v74 = vld [vmem:[%s0 + $0xf0] sm:$0xf]
  %v75 = vld [vmem:[%s0 + $0xf4] sm:$0xf]
  %v76 = vld [vmem:[%s0 + $0xf8] sm:$0xf]
  %v77 = vld [vmem:[%s0 + $0xfc] sm:$0xf]
  %v78 = vld [vmem:[%s0 + $0x100] sm:$0xf]
  %v79 = vld [vmem:[%s0 + $0x104] sm:$0xf]
  %v80 = vld [vmem:[%s0 + $0x108] sm:$0xf]
  %v81 = vld [vmem:[%s0 + $0x10c] sm:$0xf]
  %v82 = vld [vmem:[%s0 + $0x110] sm:$0xf]
  %v83 = vld [vmem:[%s0 + $0x114] sm:$0xf]
  %v84 = vld [vmem:[%s0 + $0x118] sm:$0xf]
  %v85 = vld [vmem:[%s0 + $0x11c] sm:$0xf]
  %v86 = vld [vmem:[%s0 + $0x120] sm:$0xf]
  %v87 = vld [vmem:[%s0 + $0x124] sm:$0xf]
  %v88 = vunpack.c.l.bf16 %v14
  %v89 = vunpack.c.l.bf16 %v15
  %v90 = vunpack.c.l.bf16 %v16
  %v91 = vunpack.c.l.bf16 %v17
  %v92 = vunpack.c.l.bf16 %v18
  %v93 = vunpack.c.l.bf16 %v19
  %v94 = vunpack.c.l.bf16 %v20
  %v95 = vunpack.c.l.bf16 %v21
  %v96 = vunpack.c.l.bf16 %v22
  %v97 = vunpack.c.l.bf16 %v23
  %v98 = vunpack.c.l.bf16 %v24
  %v99 = vunpack.c.l.bf16 %v25
  %v100 = vunpack.c.l.bf16 %v26
  %v101 = vunpack.c.l.bf16 %v27
  %v102 = vunpack.c.l.bf16 %v28
  %v103 = vunpack.c.l.bf16 %v29
  %v104 = vunpack.c.l.bf16 %v30
  %v105 = vunpack.c.l.bf16 %v31
  %v106 = vunpack.c.l.bf16 %v32
  %v107 = vunpack.c.l.bf16 %v33
  %v108 = vunpack.c.l.bf16 %v34
  %v109 = vunpack.c.l.bf16 %v35
  %v110 = vunpack.c.l.bf16 %v36
  %v111 = vunpack.c.l.bf16 %v37
  %v112 = vunpack.c.l.bf16 %v38
  %v113 = vunpack.c.l.bf16 %v39
  %v114 = vunpack.c.l.bf16 %v40
  %v115 = vunpack.c.l.bf16 %v41
  %v116 = vunpack.c.l.bf16 %v42
  %v117 = vunpack.c.l.bf16 %v43
  %v118 = vunpack.c.l.bf16 %v44
  %v119 = vunpack.c.l.bf16 %v45
  %v120 = vunpack.c.l.bf16 %v46
  %v121 = vunpack.c.l.bf16 %v47
  %v122 = vunpack.c.l.bf16 %v48
  %v123 = vunpack.c.l.bf16 %v49
  %v124 = vunpack.c.l.bf16 %v50
  %v125 = vunpack.c.l.bf16 %v51
  %v126 = vunpack.c.l.bf16 %v52
  %v127 = vunpack.c.l.bf16 %v53
  %v128 = vunpack.c.l.bf16 %v54
  %v129 = vunpack.c.l.bf16 %v55
  %v130 = vunpack.c.l.bf16 %v56
  %v131 = vunpack.c.l.bf16 %v57
  %v132 = vunpack.c.l.bf16 %v58
  %v133 = vunpack.c.l.bf16 %v59
  %v134 = vunpack.c.l.bf16 %v60
  %v135 = vunpack.c.l.bf16 %v61
  %v136 = vunpack.c.l.bf16 %v62
  %v137 = vunpack.c.l.bf16 %v63
  %v138 = vunpack.c.l.bf16 %v64
  %v139 = vunpack.c.l.bf16 %v65
  %v140 = vunpack.c.l.bf16 %v66
  %v141 = vunpack.c.l.bf16 %v67
  %v142 = vunpack.c.l.bf16 %v68
  %v143 = vunpack.c.l.bf16 %v69
  %v144 = vunpack.c.l.bf16 %v70
  %v145 = vunpack.c.l.bf16 %v71
  %v146 = vunpack.c.l.bf16 %v72
  %v147 = vunpack.c.l.bf16 %v73
  %v148 = vunpack.c.l.bf16 %v74
  %v149 = vunpack.c.l.bf16 %v75
  %v150 = vunpack.c.l.bf16 %v76
  %v151 = vunpack.c.l.bf16 %v77
  %v152 = vunpack.c.l.bf16 %v78
  %v153 = vunpack.c.l.bf16 %v79
  %v154 = vunpack.c.l.bf16 %v80
  %v155 = vunpack.c.l.bf16 %v81
  %v156 = vunpack.c.l.bf16 %v82
  %v157 = vunpack.c.l.bf16 %v83
  %v158 = vunpack.c.l.bf16 %v84
  %v159 = vunpack.c.l.bf16 %v85
  %v160 = vunpack.c.l.bf16 %v86
  %v161 = vunpack.c.l.bf16 %v87
  %v162 = vld [vmem:[%s1] sm:$0x1]
  %v164 = vperm.slane %v162, 0
  %v166 = vmul.f32 %v88, %v164
  %v167 = vmul.f32 %v89, %v164
  %v168 = vmul.f32 %v90, %v164
  %v169 = vmul.f32 %v91, %v164
  %v170 = vmul.f32 %v92, %v164
  %v171 = vmul.f32 %v93, %v164
  %v172 = vmul.f32 %v94, %v164
  %v173 = vmul.f32 %v95, %v164
  %v174 = vmul.f32 %v96, %v164
  %v175 = vmul.f32 %v97, %v164
  %v176 = vmul.f32 %v98, %v164
  %v177 = vmul.f32 %v99, %v164
  %v178 = vmul.f32 %v100, %v164
  %v179 = vmul.f32 %v101, %v164
  %v180 = vmul.f32 %v102, %v164
  %v181 = vmul.f32 %v103, %v164
  %v182 = vmul.f32 %v104, %v164
  %v183 = vmul.f32 %v105, %v164
  %v184 = vmul.f32 %v106, %v164
  %v185 = vmul.f32 %v107, %v164
  %v186 = vmul.f32 %v108, %v164
  %v187 = vmul.f32 %v109, %v164
  %v188 = vmul.f32 %v110, %v164
  %v189 = vmul.f32 %v111, %v164
  %v190 = vmul.f32 %v112, %v164
  %v191 = vmul.f32 %v113, %v164
  %v192 = vmul.f32 %v114, %v164
  %v193 = vmul.f32 %v115, %v164
  %v194 = vmul.f32 %v116, %v164
  %v195 = vmul.f32 %v117, %v164
  %v196 = vmul.f32 %v118, %v164
  %v197 = vmul.f32 %v119, %v164
  %v198 = vmul.f32 %v120, %v164
  %v199 = vmul.f32 %v121, %v164
  %v200 = vmul.f32 %v122, %v164
  %v201 = vmul.f32 %v123, %v164
  %v202 = vmul.f32 %v124, %v164
  %v203 = vmul.f32 %v125, %v164
  %v204 = vmul.f32 %v126, %v164
  %v205 = vmul.f32 %v127, %v164
  %v206 = vmul.f32 %v128, %v164
  %v207 = vmul.f32 %v129, %v164
  %v208 = vmul.f32 %v130, %v164
  %v209 = vmul.f32 %v131, %v164
  %v210 = vmul.f32 %v132, %v164
  %v211 = vmul.f32 %v133, %v164
  %v212 = vmul.f32 %v134, %v164
  %v213 = vmul.f32 %v135, %v164
  %v214 = vmul.f32 %v136, %v164
  %v215 = vmul.f32 %v137, %v164
  %v216 = vmul.f32 %v138, %v164
  %v217 = vmul.f32 %v139, %v164
  %v218 = vmul.f32 %v140, %v164
  %v219 = vmul.f32 %v141, %v164
  %v220 = vmul.f32 %v142, %v164
  %v221 = vmul.f32 %v143, %v164
  %v222 = vmul.f32 %v144, %v164
  %v223 = vmul.f32 %v145, %v164
  %v224 = vmul.f32 %v146, %v164
  %v225 = vmul.f32 %v147, %v164
  %v226 = vmul.f32 %v148, %v164
  %v227 = vmul.f32 %v149, %v164
  %v228 = vmul.f32 %v150, %v164
  %v229 = vmul.f32 %v151, %v164
  %v230 = vmul.f32 %v152, %v164
  %v231 = vmul.f32 %v153, %v164
  %v232 = vmul.f32 %v154, %v164
  %v233 = vmul.f32 %v155, %v164
  %v234 = vmul.f32 %v156, %v164
  %v235 = vmul.f32 %v157, %v164
  %v236 = vmul.f32 %v158, %v164
  %v237 = vmul.f32 %v159, %v164
  %v238 = vmul.f32 %v160, %v164
  %v239 = vmul.f32 %v161, %v164
  %v240 = vld [vmem:[%s2] sm:$0x1]
  %v242 = vperm.slane %v240, 0
  %v244 = vadd.f32 %v166, %v242
  %v245 = vadd.f32 %v167, %v242
  %v246 = vadd.f32 %v168, %v242
  %v247 = vadd.f32 %v169, %v242
  %v248 = vadd.f32 %v170, %v242
  %v249 = vadd.f32 %v171, %v242
  %v250 = vadd.f32 %v172, %v242
  %v251 = vadd.f32 %v173, %v242
  %v252 = vadd.f32 %v174, %v242
  %v253 = vadd.f32 %v175, %v242
  %v254 = vadd.f32 %v176, %v242
  %v255 = vadd.f32 %v177, %v242
  %v256 = vadd.f32 %v178, %v242
  %v257 = vadd.f32 %v179, %v242
  %v258 = vadd.f32 %v180, %v242
  %v259 = vadd.f32 %v181, %v242
  %v260 = vadd.f32 %v182, %v242
  %v261 = vadd.f32 %v183, %v242
  %v262 = vadd.f32 %v184, %v242
  %v263 = vadd.f32 %v185, %v242
  %v264 = vadd.f32 %v186, %v242
  %v265 = vadd.f32 %v187, %v242
  %v266 = vadd.f32 %v188, %v242
  %v267 = vadd.f32 %v189, %v242
  %v268 = vadd.f32 %v190, %v242
  %v269 = vadd.f32 %v191, %v242
  %v270 = vadd.f32 %v192, %v242
  %v271 = vadd.f32 %v193, %v242
  %v272 = vadd.f32 %v194, %v242
  %v273 = vadd.f32 %v195, %v242
  %v274 = vadd.f32 %v196, %v242
  %v275 = vadd.f32 %v197, %v242
  %v276 = vadd.f32 %v198, %v242
  %v277 = vadd.f32 %v199, %v242
  %v278 = vadd.f32 %v200, %v242
  %v279 = vadd.f32 %v201, %v242
  %v280 = vadd.f32 %v202, %v242
  %v281 = vadd.f32 %v203, %v242
  %v282 = vadd.f32 %v204, %v242
  %v283 = vadd.f32 %v205, %v242
  %v284 = vadd.f32 %v206, %v242
  %v285 = vadd.f32 %v207, %v242
  %v286 = vadd.f32 %v208, %v242
  %v287 = vadd.f32 %v209, %v242
  %v288 = vadd.f32 %v210, %v242
  %v289 = vadd.f32 %v211, %v242
  %v290 = vadd.f32 %v212, %v242
  %v291 = vadd.f32 %v213, %v242
  %v292 = vadd.f32 %v214, %v242
  %v293 = vadd.f32 %v215, %v242
  %v294 = vadd.f32 %v216, %v242
  %v295 = vadd.f32 %v217, %v242
  %v296 = vadd.f32 %v218, %v242
  %v297 = vadd.f32 %v219, %v242
  %v298 = vadd.f32 %v220, %v242
  %v299 = vadd.f32 %v221, %v242
  %v300 = vadd.f32 %v222, %v242
  %v301 = vadd.f32 %v223, %v242
  %v302 = vadd.f32 %v224, %v242
  %v303 = vadd.f32 %v225, %v242
  %v304 = vadd.f32 %v226, %v242
  %v305 = vadd.f32 %v227, %v242
  %v306 = vadd.f32 %v228, %v242
  %v307 = vadd.f32 %v229, %v242
  %v308 = vadd.f32 %v230, %v242
  %v309 = vadd.f32 %v231, %v242
  %v310 = vadd.f32 %v232, %v242
  %v311 = vadd.f32 %v233, %v242
  %v312 = vadd.f32 %v234, %v242
  %v313 = vadd.f32 %v235, %v242
  %v314 = vadd.f32 %v236, %v242
  %v315 = vadd.f32 %v237, %v242
  %v316 = vadd.f32 %v238, %v242
  %v317 = vadd.f32 %v239, %v242
  %vm318 = vcmp.ge.f32.partialorder %v244, 0.0
  %vm319 = vcmp.ge.f32.partialorder %v245, 0.0
  %vm320 = vcmp.ge.f32.partialorder %v246, 0.0
  %vm321 = vcmp.ge.f32.partialorder %v247, 0.0
  %vm322 = vcmp.ge.f32.partialorder %v248, 0.0
  %vm323 = vcmp.ge.f32.partialorder %v249, 0.0
  %vm324 = vcmp.ge.f32.partialorder %v250, 0.0
  %vm325 = vcmp.ge.f32.partialorder %v251, 0.0
  %vm326 = vcmp.ge.f32.partialorder %v252, 0.0
  %vm327 = vcmp.ge.f32.partialorder %v253, 0.0
  %vm328 = vcmp.ge.f32.partialorder %v254, 0.0
  %vm329 = vcmp.ge.f32.partialorder %v255, 0.0
  %vm330 = vcmp.ge.f32.partialorder %v256, 0.0
  %vm331 = vcmp.ge.f32.partialorder %v257, 0.0
  %vm332 = vcmp.ge.f32.partialorder %v258, 0.0
  %vm333 = vcmp.ge.f32.partialorder %v259, 0.0
  %vm334 = vcmp.ge.f32.partialorder %v260, 0.0
  %vm335 = vcmp.ge.f32.partialorder %v261, 0.0
  %vm336 = vcmp.ge.f32.partialorder %v262, 0.0
  %vm337 = vcmp.ge.f32.partialorder %v263, 0.0
  %vm338 = vcmp.ge.f32.partialorder %v264, 0.0
  %vm339 = vcmp.ge.f32.partialorder %v265, 0.0
  %vm340 = vcmp.ge.f32.partialorder %v266, 0.0
  %vm341 = vcmp.ge.f32.partialorder %v267, 0.0
  %vm342 = vcmp.ge.f32.partialorder %v268, 0.0
  %vm343 = vcmp.ge.f32.partialorder %v269, 0.0
  %vm344 = vcmp.ge.f32.partialorder %v270, 0.0
  %vm345 = vcmp.ge.f32.partialorder %v271, 0.0
  %vm346 = vcmp.ge.f32.partialorder %v272, 0.0
  %vm347 = vcmp.ge.f32.partialorder %v273, 0.0
  %vm348 = vcmp.ge.f32.partialorder %v274, 0.0
  %vm349 = vcmp.ge.f32.partialorder %v275, 0.0
  %vm350 = vcmp.ge.f32.partialorder %v276, 0.0
  %vm351 = vcmp.ge.f32.partialorder %v277, 0.0
  %vm352 = vcmp.ge.f32.partialorder %v278, 0.0
  %vm353 = vcmp.ge.f32.partialorder %v279, 0.0
  %vm354 = vcmp.ge.f32.partialorder %v280, 0.0
  %vm355 = vcmp.ge.f32.partialorder %v281, 0.0
  %vm356 = vcmp.ge.f32.partialorder %v282, 0.0
  %vm357 = vcmp.ge.f32.partialorder %v283, 0.0
  %vm358 = vcmp.ge.f32.partialorder %v284, 0.0
  %vm359 = vcmp.ge.f32.partialorder %v285, 0.0
  %vm360 = vcmp.ge.f32.partialorder %v286, 0.0
  %vm361 = vcmp.ge.f32.partialorder %v287, 0.0
  %vm362 = vcmp.ge.f32.partialorder %v288, 0.0
  %vm363 = vcmp.ge.f32.partialorder %v289, 0.0
  %vm364 = vcmp.ge.f32.partialorder %v290, 0.0
  %vm365 = vcmp.ge.f32.partialorder %v291, 0.0
  %vm366 = vcmp.ge.f32.partialorder %v292, 0.0
  %vm367 = vcmp.ge.f32.partialorder %v293, 0.0
  %vm368 = vcmp.ge.f32.partialorder %v294, 0.0
  %vm369 = vcmp.ge.f32.partialorder %v295, 0.0
  %vm370 = vcmp.ge.f32.partialorder %v296, 0.0
  %vm371 = vcmp.ge.f32.partialorder %v297, 0.0
  %vm372 = vcmp.ge.f32.partialorder %v298, 0.0
  %vm373 = vcmp.ge.f32.partialorder %v299, 0.0
  %vm374 = vcmp.ge.f32.partialorder %v300, 0.0
  %vm375 = vcmp.ge.f32.partialorder %v301, 0.0
  %vm376 = vcmp.ge.f32.partialorder %v302, 0.0
  %vm377 = vcmp.ge.f32.partialorder %v303, 0.0
  %vm378 = vcmp.ge.f32.partialorder %v304, 0.0
  %vm379 = vcmp.ge.f32.partialorder %v305, 0.0
  %vm380 = vcmp.ge.f32.partialorder %v306, 0.0
  %vm381 = vcmp.ge.f32.partialorder %v307, 0.0
  %vm382 = vcmp.ge.f32.partialorder %v308, 0.0
  %vm383 = vcmp.ge.f32.partialorder %v309, 0.0
  %vm384 = vcmp.ge.f32.partialorder %v310, 0.0
  %vm385 = vcmp.ge.f32.partialorder %v311, 0.0
  %vm386 = vcmp.ge.f32.partialorder %v312, 0.0
  %vm387 = vcmp.ge.f32.partialorder %v313, 0.0
  %vm388 = vcmp.ge.f32.partialorder %v314, 0.0
  %vm389 = vcmp.ge.f32.partialorder %v315, 0.0
  %vm390 = vcmp.ge.f32.partialorder %v316, 0.0
  %vm391 = vcmp.ge.f32.partialorder %v317, 0.0
  %v392 = vmul.f32 %v244, 0.2
  %v393 = vmul.f32 %v245, 0.2
  %v394 = vmul.f32 %v246, 0.2
  %v395 = vmul.f32 %v247, 0.2
  %v396 = vmul.f32 %v248, 0.2
  %v397 = vmul.f32 %v249, 0.2
  %v398 = vmul.f32 %v250, 0.2
  %v399 = vmul.f32 %v251, 0.2
  %v400 = vmul.f32 %v252, 0.2
  %v401 = vmul.f32 %v253, 0.2
  %v402 = vmul.f32 %v254, 0.2
  %v403 = vmul.f32 %v255, 0.2
  %v404 = vmul.f32 %v256, 0.2
  %v405 = vmul.f32 %v257, 0.2
  %v406 = vmul.f32 %v258, 0.2
  %v407 = vmul.f32 %v259, 0.2
  %v408 = vmul.f32 %v260, 0.2
  %v409 = vmul.f32 %v261, 0.2
  %v410 = vmul.f32 %v262, 0.2
  %v411 = vmul.f32 %v263, 0.2
  %v412 = vmul.f32 %v264, 0.2
  %v413 = vmul.f32 %v265, 0.2
  %v414 = vmul.f32 %v266, 0.2
  %v415 = vmul.f32 %v267, 0.2
  %v416 = vmul.f32 %v268, 0.2
  %v417 = vmul.f32 %v269, 0.2
  %v418 = vmul.f32 %v270, 0.2
  %v419 = vmul.f32 %v271, 0.2
  %v420 = vmul.f32 %v272, 0.2
  %v421 = vmul.f32 %v273, 0.2
  %v422 = vmul.f32 %v274, 0.2
  %v423 = vmul.f32 %v275, 0.2
  %v424 = vmul.f32 %v276, 0.2
  %v425 = vmul.f32 %v277, 0.2
  %v426 = vmul.f32 %v278, 0.2
  %v427 = vmul.f32 %v279, 0.2
  %v428 = vmul.f32 %v280, 0.2
  %v429 = vmul.f32 %v281, 0.2
  %v430 = vmul.f32 %v282, 0.2
  %v431 = vmul.f32 %v283, 0.2
  %v432 = vmul.f32 %v284, 0.2
  %v433 = vmul.f32 %v285, 0.2
  %v434 = vmul.f32 %v286, 0.2
  %v435 = vmul.f32 %v287, 0.2
  %v436 = vmul.f32 %v288, 0.2
  %v437 = vmul.f32 %v289, 0.2
  %v438 = vmul.f32 %v290, 0.2
  %v439 = vmul.f32 %v291, 0.2
  %v440 = vmul.f32 %v292, 0.2
  %v441 = vmul.f32 %v293, 0.2
  %v442 = vmul.f32 %v294, 0.2
  %v443 = vmul.f32 %v295, 0.2
  %v444 = vmul.f32 %v296, 0.2
  %v445 = vmul.f32 %v297, 0.2
  %v446 = vmul.f32 %v298, 0.2
  %v447 = vmul.f32 %v299, 0.2
  %v448 = vmul.f32 %v300, 0.2
  %v449 = vmul.f32 %v301, 0.2
  %v450 = vmul.f32 %v302, 0.2
  %v451 = vmul.f32 %v303, 0.2
  %v452 = vmul.f32 %v304, 0.2
  %v453 = vmul.f32 %v305, 0.2
  %v454 = vmul.f32 %v306, 0.2
  %v455 = vmul.f32 %v307, 0.2
  %v456 = vmul.f32 %v308, 0.2
  %v457 = vmul.f32 %v309, 0.2
  %v458 = vmul.f32 %v310, 0.2
  %v459 = vmul.f32 %v311, 0.2
  %v460 = vmul.f32 %v312, 0.2
  %v461 = vmul.f32 %v313, 0.2
  %v462 = vmul.f32 %v314, 0.2
  %v463 = vmul.f32 %v315, 0.2
  %v464 = vmul.f32 %v316, 0.2
  %v465 = vmul.f32 %v317, 0.2
  %v466 = vsel %vm318, %v244, %v392
  %v467 = vsel %vm319, %v245, %v393
  %v468 = vsel %vm320, %v246, %v394
  %v469 = vsel %vm321, %v247, %v395
  %v470 = vsel %vm322, %v248, %v396
  %v471 = vsel %vm323, %v249, %v397
  %v472 = vsel %vm324, %v250, %v398
  %v473 = vsel %vm325, %v251, %v399
  %v474 = vsel %vm326, %v252, %v400
  %v475 = vsel %vm327, %v253, %v401
  %v476 = vsel %vm328, %v254, %v402
  %v477 = vsel %vm329, %v255, %v403
  %v478 = vsel %vm330, %v256, %v404
  %v479 = vsel %vm331, %v257, %v405
  %v480 = vsel %vm332, %v258, %v406
  %v481 = vsel %vm333, %v259, %v407
  %v482 = vsel %vm334, %v260, %v408
  %v483 = vsel %vm335, %v261, %v409
  %v484 = vsel %vm336, %v262, %v410
  %v485 = vsel %vm337, %v263, %v411
  %v486 = vsel %vm338, %v264, %v412
  %v487 = vsel %vm339, %v265, %v413
  %v488 = vsel %vm340, %v266, %v414
  %v489 = vsel %vm341, %v267, %v415
  %v490 = vsel %vm342, %v268, %v416
  %v491 = vsel %vm343, %v269, %v417
  %v492 = vsel %vm344, %v270, %v418
  %v493 = vsel %vm345, %v271, %v419
  %v494 = vsel %vm346, %v272, %v420
  %v495 = vsel %vm347, %v273, %v421
  %v496 = vsel %vm348, %v274, %v422
  %v497 = vsel %vm349, %v275, %v423
  %v498 = vsel %vm350, %v276, %v424
  %v499 = vsel %vm351, %v277, %v425
  %v500 = vsel %vm352, %v278, %v426
  %v501 = vsel %vm353, %v279, %v427
  %v502 = vsel %vm354, %v280, %v428
  %v503 = vsel %vm355, %v281, %v429
  %v504 = vsel %vm356, %v282, %v430
  %v505 = vsel %vm357, %v283, %v431
  %v506 = vsel %vm358, %v284, %v432
  %v507 = vsel %vm359, %v285, %v433
  %v508 = vsel %vm360, %v286, %v434
  %v509 = vsel %vm361, %v287, %v435
  %v510 = vsel %vm362, %v288, %v436
  %v511 = vsel %vm363, %v289, %v437
  %v512 = vsel %vm364, %v290, %v438
  %v513 = vsel %vm365, %v291, %v439
  %v514 = vsel %vm366, %v292, %v440
  %v515 = vsel %vm367, %v293, %v441
  %v516 = vsel %vm368, %v294, %v442
  %v517 = vsel %vm369, %v295, %v443
  %v518 = vsel %vm370, %v296, %v444
  %v519 = vsel %vm371, %v297, %v445
  %v520 = vsel %vm372, %v298, %v446
  %v521 = vsel %vm373, %v299, %v447
  %v522 = vsel %vm374, %v300, %v448
  %v523 = vsel %vm375, %v301, %v449
  %v524 = vsel %vm376, %v302, %v450
  %v525 = vsel %vm377, %v303, %v451
  %v526 = vsel %vm378, %v304, %v452
  %v527 = vsel %vm379, %v305, %v453
  %v528 = vsel %vm380, %v306, %v454
  %v529 = vsel %vm381, %v307, %v455
  %v530 = vsel %vm382, %v308, %v456
  %v531 = vsel %vm383, %v309, %v457
  %v532 = vsel %vm384, %v310, %v458
  %v533 = vsel %vm385, %v311, %v459
  %v534 = vsel %vm386, %v312, %v460
  %v535 = vsel %vm387, %v313, %v461
  %v536 = vsel %vm388, %v314, %v462
  %v537 = vsel %vm389, %v315, %v463
  %v538 = vsel %vm390, %v316, %v464
  %v539 = vsel %vm391, %v317, %v465
  %v540 = vpack.c.bf16 %v466, %v466
  %v541 = vpack.c.bf16 %v467, %v467
  %v542 = vpack.c.bf16 %v468, %v468
  %v543 = vpack.c.bf16 %v469, %v469
  %v544 = vpack.c.bf16 %v470, %v470
  %v545 = vpack.c.bf16 %v471, %v471
  %v546 = vpack.c.bf16 %v472, %v472
  %v547 = vpack.c.bf16 %v473, %v473
  %v548 = vpack.c.bf16 %v474, %v474
  %v549 = vpack.c.bf16 %v475, %v475
  %v550 = vpack.c.bf16 %v476, %v476
  %v551 = vpack.c.bf16 %v477, %v477
  %v552 = vpack.c.bf16 %v478, %v478
  %v553 = vpack.c.bf16 %v479, %v479
  %v554 = vpack.c.bf16 %v480, %v480
  %v555 = vpack.c.bf16 %v481, %v481
  %v556 = vpack.c.bf16 %v482, %v482
  %v557 = vpack.c.bf16 %v483, %v483
  %v558 = vpack.c.bf16 %v484, %v484
  %v559 = vpack.c.bf16 %v485, %v485
  %v560 = vpack.c.bf16 %v486, %v486
  %v561 = vpack.c.bf16 %v487, %v487
  %v562 = vpack.c.bf16 %v488, %v488
  %v563 = vpack.c.bf16 %v489, %v489
  %v564 = vpack.c.bf16 %v490, %v490
  %v565 = vpack.c.bf16 %v491, %v491
  %v566 = vpack.c.bf16 %v492, %v492
  %v567 = vpack.c.bf16 %v493, %v493
  %v568 = vpack.c.bf16 %v494, %v494
  %v569 = vpack.c.bf16 %v495, %v495
  %v570 = vpack.c.bf16 %v496, %v496
  %v571 = vpack.c.bf16 %v497, %v497
  %v572 = vpack.c.bf16 %v498, %v498
  %v573 = vpack.c.bf16 %v499, %v499
  %v574 = vpack.c.bf16 %v500, %v500
  %v575 = vpack.c.bf16 %v501, %v501
  %v576 = vpack.c.bf16 %v502, %v502
  %v577 = vpack.c.bf16 %v503, %v503
  %v578 = vpack.c.bf16 %v504, %v504
  %v579 = vpack.c.bf16 %v505, %v505
  %v580 = vpack.c.bf16 %v506, %v506
  %v581 = vpack.c.bf16 %v507, %v507
  %v582 = vpack.c.bf16 %v508, %v508
  %v583 = vpack.c.bf16 %v509, %v509
  %v584 = vpack.c.bf16 %v510, %v510
  %v585 = vpack.c.bf16 %v511, %v511
  %v586 = vpack.c.bf16 %v512, %v512
  %v587 = vpack.c.bf16 %v513, %v513
  %v588 = vpack.c.bf16 %v514, %v514
  %v589 = vpack.c.bf16 %v515, %v515
  %v590 = vpack.c.bf16 %v516, %v516
  %v591 = vpack.c.bf16 %v517, %v517
  %v592 = vpack.c.bf16 %v518, %v518
  %v593 = vpack.c.bf16 %v519, %v519
  %v594 = vpack.c.bf16 %v520, %v520
  %v595 = vpack.c.bf16 %v521, %v521
  %v596 = vpack.c.bf16 %v522, %v522
  %v597 = vpack.c.bf16 %v523, %v523
  %v598 = vpack.c.bf16 %v524, %v524
  %v599 = vpack.c.bf16 %v525, %v525
  %v600 = vpack.c.bf16 %v526, %v526
  %v601 = vpack.c.bf16 %v527, %v527
  %v602 = vpack.c.bf16 %v528, %v528
  %v603 = vpack.c.bf16 %v529, %v529
  %v604 = vpack.c.bf16 %v530, %v530
  %v605 = vpack.c.bf16 %v531, %v531
  %v606 = vpack.c.bf16 %v532, %v532
  %v607 = vpack.c.bf16 %v533, %v533
  %v608 = vpack.c.bf16 %v534, %v534
  %v609 = vpack.c.bf16 %v535, %v535
  %v610 = vpack.c.bf16 %v536, %v536
  %v611 = vpack.c.bf16 %v537, %v537
  %v612 = vpack.c.bf16 %v538, %v538
  %v613 = vpack.c.bf16 %v539, %v539
  %614 = vst [vmem:[%s3] sm:$0xf] %v540
  %615 = vst [vmem:[%s3 + $0x4] sm:$0xf] %v541
  %616 = vst [vmem:[%s3 + $0x8] sm:$0xf] %v542
  %617 = vst [vmem:[%s3 + $0xc] sm:$0xf] %v543
  %618 = vst [vmem:[%s3 + $0x10] sm:$0xf] %v544
  %619 = vst [vmem:[%s3 + $0x14] sm:$0xf] %v545
  %620 = vst [vmem:[%s3 + $0x18] sm:$0xf] %v546
  %621 = vst [vmem:[%s3 + $0x1c] sm:$0xf] %v547
  %622 = vst [vmem:[%s3 + $0x20] sm:$0xf] %v548
  %623 = vst [vmem:[%s3 + $0x24] sm:$0xf] %v549
  %624 = vst [vmem:[%s3 + $0x28] sm:$0xf] %v550
  %625 = vst [vmem:[%s3 + $0x2c] sm:$0xf] %v551
  %626 = vst [vmem:[%s3 + $0x30] sm:$0xf] %v552
  %627 = vst [vmem:[%s3 + $0x34] sm:$0xf] %v553
  %628 = vst [vmem:[%s3 + $0x38] sm:$0xf] %v554
  %629 = vst [vmem:[%s3 + $0x3c] sm:$0xf] %v555
  %630 = vst [vmem:[%s3 + $0x40] sm:$0xf] %v556
  %631 = vst [vmem:[%s3 + $0x44] sm:$0xf] %v557
  %632 = vst [vmem:[%s3 + $0x48] sm:$0xf] %v558
  %633 = vst [vmem:[%s3 + $0x4c] sm:$0xf] %v559
  %634 = vst [vmem:[%s3 + $0x50] sm:$0xf] %v560
  %635 = vst [vmem:[%s3 + $0x54] sm:$0xf] %v561
  %636 = vst [vmem:[%s3 + $0x58] sm:$0xf] %v562
  %637 = vst [vmem:[%s3 + $0x5c] sm:$0xf] %v563
  %638 = vst [vmem:[%s3 + $0x60] sm:$0xf] %v564
  %639 = vst [vmem:[%s3 + $0x64] sm:$0xf] %v565
  %640 = vst [vmem:[%s3 + $0x68] sm:$0xf] %v566
  %641 = vst [vmem:[%s3 + $0x6c] sm:$0xf] %v567
  %642 = vst [vmem:[%s3 + $0x70] sm:$0xf] %v568
  %643 = vst [vmem:[%s3 + $0x74] sm:$0xf] %v569
  %644 = vst [vmem:[%s3 + $0x78] sm:$0xf] %v570
  %645 = vst [vmem:[%s3 + $0x7c] sm:$0xf] %v571
  %646 = vst [vmem:[%s3 + $0x80] sm:$0xf] %v572
  %647 = vst [vmem:[%s3 + $0x84] sm:$0xf] %v573
  %648 = vst [vmem:[%s3 + $0x88] sm:$0xf] %v574
  %649 = vst [vmem:[%s3 + $0x8c] sm:$0xf] %v575
  %650 = vst [vmem:[%s3 + $0x90] sm:$0xf] %v576
  %651 = vst [vmem:[%s3 + $0x94] sm:$0xf] %v577
  %652 = vst [vmem:[%s3 + $0x98] sm:$0xf] %v578
  %653 = vst [vmem:[%s3 + $0x9c] sm:$0xf] %v579
  %654 = vst [vmem:[%s3 + $0xa0] sm:$0xf] %v580
  %655 = vst [vmem:[%s3 + $0xa4] sm:$0xf] %v581
  %656 = vst [vmem:[%s3 + $0xa8] sm:$0xf] %v582
  %657 = vst [vmem:[%s3 + $0xac] sm:$0xf] %v583
  %658 = vst [vmem:[%s3 + $0xb0] sm:$0xf] %v584
  %659 = vst [vmem:[%s3 + $0xb4] sm:$0xf] %v585
  %660 = vst [vmem:[%s3 + $0xb8] sm:$0xf] %v586
  %661 = vst [vmem:[%s3 + $0xbc] sm:$0xf] %v587
  %662 = vst [vmem:[%s3 + $0xc0] sm:$0xf] %v588
  %663 = vst [vmem:[%s3 + $0xc4] sm:$0xf] %v589
  %664 = vst [vmem:[%s3 + $0xc8] sm:$0xf] %v590
  %665 = vst [vmem:[%s3 + $0xcc] sm:$0xf] %v591
  %666 = vst [vmem:[%s3 + $0xd0] sm:$0xf] %v592
  %667 = vst [vmem:[%s3 + $0xd4] sm:$0xf] %v593
  %668 = vst [vmem:[%s3 + $0xd8] sm:$0xf] %v594
  %669 = vst [vmem:[%s3 + $0xdc] sm:$0xf] %v595
  %670 = vst [vmem:[%s3 + $0xe0] sm:$0xf] %v596
  %671 = vst [vmem:[%s3 + $0xe4] sm:$0xf] %v597
  %672 = vst [vmem:[%s3 + $0xe8] sm:$0xf] %v598
  %673 = vst [vmem:[%s3 + $0xec] sm:$0xf] %v599
  %674 = vst [vmem:[%s3 + $0xf0] sm:$0xf] %v600
  %675 = vst [vmem:[%s3 + $0xf4] sm:$0xf] %v601
  %676 = vst [vmem:[%s3 + $0xf8] sm:$0xf] %v602
  %677 = vst [vmem:[%s3 + $0xfc] sm:$0xf] %v603
  %678 = vst [vmem:[%s3 + $0x100] sm:$0xf] %v604
  %679 = vst [vmem:[%s3 + $0x104] sm:$0xf] %v605
  %680 = vst [vmem:[%s3 + $0x108] sm:$0xf] %v606
  %681 = vst [vmem:[%s3 + $0x10c] sm:$0xf] %v607
  %682 = vst [vmem:[%s3 + $0x110] sm:$0xf] %v608
  %683 = vst [vmem:[%s3 + $0x114] sm:$0xf] %v609
  %684 = vst [vmem:[%s3 + $0x118] sm:$0xf] %v610
  %685 = vst [vmem:[%s3 + $0x11c] sm:$0xf] %v611
  %686 = vst [vmem:[%s3 + $0x120] sm:$0xf] %v612
  %687 = vst [vmem:[%s3 + $0x124] sm:$0xf] %v613
  // Predicated region
  $region14: #{discriminator_forward.10} parent=0 // pred_check
    _
  $region15: #{discriminator_forward.10} parent=0 // pred_check_branch
    %689 = sbr.rel (0) target = $region17
  $region16: #{discriminator_forward.10} parent=0 // pred_region
    _
  $region17: #{discriminator_forward.10} parent=0 // pred_fallthru
    _
  // Predicated region
  $region18: #{discriminator_forward.10} parent=0 // pred_check
    _
  $region19: #{discriminator_forward.10} parent=0 // pred_check_branch
    %691 = sbr.rel (0) target = $region21
  $region20: #{discriminator_forward.10} parent=0 // pred_region
    _
  $region21: #{discriminator_forward.10} parent=0 // pred_fallthru
    _

// kernel: discriminator_forward.9
$region0: #{discriminator_forward.9}
  #allocation0 [shape = 'u32[]', space=smem, size = 0x4, offset = 0x4, fixed_abs, tag = 'smem constant byte address 0x4 - core index']
  #allocation1 [shape = 'u32[72,128]{1,0:T(1,128)}', space=vmem, size = 0x9000, scoped, tag = 'internal scratch']
  %s0 = inlined_call_operand.vmem [shape: bf16[592,32], index: 0, kind: input, shape index: {}]
  %s1 = inlined_call_operand.vmem [shape: bf16[4,32,128], index: 1, kind: input, shape index: {}]
  %s2 = inlined_call_operand.vmem [shape: f32[1,128], index: 2, kind: input, shape index: {}]
  %s3 = inlined_call_operand.vmem [shape: f32[592,1], index: 3, kind: input, shape index: {}]
  %s4 = inlined_call_operand.vmem [shape: bf16[592,128], index: 4, kind: output, shape index: {0}]
  %s5 = inlined_call_operand.vmem [shape: f32[8,128], index: 5, kind: output, shape index: {1}]
  %s6 = inlined_call_operand.vmem [shape: f32[8,128], index: 6, kind: output, shape index: {2}]
  %7 = xla_tuple %s4, %s5, %s6
  %s8 = sld [smem:[#allocation0]]
  $region42: #{discriminator_forward.9} parent=0
    _
  %s10 = ssub.s32 1, %s8
  %s11 = scalar_select 0, %s10, %s8
  // Predicated region
  $region2: #{discriminator_forward.9} parent=0 // pred_check
    _
  $region3: #{discriminator_forward.9} parent=0 // pred_check_branch
    %13 = sbr.rel (0) target = $region5
  $region4: #{discriminator_forward.9} parent=0 // pred_region
    _
  $region5: #{discriminator_forward.9} parent=0 // pred_fallthru
    _
  // Predicated region
  $region6: #{discriminator_forward.9} parent=0 // pred_check
    _
  $region7: #{discriminator_forward.9} parent=0 // pred_check_branch
    %15 = sbr.rel (0) target = $region9
  $region8: #{discriminator_forward.9} parent=0 // pred_region
    _
  $region9: #{discriminator_forward.9} parent=0 // pred_fallthru
    _
  // Predicated region
  $region10: #{discriminator_forward.9} parent=0 // pred_check
    _
  $region11: #{discriminator_forward.9} parent=0 // pred_check_branch
    %17 = sbr.rel (0) target = $region13
  $region12: #{discriminator_forward.9} parent=0 // pred_region
    _
  $region13: #{discriminator_forward.9} parent=0 // pred_fallthru
    _
  // Predicated region
  $region14: #{discriminator_forward.9} parent=0 // pred_check
    _
  $region15: #{discriminator_forward.9} parent=0 // pred_check_branch
    %19 = sbr.rel (0) target = $region17
  $region16: #{discriminator_forward.9} parent=0 // pred_region
    _
  $region17: #{discriminator_forward.9} parent=0 // pred_fallthru
    _
  %v21 = vld [vmem:[%s0] sm:$0xf]
  %v22 = vld [vmem:[%s0 + $0x4] sm:$0xf]
  %v23 = vld [vmem:[%s0 + $0x8] sm:$0xf]
  %v24 = vld [vmem:[%s0 + $0xc] sm:$0xf]
  %v25 = vld [vmem:[%s0 + $0x10] sm:$0xf]
  %v26 = vld [vmem:[%s0 + $0x14] sm:$0xf]
  %v27 = vld [vmem:[%s0 + $0x18] sm:$0xf]
  %v28 = vld [vmem:[%s0 + $0x1c] sm:$0xf]
  %v29 = vld [vmem:[%s0 + $0x20] sm:$0xf]
  %v30 = vld [vmem:[%s0 + $0x24] sm:$0xf]
  %v31 = vld [vmem:[%s0 + $0x28] sm:$0xf]
  %v32 = vld [vmem:[%s0 + $0x2c] sm:$0xf]
  %v33 = vld [vmem:[%s0 + $0x30] sm:$0xf]
  %v34 = vld [vmem:[%s0 + $0x34] sm:$0xf]
  %v35 = vld [vmem:[%s0 + $0x38] sm:$0xf]
  %v36 = vld [vmem:[%s0 + $0x3c] sm:$0xf]
  %v37 = vld [vmem:[%s0 + $0x40] sm:$0xf]
  %v38 = vld [vmem:[%s0 + $0x44] sm:$0xf]
  %v39 = vld [vmem:[%s0 + $0x48] sm:$0xf]
  %v40 = vld [vmem:[%s0 + $0x4c] sm:$0xf]
  %v41 = vld [vmem:[%s0 + $0x50] sm:$0xf]
  %v42 = vld [vmem:[%s0 + $0x54] sm:$0xf]
  %v43 = vld [vmem:[%s0 + $0x58] sm:$0xf]
  %v44 = vld [vmem:[%s0 + $0x5c] sm:$0xf]
  %v45 = vld [vmem:[%s0 + $0x60] sm:$0xf]
  %v46 = vld [vmem:[%s0 + $0x64] sm:$0xf]
  %v47 = vld [vmem:[%s0 + $0x68] sm:$0xf]
  %v48 = vld [vmem:[%s0 + $0x6c] sm:$0xf]
  %v49 = vld [vmem:[%s0 + $0x70] sm:$0xf]
  %v50 = vld [vmem:[%s0 + $0x74] sm:$0xf]
  %v51 = vld [vmem:[%s0 + $0x78] sm:$0xf]
  %v52 = vld [vmem:[%s0 + $0x7c] sm:$0xf]
  %v53 = vld [vmem:[%s0 + $0x80] sm:$0xf]
  %v54 = vld [vmem:[%s0 + $0x84] sm:$0xf]
  %v55 = vld [vmem:[%s0 + $0x88] sm:$0xf]
  %v56 = vld [vmem:[%s0 + $0x8c] sm:$0xf]
  %v57 = vld [vmem:[%s0 + $0x90] sm:$0xf]
  %v58 = vld [vmem:[%s0 + $0x94] sm:$0xf]
  %v59 = vld [vmem:[%s0 + $0x98] sm:$0xf]
  %v60 = vld [vmem:[%s0 + $0x9c] sm:$0xf]
  %v61 = vld [vmem:[%s0 + $0xa0] sm:$0xf]
  %v62 = vld [vmem:[%s0 + $0xa4] sm:$0xf]
  %v63 = vld [vmem:[%s0 + $0xa8] sm:$0xf]
  %v64 = vld [vmem:[%s0 + $0xac] sm:$0xf]
  %v65 = vld [vmem:[%s0 + $0xb0] sm:$0xf]
  %v66 = vld [vmem:[%s0 + $0xb4] sm:$0xf]
  %v67 = vld [vmem:[%s0 + $0xb8] sm:$0xf]
  %v68 = vld [vmem:[%s0 + $0xbc] sm:$0xf]
  %v69 = vld [vmem:[%s0 + $0xc0] sm:$0xf]
  %v70 = vld [vmem:[%s0 + $0xc4] sm:$0xf]
  %v71 = vld [vmem:[%s0 + $0xc8] sm:$0xf]
  %v72 = vld [vmem:[%s0 + $0xcc] sm:$0xf]
  %v73 = vld [vmem:[%s0 + $0xd0] sm:$0xf]
  %v74 = vld [vmem:[%s0 + $0xd4] sm:$0xf]
  %v75 = vld [vmem:[%s0 + $0xd8] sm:$0xf]
  %v76 = vld [vmem:[%s0 + $0xdc] sm:$0xf]
  %v77 = vld [vmem:[%s0 + $0xe0] sm:$0xf]
  %v78 = vld [vmem:[%s0 + $0xe4] sm:$0xf]
  %v79 = vld [vmem:[%s0 + $0xe8] sm:$0xf]
  %v80 = vld [vmem:[%s0 + $0xec] sm:$0xf]
  %v81 = vld [vmem:[%s0 + $0xf0] sm:$0xf]
  %v82 = vld [vmem:[%s0 + $0xf4] sm:$0xf]
  %v83 = vld [vmem:[%s0 + $0xf8] sm:$0xf]
  %v84 = vld [vmem:[%s0 + $0xfc] sm:$0xf]
  %v85 = vld [vmem:[%s0 + $0x100] sm:$0xf]
  %v86 = vld [vmem:[%s0 + $0x104] sm:$0xf]
  %v87 = vld [vmem:[%s0 + $0x108] sm:$0xf]
  %v88 = vld [vmem:[%s0 + $0x10c] sm:$0xf]
  %v89 = vld [vmem:[%s0 + $0x110] sm:$0xf]
  %v90 = vld [vmem:[%s0 + $0x114] sm:$0xf]
  %v91 = vld [vmem:[%s0 + $0x118] sm:$0xf]
  %v92 = vld [vmem:[%s0 + $0x11c] sm:$0xf]
  %v93 = vld [vmem:[%s0 + $0x120] sm:$0xf]
  %v94 = vld [vmem:[%s0 + $0x124] sm:$0xf]
  %v95 = vld [vmem:[%s1] sm:$0xf]
  %v96 = vld [vmem:[%s1 + $0x4] sm:$0xf]
  %v97 = vld [vmem:[%s1 + $0x8] sm:$0xf]
  %v98 = vld [vmem:[%s1 + $0xc] sm:$0xf]
  %s99 = scalar_lea.vmem %s1, 16
  %v100 = vld [vmem:[%s99] sm:$0xf]
  %v101 = vld [vmem:[%s99 + $0x4] sm:$0xf]
  %v102 = vld [vmem:[%s99 + $0x8] sm:$0xf]
  %v103 = vld [vmem:[%s99 + $0xc] sm:$0xf]
  %v178 = vunpack.c.l.b16 %v21
  %v179 = vunpack.c.l.b16 %v22
  %v180 = vunpack.c.l.b16 %v23
  %v181 = vunpack.c.l.b16 %v24
  %v182 = vunpack.c.l.b16 %v25
  %v183 = vunpack.c.l.b16 %v26
  %v184 = vunpack.c.l.b16 %v27
  %v185 = vunpack.c.l.b16 %v28
  %v186 = vunpack.c.l.b16 %v29
  %v187 = vunpack.c.l.b16 %v30
  %v188 = vunpack.c.l.b16 %v31
  %v189 = vunpack.c.l.b16 %v32
  %v190 = vunpack.c.l.b16 %v33
  %v191 = vunpack.c.l.b16 %v34
  %v192 = vunpack.c.l.b16 %v35
  %v193 = vunpack.c.l.b16 %v36
  %v194 = vunpack.c.l.b16 %v37
  %v195 = vunpack.c.l.b16 %v38
  %v196 = vunpack.c.l.b16 %v39
  %v197 = vunpack.c.l.b16 %v40
  %v198 = vunpack.c.l.b16 %v41
  %v199 = vunpack.c.l.b16 %v42
  %v200 = vunpack.c.l.b16 %v43
  %v201 = vunpack.c.l.b16 %v44
  %v202 = vunpack.c.l.b16 %v45
  %v203 = vunpack.c.l.b16 %v46
  %v204 = vunpack.c.l.b16 %v47
  %v205 = vunpack.c.l.b16 %v48
  %v206 = vunpack.c.l.b16 %v49
  %v207 = vunpack.c.l.b16 %v50
  %v208 = vunpack.c.l.b16 %v51
  %v209 = vunpack.c.l.b16 %v52
  %v210 = vunpack.c.l.b16 %v53
  %v211 = vunpack.c.l.b16 %v54
  %v212 = vunpack.c.l.b16 %v55
  %v213 = vunpack.c.l.b16 %v56
  %v214 = vunpack.c.l.b16 %v57
  %v215 = vunpack.c.l.b16 %v58
  %v216 = vunpack.c.l.b16 %v59
  %v217 = vunpack.c.l.b16 %v60
  %v218 = vunpack.c.l.b16 %v61
  %v219 = vunpack.c.l.b16 %v62
  %v220 = vunpack.c.l.b16 %v63
  %v221 = vunpack.c.l.b16 %v64
  %v222 = vunpack.c.l.b16 %v65
  %v223 = vunpack.c.l.b16 %v66
  %v224 = vunpack.c.l.b16 %v67
  %v225 = vunpack.c.l.b16 %v68
  %v226 = vunpack.c.l.b16 %v69
  %v227 = vunpack.c.l.b16 %v70
  %v228 = vunpack.c.l.b16 %v71
  %v229 = vunpack.c.l.b16 %v72
  %v230 = vunpack.c.l.b16 %v73
  %v231 = vunpack.c.l.b16 %v74
  %v232 = vunpack.c.l.b16 %v75
  %v233 = vunpack.c.l.b16 %v76
  %v234 = vunpack.c.l.b16 %v77
  %v235 = vunpack.c.l.b16 %v78
  %v236 = vunpack.c.l.b16 %v79
  %v237 = vunpack.c.l.b16 %v80
  %v238 = vunpack.c.l.b16 %v81
  %v239 = vunpack.c.l.b16 %v82
  %v240 = vunpack.c.l.b16 %v83
  %v241 = vunpack.c.l.b16 %v84
  %v242 = vunpack.c.l.b16 %v85
  %v243 = vunpack.c.l.b16 %v86
  %v244 = vunpack.c.l.b16 %v87
  %v245 = vunpack.c.l.b16 %v88
  %v246 = vunpack.c.l.b16 %v89
  %v247 = vunpack.c.l.b16 %v90
  %v248 = vunpack.c.l.b16 %v91
  %v249 = vunpack.c.l.b16 %v92
  %v250 = vunpack.c.l.b16 %v93
  %v251 = vunpack.c.l.b16 %v94
  %v252 = vpack.c.b16 %v179, %v178
  %v253 = vpack.c.b16 %v181, %v180
  %v254 = vpack.c.b16 %v183, %v182
  %v255 = vpack.c.b16 %v185, %v184
  %v256 = vpack.c.b16 %v187, %v186
  %v257 = vpack.c.b16 %v189, %v188
  %v258 = vpack.c.b16 %v191, %v190
  %v259 = vpack.c.b16 %v193, %v192
  %v260 = vpack.c.b16 %v195, %v194
  %v261 = vpack.c.b16 %v197, %v196
  %v262 = vpack.c.b16 %v199, %v198
  %v263 = vpack.c.b16 %v201, %v200
  %v264 = vpack.c.b16 %v203, %v202
  %v265 = vpack.c.b16 %v205, %v204
  %v266 = vpack.c.b16 %v207, %v206
  %v267 = vpack.c.b16 %v209, %v208
  %v268 = vpack.c.b16 %v211, %v210
  %v269 = vpack.c.b16 %v213, %v212
  %v270 = vpack.c.b16 %v215, %v214
  %v271 = vpack.c.b16 %v217, %v216
  %v272 = vpack.c.b16 %v219, %v218
  %v273 = vpack.c.b16 %v221, %v220
  %v274 = vpack.c.b16 %v223, %v222
  %v275 = vpack.c.b16 %v225, %v224
  %v276 = vpack.c.b16 %v227, %v226
  %v277 = vpack.c.b16 %v229, %v228
  %v278 = vpack.c.b16 %v231, %v230
  %v279 = vpack.c.b16 %v233, %v232
  %v280 = vpack.c.b16 %v235, %v234
  %v281 = vpack.c.b16 %v237, %v236
  %v282 = vpack.c.b16 %v239, %v238
  %v283 = vpack.c.b16 %v241, %v240
  %v284 = vpack.c.b16 %v243, %v242
  %v285 = vpack.c.b16 %v245, %v244
  %v286 = vpack.c.b16 %v247, %v246
  %v287 = vpack.c.b16 %v249, %v248
  %v288 = vpack.c.b16 %v251, %v250
  %v293 = vunpack.c.l.b16 %v100
  %v294 = vunpack.c.l.b16 %v101
  %v295 = vunpack.c.l.b16 %v102
  %v296 = vunpack.c.l.b16 %v103
  %v297 = vpack.c.b16 %v294, %v293
  %v298 = vpack.c.b16 %v296, %v295
  %vm301 = vcmask 261120
  %v303 = vsel %vm301, %v252, 0
  %v306 = vsel %vm301, %v253, 0
  %v309 = vsel %vm301, %v254, 0
  %v312 = vsel %vm301, %v255, 0
  %v315 = vsel %vm301, %v256, 0
  %v318 = vsel %vm301, %v257, 0
  %v321 = vsel %vm301, %v258, 0
  %v324 = vsel %vm301, %v259, 0
  %v327 = vsel %vm301, %v260, 0
  %v330 = vsel %vm301, %v261, 0
  %v333 = vsel %vm301, %v262, 0
  %v336 = vsel %vm301, %v263, 0
  %v339 = vsel %vm301, %v264, 0
  %v342 = vsel %vm301, %v265, 0
  %v345 = vsel %vm301, %v266, 0
  %v348 = vsel %vm301, %v267, 0
  %v351 = vsel %vm301, %v268, 0
  %v354 = vsel %vm301, %v269, 0
  %v357 = vsel %vm301, %v270, 0
  %v360 = vsel %vm301, %v271, 0
  %v363 = vsel %vm301, %v272, 0
  %v366 = vsel %vm301, %v273, 0
  %v369 = vsel %vm301, %v274, 0
  %v372 = vsel %vm301, %v275, 0
  %v375 = vsel %vm301, %v276, 0
  %v378 = vsel %vm301, %v277, 0
  %v381 = vsel %vm301, %v278, 0
  %v384 = vsel %vm301, %v279, 0
  %v387 = vsel %vm301, %v280, 0
  %v390 = vsel %vm301, %v281, 0
  %v393 = vsel %vm301, %v282, 0
  %v396 = vsel %vm301, %v283, 0
  %v399 = vsel %vm301, %v284, 0
  %v402 = vsel %vm301, %v285, 0
  %v405 = vsel %vm301, %v286, 0
  %v408 = vsel %vm301, %v287, 0
  %v411 = vsel %vm301, %v288, 0
  %413 = vmatpush.bf16.msra.mxu0 0
  %414 = vmatpush.bf16.msra.mxu0 0
  %415 = vmatpush.bf16.msra.mxu0 0
  %416 = vmatpush.bf16.msra.mxu0 0
  %417 = vmatpush.bf16.msra.mxu0 0
  %418 = vmatpush.bf16.msra.mxu0 0
  %419 = vmatpush.bf16.msra.mxu0 %v298
  %420 = vmatpush.bf16.msra.mxu0 %v297
  %421 = vmatmul.bf16.gmra.mxu0 %v303
  %v422 = vpop.f32.mrf.mxu0
  %v423 = vadd.f32 0.0, %v422
  %v424 = vpop.f32.mrf.mxu0
  %v425 = vadd.f32 0.0, %v424
  %426 = vmatmul.bf16.gmra.mxu0 %v306
  %v427 = vpop.f32.mrf.mxu0
  %v428 = vadd.f32 0.0, %v427
  %v429 = vpop.f32.mrf.mxu0
  %v430 = vadd.f32 0.0, %v429
  %431 = vmatmul.bf16.gmra.mxu0 %v309
  %v432 = vpop.f32.mrf.mxu0
  %v433 = vadd.f32 0.0, %v432
  %v434 = vpop.f32.mrf.mxu0
  %v435 = vadd.f32 0.0, %v434
  %436 = vmatmul.bf16.gmra.mxu0 %v312
  %v437 = vpop.f32.mrf.mxu0
  %v438 = vadd.f32 0.0, %v437
  %v439 = vpop.f32.mrf.mxu0
  %v440 = vadd.f32 0.0, %v439
  %441 = vmatmul.bf16.gmra.mxu0 %v315
  %v442 = vpop.f32.mrf.mxu0
  %v443 = vadd.f32 0.0, %v442
  %v444 = vpop.f32.mrf.mxu0
  %v445 = vadd.f32 0.0, %v444
  %446 = vmatmul.bf16.gmra.mxu0 %v318
  %v447 = vpop.f32.mrf.mxu0
  %v448 = vadd.f32 0.0, %v447
  %v449 = vpop.f32.mrf.mxu0
  %v450 = vadd.f32 0.0, %v449
  %451 = vmatmul.bf16.gmra.mxu0 %v321
  %v452 = vpop.f32.mrf.mxu0
  %v453 = vadd.f32 0.0, %v452
  %v454 = vpop.f32.mrf.mxu0
  %v455 = vadd.f32 0.0, %v454
  %456 = vmatmul.bf16.gmra.mxu0 %v324
  %v457 = vpop.f32.mrf.mxu0
  %v458 = vadd.f32 0.0, %v457
  %v459 = vpop.f32.mrf.mxu0
  %v460 = vadd.f32 0.0, %v459
  %461 = vmatmul.bf16.gmra.mxu0 %v327
  %v462 = vpop.f32.mrf.mxu0
  %v463 = vadd.f32 0.0, %v462
  %v464 = vpop.f32.mrf.mxu0
  %v465 = vadd.f32 0.0, %v464
  %466 = vmatmul.bf16.gmra.mxu0 %v330
  %v467 = vpop.f32.mrf.mxu0
  %v468 = vadd.f32 0.0, %v467
  %v469 = vpop.f32.mrf.mxu0
  %v470 = vadd.f32 0.0, %v469
  %471 = vmatmul.bf16.gmra.mxu0 %v333
  %v472 = vpop.f32.mrf.mxu0
  %v473 = vadd.f32 0.0, %v472
  %v474 = vpop.f32.mrf.mxu0
  %v475 = vadd.f32 0.0, %v474
  %476 = vmatmul.bf16.gmra.mxu0 %v336
  %v477 = vpop.f32.mrf.mxu0
  %v478 = vadd.f32 0.0, %v477
  %v479 = vpop.f32.mrf.mxu0
  %v480 = vadd.f32 0.0, %v479
  %481 = vmatmul.bf16.gmra.mxu0 %v339
  %v482 = vpop.f32.mrf.mxu0
  %v483 = vadd.f32 0.0, %v482
  %v484 = vpop.f32.mrf.mxu0
  %v485 = vadd.f32 0.0, %v484
  %486 = vmatmul.bf16.gmra.mxu0 %v342
  %v487 = vpop.f32.mrf.mxu0
  %v488 = vadd.f32 0.0, %v487
  %v489 = vpop.f32.mrf.mxu0
  %v490 = vadd.f32 0.0, %v489
  %491 = vmatmul.bf16.gmra.mxu0 %v345
  %v492 = vpop.f32.mrf.mxu0
  %v493 = vadd.f32 0.0, %v492
  %v494 = vpop.f32.mrf.mxu0
  %v495 = vadd.f32 0.0, %v494
  %496 = vmatmul.bf16.gmra.mxu0 %v348
  %v497 = vpop.f32.mrf.mxu0
  %v498 = vadd.f32 0.0, %v497
  %v499 = vpop.f32.mrf.mxu0
  %v500 = vadd.f32 0.0, %v499
  %501 = vmatmul.bf16.gmra.mxu0 %v351
  %v502 = vpop.f32.mrf.mxu0
  %v503 = vadd.f32 0.0, %v502
  %v504 = vpop.f32.mrf.mxu0
  %v505 = vadd.f32 0.0, %v504
  %506 = vmatmul.bf16.gmra.mxu0 %v354
  %v507 = vpop.f32.mrf.mxu0
  %v508 = vadd.f32 0.0, %v507
  %v509 = vpop.f32.mrf.mxu0
  %v510 = vadd.f32 0.0, %v509
  %511 = vmatmul.bf16.gmra.mxu0 %v357
  %v512 = vpop.f32.mrf.mxu0
  %v513 = vadd.f32 0.0, %v512
  %v514 = vpop.f32.mrf.mxu0
  %v515 = vadd.f32 0.0, %v514
  %516 = vmatmul.bf16.gmra.mxu0 %v360
  %v517 = vpop.f32.mrf.mxu0
  %v518 = vadd.f32 0.0, %v517
  %v519 = vpop.f32.mrf.mxu0
  %v520 = vadd.f32 0.0, %v519
  %521 = vmatmul.bf16.gmra.mxu0 %v363
  %v522 = vpop.f32.mrf.mxu0
  %v523 = vadd.f32 0.0, %v522
  %v524 = vpop.f32.mrf.mxu0
  %v525 = vadd.f32 0.0, %v524
  %526 = vmatmul.bf16.gmra.mxu0 %v366
  %v527 = vpop.f32.mrf.mxu0
  %v528 = vadd.f32 0.0, %v527
  %v529 = vpop.f32.mrf.mxu0
  %v530 = vadd.f32 0.0, %v529
  %531 = vmatmul.bf16.gmra.mxu0 %v369
  %v532 = vpop.f32.mrf.mxu0
  %v533 = vadd.f32 0.0, %v532
  %v534 = vpop.f32.mrf.mxu0
  %v535 = vadd.f32 0.0, %v534
  %536 = vmatmul.bf16.gmra.mxu0 %v372
  %v537 = vpop.f32.mrf.mxu0
  %v538 = vadd.f32 0.0, %v537
  %v539 = vpop.f32.mrf.mxu0
  %v540 = vadd.f32 0.0, %v539
  %541 = vmatmul.bf16.gmra.mxu0 %v375
  %v542 = vpop.f32.mrf.mxu0
  %v543 = vadd.f32 0.0, %v542
  %v544 = vpop.f32.mrf.mxu0
  %v545 = vadd.f32 0.0, %v544
  %546 = vmatmul.bf16.gmra.mxu0 %v378
  %v547 = vpop.f32.mrf.mxu0
  %v548 = vadd.f32 0.0, %v547
  %v549 = vpop.f32.mrf.mxu0
  %v550 = vadd.f32 0.0, %v549
  %551 = vmatmul.bf16.gmra.mxu0 %v381
  %v552 = vpop.f32.mrf.mxu0
  %v553 = vadd.f32 0.0, %v552
  %v554 = vpop.f32.mrf.mxu0
  %v555 = vadd.f32 0.0, %v554
  %556 = vmatmul.bf16.gmra.mxu0 %v384
  %v557 = vpop.f32.mrf.mxu0
  %v558 = vadd.f32 0.0, %v557
  %v559 = vpop.f32.mrf.mxu0
  %v560 = vadd.f32 0.0, %v559
  %561 = vmatmul.bf16.gmra.mxu0 %v387
  %v562 = vpop.f32.mrf.mxu0
  %v563 = vadd.f32 0.0, %v562
  %v564 = vpop.f32.mrf.mxu0
  %v565 = vadd.f32 0.0, %v564
  %566 = vmatmul.bf16.gmra.mxu0 %v390
  %v567 = vpop.f32.mrf.mxu0
  %v568 = vadd.f32 0.0, %v567
  %v569 = vpop.f32.mrf.mxu0
  %v570 = vadd.f32 0.0, %v569
  %571 = vmatmul.bf16.gmra.mxu0 %v393
  %v572 = vpop.f32.mrf.mxu0
  %v573 = vadd.f32 0.0, %v572
  %v574 = vpop.f32.mrf.mxu0
  %v575 = vadd.f32 0.0, %v574
  %576 = vmatmul.bf16.gmra.mxu0 %v396
  %v577 = vpop.f32.mrf.mxu0
  %v578 = vadd.f32 0.0, %v577
  %v579 = vpop.f32.mrf.mxu0
  %v580 = vadd.f32 0.0, %v579
  %581 = vmatmul.bf16.gmra.mxu0 %v399
  %v582 = vpop.f32.mrf.mxu0
  %v583 = vadd.f32 0.0, %v582
  %v584 = vpop.f32.mrf.mxu0
  %v585 = vadd.f32 0.0, %v584
  %586 = vmatmul.bf16.gmra.mxu0 %v402
  %v587 = vpop.f32.mrf.mxu0
  %v588 = vadd.f32 0.0, %v587
  %v589 = vpop.f32.mrf.mxu0
  %v590 = vadd.f32 0.0, %v589
  %591 = vmatmul.bf16.gmra.mxu0 %v405
  %v592 = vpop.f32.mrf.mxu0
  %v593 = vadd.f32 0.0, %v592
  %v594 = vpop.f32.mrf.mxu0
  %v595 = vadd.f32 0.0, %v594
  %596 = vmatmul.bf16.gmra.mxu0 %v408
  %v597 = vpop.f32.mrf.mxu0
  %v598 = vadd.f32 0.0, %v597
  %v599 = vpop.f32.mrf.mxu0
  %v600 = vadd.f32 0.0, %v599
  %601 = vmatmul.bf16.gmra.mxu0 %v411
  %v602 = vpop.f32.mrf.mxu0
  %v603 = vadd.f32 0.0, %v602
  %v604 = vpop.f32.mrf.mxu0
  %v605 = vadd.f32 0.0, %v604
  %606 = vdwg.mxu0
  %v607 = vrot.slane %v423, 1
  %v608 = vrot.slane %v425, 1
  %v609 = vrot.slane %v428, 1
  %v610 = vrot.slane %v430, 1
  %v611 = vrot.slane %v433, 1
  %v612 = vrot.slane %v435, 1
  %v613 = vrot.slane %v438, 1
  %v614 = vrot.slane %v440, 1
  %v615 = vrot.slane %v443, 1
  %v616 = vrot.slane %v445, 1
  %v617 = vrot.slane %v448, 1
  %v618 = vrot.slane %v450, 1
  %v619 = vrot.slane %v453, 1
  %v620 = vrot.slane %v455, 1
  %v621 = vrot.slane %v458, 1
  %v622 = vrot.slane %v460, 1
  %v623 = vrot.slane %v463, 1
  %v624 = vrot.slane %v465, 1
  %v625 = vrot.slane %v468, 1
  %v626 = vrot.slane %v470, 1
  %v627 = vrot.slane %v473, 1
  %v628 = vrot.slane %v475, 1
  %v629 = vrot.slane %v478, 1
  %v630 = vrot.slane %v480, 1
  %v631 = vrot.slane %v483, 1
  %v632 = vrot.slane %v485, 1
  %v633 = vrot.slane %v488, 1
  %v634 = vrot.slane %v490, 1
  %v635 = vrot.slane %v493, 1
  %v636 = vrot.slane %v495, 1
  %v637 = vrot.slane %v498, 1
  %v638 = vrot.slane %v500, 1
  %v639 = vrot.slane %v503, 1
  %v640 = vrot.slane %v505, 1
  %v641 = vrot.slane %v508, 1
  %v642 = vrot.slane %v510, 1
  %v643 = vrot.slane %v513, 1
  %v644 = vrot.slane %v515, 1
  %v645 = vrot.slane %v518, 1
  %v646 = vrot.slane %v520, 1
  %v647 = vrot.slane %v523, 1
  %v648 = vrot.slane %v525, 1
  %v649 = vrot.slane %v528, 1
  %v650 = vrot.slane %v530, 1
  %v651 = vrot.slane %v533, 1
  %v652 = vrot.slane %v535, 1
  %v653 = vrot.slane %v538, 1
  %v654 = vrot.slane %v540, 1
  %v655 = vrot.slane %v543, 1
  %v656 = vrot.slane %v545, 1
  %v657 = vrot.slane %v548, 1
  %v658 = vrot.slane %v550, 1
  %v659 = vrot.slane %v553, 1
  %v660 = vrot.slane %v555, 1
  %v661 = vrot.slane %v558, 1
  %v662 = vrot.slane %v560, 1
  %v663 = vrot.slane %v563, 1
  %v664 = vrot.slane %v565, 1
  %v665 = vrot.slane %v568, 1
  %v666 = vrot.slane %v570, 1
  %v667 = vrot.slane %v573, 1
  %v668 = vrot.slane %v575, 1
  %v669 = vrot.slane %v578, 1
  %v670 = vrot.slane %v580, 1
  %v671 = vrot.slane %v583, 1
  %v672 = vrot.slane %v585, 1
  %v673 = vrot.slane %v588, 1
  %v674 = vrot.slane %v590, 1
  %v675 = vrot.slane %v593, 1
  %v676 = vrot.slane %v595, 1
  %v677 = vrot.slane %v598, 1
  %v678 = vrot.slane %v600, 1
  %v679 = vrot.slane %v603, 1
  %v680 = vrot.slane %v605, 1
  %v681 = vlaneseq
  %v682 = vshrl.u32 %v681, 7
  %vm683 = vcmp.lt.s32.totalorder %v682, 7
  %v684 = vsel %vm683, %v679, %v680
  %v685 = vsel %vm683, %v678, %v679
  %v686 = vsel %vm683, %v677, %v678
  %v687 = vsel %vm683, %v676, %v677
  %v688 = vsel %vm683, %v675, %v676
  %v689 = vsel %vm683, %v674, %v675
  %v690 = vsel %vm683, %v673, %v674
  %v691 = vsel %vm683, %v672, %v673
  %v692 = vsel %vm683, %v671, %v672
  %v693 = vsel %vm683, %v670, %v671
  %v694 = vsel %vm683, %v669, %v670
  %v695 = vsel %vm683, %v668, %v669
  %v696 = vsel %vm683, %v667, %v668
  %v697 = vsel %vm683, %v666, %v667
  %v698 = vsel %vm683, %v665, %v666
  %v699 = vsel %vm683, %v664, %v665
  %v700 = vsel %vm683, %v663, %v664
  %v701 = vsel %vm683, %v662, %v663
  %v702 = vsel %vm683, %v661, %v662
  %v703 = vsel %vm683, %v660, %v661
  %v704 = vsel %vm683, %v659, %v660
  %v705 = vsel %vm683, %v658, %v659
  %v706 = vsel %vm683, %v657, %v658
  %v707 = vsel %vm683, %v656, %v657
  %v708 = vsel %vm683, %v655, %v656
  %v709 = vsel %vm683, %v654, %v655
  %v710 = vsel %vm683, %v653, %v654
  %v711 = vsel %vm683, %v652, %v653
  %v712 = vsel %vm683, %v651, %v652
  %v713 = vsel %vm683, %v650, %v651
  %v714 = vsel %vm683, %v649, %v650
  %v715 = vsel %vm683, %v648, %v649
  %v716 = vsel %vm683, %v647, %v648
  %v717 = vsel %vm683, %v646, %v647
  %v718 = vsel %vm683, %v645, %v646
  %v719 = vsel %vm683, %v644, %v645
  %v720 = vsel %vm683, %v643, %v644
  %v721 = vsel %vm683, %v642, %v643
  %v722 = vsel %vm683, %v641, %v642
  %v723 = vsel %vm683, %v640, %v641
  %v724 = vsel %vm683, %v639, %v640
  %v725 = vsel %vm683, %v638, %v639
  %v726 = vsel %vm683, %v637, %v638
  %v727 = vsel %vm683, %v636, %v637
  %v728 = vsel %vm683, %v635, %v636
  %v729 = vsel %vm683, %v634, %v635
  %v730 = vsel %vm683, %v633, %v634
  %v731 = vsel %vm683, %v632, %v633
  %v732 = vsel %vm683, %v631, %v632
  %v733 = vsel %vm683, %v630, %v631
  %v734 = vsel %vm683, %v629, %v630
  %v735 = vsel %vm683, %v628, %v629
  %v736 = vsel %vm683, %v627, %v628
  %v737 = vsel %vm683, %v626, %v627
  %v738 = vsel %vm683, %v625, %v626
  %v739 = vsel %vm683, %v624, %v625
  %v740 = vsel %vm683, %v623, %v624
  %v741 = vsel %vm683, %v622, %v623
  %v742 = vsel %vm683, %v621, %v622
  %v743 = vsel %vm683, %v620, %v621
  %v744 = vsel %vm683, %v619, %v620
  %v745 = vsel %vm683, %v618, %v619
  %v746 = vsel %vm683, %v617, %v618
  %v747 = vsel %vm683, %v616, %v617
  %v748 = vsel %vm683, %v615, %v616
  %v749 = vsel %vm683, %v614, %v615
  %v750 = vsel %vm683, %v613, %v614
  %v751 = vsel %vm683, %v612, %v613
  %v752 = vsel %vm683, %v611, %v612
  %v753 = vsel %vm683, %v610, %v611
  %v754 = vsel %vm683, %v609, %v610
  %v755 = vsel %vm683, %v608, %v609
  %v756 = vsel %vm683, %v607, %v608
  %v757 = vsel %vm683, %v680, %v607
  %v762 = vunpack.c.l.b16 %v95
  %v763 = vunpack.c.l.b16 %v96
  %v764 = vunpack.c.l.b16 %v97
  %v765 = vunpack.c.l.b16 %v98
  %v766 = vpack.c.b16 %v763, %v762
  %v767 = vpack.c.b16 %v765, %v764
  %770 = vmatpush.bf16.msra.mxu0 0
  %771 = vmatpush.bf16.msra.mxu0 0
  %772 = vmatpush.bf16.msra.mxu0 0
  %773 = vmatpush.bf16.msra.mxu0 0
  %774 = vmatpush.bf16.msra.mxu0 0
  %775 = vmatpush.bf16.msra.mxu0 0
  %776 = vmatpush.bf16.msra.mxu0 %v767
  %777 = vmatpush.bf16.msra.mxu0 %v766
  %778 = vmatmul.bf16.gmra.mxu0 %v303
  %v779 = vpop.f32.mrf.mxu0
  %v780 = vadd.f32 %v756, %v779
  %v781 = vpop.f32.mrf.mxu0
  %v782 = vadd.f32 %v755, %v781
  %783 = vmatmul.bf16.gmra.mxu0 %v306
  %v784 = vpop.f32.mrf.mxu0
  %v785 = vadd.f32 %v754, %v784
  %v786 = vpop.f32.mrf.mxu0
  %v787 = vadd.f32 %v753, %v786
  %788 = vmatmul.bf16.gmra.mxu0 %v309
  %v789 = vpop.f32.mrf.mxu0
  %v790 = vadd.f32 %v752, %v789
  %v791 = vpop.f32.mrf.mxu0
  %v792 = vadd.f32 %v751, %v791
  %793 = vmatmul.bf16.gmra.mxu0 %v312
  %v794 = vpop.f32.mrf.mxu0
  %v795 = vadd.f32 %v750, %v794
  %v796 = vpop.f32.mrf.mxu0
  %v797 = vadd.f32 %v749, %v796
  %798 = vmatmul.bf16.gmra.mxu0 %v315
  %v799 = vpop.f32.mrf.mxu0
  %v800 = vadd.f32 %v748, %v799
  %v801 = vpop.f32.mrf.mxu0
  %v802 = vadd.f32 %v747, %v801
  %803 = vmatmul.bf16.gmra.mxu0 %v318
  %v804 = vpop.f32.mrf.mxu0
  %v805 = vadd.f32 %v746, %v804
  %v806 = vpop.f32.mrf.mxu0
  %v807 = vadd.f32 %v745, %v806
  %808 = vmatmul.bf16.gmra.mxu0 %v321
  %v809 = vpop.f32.mrf.mxu0
  %v810 = vadd.f32 %v744, %v809
  %v811 = vpop.f32.mrf.mxu0
  %v812 = vadd.f32 %v743, %v811
  %813 = vmatmul.bf16.gmra.mxu0 %v324
  %v814 = vpop.f32.mrf.mxu0
  %v815 = vadd.f32 %v742, %v814
  %v816 = vpop.f32.mrf.mxu0
  %v817 = vadd.f32 %v741, %v816
  %818 = vmatmul.bf16.gmra.mxu0 %v327
  %v819 = vpop.f32.mrf.mxu0
  %v820 = vadd.f32 %v740, %v819
  %v821 = vpop.f32.mrf.mxu0
  %v822 = vadd.f32 %v739, %v821
  %823 = vmatmul.bf16.gmra.mxu0 %v330
  %v824 = vpop.f32.mrf.mxu0
  %v825 = vadd.f32 %v738, %v824
  %v826 = vpop.f32.mrf.mxu0
  %v827 = vadd.f32 %v737, %v826
  %828 = vmatmul.bf16.gmra.mxu0 %v333
  %v829 = vpop.f32.mrf.mxu0
  %v830 = vadd.f32 %v736, %v829
  %v831 = vpop.f32.mrf.mxu0
  %v832 = vadd.f32 %v735, %v831
  %833 = vmatmul.bf16.gmra.mxu0 %v336
  %v834 = vpop.f32.mrf.mxu0
  %v835 = vadd.f32 %v734, %v834
  %v836 = vpop.f32.mrf.mxu0
  %v837 = vadd.f32 %v733, %v836
  %838 = vmatmul.bf16.gmra.mxu0 %v339
  %v839 = vpop.f32.mrf.mxu0
  %v840 = vadd.f32 %v732, %v839
  %v841 = vpop.f32.mrf.mxu0
  %v842 = vadd.f32 %v731, %v841
  %843 = vmatmul.bf16.gmra.mxu0 %v342
  %v844 = vpop.f32.mrf.mxu0
  %v845 = vadd.f32 %v730, %v844
  %v846 = vpop.f32.mrf.mxu0
  %v847 = vadd.f32 %v729, %v846
  %848 = vmatmul.bf16.gmra.mxu0 %v345
  %v849 = vpop.f32.mrf.mxu0
  %v850 = vadd.f32 %v728, %v849
  %v851 = vpop.f32.mrf.mxu0
  %v852 = vadd.f32 %v727, %v851
  %853 = vmatmul.bf16.gmra.mxu0 %v348
  %v854 = vpop.f32.mrf.mxu0
  %v855 = vadd.f32 %v726, %v854
  %v856 = vpop.f32.mrf.mxu0
  %v857 = vadd.f32 %v725, %v856
  %858 = vmatmul.bf16.gmra.mxu0 %v351
  %v859 = vpop.f32.mrf.mxu0
  %v860 = vadd.f32 %v724, %v859
  %v861 = vpop.f32.mrf.mxu0
  %v862 = vadd.f32 %v723, %v861
  %863 = vmatmul.bf16.gmra.mxu0 %v354
  %v864 = vpop.f32.mrf.mxu0
  %v865 = vadd.f32 %v722, %v864
  %v866 = vpop.f32.mrf.mxu0
  %v867 = vadd.f32 %v721, %v866
  %868 = vmatmul.bf16.gmra.mxu0 %v357
  %v869 = vpop.f32.mrf.mxu0
  %v870 = vadd.f32 %v720, %v869
  %v871 = vpop.f32.mrf.mxu0
  %v872 = vadd.f32 %v719, %v871
  %873 = vmatmul.bf16.gmra.mxu0 %v360
  %v874 = vpop.f32.mrf.mxu0
  %v875 = vadd.f32 %v718, %v874
  %v876 = vpop.f32.mrf.mxu0
  %v877 = vadd.f32 %v717, %v876
  %878 = vmatmul.bf16.gmra.mxu0 %v363
  %v879 = vpop.f32.mrf.mxu0
  %v880 = vadd.f32 %v716, %v879
  %v881 = vpop.f32.mrf.mxu0
  %v882 = vadd.f32 %v715, %v881
  %883 = vmatmul.bf16.gmra.mxu0 %v366
  %v884 = vpop.f32.mrf.mxu0
  %v885 = vadd.f32 %v714, %v884
  %v886 = vpop.f32.mrf.mxu0
  %v887 = vadd.f32 %v713, %v886
  %888 = vmatmul.bf16.gmra.mxu0 %v369
  %v889 = vpop.f32.mrf.mxu0
  %v890 = vadd.f32 %v712, %v889
  %v891 = vpop.f32.mrf.mxu0
  %v892 = vadd.f32 %v711, %v891
  %893 = vmatmul.bf16.gmra.mxu0 %v372
  %v894 = vpop.f32.mrf.mxu0
  %v895 = vadd.f32 %v710, %v894
  %v896 = vpop.f32.mrf.mxu0
  %v897 = vadd.f32 %v709, %v896
  %898 = vmatmul.bf16.gmra.mxu0 %v375
  %v899 = vpop.f32.mrf.mxu0
  %v900 = vadd.f32 %v708, %v899
  %v901 = vpop.f32.mrf.mxu0
  %v902 = vadd.f32 %v707, %v901
  %903 = vmatmul.bf16.gmra.mxu0 %v378
  %v904 = vpop.f32.mrf.mxu0
  %v905 = vadd.f32 %v706, %v904
  %v906 = vpop.f32.mrf.mxu0
  %v907 = vadd.f32 %v705, %v906
  %908 = vmatmul.bf16.gmra.mxu0 %v381
  %v909 = vpop.f32.mrf.mxu0
  %v910 = vadd.f32 %v704, %v909
  %v911 = vpop.f32.mrf.mxu0
  %v912 = vadd.f32 %v703, %v911
  %913 = vmatmul.bf16.gmra.mxu0 %v384
  %v914 = vpop.f32.mrf.mxu0
  %v915 = vadd.f32 %v702, %v914
  %v916 = vpop.f32.mrf.mxu0
  %v917 = vadd.f32 %v701, %v916
  %918 = vmatmul.bf16.gmra.mxu0 %v387
  %v919 = vpop.f32.mrf.mxu0
  %v920 = vadd.f32 %v700, %v919
  %v921 = vpop.f32.mrf.mxu0
  %v922 = vadd.f32 %v699, %v921
  %923 = vmatmul.bf16.gmra.mxu0 %v390
  %v924 = vpop.f32.mrf.mxu0
  %v925 = vadd.f32 %v698, %v924
  %v926 = vpop.f32.mrf.mxu0
  %v927 = vadd.f32 %v697, %v926
  %928 = vmatmul.bf16.gmra.mxu0 %v393
  %v929 = vpop.f32.mrf.mxu0
  %v930 = vadd.f32 %v696, %v929
  %v931 = vpop.f32.mrf.mxu0
  %v932 = vadd.f32 %v695, %v931
  %933 = vmatmul.bf16.gmra.mxu0 %v396
  %v934 = vpop.f32.mrf.mxu0
  %v935 = vadd.f32 %v694, %v934
  %v936 = vpop.f32.mrf.mxu0
  %v937 = vadd.f32 %v693, %v936
  %938 = vmatmul.bf16.gmra.mxu0 %v399
  %v939 = vpop.f32.mrf.mxu0
  %v940 = vadd.f32 %v692, %v939
  %v941 = vpop.f32.mrf.mxu0
  %v942 = vadd.f32 %v691, %v941
  %943 = vmatmul.bf16.gmra.mxu0 %v402
  %v944 = vpop.f32.mrf.mxu0
  %v945 = vadd.f32 %v690, %v944
  %v946 = vpop.f32.mrf.mxu0
  %v947 = vadd.f32 %v689, %v946
  %948 = vmatmul.bf16.gmra.mxu0 %v405
  %v949 = vpop.f32.mrf.mxu0
  %v950 = vadd.f32 %v688, %v949
  %v951 = vpop.f32.mrf.mxu0
  %v952 = vadd.f32 %v687, %v951
  %953 = vmatmul.bf16.gmra.mxu0 %v408
  %v954 = vpop.f32.mrf.mxu0
  %v955 = vadd.f32 %v686, %v954
  %v956 = vpop.f32.mrf.mxu0
  %v957 = vadd.f32 %v685, %v956
  %958 = vmatmul.bf16.gmra.mxu0 %v411
  %v959 = vpop.f32.mrf.mxu0
  %v960 = vadd.f32 %v684, %v959
  %v961 = vpop.f32.mrf.mxu0
  %v962 = vadd.f32 %v757, %v961
  %963 = vdwg.mxu0
  %s964 = scalar_lea.vmem %s1, 32
  %v965 = vld [vmem:[%s964] sm:$0xf]
  %v966 = vld [vmem:[%s964 + $0x4] sm:$0xf]
  %v967 = vld [vmem:[%s964 + $0x8] sm:$0xf]
  %v968 = vld [vmem:[%s964 + $0xc] sm:$0xf]
  %v973 = vunpack.c.l.b16 %v965
  %v974 = vunpack.c.l.b16 %v966
  %v975 = vunpack.c.l.b16 %v967
  %v976 = vunpack.c.l.b16 %v968
  %v977 = vpack.c.b16 %v974, %v973
  %v978 = vpack.c.b16 %v976, %v975
  %981 = vmatpush.bf16.msra.mxu0 0
  %982 = vmatpush.bf16.msra.mxu0 0
  %983 = vmatpush.bf16.msra.mxu0 0
  %984 = vmatpush.bf16.msra.mxu0 0
  %985 = vmatpush.bf16.msra.mxu0 0
  %986 = vmatpush.bf16.msra.mxu0 0
  %987 = vmatpush.bf16.msra.mxu0 %v978
  %988 = vmatpush.bf16.msra.mxu0 %v977
  %989 = vmatmul.bf16.gmra.mxu0 %v303
  %v990 = vpop.f32.mrf.mxu0
  %v991 = vadd.f32 0.0, %v990
  %v992 = vpop.f32.mrf.mxu0
  %v993 = vadd.f32 0.0, %v992
  %994 = vmatmul.bf16.gmra.mxu0 %v306
  %v995 = vpop.f32.mrf.mxu0
  %v996 = vadd.f32 0.0, %v995
  %v997 = vpop.f32.mrf.mxu0
  %v998 = vadd.f32 0.0, %v997
  %999 = vmatmul.bf16.gmra.mxu0 %v309
  %v1000 = vpop.f32.mrf.mxu0
  %v1001 = vadd.f32 0.0, %v1000
  %v1002 = vpop.f32.mrf.mxu0
  %v1003 = vadd.f32 0.0, %v1002
  %1004 = vmatmul.bf16.gmra.mxu0 %v312
  %v1005 = vpop.f32.mrf.mxu0
  %v1006 = vadd.f32 0.0, %v1005
  %v1007 = vpop.f32.mrf.mxu0
  %v1008 = vadd.f32 0.0, %v1007
  %1009 = vmatmul.bf16.gmra.mxu0 %v315
  %v1010 = vpop.f32.mrf.mxu0
  %v1011 = vadd.f32 0.0, %v1010
  %v1012 = vpop.f32.mrf.mxu0
  %v1013 = vadd.f32 0.0, %v1012
  %1014 = vmatmul.bf16.gmra.mxu0 %v318
  %v1015 = vpop.f32.mrf.mxu0
  %v1016 = vadd.f32 0.0, %v1015
  %v1017 = vpop.f32.mrf.mxu0
  %v1018 = vadd.f32 0.0, %v1017
  %1019 = vmatmul.bf16.gmra.mxu0 %v321
  %v1020 = vpop.f32.mrf.mxu0
  %v1021 = vadd.f32 0.0, %v1020
  %v1022 = vpop.f32.mrf.mxu0
  %v1023 = vadd.f32 0.0, %v1022
  %1024 = vmatmul.bf16.gmra.mxu0 %v324
  %v1025 = vpop.f32.mrf.mxu0
  %v1026 = vadd.f32 0.0, %v1025
  %v1027 = vpop.f32.mrf.mxu0
  %v1028 = vadd.f32 0.0, %v1027
  %1029 = vmatmul.bf16.gmra.mxu0 %v327
  %v1030 = vpop.f32.mrf.mxu0
  %v1031 = vadd.f32 0.0, %v1030
  %v1032 = vpop.f32.mrf.mxu0
  %v1033 = vadd.f32 0.0, %v1032
  %1034 = vmatmul.bf16.gmra.mxu0 %v330
  %v1035 = vpop.f32.mrf.mxu0
  %v1036 = vadd.f32 0.0, %v1035
  %v1037 = vpop.f32.mrf.mxu0
  %v1038 = vadd.f32 0.0, %v1037
  %1039 = vmatmul.bf16.gmra.mxu0 %v333
  %v1040 = vpop.f32.mrf.mxu0
  %v1041 = vadd.f32 0.0, %v1040
  %v1042 = vpop.f32.mrf.mxu0
  %v1043 = vadd.f32 0.0, %v1042
  %1044 = vmatmul.bf16.gmra.mxu0 %v336
  %v1045 = vpop.f32.mrf.mxu0
  %v1046 = vadd.f32 0.0, %v1045
  %v1047 = vpop.f32.mrf.mxu0
  %v1048 = vadd.f32 0.0, %v1047
  %1049 = vmatmul.bf16.gmra.mxu0 %v339
  %v1050 = vpop.f32.mrf.mxu0
  %v1051 = vadd.f32 0.0, %v1050
  %v1052 = vpop.f32.mrf.mxu0
  %v1053 = vadd.f32 0.0, %v1052
  %1054 = vmatmul.bf16.gmra.mxu0 %v342
  %v1055 = vpop.f32.mrf.mxu0
  %v1056 = vadd.f32 0.0, %v1055
  %v1057 = vpop.f32.mrf.mxu0
  %v1058 = vadd.f32 0.0, %v1057
  %1059 = vmatmul.bf16.gmra.mxu0 %v345
  %v1060 = vpop.f32.mrf.mxu0
  %v1061 = vadd.f32 0.0, %v1060
  %v1062 = vpop.f32.mrf.mxu0
  %v1063 = vadd.f32 0.0, %v1062
  %1064 = vmatmul.bf16.gmra.mxu0 %v348
  %v1065 = vpop.f32.mrf.mxu0
  %v1066 = vadd.f32 0.0, %v1065
  %v1067 = vpop.f32.mrf.mxu0
  %v1068 = vadd.f32 0.0, %v1067
  %1069 = vmatmul.bf16.gmra.mxu0 %v351
  %v1070 = vpop.f32.mrf.mxu0
  %v1071 = vadd.f32 0.0, %v1070
  %v1072 = vpop.f32.mrf.mxu0
  %v1073 = vadd.f32 0.0, %v1072
  %1074 = vmatmul.bf16.gmra.mxu0 %v354
  %v1075 = vpop.f32.mrf.mxu0
  %v1076 = vadd.f32 0.0, %v1075
  %v1077 = vpop.f32.mrf.mxu0
  %v1078 = vadd.f32 0.0, %v1077
  %1079 = vmatmul.bf16.gmra.mxu0 %v357
  %v1080 = vpop.f32.mrf.mxu0
  %v1081 = vadd.f32 0.0, %v1080
  %v1082 = vpop.f32.mrf.mxu0
  %v1083 = vadd.f32 0.0, %v1082
  %1084 = vmatmul.bf16.gmra.mxu0 %v360
  %v1085 = vpop.f32.mrf.mxu0
  %v1086 = vadd.f32 0.0, %v1085
  %v1087 = vpop.f32.mrf.mxu0
  %v1088 = vadd.f32 0.0, %v1087
  %1089 = vmatmul.bf16.gmra.mxu0 %v363
  %v1090 = vpop.f32.mrf.mxu0
  %v1091 = vadd.f32 0.0, %v1090
  %v1092 = vpop.f32.mrf.mxu0
  %v1093 = vadd.f32 0.0, %v1092
  %1094 = vmatmul.bf16.gmra.mxu0 %v366
  %v1095 = vpop.f32.mrf.mxu0
  %v1096 = vadd.f32 0.0, %v1095
  %v1097 = vpop.f32.mrf.mxu0
  %v1098 = vadd.f32 0.0, %v1097
  %1099 = vmatmul.bf16.gmra.mxu0 %v369
  %v1100 = vpop.f32.mrf.mxu0
  %v1101 = vadd.f32 0.0, %v1100
  %v1102 = vpop.f32.mrf.mxu0
  %v1103 = vadd.f32 0.0, %v1102
  %1104 = vmatmul.bf16.gmra.mxu0 %v372
  %v1105 = vpop.f32.mrf.mxu0
  %v1106 = vadd.f32 0.0, %v1105
  %v1107 = vpop.f32.mrf.mxu0
  %v1108 = vadd.f32 0.0, %v1107
  %1109 = vmatmul.bf16.gmra.mxu0 %v375
  %v1110 = vpop.f32.mrf.mxu0
  %v1111 = vadd.f32 0.0, %v1110
  %v1112 = vpop.f32.mrf.mxu0
  %v1113 = vadd.f32 0.0, %v1112
  %1114 = vmatmul.bf16.gmra.mxu0 %v378
  %v1115 = vpop.f32.mrf.mxu0
  %v1116 = vadd.f32 0.0, %v1115
  %v1117 = vpop.f32.mrf.mxu0
  %v1118 = vadd.f32 0.0, %v1117
  %1119 = vmatmul.bf16.gmra.mxu0 %v381
  %v1120 = vpop.f32.mrf.mxu0
  %v1121 = vadd.f32 0.0, %v1120
  %v1122 = vpop.f32.mrf.mxu0
  %v1123 = vadd.f32 0.0, %v1122
  %1124 = vmatmul.bf16.gmra.mxu0 %v384
  %v1125 = vpop.f32.mrf.mxu0
  %v1126 = vadd.f32 0.0, %v1125
  %v1127 = vpop.f32.mrf.mxu0
  %v1128 = vadd.f32 0.0, %v1127
  %1129 = vmatmul.bf16.gmra.mxu0 %v387
  %v1130 = vpop.f32.mrf.mxu0
  %v1131 = vadd.f32 0.0, %v1130
  %v1132 = vpop.f32.mrf.mxu0
  %v1133 = vadd.f32 0.0, %v1132
  %1134 = vmatmul.bf16.gmra.mxu0 %v390
  %v1135 = vpop.f32.mrf.mxu0
  %v1136 = vadd.f32 0.0, %v1135
  %v1137 = vpop.f32.mrf.mxu0
  %v1138 = vadd.f32 0.0, %v1137
  %1139 = vmatmul.bf16.gmra.mxu0 %v393
  %v1140 = vpop.f32.mrf.mxu0
  %v1141 = vadd.f32 0.0, %v1140
  %v1142 = vpop.f32.mrf.mxu0
  %v1143 = vadd.f32 0.0, %v1142
  %1144 = vmatmul.bf16.gmra.mxu0 %v396
  %v1145 = vpop.f32.mrf.mxu0
  %v1146 = vadd.f32 0.0, %v1145
  %v1147 = vpop.f32.mrf.mxu0
  %v1148 = vadd.f32 0.0, %v1147
  %1149 = vmatmul.bf16.gmra.mxu0 %v399
  %v1150 = vpop.f32.mrf.mxu0
  %v1151 = vadd.f32 0.0, %v1150
  %v1152 = vpop.f32.mrf.mxu0
  %v1153 = vadd.f32 0.0, %v1152
  %1154 = vmatmul.bf16.gmra.mxu0 %v402
  %v1155 = vpop.f32.mrf.mxu0
  %v1156 = vadd.f32 0.0, %v1155
  %v1157 = vpop.f32.mrf.mxu0
  %v1158 = vadd.f32 0.0, %v1157
  %1159 = vmatmul.bf16.gmra.mxu0 %v405
  %v1160 = vpop.f32.mrf.mxu0
  %v1161 = vadd.f32 0.0, %v1160
  %v1162 = vpop.f32.mrf.mxu0
  %v1163 = vadd.f32 0.0, %v1162
  %1164 = vmatmul.bf16.gmra.mxu0 %v408
  %v1165 = vpop.f32.mrf.mxu0
  %v1166 = vadd.f32 0.0, %v1165
  %v1167 = vpop.f32.mrf.mxu0
  %v1168 = vadd.f32 0.0, %v1167
  %1169 = vmatmul.bf16.gmra.mxu0 %v411
  %v1170 = vpop.f32.mrf.mxu0
  %v1171 = vadd.f32 0.0, %v1170
  %v1172 = vpop.f32.mrf.mxu0
  %v1173 = vadd.f32 0.0, %v1172
  %1174 = vdwg.mxu0
  %v1175 = vrot.slane %v991, 1
  %v1176 = vrot.slane %v993, 1
  %v1177 = vrot.slane %v996, 1
  %v1178 = vrot.slane %v998, 1
  %v1179 = vrot.slane %v1001, 1
  %v1180 = vrot.slane %v1003, 1
  %v1181 = vrot.slane %v1006, 1
  %v1182 = vrot.slane %v1008, 1
  %v1183 = vrot.slane %v1011, 1
  %v1184 = vrot.slane %v1013, 1
  %v1185 = vrot.slane %v1016, 1
  %v1186 = vrot.slane %v1018, 1
  %v1187 = vrot.slane %v1021, 1
  %v1188 = vrot.slane %v1023, 1
  %v1189 = vrot.slane %v1026, 1
  %v1190 = vrot.slane %v1028, 1
  %v1191 = vrot.slane %v1031, 1
  %v1192 = vrot.slane %v1033, 1
  %v1193 = vrot.slane %v1036, 1
  %v1194 = vrot.slane %v1038, 1
  %v1195 = vrot.slane %v1041, 1
  %v1196 = vrot.slane %v1043, 1
  %v1197 = vrot.slane %v1046, 1
  %v1198 = vrot.slane %v1048, 1
  %v1199 = vrot.slane %v1051, 1
  %v1200 = vrot.slane %v1053, 1
  %v1201 = vrot.slane %v1056, 1
  %v1202 = vrot.slane %v1058, 1
  %v1203 = vrot.slane %v1061, 1
  %v1204 = vrot.slane %v1063, 1
  %v1205 = vrot.slane %v1066, 1
  %v1206 = vrot.slane %v1068, 1
  %v1207 = vrot.slane %v1071, 1
  %v1208 = vrot.slane %v1073, 1
  %v1209 = vrot.slane %v1076, 1
  %v1210 = vrot.slane %v1078, 1
  %v1211 = vrot.slane %v1081, 1
  %v1212 = vrot.slane %v1083, 1
  %v1213 = vrot.slane %v1086, 1
  %v1214 = vrot.slane %v1088, 1
  %v1215 = vrot.slane %v1091, 1
  %v1216 = vrot.slane %v1093, 1
  %v1217 = vrot.slane %v1096, 1
  %v1218 = vrot.slane %v1098, 1
  %v1219 = vrot.slane %v1101, 1
  %v1220 = vrot.slane %v1103, 1
  %v1221 = vrot.slane %v1106, 1
  %v1222 = vrot.slane %v1108, 1
  %v1223 = vrot.slane %v1111, 1
  %v1224 = vrot.slane %v1113, 1
  %v1225 = vrot.slane %v1116, 1
  %v1226 = vrot.slane %v1118, 1
  %v1227 = vrot.slane %v1121, 1
  %v1228 = vrot.slane %v1123, 1
  %v1229 = vrot.slane %v1126, 1
  %v1230 = vrot.slane %v1128, 1
  %v1231 = vrot.slane %v1131, 1
  %v1232 = vrot.slane %v1133, 1
  %v1233 = vrot.slane %v1136, 1
  %v1234 = vrot.slane %v1138, 1
  %v1235 = vrot.slane %v1141, 1
  %v1236 = vrot.slane %v1143, 1
  %v1237 = vrot.slane %v1146, 1
  %v1238 = vrot.slane %v1148, 1
  %v1239 = vrot.slane %v1151, 1
  %v1240 = vrot.slane %v1153, 1
  %v1241 = vrot.slane %v1156, 1
  %v1242 = vrot.slane %v1158, 1
  %v1243 = vrot.slane %v1161, 1
  %v1244 = vrot.slane %v1163, 1
  %v1245 = vrot.slane %v1166, 1
  %v1246 = vrot.slane %v1168, 1
  %v1247 = vrot.slane %v1171, 1
  %v1248 = vrot.slane %v1173, 1
  %v1249 = vsel %vm683, %v1247, %v1248
  %v1250 = vsel %vm683, %v1246, %v1247
  %v1251 = vsel %vm683, %v1245, %v1246
  %v1252 = vsel %vm683, %v1244, %v1245
  %v1253 = vsel %vm683, %v1243, %v1244
  %v1254 = vsel %vm683, %v1242, %v1243
  %v1255 = vsel %vm683, %v1241, %v1242
  %v1256 = vsel %vm683, %v1240, %v1241
  %v1257 = vsel %vm683, %v1239, %v1240
  %v1258 = vsel %vm683, %v1238, %v1239
  %v1259 = vsel %vm683, %v1237, %v1238
  %v1260 = vsel %vm683, %v1236, %v1237
  %v1261 = vsel %vm683, %v1235, %v1236
  %v1262 = vsel %vm683, %v1234, %v1235
  %v1263 = vsel %vm683, %v1233, %v1234
  %v1264 = vsel %vm683, %v1232, %v1233
  %v1265 = vsel %vm683, %v1231, %v1232
  %v1266 = vsel %vm683, %v1230, %v1231
  %v1267 = vsel %vm683, %v1229, %v1230
  %v1268 = vsel %vm683, %v1228, %v1229
  %v1269 = vsel %vm683, %v1227, %v1228
  %v1270 = vsel %vm683, %v1226, %v1227
  %v1271 = vsel %vm683, %v1225, %v1226
  %v1272 = vsel %vm683, %v1224, %v1225
  %v1273 = vsel %vm683, %v1223, %v1224
  %v1274 = vsel %vm683, %v1222, %v1223
  %v1275 = vsel %vm683, %v1221, %v1222
  %v1276 = vsel %vm683, %v1220, %v1221
  %v1277 = vsel %vm683, %v1219, %v1220
  %v1278 = vsel %vm683, %v1218, %v1219
  %v1279 = vsel %vm683, %v1217, %v1218
  %v1280 = vsel %vm683, %v1216, %v1217
  %v1281 = vsel %vm683, %v1215, %v1216
  %v1282 = vsel %vm683, %v1214, %v1215
  %v1283 = vsel %vm683, %v1213, %v1214
  %v1284 = vsel %vm683, %v1212, %v1213
  %v1285 = vsel %vm683, %v1211, %v1212
  %v1286 = vsel %vm683, %v1210, %v1211
  %v1287 = vsel %vm683, %v1209, %v1210
  %v1288 = vsel %vm683, %v1208, %v1209
  %v1289 = vsel %vm683, %v1207, %v1208
  %v1290 = vsel %vm683, %v1206, %v1207
  %v1291 = vsel %vm683, %v1205, %v1206
  %v1292 = vsel %vm683, %v1204, %v1205
  %v1293 = vsel %vm683, %v1203, %v1204
  %v1294 = vsel %vm683, %v1202, %v1203
  %v1295 = vsel %vm683, %v1201, %v1202
  %v1296 = vsel %vm683, %v1200, %v1201
  %v1297 = vsel %vm683, %v1199, %v1200
  %v1298 = vsel %vm683, %v1198, %v1199
  %v1299 = vsel %vm683, %v1197, %v1198
  %v1300 = vsel %vm683, %v1196, %v1197
  %v1301 = vsel %vm683, %v1195, %v1196
  %v1302 = vsel %vm683, %v1194, %v1195
  %v1303 = vsel %vm683, %v1193, %v1194
  %v1304 = vsel %vm683, %v1192, %v1193
  %v1305 = vsel %vm683, %v1191, %v1192
  %v1306 = vsel %vm683, %v1190, %v1191
  %v1307 = vsel %vm683, %v1189, %v1190
  %v1308 = vsel %vm683, %v1188, %v1189
  %v1309 = vsel %vm683, %v1187, %v1188
  %v1310 = vsel %vm683, %v1186, %v1187
  %v1311 = vsel %vm683, %v1185, %v1186
  %v1312 = vsel %vm683, %v1184, %v1185
  %v1313 = vsel %vm683, %v1183, %v1184
  %v1314 = vsel %vm683, %v1182, %v1183
  %v1315 = vsel %vm683, %v1181, %v1182
  %v1316 = vsel %vm683, %v1180, %v1181
  %v1317 = vsel %vm683, %v1179, %v1180
  %v1318 = vsel %vm683, %v1178, %v1179
  %v1319 = vsel %vm683, %v1177, %v1178
  %v1320 = vsel %vm683, %v1176, %v1177
  %v1321 = vsel %vm683, %v1175, %v1176
  %v1322 = vsel %vm683, %v1248, %v1175
  %v1323 = vadd.f32 %v780, %v1319
  %v1324 = vadd.f32 %v782, %v1318
  %v1325 = vadd.f32 %v785, %v1317
  %v1326 = vadd.f32 %v787, %v1316
  %v1327 = vadd.f32 %v790, %v1315
  %v1328 = vadd.f32 %v792, %v1314
  %v1329 = vadd.f32 %v795, %v1313
  %v1330 = vadd.f32 %v797, %v1312
  %v1331 = vadd.f32 %v800, %v1311
  %v1332 = vadd.f32 %v802, %v1310
  %v1333 = vadd.f32 %v805, %v1309
  %v1334 = vadd.f32 %v807, %v1308
  %v1335 = vadd.f32 %v810, %v1307
  %v1336 = vadd.f32 %v812, %v1306
  %v1337 = vadd.f32 %v815, %v1305
  %v1338 = vadd.f32 %v817, %v1304
  %v1339 = vadd.f32 %v820, %v1303
  %v1340 = vadd.f32 %v822, %v1302
  %v1341 = vadd.f32 %v825, %v1301
  %v1342 = vadd.f32 %v827, %v1300
  %v1343 = vadd.f32 %v830, %v1299
  %v1344 = vadd.f32 %v832, %v1298
  %v1345 = vadd.f32 %v835, %v1297
  %v1346 = vadd.f32 %v837, %v1296
  %v1347 = vadd.f32 %v840, %v1295
  %v1348 = vadd.f32 %v842, %v1294
  %v1349 = vadd.f32 %v845, %v1293
  %v1350 = vadd.f32 %v847, %v1292
  %v1351 = vadd.f32 %v850, %v1291
  %v1352 = vadd.f32 %v852, %v1290
  %v1353 = vadd.f32 %v855, %v1289
  %v1354 = vadd.f32 %v857, %v1288
  %v1355 = vadd.f32 %v860, %v1287
  %v1356 = vadd.f32 %v862, %v1286
  %v1357 = vadd.f32 %v865, %v1285
  %v1358 = vadd.f32 %v867, %v1284
  %v1359 = vadd.f32 %v870, %v1283
  %v1360 = vadd.f32 %v872, %v1282
  %v1361 = vadd.f32 %v875, %v1281
  %v1362 = vadd.f32 %v877, %v1280
  %v1363 = vadd.f32 %v880, %v1279
  %v1364 = vadd.f32 %v882, %v1278
  %v1365 = vadd.f32 %v885, %v1277
  %v1366 = vadd.f32 %v887, %v1276
  %v1367 = vadd.f32 %v890, %v1275
  %v1368 = vadd.f32 %v892, %v1274
  %v1369 = vadd.f32 %v895, %v1273
  %v1370 = vadd.f32 %v897, %v1272
  %v1371 = vadd.f32 %v900, %v1271
  %v1372 = vadd.f32 %v902, %v1270
  %v1373 = vadd.f32 %v905, %v1269
  %v1374 = vadd.f32 %v907, %v1268
  %v1375 = vadd.f32 %v910, %v1267
  %v1376 = vadd.f32 %v912, %v1266
  %v1377 = vadd.f32 %v915, %v1265
  %v1378 = vadd.f32 %v917, %v1264
  %v1379 = vadd.f32 %v920, %v1263
  %v1380 = vadd.f32 %v922, %v1262
  %v1381 = vadd.f32 %v925, %v1261
  %v1382 = vadd.f32 %v927, %v1260
  %v1383 = vadd.f32 %v930, %v1259
  %v1384 = vadd.f32 %v932, %v1258
  %v1385 = vadd.f32 %v935, %v1257
  %v1386 = vadd.f32 %v937, %v1256
  %v1387 = vadd.f32 %v940, %v1255
  %v1388 = vadd.f32 %v942, %v1254
  %v1389 = vadd.f32 %v945, %v1253
  %v1390 = vadd.f32 %v947, %v1252
  %v1391 = vadd.f32 %v950, %v1251
  %v1392 = vadd.f32 %v952, %v1250
  %v1393 = vadd.f32 %v955, %v1249
  %v1394 = vadd.f32 %v957, %v1322
  %v1395 = vadd.f32 %v960, %v1321
  %v1396 = vadd.f32 %v962, %v1320
  %s1397 = scalar_lea.vmem %s1, 48
  %v1398 = vld [vmem:[%s1397] sm:$0xf]
  %v1399 = vld [vmem:[%s1397 + $0x4] sm:$0xf]
  %v1400 = vld [vmem:[%s1397 + $0x8] sm:$0xf]
  %v1401 = vld [vmem:[%s1397 + $0xc] sm:$0xf]
  %v1406 = vunpack.c.l.b16 %v1398
  %v1407 = vunpack.c.l.b16 %v1399
  %v1408 = vunpack.c.l.b16 %v1400
  %v1409 = vunpack.c.l.b16 %v1401
  %v1410 = vpack.c.b16 %v1407, %v1406
  %v1411 = vpack.c.b16 %v1409, %v1408
  %1414 = vmatpush.bf16.msra.mxu0 0
  %1415 = vmatpush.bf16.msra.mxu0 0
  %1416 = vmatpush.bf16.msra.mxu0 0
  %1417 = vmatpush.bf16.msra.mxu0 0
  %1418 = vmatpush.bf16.msra.mxu0 0
  %1419 = vmatpush.bf16.msra.mxu0 0
  %1420 = vmatpush.bf16.msra.mxu0 %v1411
  %1421 = vmatpush.bf16.msra.mxu0 %v1410
  %1422 = vmatmul.bf16.gmra.mxu0 %v303
  %v1423 = vpop.f32.mrf.mxu0
  %v1424 = vadd.f32 0.0, %v1423
  %v1425 = vpop.f32.mrf.mxu0
  %v1426 = vadd.f32 0.0, %v1425
  %1427 = vmatmul.bf16.gmra.mxu0 %v306
  %v1428 = vpop.f32.mrf.mxu0
  %v1429 = vadd.f32 0.0, %v1428
  %v1430 = vpop.f32.mrf.mxu0
  %v1431 = vadd.f32 0.0, %v1430
  %1432 = vmatmul.bf16.gmra.mxu0 %v309
  %v1433 = vpop.f32.mrf.mxu0
  %v1434 = vadd.f32 0.0, %v1433
  %v1435 = vpop.f32.mrf.mxu0
  %v1436 = vadd.f32 0.0, %v1435
  %1437 = vmatmul.bf16.gmra.mxu0 %v312
  %v1438 = vpop.f32.mrf.mxu0
  %v1439 = vadd.f32 0.0, %v1438
  %v1440 = vpop.f32.mrf.mxu0
  %v1441 = vadd.f32 0.0, %v1440
  %1442 = vmatmul.bf16.gmra.mxu0 %v315
  %v1443 = vpop.f32.mrf.mxu0
  %v1444 = vadd.f32 0.0, %v1443
  %v1445 = vpop.f32.mrf.mxu0
  %v1446 = vadd.f32 0.0, %v1445
  %1447 = vmatmul.bf16.gmra.mxu0 %v318
  %v1448 = vpop.f32.mrf.mxu0
  %v1449 = vadd.f32 0.0, %v1448
  %v1450 = vpop.f32.mrf.mxu0
  %v1451 = vadd.f32 0.0, %v1450
  %1452 = vmatmul.bf16.gmra.mxu0 %v321
  %v1453 = vpop.f32.mrf.mxu0
  %v1454 = vadd.f32 0.0, %v1453
  %v1455 = vpop.f32.mrf.mxu0
  %v1456 = vadd.f32 0.0, %v1455
  %1457 = vmatmul.bf16.gmra.mxu0 %v324
  %v1458 = vpop.f32.mrf.mxu0
  %v1459 = vadd.f32 0.0, %v1458
  %v1460 = vpop.f32.mrf.mxu0
  %v1461 = vadd.f32 0.0, %v1460
  %1462 = vmatmul.bf16.gmra.mxu0 %v327
  %v1463 = vpop.f32.mrf.mxu0
  %v1464 = vadd.f32 0.0, %v1463
  %v1465 = vpop.f32.mrf.mxu0
  %v1466 = vadd.f32 0.0, %v1465
  %1467 = vmatmul.bf16.gmra.mxu0 %v330
  %v1468 = vpop.f32.mrf.mxu0
  %v1469 = vadd.f32 0.0, %v1468
  %v1470 = vpop.f32.mrf.mxu0
  %v1471 = vadd.f32 0.0, %v1470
  %1472 = vmatmul.bf16.gmra.mxu0 %v333
  %v1473 = vpop.f32.mrf.mxu0
  %v1474 = vadd.f32 0.0, %v1473
  %v1475 = vpop.f32.mrf.mxu0
  %v1476 = vadd.f32 0.0, %v1475
  %1477 = vmatmul.bf16.gmra.mxu0 %v336
  %v1478 = vpop.f32.mrf.mxu0
  %v1479 = vadd.f32 0.0, %v1478
  %v1480 = vpop.f32.mrf.mxu0
  %v1481 = vadd.f32 0.0, %v1480
  %1482 = vmatmul.bf16.gmra.mxu0 %v339
  %v1483 = vpop.f32.mrf.mxu0
  %v1484 = vadd.f32 0.0, %v1483
  %v1485 = vpop.f32.mrf.mxu0
  %v1486 = vadd.f32 0.0, %v1485
  %1487 = vmatmul.bf16.gmra.mxu0 %v342
  %v1488 = vpop.f32.mrf.mxu0
  %v1489 = vadd.f32 0.0, %v1488
  %v1490 = vpop.f32.mrf.mxu0
  %v1491 = vadd.f32 0.0, %v1490
  %1492 = vmatmul.bf16.gmra.mxu0 %v345
  %v1493 = vpop.f32.mrf.mxu0
  %v1494 = vadd.f32 0.0, %v1493
  %v1495 = vpop.f32.mrf.mxu0
  %v1496 = vadd.f32 0.0, %v1495
  %1497 = vmatmul.bf16.gmra.mxu0 %v348
  %v1498 = vpop.f32.mrf.mxu0
  %v1499 = vadd.f32 0.0, %v1498
  %v1500 = vpop.f32.mrf.mxu0
  %v1501 = vadd.f32 0.0, %v1500
  %1502 = vmatmul.bf16.gmra.mxu0 %v351
  %v1503 = vpop.f32.mrf.mxu0
  %v1504 = vadd.f32 0.0, %v1503
  %v1505 = vpop.f32.mrf.mxu0
  %v1506 = vadd.f32 0.0, %v1505
  %1507 = vmatmul.bf16.gmra.mxu0 %v354
  %v1508 = vpop.f32.mrf.mxu0
  %v1509 = vadd.f32 0.0, %v1508
  %v1510 = vpop.f32.mrf.mxu0
  %v1511 = vadd.f32 0.0, %v1510
  %1512 = vmatmul.bf16.gmra.mxu0 %v357
  %v1513 = vpop.f32.mrf.mxu0
  %v1514 = vadd.f32 0.0, %v1513
  %v1515 = vpop.f32.mrf.mxu0
  %v1516 = vadd.f32 0.0, %v1515
  %1517 = vmatmul.bf16.gmra.mxu0 %v360
  %v1518 = vpop.f32.mrf.mxu0
  %v1519 = vadd.f32 0.0, %v1518
  %v1520 = vpop.f32.mrf.mxu0
  %v1521 = vadd.f32 0.0, %v1520
  %1522 = vmatmul.bf16.gmra.mxu0 %v363
  %v1523 = vpop.f32.mrf.mxu0
  %v1524 = vadd.f32 0.0, %v1523
  %v1525 = vpop.f32.mrf.mxu0
  %v1526 = vadd.f32 0.0, %v1525
  %1527 = vmatmul.bf16.gmra.mxu0 %v366
  %v1528 = vpop.f32.mrf.mxu0
  %v1529 = vadd.f32 0.0, %v1528
  %v1530 = vpop.f32.mrf.mxu0
  %v1531 = vadd.f32 0.0, %v1530
  %1532 = vmatmul.bf16.gmra.mxu0 %v369
  %v1533 = vpop.f32.mrf.mxu0
  %v1534 = vadd.f32 0.0, %v1533
  %v1535 = vpop.f32.mrf.mxu0
  %v1536 = vadd.f32 0.0, %v1535
  %1537 = vmatmul.bf16.gmra.mxu0 %v372
  %v1538 = vpop.f32.mrf.mxu0
  %v1539 = vadd.f32 0.0, %v1538
  %v1540 = vpop.f32.mrf.mxu0
  %v1541 = vadd.f32 0.0, %v1540
  %1542 = vmatmul.bf16.gmra.mxu0 %v375
  %v1543 = vpop.f32.mrf.mxu0
  %v1544 = vadd.f32 0.0, %v1543
  %v1545 = vpop.f32.mrf.mxu0
  %v1546 = vadd.f32 0.0, %v1545
  %1547 = vmatmul.bf16.gmra.mxu0 %v378
  %v1548 = vpop.f32.mrf.mxu0
  %v1549 = vadd.f32 0.0, %v1548
  %v1550 = vpop.f32.mrf.mxu0
  %v1551 = vadd.f32 0.0, %v1550
  %1552 = vmatmul.bf16.gmra.mxu0 %v381
  %v1553 = vpop.f32.mrf.mxu0
  %v1554 = vadd.f32 0.0, %v1553
  %v1555 = vpop.f32.mrf.mxu0
  %v1556 = vadd.f32 0.0, %v1555
  %1557 = vmatmul.bf16.gmra.mxu0 %v384
  %v1558 = vpop.f32.mrf.mxu0
  %v1559 = vadd.f32 0.0, %v1558
  %v1560 = vpop.f32.mrf.mxu0
  %v1561 = vadd.f32 0.0, %v1560
  %1562 = vmatmul.bf16.gmra.mxu0 %v387
  %v1563 = vpop.f32.mrf.mxu0
  %v1564 = vadd.f32 0.0, %v1563
  %v1565 = vpop.f32.mrf.mxu0
  %v1566 = vadd.f32 0.0, %v1565
  %1567 = vmatmul.bf16.gmra.mxu0 %v390
  %v1568 = vpop.f32.mrf.mxu0
  %v1569 = vadd.f32 0.0, %v1568
  %v1570 = vpop.f32.mrf.mxu0
  %v1571 = vadd.f32 0.0, %v1570
  %1572 = vmatmul.bf16.gmra.mxu0 %v393
  %v1573 = vpop.f32.mrf.mxu0
  %v1574 = vadd.f32 0.0, %v1573
  %v1575 = vpop.f32.mrf.mxu0
  %v1576 = vadd.f32 0.0, %v1575
  %1577 = vmatmul.bf16.gmra.mxu0 %v396
  %v1578 = vpop.f32.mrf.mxu0
  %v1579 = vadd.f32 0.0, %v1578
  %v1580 = vpop.f32.mrf.mxu0
  %v1581 = vadd.f32 0.0, %v1580
  %1582 = vmatmul.bf16.gmra.mxu0 %v399
  %v1583 = vpop.f32.mrf.mxu0
  %v1584 = vadd.f32 0.0, %v1583
  %v1585 = vpop.f32.mrf.mxu0
  %v1586 = vadd.f32 0.0, %v1585
  %1587 = vmatmul.bf16.gmra.mxu0 %v402
  %v1588 = vpop.f32.mrf.mxu0
  %v1589 = vadd.f32 0.0, %v1588
  %v1590 = vpop.f32.mrf.mxu0
  %v1591 = vadd.f32 0.0, %v1590
  %1592 = vmatmul.bf16.gmra.mxu0 %v405
  %v1593 = vpop.f32.mrf.mxu0
  %v1594 = vadd.f32 0.0, %v1593
  %v1595 = vpop.f32.mrf.mxu0
  %v1596 = vadd.f32 0.0, %v1595
  %1597 = vmatmul.bf16.gmra.mxu0 %v408
  %v1598 = vpop.f32.mrf.mxu0
  %v1599 = vadd.f32 0.0, %v1598
  %v1600 = vpop.f32.mrf.mxu0
  %v1601 = vadd.f32 0.0, %v1600
  %1602 = vmatmul.bf16.gmra.mxu0 %v411
  %v1603 = vpop.f32.mrf.mxu0
  %v1604 = vadd.f32 0.0, %v1603
  %v1605 = vpop.f32.mrf.mxu0
  %v1606 = vadd.f32 0.0, %v1605
  %1607 = vdwg.mxu0
  %v1608 = vrot.slane %v1424, 2
  %v1609 = vrot.slane %v1426, 2
  %v1610 = vrot.slane %v1429, 2
  %v1611 = vrot.slane %v1431, 2
  %v1612 = vrot.slane %v1434, 2
  %v1613 = vrot.slane %v1436, 2
  %v1614 = vrot.slane %v1439, 2
  %v1615 = vrot.slane %v1441, 2
  %v1616 = vrot.slane %v1444, 2
  %v1617 = vrot.slane %v1446, 2
  %v1618 = vrot.slane %v1449, 2
  %v1619 = vrot.slane %v1451, 2
  %v1620 = vrot.slane %v1454, 2
  %v1621 = vrot.slane %v1456, 2
  %v1622 = vrot.slane %v1459, 2
  %v1623 = vrot.slane %v1461, 2
  %v1624 = vrot.slane %v1464, 2
  %v1625 = vrot.slane %v1466, 2
  %v1626 = vrot.slane %v1469, 2
  %v1627 = vrot.slane %v1471, 2
  %v1628 = vrot.slane %v1474, 2
  %v1629 = vrot.slane %v1476, 2
  %v1630 = vrot.slane %v1479, 2
  %v1631 = vrot.slane %v1481, 2
  %v1632 = vrot.slane %v1484, 2
  %v1633 = vrot.slane %v1486, 2
  %v1634 = vrot.slane %v1489, 2
  %v1635 = vrot.slane %v1491, 2
  %v1636 = vrot.slane %v1494, 2
  %v1637 = vrot.slane %v1496, 2
  %v1638 = vrot.slane %v1499, 2
  %v1639 = vrot.slane %v1501, 2
  %v1640 = vrot.slane %v1504, 2
  %v1641 = vrot.slane %v1506, 2
  %v1642 = vrot.slane %v1509, 2
  %v1643 = vrot.slane %v1511, 2
  %v1644 = vrot.slane %v1514, 2
  %v1645 = vrot.slane %v1516, 2
  %v1646 = vrot.slane %v1519, 2
  %v1647 = vrot.slane %v1521, 2
  %v1648 = vrot.slane %v1524, 2
  %v1649 = vrot.slane %v1526, 2
  %v1650 = vrot.slane %v1529, 2
  %v1651 = vrot.slane %v1531, 2
  %v1652 = vrot.slane %v1534, 2
  %v1653 = vrot.slane %v1536, 2
  %v1654 = vrot.slane %v1539, 2
  %v1655 = vrot.slane %v1541, 2
  %v1656 = vrot.slane %v1544, 2
  %v1657 = vrot.slane %v1546, 2
  %v1658 = vrot.slane %v1549, 2
  %v1659 = vrot.slane %v1551, 2
  %v1660 = vrot.slane %v1554, 2
  %v1661 = vrot.slane %v1556, 2
  %v1662 = vrot.slane %v1559, 2
  %v1663 = vrot.slane %v1561, 2
  %v1664 = vrot.slane %v1564, 2
  %v1665 = vrot.slane %v1566, 2
  %v1666 = vrot.slane %v1569, 2
  %v1667 = vrot.slane %v1571, 2
  %v1668 = vrot.slane %v1574, 2
  %v1669 = vrot.slane %v1576, 2
  %v1670 = vrot.slane %v1579, 2
  %v1671 = vrot.slane %v1581, 2
  %v1672 = vrot.slane %v1584, 2
  %v1673 = vrot.slane %v1586, 2
  %v1674 = vrot.slane %v1589, 2
  %v1675 = vrot.slane %v1591, 2
  %v1676 = vrot.slane %v1594, 2
  %v1677 = vrot.slane %v1596, 2
  %v1678 = vrot.slane %v1599, 2
  %v1679 = vrot.slane %v1601, 2
  %v1680 = vrot.slane %v1604, 2
  %v1681 = vrot.slane %v1606, 2
  %vm1682 = vcmp.lt.s32.totalorder %v682, 6
  %v1683 = vsel %vm1682, %v1680, %v1681
  %v1684 = vsel %vm1682, %v1679, %v1680
  %v1685 = vsel %vm1682, %v1678, %v1679
  %v1686 = vsel %vm1682, %v1677, %v1678
  %v1687 = vsel %vm1682, %v1676, %v1677
  %v1688 = vsel %vm1682, %v1675, %v1676
  %v1689 = vsel %vm1682, %v1674, %v1675
  %v1690 = vsel %vm1682, %v1673, %v1674
  %v1691 = vsel %vm1682, %v1672, %v1673
  %v1692 = vsel %vm1682, %v1671, %v1672
  %v1693 = vsel %vm1682, %v1670, %v1671
  %v1694 = vsel %vm1682, %v1669, %v1670
  %v1695 = vsel %vm1682, %v1668, %v1669
  %v1696 = vsel %vm1682, %v1667, %v1668
  %v1697 = vsel %vm1682, %v1666, %v1667
  %v1698 = vsel %vm1682, %v1665, %v1666
  %v1699 = vsel %vm1682, %v1664, %v1665
  %v1700 = vsel %vm1682, %v1663, %v1664
  %v1701 = vsel %vm1682, %v1662, %v1663
  %v1702 = vsel %vm1682, %v1661, %v1662
  %v1703 = vsel %vm1682, %v1660, %v1661
  %v1704 = vsel %vm1682, %v1659, %v1660
  %v1705 = vsel %vm1682, %v1658, %v1659
  %v1706 = vsel %vm1682, %v1657, %v1658
  %v1707 = vsel %vm1682, %v1656, %v1657
  %v1708 = vsel %vm1682, %v1655, %v1656
  %v1709 = vsel %vm1682, %v1654, %v1655
  %v1710 = vsel %vm1682, %v1653, %v1654
  %v1711 = vsel %vm1682, %v1652, %v1653
  %v1712 = vsel %vm1682, %v1651, %v1652
  %v1713 = vsel %vm1682, %v1650, %v1651
  %v1714 = vsel %vm1682, %v1649, %v1650
  %v1715 = vsel %vm1682, %v1648, %v1649
  %v1716 = vsel %vm1682, %v1647, %v1648
  %v1717 = vsel %vm1682, %v1646, %v1647
  %v1718 = vsel %vm1682, %v1645, %v1646
  %v1719 = vsel %vm1682, %v1644, %v1645
  %v1720 = vsel %vm1682, %v1643, %v1644
  %v1721 = vsel %vm1682, %v1642, %v1643
  %v1722 = vsel %vm1682, %v1641, %v1642
  %v1723 = vsel %vm1682, %v1640, %v1641
  %v1724 = vsel %vm1682, %v1639, %v1640
  %v1725 = vsel %vm1682, %v1638, %v1639
  %v1726 = vsel %vm1682, %v1637, %v1638
  %v1727 = vsel %vm1682, %v1636, %v1637
  %v1728 = vsel %vm1682, %v1635, %v1636
  %v1729 = vsel %vm1682, %v1634, %v1635
  %v1730 = vsel %vm1682, %v1633, %v1634
  %v1731 = vsel %vm1682, %v1632, %v1633
  %v1732 = vsel %vm1682, %v1631, %v1632
  %v1733 = vsel %vm1682, %v1630, %v1631
  %v1734 = vsel %vm1682, %v1629, %v1630
  %v1735 = vsel %vm1682, %v1628, %v1629
  %v1736 = vsel %vm1682, %v1627, %v1628
  %v1737 = vsel %vm1682, %v1626, %v1627
  %v1738 = vsel %vm1682, %v1625, %v1626
  %v1739 = vsel %vm1682, %v1624, %v1625
  %v1740 = vsel %vm1682, %v1623, %v1624
  %v1741 = vsel %vm1682, %v1622, %v1623
  %v1742 = vsel %vm1682, %v1621, %v1622
  %v1743 = vsel %vm1682, %v1620, %v1621
  %v1744 = vsel %vm1682, %v1619, %v1620
  %v1745 = vsel %vm1682, %v1618, %v1619
  %v1746 = vsel %vm1682, %v1617, %v1618
  %v1747 = vsel %vm1682, %v1616, %v1617
  %v1748 = vsel %vm1682, %v1615, %v1616
  %v1749 = vsel %vm1682, %v1614, %v1615
  %v1750 = vsel %vm1682, %v1613, %v1614
  %v1751 = vsel %vm1682, %v1612, %v1613
  %v1752 = vsel %vm1682, %v1611, %v1612
  %v1753 = vsel %vm1682, %v1610, %v1611
  %v1754 = vsel %vm1682, %v1609, %v1610
  %v1755 = vsel %vm1682, %v1608, %v1609
  %v1756 = vsel %vm1682, %v1681, %v1608
  %v1757 = vadd.f32 %v1323, %v1753
  %v1758 = vadd.f32 %v1324, %v1752
  %v1759 = vadd.f32 %v1325, %v1751
  %v1760 = vadd.f32 %v1326, %v1750
  %v1761 = vadd.f32 %v1327, %v1749
  %v1762 = vadd.f32 %v1328, %v1748
  %v1763 = vadd.f32 %v1329, %v1747
  %v1764 = vadd.f32 %v1330, %v1746
  %v1765 = vadd.f32 %v1331, %v1745
  %v1766 = vadd.f32 %v1332, %v1744
  %v1767 = vadd.f32 %v1333, %v1743
  %v1768 = vadd.f32 %v1334, %v1742
  %v1769 = vadd.f32 %v1335, %v1741
  %v1770 = vadd.f32 %v1336, %v1740
  %v1771 = vadd.f32 %v1337, %v1739
  %v1772 = vadd.f32 %v1338, %v1738
  %v1773 = vadd.f32 %v1339, %v1737
  %v1774 = vadd.f32 %v1340, %v1736
  %v1775 = vadd.f32 %v1341, %v1735
  %v1776 = vadd.f32 %v1342, %v1734
  %v1777 = vadd.f32 %v1343, %v1733
  %v1778 = vadd.f32 %v1344, %v1732
  %v1779 = vadd.f32 %v1345, %v1731
  %v1780 = vadd.f32 %v1346, %v1730
  %v1781 = vadd.f32 %v1347, %v1729
  %v1782 = vadd.f32 %v1348, %v1728
  %v1783 = vadd.f32 %v1349, %v1727
  %v1784 = vadd.f32 %v1350, %v1726
  %v1785 = vadd.f32 %v1351, %v1725
  %v1786 = vadd.f32 %v1352, %v1724
  %v1787 = vadd.f32 %v1353, %v1723
  %v1788 = vadd.f32 %v1354, %v1722
  %v1789 = vadd.f32 %v1355, %v1721
  %v1790 = vadd.f32 %v1356, %v1720
  %v1791 = vadd.f32 %v1357, %v1719
  %v1792 = vadd.f32 %v1358, %v1718
  %v1793 = vadd.f32 %v1359, %v1717
  %v1794 = vadd.f32 %v1360, %v1716
  %v1795 = vadd.f32 %v1361, %v1715
  %v1796 = vadd.f32 %v1362, %v1714
  %v1797 = vadd.f32 %v1363, %v1713
  %v1798 = vadd.f32 %v1364, %v1712
  %v1799 = vadd.f32 %v1365, %v1711
  %v1800 = vadd.f32 %v1366, %v1710
  %v1801 = vadd.f32 %v1367, %v1709
  %v1802 = vadd.f32 %v1368, %v1708
  %v1803 = vadd.f32 %v1369, %v1707
  %v1804 = vadd.f32 %v1370, %v1706
  %v1805 = vadd.f32 %v1371, %v1705
  %v1806 = vadd.f32 %v1372, %v1704
  %v1807 = vadd.f32 %v1373, %v1703
  %v1808 = vadd.f32 %v1374, %v1702
  %v1809 = vadd.f32 %v1375, %v1701
  %v1810 = vadd.f32 %v1376, %v1700
  %v1811 = vadd.f32 %v1377, %v1699
  %v1812 = vadd.f32 %v1378, %v1698
  %v1813 = vadd.f32 %v1379, %v1697
  %v1814 = vadd.f32 %v1380, %v1696
  %v1815 = vadd.f32 %v1381, %v1695
  %v1816 = vadd.f32 %v1382, %v1694
  %v1817 = vadd.f32 %v1383, %v1693
  %v1818 = vadd.f32 %v1384, %v1692
  %v1819 = vadd.f32 %v1385, %v1691
  %v1820 = vadd.f32 %v1386, %v1690
  %v1821 = vadd.f32 %v1387, %v1689
  %v1822 = vadd.f32 %v1388, %v1688
  %v1823 = vadd.f32 %v1389, %v1687
  %v1824 = vadd.f32 %v1390, %v1686
  %v1825 = vadd.f32 %v1391, %v1685
  %v1826 = vadd.f32 %v1392, %v1684
  %v1827 = vadd.f32 %v1393, %v1683
  %v1828 = vadd.f32 %v1394, %v1756
  %v1829 = vadd.f32 %v1395, %v1755
  %v1830 = vadd.f32 %v1396, %v1754
  %v1831 = vld [vmem:[%s2] sm:$0x1]
  %v1833 = vperm.slane %v1831, 0
  %v1835 = vadd.f32 %v1757, %v1833
  %v1836 = vadd.f32 %v1758, %v1833
  %v1837 = vadd.f32 %v1759, %v1833
  %v1838 = vadd.f32 %v1760, %v1833
  %v1839 = vadd.f32 %v1761, %v1833
  %v1840 = vadd.f32 %v1762, %v1833
  %v1841 = vadd.f32 %v1763, %v1833
  %v1842 = vadd.f32 %v1764, %v1833
  %v1843 = vadd.f32 %v1765, %v1833
  %v1844 = vadd.f32 %v1766, %v1833
  %v1845 = vadd.f32 %v1767, %v1833
  %v1846 = vadd.f32 %v1768, %v1833
  %v1847 = vadd.f32 %v1769, %v1833
  %v1848 = vadd.f32 %v1770, %v1833
  %v1849 = vadd.f32 %v1771, %v1833
  %v1850 = vadd.f32 %v1772, %v1833
  %v1851 = vadd.f32 %v1773, %v1833
  %v1852 = vadd.f32 %v1774, %v1833
  %v1853 = vadd.f32 %v1775, %v1833
  %v1854 = vadd.f32 %v1776, %v1833
  %v1855 = vadd.f32 %v1777, %v1833
  %v1856 = vadd.f32 %v1778, %v1833
  %v1857 = vadd.f32 %v1779, %v1833
  %v1858 = vadd.f32 %v1780, %v1833
  %v1859 = vadd.f32 %v1781, %v1833
  %v1860 = vadd.f32 %v1782, %v1833
  %v1861 = vadd.f32 %v1783, %v1833
  %v1862 = vadd.f32 %v1784, %v1833
  %v1863 = vadd.f32 %v1785, %v1833
  %v1864 = vadd.f32 %v1786, %v1833
  %v1865 = vadd.f32 %v1787, %v1833
  %v1866 = vadd.f32 %v1788, %v1833
  %v1867 = vadd.f32 %v1789, %v1833
  %v1868 = vadd.f32 %v1790, %v1833
  %v1869 = vadd.f32 %v1791, %v1833
  %v1870 = vadd.f32 %v1792, %v1833
  %v1871 = vadd.f32 %v1793, %v1833
  %v1872 = vadd.f32 %v1794, %v1833
  %v1873 = vadd.f32 %v1795, %v1833
  %v1874 = vadd.f32 %v1796, %v1833
  %v1875 = vadd.f32 %v1797, %v1833
  %v1876 = vadd.f32 %v1798, %v1833
  %v1877 = vadd.f32 %v1799, %v1833
  %v1878 = vadd.f32 %v1800, %v1833
  %v1879 = vadd.f32 %v1801, %v1833
  %v1880 = vadd.f32 %v1802, %v1833
  %v1881 = vadd.f32 %v1803, %v1833
  %v1882 = vadd.f32 %v1804, %v1833
  %v1883 = vadd.f32 %v1805, %v1833
  %v1884 = vadd.f32 %v1806, %v1833
  %v1885 = vadd.f32 %v1807, %v1833
  %v1886 = vadd.f32 %v1808, %v1833
  %v1887 = vadd.f32 %v1809, %v1833
  %v1888 = vadd.f32 %v1810, %v1833
  %v1889 = vadd.f32 %v1811, %v1833
  %v1890 = vadd.f32 %v1812, %v1833
  %v1891 = vadd.f32 %v1813, %v1833
  %v1892 = vadd.f32 %v1814, %v1833
  %v1893 = vadd.f32 %v1815, %v1833
  %v1894 = vadd.f32 %v1816, %v1833
  %v1895 = vadd.f32 %v1817, %v1833
  %v1896 = vadd.f32 %v1818, %v1833
  %v1897 = vadd.f32 %v1819, %v1833
  %v1898 = vadd.f32 %v1820, %v1833
  %v1899 = vadd.f32 %v1821, %v1833
  %v1900 = vadd.f32 %v1822, %v1833
  %v1901 = vadd.f32 %v1823, %v1833
  %v1902 = vadd.f32 %v1824, %v1833
  %v1903 = vadd.f32 %v1825, %v1833
  %v1904 = vadd.f32 %v1826, %v1833
  %v1905 = vadd.f32 %v1827, %v1833
  %v1906 = vadd.f32 %v1828, %v1833
  %v1907 = vadd.f32 %v1829, %v1833
  %v1908 = vadd.f32 %v1830, %v1833
  %v1909 = vld [vmem:[%s3] sm:$0xff]
  %v1910 = vld [vmem:[%s3 + $0x8] sm:$0xff]
  %v1911 = vld [vmem:[%s3 + $0x10] sm:$0xff]
  %v1912 = vld [vmem:[%s3 + $0x18] sm:$0xff]
  %v1913 = vld [vmem:[%s3 + $0x20] sm:$0xff]
  %v1914 = vld [vmem:[%s3 + $0x28] sm:$0xff]
  %v1915 = vld [vmem:[%s3 + $0x30] sm:$0xff]
  %v1916 = vld [vmem:[%s3 + $0x38] sm:$0xff]
  %v1917 = vld [vmem:[%s3 + $0x40] sm:$0xff]
  %v1918 = vld [vmem:[%s3 + $0x48] sm:$0xff]
  %v1919 = vld [vmem:[%s3 + $0x50] sm:$0xff]
  %v1920 = vld [vmem:[%s3 + $0x58] sm:$0xff]
  %v1921 = vld [vmem:[%s3 + $0x60] sm:$0xff]
  %v1922 = vld [vmem:[%s3 + $0x68] sm:$0xff]
  %v1923 = vld [vmem:[%s3 + $0x70] sm:$0xff]
  %v1924 = vld [vmem:[%s3 + $0x78] sm:$0xff]
  %v1925 = vld [vmem:[%s3 + $0x80] sm:$0xff]
  %v1926 = vld [vmem:[%s3 + $0x88] sm:$0xff]
  %v1927 = vld [vmem:[%s3 + $0x90] sm:$0xff]
  %v1928 = vld [vmem:[%s3 + $0x98] sm:$0xff]
  %v1929 = vld [vmem:[%s3 + $0xa0] sm:$0xff]
  %v1930 = vld [vmem:[%s3 + $0xa8] sm:$0xff]
  %v1931 = vld [vmem:[%s3 + $0xb0] sm:$0xff]
  %v1932 = vld [vmem:[%s3 + $0xb8] sm:$0xff]
  %v1933 = vld [vmem:[%s3 + $0xc0] sm:$0xff]
  %v1934 = vld [vmem:[%s3 + $0xc8] sm:$0xff]
  %v1935 = vld [vmem:[%s3 + $0xd0] sm:$0xff]
  %v1936 = vld [vmem:[%s3 + $0xd8] sm:$0xff]
  %v1937 = vld [vmem:[%s3 + $0xe0] sm:$0xff]
  %v1938 = vld [vmem:[%s3 + $0xe8] sm:$0xff]
  %v1939 = vld [vmem:[%s3 + $0xf0] sm:$0xff]
  %v1940 = vld [vmem:[%s3 + $0xf8] sm:$0xff]
  %v1941 = vld [vmem:[%s3 + $0x100] sm:$0xff]
  %v1942 = vld [vmem:[%s3 + $0x108] sm:$0xff]
  %v1943 = vld [vmem:[%s3 + $0x110] sm:$0xff]
  %v1944 = vld [vmem:[%s3 + $0x118] sm:$0xff]
  %v1945 = vld [vmem:[%s3 + $0x120] sm:$0xff]
  %v1946 = vld [vmem:[%s3 + $0x128] sm:$0xff]
  %v1947 = vld [vmem:[%s3 + $0x130] sm:$0xff]
  %v1948 = vld [vmem:[%s3 + $0x138] sm:$0xff]
  %v1949 = vld [vmem:[%s3 + $0x140] sm:$0xff]
  %v1950 = vld [vmem:[%s3 + $0x148] sm:$0xff]
  %v1951 = vld [vmem:[%s3 + $0x150] sm:$0xff]
  %v1952 = vld [vmem:[%s3 + $0x158] sm:$0xff]
  %v1953 = vld [vmem:[%s3 + $0x160] sm:$0xff]
  %v1954 = vld [vmem:[%s3 + $0x168] sm:$0xff]
  %v1955 = vld [vmem:[%s3 + $0x170] sm:$0xff]
  %v1956 = vld [vmem:[%s3 + $0x178] sm:$0xff]
  %v1957 = vld [vmem:[%s3 + $0x180] sm:$0xff]
  %v1958 = vld [vmem:[%s3 + $0x188] sm:$0xff]
  %v1959 = vld [vmem:[%s3 + $0x190] sm:$0xff]
  %v1960 = vld [vmem:[%s3 + $0x198] sm:$0xff]
  %v1961 = vld [vmem:[%s3 + $0x1a0] sm:$0xff]
  %v1962 = vld [vmem:[%s3 + $0x1a8] sm:$0xff]
  %v1963 = vld [vmem:[%s3 + $0x1b0] sm:$0xff]
  %v1964 = vld [vmem:[%s3 + $0x1b8] sm:$0xff]
  %v1965 = vld [vmem:[%s3 + $0x1c0] sm:$0xff]
  %v1966 = vld [vmem:[%s3 + $0x1c8] sm:$0xff]
  %v1967 = vld [vmem:[%s3 + $0x1d0] sm:$0xff]
  %v1968 = vld [vmem:[%s3 + $0x1d8] sm:$0xff]
  %v1969 = vld [vmem:[%s3 + $0x1e0] sm:$0xff]
  %v1970 = vld [vmem:[%s3 + $0x1e8] sm:$0xff]
  %v1971 = vld [vmem:[%s3 + $0x1f0] sm:$0xff]
  %v1972 = vld [vmem:[%s3 + $0x1f8] sm:$0xff]
  %v1973 = vld [vmem:[%s3 + $0x200] sm:$0xff]
  %v1974 = vld [vmem:[%s3 + $0x208] sm:$0xff]
  %v1975 = vld [vmem:[%s3 + $0x210] sm:$0xff]
  %v1976 = vld [vmem:[%s3 + $0x218] sm:$0xff]
  %v1977 = vld [vmem:[%s3 + $0x220] sm:$0xff]
  %v1978 = vld [vmem:[%s3 + $0x228] sm:$0xff]
  %v1979 = vld [vmem:[%s3 + $0x230] sm:$0xff]
  %v1980 = vld [vmem:[%s3 + $0x238] sm:$0xff]
  %v1981 = vld [vmem:[%s3 + $0x240] sm:$0xff]
  %v1982 = vld [vmem:[%s3 + $0x248] sm:$0xff]
  %1984 = vset.pattern.permute.xlu0 0
  %1985 = vperm.xlu0 %1984, %v1909
  %v1986 = vpop.permute.xlu0 %1985
  %1989 = vset.pattern.permute.xlu0 0
  %1990 = vperm.xlu0 %1989, %v1910
  %v1991 = vpop.permute.xlu0 %1990
  %1994 = vset.pattern.permute.xlu0 0
  %1995 = vperm.xlu0 %1994, %v1911
  %v1996 = vpop.permute.xlu0 %1995
  %1999 = vset.pattern.permute.xlu0 0
  %2000 = vperm.xlu0 %1999, %v1912
  %v2001 = vpop.permute.xlu0 %2000
  %2004 = vset.pattern.permute.xlu0 0
  %2005 = vperm.xlu0 %2004, %v1913
  %v2006 = vpop.permute.xlu0 %2005
  %2009 = vset.pattern.permute.xlu0 0
  %2010 = vperm.xlu0 %2009, %v1914
  %v2011 = vpop.permute.xlu0 %2010
  %2014 = vset.pattern.permute.xlu0 0
  %2015 = vperm.xlu0 %2014, %v1915
  %v2016 = vpop.permute.xlu0 %2015
  %2019 = vset.pattern.permute.xlu0 0
  %2020 = vperm.xlu0 %2019, %v1916
  %v2021 = vpop.permute.xlu0 %2020
  %2024 = vset.pattern.permute.xlu0 0
  %2025 = vperm.xlu0 %2024, %v1917
  %v2026 = vpop.permute.xlu0 %2025
  %2029 = vset.pattern.permute.xlu0 0
  %2030 = vperm.xlu0 %2029, %v1918
  %v2031 = vpop.permute.xlu0 %2030
  %2034 = vset.pattern.permute.xlu0 0
  %2035 = vperm.xlu0 %2034, %v1919
  %v2036 = vpop.permute.xlu0 %2035
  %2039 = vset.pattern.permute.xlu0 0
  %2040 = vperm.xlu0 %2039, %v1920
  %v2041 = vpop.permute.xlu0 %2040
  %2044 = vset.pattern.permute.xlu0 0
  %2045 = vperm.xlu0 %2044, %v1921
  %v2046 = vpop.permute.xlu0 %2045
  %2049 = vset.pattern.permute.xlu0 0
  %2050 = vperm.xlu0 %2049, %v1922
  %v2051 = vpop.permute.xlu0 %2050
  %2054 = vset.pattern.permute.xlu0 0
  %2055 = vperm.xlu0 %2054, %v1923
  %v2056 = vpop.permute.xlu0 %2055
  %2059 = vset.pattern.permute.xlu0 0
  %2060 = vperm.xlu0 %2059, %v1924
  %v2061 = vpop.permute.xlu0 %2060
  %2064 = vset.pattern.permute.xlu0 0
  %2065 = vperm.xlu0 %2064, %v1925
  %v2066 = vpop.permute.xlu0 %2065
  %2069 = vset.pattern.permute.xlu0 0
  %2070 = vperm.xlu0 %2069, %v1926
  %v2071 = vpop.permute.xlu0 %2070
  %2074 = vset.pattern.permute.xlu0 0
  %2075 = vperm.xlu0 %2074, %v1927
  %v2076 = vpop.permute.xlu0 %2075
  %2079 = vset.pattern.permute.xlu0 0
  %2080 = vperm.xlu0 %2079, %v1928
  %v2081 = vpop.permute.xlu0 %2080
  %2084 = vset.pattern.permute.xlu0 0
  %2085 = vperm.xlu0 %2084, %v1929
  %v2086 = vpop.permute.xlu0 %2085
  %2089 = vset.pattern.permute.xlu0 0
  %2090 = vperm.xlu0 %2089, %v1930
  %v2091 = vpop.permute.xlu0 %2090
  %2094 = vset.pattern.permute.xlu0 0
  %2095 = vperm.xlu0 %2094, %v1931
  %v2096 = vpop.permute.xlu0 %2095
  %2099 = vset.pattern.permute.xlu0 0
  %2100 = vperm.xlu0 %2099, %v1932
  %v2101 = vpop.permute.xlu0 %2100
  %2104 = vset.pattern.permute.xlu0 0
  %2105 = vperm.xlu0 %2104, %v1933
  %v2106 = vpop.permute.xlu0 %2105
  %2109 = vset.pattern.permute.xlu0 0
  %2110 = vperm.xlu0 %2109, %v1934
  %v2111 = vpop.permute.xlu0 %2110
  %2114 = vset.pattern.permute.xlu0 0
  %2115 = vperm.xlu0 %2114, %v1935
  %v2116 = vpop.permute.xlu0 %2115
  %2119 = vset.pattern.permute.xlu0 0
  %2120 = vperm.xlu0 %2119, %v1936
  %v2121 = vpop.permute.xlu0 %2120
  %2124 = vset.pattern.permute.xlu0 0
  %2125 = vperm.xlu0 %2124, %v1937
  %v2126 = vpop.permute.xlu0 %2125
  %2129 = vset.pattern.permute.xlu0 0
  %2130 = vperm.xlu0 %2129, %v1938
  %v2131 = vpop.permute.xlu0 %2130
  %2134 = vset.pattern.permute.xlu0 0
  %2135 = vperm.xlu0 %2134, %v1939
  %v2136 = vpop.permute.xlu0 %2135
  %2139 = vset.pattern.permute.xlu0 0
  %2140 = vperm.xlu0 %2139, %v1940
  %v2141 = vpop.permute.xlu0 %2140
  %2144 = vset.pattern.permute.xlu0 0
  %2145 = vperm.xlu0 %2144, %v1941
  %v2146 = vpop.permute.xlu0 %2145
  %2149 = vset.pattern.permute.xlu0 0
  %2150 = vperm.xlu0 %2149, %v1942
  %v2151 = vpop.permute.xlu0 %2150
  %2154 = vset.pattern.permute.xlu0 0
  %2155 = vperm.xlu0 %2154, %v1943
  %v2156 = vpop.permute.xlu0 %2155
  %2159 = vset.pattern.permute.xlu0 0
  %2160 = vperm.xlu0 %2159, %v1944
  %v2161 = vpop.permute.xlu0 %2160
  %2164 = vset.pattern.permute.xlu0 0
  %2165 = vperm.xlu0 %2164, %v1945
  %v2166 = vpop.permute.xlu0 %2165
  %2169 = vset.pattern.permute.xlu0 0
  %2170 = vperm.xlu0 %2169, %v1946
  %v2171 = vpop.permute.xlu0 %2170
  %2174 = vset.pattern.permute.xlu0 0
  %2175 = vperm.xlu0 %2174, %v1947
  %v2176 = vpop.permute.xlu0 %2175
  %2179 = vset.pattern.permute.xlu0 0
  %2180 = vperm.xlu0 %2179, %v1948
  %v2181 = vpop.permute.xlu0 %2180
  %2184 = vset.pattern.permute.xlu0 0
  %2185 = vperm.xlu0 %2184, %v1949
  %v2186 = vpop.permute.xlu0 %2185
  %2189 = vset.pattern.permute.xlu0 0
  %2190 = vperm.xlu0 %2189, %v1950
  %v2191 = vpop.permute.xlu0 %2190
  %2194 = vset.pattern.permute.xlu0 0
  %2195 = vperm.xlu0 %2194, %v1951
  %v2196 = vpop.permute.xlu0 %2195
  %2199 = vset.pattern.permute.xlu0 0
  %2200 = vperm.xlu0 %2199, %v1952
  %v2201 = vpop.permute.xlu0 %2200
  %2204 = vset.pattern.permute.xlu0 0
  %2205 = vperm.xlu0 %2204, %v1953
  %v2206 = vpop.permute.xlu0 %2205
  %2209 = vset.pattern.permute.xlu0 0
  %2210 = vperm.xlu0 %2209, %v1954
  %v2211 = vpop.permute.xlu0 %2210
  %2214 = vset.pattern.permute.xlu0 0
  %2215 = vperm.xlu0 %2214, %v1955
  %v2216 = vpop.permute.xlu0 %2215
  %2219 = vset.pattern.permute.xlu0 0
  %2220 = vperm.xlu0 %2219, %v1956
  %v2221 = vpop.permute.xlu0 %2220
  %2224 = vset.pattern.permute.xlu0 0
  %2225 = vperm.xlu0 %2224, %v1957
  %v2226 = vpop.permute.xlu0 %2225
  %2229 = vset.pattern.permute.xlu0 0
  %2230 = vperm.xlu0 %2229, %v1958
  %v2231 = vpop.permute.xlu0 %2230
  %2234 = vset.pattern.permute.xlu0 0
  %2235 = vperm.xlu0 %2234, %v1959
  %v2236 = vpop.permute.xlu0 %2235
  %2239 = vset.pattern.permute.xlu0 0
  %2240 = vperm.xlu0 %2239, %v1960
  %v2241 = vpop.permute.xlu0 %2240
  %2244 = vset.pattern.permute.xlu0 0
  %2245 = vperm.xlu0 %2244, %v1961
  %v2246 = vpop.permute.xlu0 %2245
  %2249 = vset.pattern.permute.xlu0 0
  %2250 = vperm.xlu0 %2249, %v1962
  %v2251 = vpop.permute.xlu0 %2250
  %2254 = vset.pattern.permute.xlu0 0
  %2255 = vperm.xlu0 %2254, %v1963
  %v2256 = vpop.permute.xlu0 %2255
  %2259 = vset.pattern.permute.xlu0 0
  %2260 = vperm.xlu0 %2259, %v1964
  %v2261 = vpop.permute.xlu0 %2260
  %2264 = vset.pattern.permute.xlu0 0
  %2265 = vperm.xlu0 %2264, %v1965
  %v2266 = vpop.permute.xlu0 %2265
  %2269 = vset.pattern.permute.xlu0 0
  %2270 = vperm.xlu0 %2269, %v1966
  %v2271 = vpop.permute.xlu0 %2270
  %2274 = vset.pattern.permute.xlu0 0
  %2275 = vperm.xlu0 %2274, %v1967
  %v2276 = vpop.permute.xlu0 %2275
  %2279 = vset.pattern.permute.xlu0 0
  %2280 = vperm.xlu0 %2279, %v1968
  %v2281 = vpop.permute.xlu0 %2280
  %2284 = vset.pattern.permute.xlu0 0
  %2285 = vperm.xlu0 %2284, %v1969
  %v2286 = vpop.permute.xlu0 %2285
  %2289 = vset.pattern.permute.xlu0 0
  %2290 = vperm.xlu0 %2289, %v1970
  %v2291 = vpop.permute.xlu0 %2290
  %2294 = vset.pattern.permute.xlu0 0
  %2295 = vperm.xlu0 %2294, %v1971
  %v2296 = vpop.permute.xlu0 %2295
  %2299 = vset.pattern.permute.xlu0 0
  %2300 = vperm.xlu0 %2299, %v1972
  %v2301 = vpop.permute.xlu0 %2300
  %2304 = vset.pattern.permute.xlu0 0
  %2305 = vperm.xlu0 %2304, %v1973
  %v2306 = vpop.permute.xlu0 %2305
  %2309 = vset.pattern.permute.xlu0 0
  %2310 = vperm.xlu0 %2309, %v1974
  %v2311 = vpop.permute.xlu0 %2310
  %2314 = vset.pattern.permute.xlu0 0
  %2315 = vperm.xlu0 %2314, %v1975
  %v2316 = vpop.permute.xlu0 %2315
  %2319 = vset.pattern.permute.xlu0 0
  %2320 = vperm.xlu0 %2319, %v1976
  %v2321 = vpop.permute.xlu0 %2320
  %2324 = vset.pattern.permute.xlu0 0
  %2325 = vperm.xlu0 %2324, %v1977
  %v2326 = vpop.permute.xlu0 %2325
  %2329 = vset.pattern.permute.xlu0 0
  %2330 = vperm.xlu0 %2329, %v1978
  %v2331 = vpop.permute.xlu0 %2330
  %2334 = vset.pattern.permute.xlu0 0
  %2335 = vperm.xlu0 %2334, %v1979
  %v2336 = vpop.permute.xlu0 %2335
  %2339 = vset.pattern.permute.xlu0 0
  %2340 = vperm.xlu0 %2339, %v1980
  %v2341 = vpop.permute.xlu0 %2340
  %2344 = vset.pattern.permute.xlu0 0
  %2345 = vperm.xlu0 %2344, %v1981
  %v2346 = vpop.permute.xlu0 %2345
  %2349 = vset.pattern.permute.xlu0 0
  %2350 = vperm.xlu0 %2349, %v1982
  %v2351 = vpop.permute.xlu0 %2350
  %v2353 = vmul.f32 %v1835, %v1986
  %v2354 = vmul.f32 %v1836, %v1991
  %v2355 = vmul.f32 %v1837, %v1996
  %v2356 = vmul.f32 %v1838, %v2001
  %v2357 = vmul.f32 %v1839, %v2006
  %v2358 = vmul.f32 %v1840, %v2011
  %v2359 = vmul.f32 %v1841, %v2016
  %v2360 = vmul.f32 %v1842, %v2021
  %v2361 = vmul.f32 %v1843, %v2026
  %v2362 = vmul.f32 %v1844, %v2031
  %v2363 = vmul.f32 %v1845, %v2036
  %v2364 = vmul.f32 %v1846, %v2041
  %v2365 = vmul.f32 %v1847, %v2046
  %v2366 = vmul.f32 %v1848, %v2051
  %v2367 = vmul.f32 %v1849, %v2056
  %v2368 = vmul.f32 %v1850, %v2061
  %v2369 = vmul.f32 %v1851, %v2066
  %v2370 = vmul.f32 %v1852, %v2071
  %v2371 = vmul.f32 %v1853, %v2076
  %v2372 = vmul.f32 %v1854, %v2081
  %v2373 = vmul.f32 %v1855, %v2086
  %v2374 = vmul.f32 %v1856, %v2091
  %v2375 = vmul.f32 %v1857, %v2096
  %v2376 = vmul.f32 %v1858, %v2101
  %v2377 = vmul.f32 %v1859, %v2106
  %v2378 = vmul.f32 %v1860, %v2111
  %v2379 = vmul.f32 %v1861, %v2116
  %v2380 = vmul.f32 %v1862, %v2121
  %v2381 = vmul.f32 %v1863, %v2126
  %v2382 = vmul.f32 %v1864, %v2131
  %v2383 = vmul.f32 %v1865, %v2136
  %v2384 = vmul.f32 %v1866, %v2141
  %v2385 = vmul.f32 %v1867, %v2146
  %v2386 = vmul.f32 %v1868, %v2151
  %v2387 = vmul.f32 %v1869, %v2156
  %v2388 = vmul.f32 %v1870, %v2161
  %v2389 = vmul.f32 %v1871, %v2166
  %v2390 = vmul.f32 %v1872, %v2171
  %v2391 = vmul.f32 %v1873, %v2176
  %v2392 = vmul.f32 %v1874, %v2181
  %v2393 = vmul.f32 %v1875, %v2186
  %v2394 = vmul.f32 %v1876, %v2191
  %v2395 = vmul.f32 %v1877, %v2196
  %v2396 = vmul.f32 %v1878, %v2201
  %v2397 = vmul.f32 %v1879, %v2206
  %v2398 = vmul.f32 %v1880, %v2211
  %v2399 = vmul.f32 %v1881, %v2216
  %v2400 = vmul.f32 %v1882, %v2221
  %v2401 = vmul.f32 %v1883, %v2226
  %v2402 = vmul.f32 %v1884, %v2231
  %v2403 = vmul.f32 %v1885, %v2236
  %v2404 = vmul.f32 %v1886, %v2241
  %v2405 = vmul.f32 %v1887, %v2246
  %v2406 = vmul.f32 %v1888, %v2251
  %v2407 = vmul.f32 %v1889, %v2256
  %v2408 = vmul.f32 %v1890, %v2261
  %v2409 = vmul.f32 %v1891, %v2266
  %v2410 = vmul.f32 %v1892, %v2271
  %v2411 = vmul.f32 %v1893, %v2276
  %v2412 = vmul.f32 %v1894, %v2281
  %v2413 = vmul.f32 %v1895, %v2286
  %v2414 = vmul.f32 %v1896, %v2291
  %v2415 = vmul.f32 %v1897, %v2296
  %v2416 = vmul.f32 %v1898, %v2301
  %v2417 = vmul.f32 %v1899, %v2306
  %v2418 = vmul.f32 %v1900, %v2311
  %v2419 = vmul.f32 %v1901, %v2316
  %v2420 = vmul.f32 %v1902, %v2321
  %v2421 = vmul.f32 %v1903, %v2326
  %v2422 = vmul.f32 %v1904, %v2331
  %v2423 = vmul.f32 %v1905, %v2336
  %v2424 = vmul.f32 %v1906, %v2341
  %v2425 = vmul.f32 %v1907, %v2346
  %v2426 = vmul.f32 %v1908, %v2351
  %v2427 = vadd.f32 %v2353, %v2354
  %v2428 = vadd.f32 %v2427, %v2355
  %v2429 = vadd.f32 %v2428, %v2356
  %v2430 = vadd.f32 %v2429, %v2357
  %v2431 = vadd.f32 %v2430, %v2358
  %v2432 = vadd.f32 %v2431, %v2359
  %v2433 = vadd.f32 %v2432, %v2360
  %v2434 = vadd.f32 %v2433, %v2361
  %v2435 = vadd.f32 %v2434, %v2362
  %v2436 = vadd.f32 %v2435, %v2363
  %v2437 = vadd.f32 %v2436, %v2364
  %v2438 = vadd.f32 %v2437, %v2365
  %v2439 = vadd.f32 %v2438, %v2366
  %v2440 = vadd.f32 %v2439, %v2367
  %v2441 = vadd.f32 %v2440, %v2368
  %v2442 = vadd.f32 %v2441, %v2369
  %v2443 = vadd.f32 %v2442, %v2370
  %v2444 = vadd.f32 %v2443, %v2371
  %v2445 = vadd.f32 %v2444, %v2372
  %v2446 = vadd.f32 %v2445, %v2373
  %v2447 = vadd.f32 %v2446, %v2374
  %v2448 = vadd.f32 %v2447, %v2375
  %v2449 = vadd.f32 %v2448, %v2376
  %v2450 = vadd.f32 %v2449, %v2377
  %v2451 = vadd.f32 %v2450, %v2378
  %v2452 = vadd.f32 %v2451, %v2379
  %v2453 = vadd.f32 %v2452, %v2380
  %v2454 = vadd.f32 %v2453, %v2381
  %v2455 = vadd.f32 %v2454, %v2382
  %v2456 = vadd.f32 %v2455, %v2383
  %v2457 = vadd.f32 %v2456, %v2384
  %v2458 = vadd.f32 %v2457, %v2385
  %v2459 = vadd.f32 %v2458, %v2386
  %v2460 = vadd.f32 %v2459, %v2387
  %v2461 = vadd.f32 %v2460, %v2388
  %v2462 = vadd.f32 %v2461, %v2389
  %v2463 = vadd.f32 %v2462, %v2390
  %v2464 = vadd.f32 %v2463, %v2391
  %v2465 = vadd.f32 %v2464, %v2392
  %v2466 = vadd.f32 %v2465, %v2393
  %v2467 = vadd.f32 %v2466, %v2394
  %v2468 = vadd.f32 %v2467, %v2395
  %v2469 = vadd.f32 %v2468, %v2396
  %v2470 = vadd.f32 %v2469, %v2397
  %v2471 = vadd.f32 %v2470, %v2398
  %v2472 = vadd.f32 %v2471, %v2399
  %v2473 = vadd.f32 %v2472, %v2400
  %v2474 = vadd.f32 %v2473, %v2401
  %v2475 = vadd.f32 %v2474, %v2402
  %v2476 = vadd.f32 %v2475, %v2403
  %v2477 = vadd.f32 %v2476, %v2404
  %v2478 = vadd.f32 %v2477, %v2405
  %v2479 = vadd.f32 %v2478, %v2406
  %v2480 = vadd.f32 %v2479, %v2407
  %v2481 = vadd.f32 %v2480, %v2408
  %v2482 = vadd.f32 %v2481, %v2409
  %v2483 = vadd.f32 %v2482, %v2410
  %v2484 = vadd.f32 %v2483, %v2411
  %v2485 = vadd.f32 %v2484, %v2412
  %v2486 = vadd.f32 %v2485, %v2413
  %v2487 = vadd.f32 %v2486, %v2414
  %v2488 = vadd.f32 %v2487, %v2415
  %v2489 = vadd.f32 %v2488, %v2416
  %v2490 = vadd.f32 %v2489, %v2417
  %v2491 = vadd.f32 %v2490, %v2418
  %v2492 = vadd.f32 %v2491, %v2419
  %v2493 = vadd.f32 %v2492, %v2420
  %v2494 = vadd.f32 %v2493, %v2421
  %v2495 = vadd.f32 %v2494, %v2422
  %v2496 = vadd.f32 %v2495, %v2423
  %v2497 = vadd.f32 %v2496, %v2424
  %v2498 = vadd.f32 %v2497, %v2425
  %v2499 = vadd.f32 %v2498, %v2426
  %v2500 = vrot.slane %v2499, 4
  %v2501 = vadd.f32 %v2499, %v2500
  %v2502 = vrot.slane %v2501, 2
  %v2503 = vadd.f32 %v2501, %v2502
  %v2504 = vrot.slane %v2503, 1
  %v2505 = vadd.f32 %v2503, %v2504
  %2506 = vst [vmem:[%s5] sm:$0xff] %v2505
  %v2507 = vmul.f32 %v1835, %v2353
  %v2508 = vmul.f32 %v1836, %v2354
  %v2509 = vmul.f32 %v1837, %v2355
  %v2510 = vmul.f32 %v1838, %v2356
  %v2511 = vmul.f32 %v1839, %v2357
  %v2512 = vmul.f32 %v1840, %v2358
  %v2513 = vmul.f32 %v1841, %v2359
  %v2514 = vmul.f32 %v1842, %v2360
  %v2515 = vmul.f32 %v1843, %v2361
  %v2516 = vmul.f32 %v1844, %v2362
  %v2517 = vmul.f32 %v1845, %v2363
  %v2518 = vmul.f32 %v1846, %v2364
  %v2519 = vmul.f32 %v1847, %v2365
  %v2520 = vmul.f32 %v1848, %v2366
  %v2521 = vmul.f32 %v1849, %v2367
  %v2522 = vmul.f32 %v1850, %v2368
  %v2523 = vmul.f32 %v1851, %v2369
  %v2524 = vmul.f32 %v1852, %v2370
  %v2525 = vmul.f32 %v1853, %v2371
  %v2526 = vmul.f32 %v1854, %v2372
  %v2527 = vmul.f32 %v1855, %v2373
  %v2528 = vmul.f32 %v1856, %v2374
  %v2529 = vmul.f32 %v1857, %v2375
  %v2530 = vmul.f32 %v1858, %v2376
  %v2531 = vmul.f32 %v1859, %v2377
  %v2532 = vmul.f32 %v1860, %v2378
  %v2533 = vmul.f32 %v1861, %v2379
  %v2534 = vmul.f32 %v1862, %v2380
  %v2535 = vmul.f32 %v1863, %v2381
  %v2536 = vmul.f32 %v1864, %v2382
  %v2537 = vmul.f32 %v1865, %v2383
  %v2538 = vmul.f32 %v1866, %v2384
  %v2539 = vmul.f32 %v1867, %v2385
  %v2540 = vmul.f32 %v1868, %v2386
  %v2541 = vmul.f32 %v1869, %v2387
  %v2542 = vmul.f32 %v1870, %v2388
  %v2543 = vmul.f32 %v1871, %v2389
  %v2544 = vmul.f32 %v1872, %v2390
  %v2545 = vmul.f32 %v1873, %v2391
  %v2546 = vmul.f32 %v1874, %v2392
  %v2547 = vmul.f32 %v1875, %v2393
  %v2548 = vmul.f32 %v1876, %v2394
  %v2549 = vmul.f32 %v1877, %v2395
  %v2550 = vmul.f32 %v1878, %v2396
  %v2551 = vmul.f32 %v1879, %v2397
  %v2552 = vmul.f32 %v1880, %v2398
  %v2553 = vmul.f32 %v1881, %v2399
  %v2554 = vmul.f32 %v1882, %v2400
  %v2555 = vmul.f32 %v1883, %v2401
  %v2556 = vmul.f32 %v1884, %v2402
  %v2557 = vmul.f32 %v1885, %v2403
  %v2558 = vmul.f32 %v1886, %v2404
  %v2559 = vmul.f32 %v1887, %v2405
  %v2560 = vmul.f32 %v1888, %v2406
  %v2561 = vmul.f32 %v1889, %v2407
  %v2562 = vmul.f32 %v1890, %v2408
  %v2563 = vmul.f32 %v1891, %v2409
  %v2564 = vmul.f32 %v1892, %v2410
  %v2565 = vmul.f32 %v1893, %v2411
  %v2566 = vmul.f32 %v1894, %v2412
  %v2567 = vmul.f32 %v1895, %v2413
  %v2568 = vmul.f32 %v1896, %v2414
  %v2569 = vmul.f32 %v1897, %v2415
  %v2570 = vmul.f32 %v1898, %v2416
  %v2571 = vmul.f32 %v1899, %v2417
  %v2572 = vmul.f32 %v1900, %v2418
  %v2573 = vmul.f32 %v1901, %v2419
  %v2574 = vmul.f32 %v1902, %v2420
  %v2575 = vmul.f32 %v1903, %v2421
  %v2576 = vmul.f32 %v1904, %v2422
  %v2577 = vmul.f32 %v1905, %v2423
  %v2578 = vmul.f32 %v1906, %v2424
  %v2579 = vmul.f32 %v1907, %v2425
  %v2580 = vmul.f32 %v1908, %v2426
  %v2581 = vadd.f32 %v2507, %v2508
  %v2582 = vadd.f32 %v2581, %v2509
  %v2583 = vadd.f32 %v2582, %v2510
  %v2584 = vadd.f32 %v2583, %v2511
  %v2585 = vadd.f32 %v2584, %v2512
  %v2586 = vadd.f32 %v2585, %v2513
  %v2587 = vadd.f32 %v2586, %v2514
  %v2588 = vadd.f32 %v2587, %v2515
  %v2589 = vadd.f32 %v2588, %v2516
  %v2590 = vadd.f32 %v2589, %v2517
  %v2591 = vadd.f32 %v2590, %v2518
  %v2592 = vadd.f32 %v2591, %v2519
  %v2593 = vadd.f32 %v2592, %v2520
  %v2594 = vadd.f32 %v2593, %v2521
  %v2595 = vadd.f32 %v2594, %v2522
  %v2596 = vadd.f32 %v2595, %v2523
  %v2597 = vadd.f32 %v2596, %v2524
  %v2598 = vadd.f32 %v2597, %v2525
  %v2599 = vadd.f32 %v2598, %v2526
  %v2600 = vadd.f32 %v2599, %v2527
  %v2601 = vadd.f32 %v2600, %v2528
  %v2602 = vadd.f32 %v2601, %v2529
  %v2603 = vadd.f32 %v2602, %v2530
  %v2604 = vadd.f32 %v2603, %v2531
  %v2605 = vadd.f32 %v2604, %v2532
  %v2606 = vadd.f32 %v2605, %v2533
  %v2607 = vadd.f32 %v2606, %v2534
  %v2608 = vadd.f32 %v2607, %v2535
  %v2609 = vadd.f32 %v2608, %v2536
  %v2610 = vadd.f32 %v2609, %v2537
  %v2611 = vadd.f32 %v2610, %v2538
  %v2612 = vadd.f32 %v2611, %v2539
  %v2613 = vadd.f32 %v2612, %v2540
  %v2614 = vadd.f32 %v2613, %v2541
  %v2615 = vadd.f32 %v2614, %v2542
  %v2616 = vadd.f32 %v2615, %v2543
  %v2617 = vadd.f32 %v2616, %v2544
  %v2618 = vadd.f32 %v2617, %v2545
  %v2619 = vadd.f32 %v2618, %v2546
  %v2620 = vadd.f32 %v2619, %v2547
  %v2621 = vadd.f32 %v2620, %v2548
  %v2622 = vadd.f32 %v2621, %v2549
  %v2623 = vadd.f32 %v2622, %v2550
  %v2624 = vadd.f32 %v2623, %v2551
  %v2625 = vadd.f32 %v2624, %v2552
  %v2626 = vadd.f32 %v2625, %v2553
  %v2627 = vadd.f32 %v2626, %v2554
  %v2628 = vadd.f32 %v2627, %v2555
  %v2629 = vadd.f32 %v2628, %v2556
  %v2630 = vadd.f32 %v2629, %v2557
  %v2631 = vadd.f32 %v2630, %v2558
  %v2632 = vadd.f32 %v2631, %v2559
  %v2633 = vadd.f32 %v2632, %v2560
  %v2634 = vadd.f32 %v2633, %v2561
  %v2635 = vadd.f32 %v2634, %v2562
  %v2636 = vadd.f32 %v2635, %v2563
  %v2637 = vadd.f32 %v2636, %v2564
  %v2638 = vadd.f32 %v2637, %v2565
  %v2639 = vadd.f32 %v2638, %v2566
  %v2640 = vadd.f32 %v2639, %v2567
  %v2641 = vadd.f32 %v2640, %v2568
  %v2642 = vadd.f32 %v2641, %v2569
  %v2643 = vadd.f32 %v2642, %v2570
  %v2644 = vadd.f32 %v2643, %v2571
  %v2645 = vadd.f32 %v2644, %v2572
  %v2646 = vadd.f32 %v2645, %v2573
  %v2647 = vadd.f32 %v2646, %v2574
  %v2648 = vadd.f32 %v2647, %v2575
  %v2649 = vadd.f32 %v2648, %v2576
  %v2650 = vadd.f32 %v2649, %v2577
  %v2651 = vadd.f32 %v2650, %v2578
  %v2652 = vadd.f32 %v2651, %v2579
  %v2653 = vadd.f32 %v2652, %v2580
  %v2654 = vrot.slane %v2653, 4
  %v2655 = vadd.f32 %v2653, %v2654
  %v2656 = vrot.slane %v2655, 2
  %v2657 = vadd.f32 %v2655, %v2656
  %v2658 = vrot.slane %v2657, 1
  %v2659 = vadd.f32 %v2657, %v2658
  %2660 = vst [vmem:[%s6] sm:$0xff] %v2659
  %v2661 = vpack.c.bf16 %v1835, %v1835
  %v2662 = vpack.c.bf16 %v1836, %v1836
  %v2663 = vpack.c.bf16 %v1837, %v1837
  %v2664 = vpack.c.bf16 %v1838, %v1838
  %v2665 = vpack.c.bf16 %v1839, %v1839
  %v2666 = vpack.c.bf16 %v1840, %v1840
  %v2667 = vpack.c.bf16 %v1841, %v1841
  %v2668 = vpack.c.bf16 %v1842, %v1842
  %v2669 = vpack.c.bf16 %v1843, %v1843
  %v2670 = vpack.c.bf16 %v1844, %v1844
  %v2671 = vpack.c.bf16 %v1845, %v1845
  %v2672 = vpack.c.bf16 %v1846, %v1846
  %v2673 = vpack.c.bf16 %v1847, %v1847
  %v2674 = vpack.c.bf16 %v1848, %v1848
  %v2675 = vpack.c.bf16 %v1849, %v1849
  %v2676 = vpack.c.bf16 %v1850, %v1850
  %v2677 = vpack.c.bf16 %v1851, %v1851
  %v2678 = vpack.c.bf16 %v1852, %v1852
  %v2679 = vpack.c.bf16 %v1853, %v1853
  %v2680 = vpack.c.bf16 %v1854, %v1854
  %v2681 = vpack.c.bf16 %v1855, %v1855
  %v2682 = vpack.c.bf16 %v1856, %v1856
  %v2683 = vpack.c.bf16 %v1857, %v1857
  %v2684 = vpack.c.bf16 %v1858, %v1858
  %v2685 = vpack.c.bf16 %v1859, %v1859
  %v2686 = vpack.c.bf16 %v1860, %v1860
  %v2687 = vpack.c.bf16 %v1861, %v1861
  %v2688 = vpack.c.bf16 %v1862, %v1862
  %v2689 = vpack.c.bf16 %v1863, %v1863
  %v2690 = vpack.c.bf16 %v1864, %v1864
  %v2691 = vpack.c.bf16 %v1865, %v1865
  %v2692 = vpack.c.bf16 %v1866, %v1866
  %v2693 = vpack.c.bf16 %v1867, %v1867
  %v2694 = vpack.c.bf16 %v1868, %v1868
  %v2695 = vpack.c.bf16 %v1869, %v1869
  %v2696 = vpack.c.bf16 %v1870, %v1870
  %v2697 = vpack.c.bf16 %v1871, %v1871
  %v2698 = vpack.c.bf16 %v1872, %v1872
  %v2699 = vpack.c.bf16 %v1873, %v1873
  %v2700 = vpack.c.bf16 %v1874, %v1874
  %v2701 = vpack.c.bf16 %v1875, %v1875
  %v2702 = vpack.c.bf16 %v1876, %v1876
  %v2703 = vpack.c.bf16 %v1877, %v1877
  %v2704 = vpack.c.bf16 %v1878, %v1878
  %v2705 = vpack.c.bf16 %v1879, %v1879
  %v2706 = vpack.c.bf16 %v1880, %v1880
  %v2707 = vpack.c.bf16 %v1881, %v1881
  %v2708 = vpack.c.bf16 %v1882, %v1882
  %v2709 = vpack.c.bf16 %v1883, %v1883
  %v2710 = vpack.c.bf16 %v1884, %v1884
  %v2711 = vpack.c.bf16 %v1885, %v1885
  %v2712 = vpack.c.bf16 %v1886, %v1886
  %v2713 = vpack.c.bf16 %v1887, %v1887
  %v2714 = vpack.c.bf16 %v1888, %v1888
  %v2715 = vpack.c.bf16 %v1889, %v1889
  %v2716 = vpack.c.bf16 %v1890, %v1890
  %v2717 = vpack.c.bf16 %v1891, %v1891
  %v2718 = vpack.c.bf16 %v1892, %v1892
  %v2719 = vpack.c.bf16 %v1893, %v1893
  %v2720 = vpack.c.bf16 %v1894, %v1894
  %v2721 = vpack.c.bf16 %v1895, %v1895
  %v2722 = vpack.c.bf16 %v1896, %v1896
  %v2723 = vpack.c.bf16 %v1897, %v1897
  %v2724 = vpack.c.bf16 %v1898, %v1898
  %v2725 = vpack.c.bf16 %v1899, %v1899
  %v2726 = vpack.c.bf16 %v1900, %v1900
  %v2727 = vpack.c.bf16 %v1901, %v1901
  %v2728 = vpack.c.bf16 %v1902, %v1902
  %v2729 = vpack.c.bf16 %v1903, %v1903
  %v2730 = vpack.c.bf16 %v1904, %v1904
  %v2731 = vpack.c.bf16 %v1905, %v1905
  %v2732 = vpack.c.bf16 %v1906, %v1906
  %v2733 = vpack.c.bf16 %v1907, %v1907
  %v2734 = vpack.c.bf16 %v1908, %v1908
  %2735 = vst [vmem:[%s4] sm:$0xf] %v2661
  %2736 = vst [vmem:[%s4 + $0x4] sm:$0xf] %v2662
  %2737 = vst [vmem:[%s4 + $0x8] sm:$0xf] %v2663
  %2738 = vst [vmem:[%s4 + $0xc] sm:$0xf] %v2664
  %2739 = vst [vmem:[%s4 + $0x10] sm:$0xf] %v2665
  %2740 = vst [vmem:[%s4 + $0x14] sm:$0xf] %v2666
  %2741 = vst [vmem:[%s4 + $0x18] sm:$0xf] %v2667
  %2742 = vst [vmem:[%s4 + $0x1c] sm:$0xf] %v2668
  %2743 = vst [vmem:[%s4 + $0x20] sm:$0xf] %v2669
  %2744 = vst [vmem:[%s4 + $0x24] sm:$0xf] %v2670
  %2745 = vst [vmem:[%s4 + $0x28] sm:$0xf] %v2671
  %2746 = vst [vmem:[%s4 + $0x2c] sm:$0xf] %v2672
  %2747 = vst [vmem:[%s4 + $0x30] sm:$0xf] %v2673
  %2748 = vst [vmem:[%s4 + $0x34] sm:$0xf] %v2674
  %2749 = vst [vmem:[%s4 + $0x38] sm:$0xf] %v2675
  %2750 = vst [vmem:[%s4 + $0x3c] sm:$0xf] %v2676
  %2751 = vst [vmem:[%s4 + $0x40] sm:$0xf] %v2677
  %2752 = vst [vmem:[%s4 + $0x44] sm:$0xf] %v2678
  %2753 = vst [vmem:[%s4 + $0x48] sm:$0xf] %v2679
  %2754 = vst [vmem:[%s4 + $0x4c] sm:$0xf] %v2680
  %2755 = vst [vmem:[%s4 + $0x50] sm:$0xf] %v2681
  %2756 = vst [vmem:[%s4 + $0x54] sm:$0xf] %v2682
  %2757 = vst [vmem:[%s4 + $0x58] sm:$0xf] %v2683
  %2758 = vst [vmem:[%s4 + $0x5c] sm:$0xf] %v2684
  %2759 = vst [vmem:[%s4 + $0x60] sm:$0xf] %v2685
  %2760 = vst [vmem:[%s4 + $0x64] sm:$0xf] %v2686
  %2761 = vst [vmem:[%s4 + $0x68] sm:$0xf] %v2687
  %2762 = vst [vmem:[%s4 + $0x6c] sm:$0xf] %v2688
  %2763 = vst [vmem:[%s4 + $0x70] sm:$0xf] %v2689
  %2764 = vst [vmem:[%s4 + $0x74] sm:$0xf] %v2690
  %2765 = vst [vmem:[%s4 + $0x78] sm:$0xf] %v2691
  %2766 = vst [vmem:[%s4 + $0x7c] sm:$0xf] %v2692
  %2767 = vst [vmem:[%s4 + $0x80] sm:$0xf] %v2693
  %2768 = vst [vmem:[%s4 + $0x84] sm:$0xf] %v2694
  %2769 = vst [vmem:[%s4 + $0x88] sm:$0xf] %v2695
  %2770 = vst [vmem:[%s4 + $0x8c] sm:$0xf] %v2696
  %2771 = vst [vmem:[%s4 + $0x90] sm:$0xf] %v2697
  %2772 = vst [vmem:[%s4 + $0x94] sm:$0xf] %v2698
  %2773 = vst [vmem:[%s4 + $0x98] sm:$0xf] %v2699
  %2774 = vst [vmem:[%s4 + $0x9c] sm:$0xf] %v2700
  %2775 = vst [vmem:[%s4 + $0xa0] sm:$0xf] %v2701
  %2776 = vst [vmem:[%s4 + $0xa4] sm:$0xf] %v2702
  %2777 = vst [vmem:[%s4 + $0xa8] sm:$0xf] %v2703
  %2778 = vst [vmem:[%s4 + $0xac] sm:$0xf] %v2704
  %2779 = vst [vmem:[%s4 + $0xb0] sm:$0xf] %v2705
  %2780 = vst [vmem:[%s4 + $0xb4] sm:$0xf] %v2706
  %2781 = vst [vmem:[%s4 + $0xb8] sm:$0xf] %v2707
  %2782 = vst [vmem:[%s4 + $0xbc] sm:$0xf] %v2708
  %2783 = vst [vmem:[%s4 + $0xc0] sm:$0xf] %v2709
  %2784 = vst [vmem:[%s4 + $0xc4] sm:$0xf] %v2710
  %2785 = vst [vmem:[%s4 + $0xc8] sm:$0xf] %v2711
  %2786 = vst [vmem:[%s4 + $0xcc] sm:$0xf] %v2712
  %2787 = vst [vmem:[%s4 + $0xd0] sm:$0xf] %v2713
  %2788 = vst [vmem:[%s4 + $0xd4] sm:$0xf] %v2714
  %2789 = vst [vmem:[%s4 + $0xd8] sm:$0xf] %v2715
  %2790 = vst [vmem:[%s4 + $0xdc] sm:$0xf] %v2716
  %2791 = vst [vmem:[%s4 + $0xe0] sm:$0xf] %v2717
  %2792 = vst [vmem:[%s4 + $0xe4] sm:$0xf] %v2718
  %2793 = vst [vmem:[%s4 + $0xe8] sm:$0xf] %v2719
  %2794 = vst [vmem:[%s4 + $0xec] sm:$0xf] %v2720
  %2795 = vst [vmem:[%s4 + $0xf0] sm:$0xf] %v2721
  %2796 = vst [vmem:[%s4 + $0xf4] sm:$0xf] %v2722
  %2797 = vst [vmem:[%s4 + $0xf8] sm:$0xf] %v2723
  %2798 = vst [vmem:[%s4 + $0xfc] sm:$0xf] %v2724
  %2799 = vst [vmem:[%s4 + $0x100] sm:$0xf] %v2725
  %2800 = vst [vmem:[%s4 + $0x104] sm:$0xf] %v2726
  %2801 = vst [vmem:[%s4 + $0x108] sm:$0xf] %v2727
  %2802 = vst [vmem:[%s4 + $0x10c] sm:$0xf] %v2728
  %2803 = vst [vmem:[%s4 + $0x110] sm:$0xf] %v2729
  %2804 = vst [vmem:[%s4 + $0x114] sm:$0xf] %v2730
  %2805 = vst [vmem:[%s4 + $0x118] sm:$0xf] %v2731
  %2806 = vst [vmem:[%s4 + $0x11c] sm:$0xf] %v2732
  %2807 = vst [vmem:[%s4 + $0x120] sm:$0xf] %v2733
  %2808 = vst [vmem:[%s4 + $0x124] sm:$0xf] %v2734
  // Predicated region
  $region18: #{discriminator_forward.9} parent=0 // pred_check
    _
  $region19: #{discriminator_forward.9} parent=0 // pred_check_branch
    %2810 = sbr.rel (0) target = $region21
  $region20: #{discriminator_forward.9} parent=0 // pred_region
    _
  $region21: #{discriminator_forward.9} parent=0 // pred_fallthru
    _
  // Predicated region
  $region22: #{discriminator_forward.9} parent=0 // pred_check
    _
  $region23: #{discriminator_forward.9} parent=0 // pred_check_branch
    %2812 = sbr.rel (0) target = $region25
  $region24: #{discriminator_forward.9} parent=0 // pred_region
    _
  $region25: #{discriminator_forward.9} parent=0 // pred_fallthru
    _
  // Predicated region
  $region26: #{discriminator_forward.9} parent=0 // pred_check
    _
  $region27: #{discriminator_forward.9} parent=0 // pred_check_branch
    %2814 = sbr.rel (0) target = $region29
  $region28: #{discriminator_forward.9} parent=0 // pred_region
    _
  $region29: #{discriminator_forward.9} parent=0 // pred_fallthru
    _
  // Predicated region
  $region30: #{discriminator_forward.9} parent=0 // pred_check
    _
  $region31: #{discriminator_forward.9} parent=0 // pred_check_branch
    %2816 = sbr.rel (0) target = $region33
  $region32: #{discriminator_forward.9} parent=0 // pred_region
    _
  $region33: #{discriminator_forward.9} parent=0 // pred_fallthru
    _
  // Predicated region
  $region34: #{discriminator_forward.9} parent=0 // pred_check
    _
  $region35: #{discriminator_forward.9} parent=0 // pred_check_branch
    %2818 = sbr.rel (0) target = $region37
  $region36: #{discriminator_forward.9} parent=0 // pred_region
    _
  $region37: #{discriminator_forward.9} parent=0 // pred_fallthru
    _
  // Predicated region
  $region38: #{discriminator_forward.9} parent=0 // pred_check
    _
  $region39: #{discriminator_forward.9} parent=0 // pred_check_branch
    %2820 = sbr.rel (0) target = $region41
  $region40: #{discriminator_forward.9} parent=0 // pred_region
    _
  $region41: #{discriminator_forward.9} parent=0 // pred_fallthru
    _

// kernel: discriminator_forward.12
$region0: #{discriminator_forward.12}
  #allocation0 [shape = 'u32[]', space=smem, size = 0x4, offset = 0x4, fixed_abs, tag = 'smem constant byte address 0x4 - core index']
  #allocation1 [shape = 'u32[72,128]{1,0:T(1,128)}', space=vmem, size = 0x9000, scoped, tag = 'internal scratch']
  %s0 = inlined_call_operand.vmem [shape: bf16[176,128], index: 0, kind: input, shape index: {}]
  %s1 = inlined_call_operand.vmem [shape: f32[1,128], index: 1, kind: input, shape index: {}]
  %s2 = inlined_call_operand.vmem [shape: f32[1,128], index: 2, kind: input, shape index: {}]
  %s3 = inlined_call_operand.vmem [shape: bf16[176,128], index: 3, kind: output, shape index: {}]
  %s4 = sld [smem:[#allocation0]]
  $region22: #{discriminator_forward.12} parent=0
    _
  %s6 = ssub.s32 1, %s4
  %s7 = scalar_select 0, %s6, %s4
  // Predicated region
  $region2: #{discriminator_forward.12} parent=0 // pred_check
    _
  $region3: #{discriminator_forward.12} parent=0 // pred_check_branch
    %9 = sbr.rel (0) target = $region5
  $region4: #{discriminator_forward.12} parent=0 // pred_region
    _
  $region5: #{discriminator_forward.12} parent=0 // pred_fallthru
    _
  // Predicated region
  $region6: #{discriminator_forward.12} parent=0 // pred_check
    _
  $region7: #{discriminator_forward.12} parent=0 // pred_check_branch
    %11 = sbr.rel (0) target = $region9
  $region8: #{discriminator_forward.12} parent=0 // pred_region
    _
  $region9: #{discriminator_forward.12} parent=0 // pred_fallthru
    _
  // Predicated region
  $region10: #{discriminator_forward.12} parent=0 // pred_check
    _
  $region11: #{discriminator_forward.12} parent=0 // pred_check_branch
    %13 = sbr.rel (0) target = $region13
  $region12: #{discriminator_forward.12} parent=0 // pred_region
    _
  $region13: #{discriminator_forward.12} parent=0 // pred_fallthru
    _
  %v14 = vld [vmem:[%s0] sm:$0xf]
  %v15 = vld [vmem:[%s0 + $0x4] sm:$0xf]
  %v16 = vld [vmem:[%s0 + $0x8] sm:$0xf]
  %v17 = vld [vmem:[%s0 + $0xc] sm:$0xf]
  %v18 = vld [vmem:[%s0 + $0x10] sm:$0xf]
  %v19 = vld [vmem:[%s0 + $0x14] sm:$0xf]
  %v20 = vld [vmem:[%s0 + $0x18] sm:$0xf]
  %v21 = vld [vmem:[%s0 + $0x1c] sm:$0xf]
  %v22 = vld [vmem:[%s0 + $0x20] sm:$0xf]
  %v23 = vld [vmem:[%s0 + $0x24] sm:$0xf]
  %v24 = vld [vmem:[%s0 + $0x28] sm:$0xf]
  %v25 = vld [vmem:[%s0 + $0x2c] sm:$0xf]
  %v26 = vld [vmem:[%s0 + $0x30] sm:$0xf]
  %v27 = vld [vmem:[%s0 + $0x34] sm:$0xf]
  %v28 = vld [vmem:[%s0 + $0x38] sm:$0xf]
  %v29 = vld [vmem:[%s0 + $0x3c] sm:$0xf]
  %v30 = vld [vmem:[%s0 + $0x40] sm:$0xf]
  %v31 = vld [vmem:[%s0 + $0x44] sm:$0xf]
  %v32 = vld [vmem:[%s0 + $0x48] sm:$0xf]
  %v33 = vld [vmem:[%s0 + $0x4c] sm:$0xf]
  %v34 = vld [vmem:[%s0 + $0x50] sm:$0xf]
  %v35 = vld [vmem:[%s0 + $0x54] sm:$0xf]
  %v36 = vunpack.c.l.bf16 %v14
  %v37 = vunpack.c.l.bf16 %v15
  %v38 = vunpack.c.l.bf16 %v16
  %v39 = vunpack.c.l.bf16 %v17
  %v40 = vunpack.c.l.bf16 %v18
  %v41 = vunpack.c.l.bf16 %v19
  %v42 = vunpack.c.l.bf16 %v20
  %v43 = vunpack.c.l.bf16 %v21
  %v44 = vunpack.c.l.bf16 %v22
  %v45 = vunpack.c.l.bf16 %v23
  %v46 = vunpack.c.l.bf16 %v24
  %v47 = vunpack.c.l.bf16 %v25
  %v48 = vunpack.c.l.bf16 %v26
  %v49 = vunpack.c.l.bf16 %v27
  %v50 = vunpack.c.l.bf16 %v28
  %v51 = vunpack.c.l.bf16 %v29
  %v52 = vunpack.c.l.bf16 %v30
  %v53 = vunpack.c.l.bf16 %v31
  %v54 = vunpack.c.l.bf16 %v32
  %v55 = vunpack.c.l.bf16 %v33
  %v56 = vunpack.c.l.bf16 %v34
  %v57 = vunpack.c.l.bf16 %v35
  %v58 = vld [vmem:[%s1] sm:$0x1]
  %v60 = vperm.slane %v58, 0
  %v62 = vmul.f32 %v36, %v60
  %v63 = vmul.f32 %v37, %v60
  %v64 = vmul.f32 %v38, %v60
  %v65 = vmul.f32 %v39, %v60
  %v66 = vmul.f32 %v40, %v60
  %v67 = vmul.f32 %v41, %v60
  %v68 = vmul.f32 %v42, %v60
  %v69 = vmul.f32 %v43, %v60
  %v70 = vmul.f32 %v44, %v60
  %v71 = vmul.f32 %v45, %v60
  %v72 = vmul.f32 %v46, %v60
  %v73 = vmul.f32 %v47, %v60
  %v74 = vmul.f32 %v48, %v60
  %v75 = vmul.f32 %v49, %v60
  %v76 = vmul.f32 %v50, %v60
  %v77 = vmul.f32 %v51, %v60
  %v78 = vmul.f32 %v52, %v60
  %v79 = vmul.f32 %v53, %v60
  %v80 = vmul.f32 %v54, %v60
  %v81 = vmul.f32 %v55, %v60
  %v82 = vmul.f32 %v56, %v60
  %v83 = vmul.f32 %v57, %v60
  %v84 = vld [vmem:[%s2] sm:$0x1]
  %v86 = vperm.slane %v84, 0
  %v88 = vadd.f32 %v62, %v86
  %v89 = vadd.f32 %v63, %v86
  %v90 = vadd.f32 %v64, %v86
  %v91 = vadd.f32 %v65, %v86
  %v92 = vadd.f32 %v66, %v86
  %v93 = vadd.f32 %v67, %v86
  %v94 = vadd.f32 %v68, %v86
  %v95 = vadd.f32 %v69, %v86
  %v96 = vadd.f32 %v70, %v86
  %v97 = vadd.f32 %v71, %v86
  %v98 = vadd.f32 %v72, %v86
  %v99 = vadd.f32 %v73, %v86
  %v100 = vadd.f32 %v74, %v86
  %v101 = vadd.f32 %v75, %v86
  %v102 = vadd.f32 %v76, %v86
  %v103 = vadd.f32 %v77, %v86
  %v104 = vadd.f32 %v78, %v86
  %v105 = vadd.f32 %v79, %v86
  %v106 = vadd.f32 %v80, %v86
  %v107 = vadd.f32 %v81, %v86
  %v108 = vadd.f32 %v82, %v86
  %v109 = vadd.f32 %v83, %v86
  %vm110 = vcmp.ge.f32.partialorder %v88, 0.0
  %vm111 = vcmp.ge.f32.partialorder %v89, 0.0
  %vm112 = vcmp.ge.f32.partialorder %v90, 0.0
  %vm113 = vcmp.ge.f32.partialorder %v91, 0.0
  %vm114 = vcmp.ge.f32.partialorder %v92, 0.0
  %vm115 = vcmp.ge.f32.partialorder %v93, 0.0
  %vm116 = vcmp.ge.f32.partialorder %v94, 0.0
  %vm117 = vcmp.ge.f32.partialorder %v95, 0.0
  %vm118 = vcmp.ge.f32.partialorder %v96, 0.0
  %vm119 = vcmp.ge.f32.partialorder %v97, 0.0
  %vm120 = vcmp.ge.f32.partialorder %v98, 0.0
  %vm121 = vcmp.ge.f32.partialorder %v99, 0.0
  %vm122 = vcmp.ge.f32.partialorder %v100, 0.0
  %vm123 = vcmp.ge.f32.partialorder %v101, 0.0
  %vm124 = vcmp.ge.f32.partialorder %v102, 0.0
  %vm125 = vcmp.ge.f32.partialorder %v103, 0.0
  %vm126 = vcmp.ge.f32.partialorder %v104, 0.0
  %vm127 = vcmp.ge.f32.partialorder %v105, 0.0
  %vm128 = vcmp.ge.f32.partialorder %v106, 0.0
  %vm129 = vcmp.ge.f32.partialorder %v107, 0.0
  %vm130 = vcmp.ge.f32.partialorder %v108, 0.0
  %vm131 = vcmp.ge.f32.partialorder %v109, 0.0
  %v132 = vmul.f32 %v88, 0.2
  %v133 = vmul.f32 %v89, 0.2
  %v134 = vmul.f32 %v90, 0.2
  %v135 = vmul.f32 %v91, 0.2
  %v136 = vmul.f32 %v92, 0.2
  %v137 = vmul.f32 %v93, 0.2
  %v138 = vmul.f32 %v94, 0.2
  %v139 = vmul.f32 %v95, 0.2
  %v140 = vmul.f32 %v96, 0.2
  %v141 = vmul.f32 %v97, 0.2
  %v142 = vmul.f32 %v98, 0.2
  %v143 = vmul.f32 %v99, 0.2
  %v144 = vmul.f32 %v100, 0.2
  %v145 = vmul.f32 %v101, 0.2
  %v146 = vmul.f32 %v102, 0.2
  %v147 = vmul.f32 %v103, 0.2
  %v148 = vmul.f32 %v104, 0.2
  %v149 = vmul.f32 %v105, 0.2
  %v150 = vmul.f32 %v106, 0.2
  %v151 = vmul.f32 %v107, 0.2
  %v152 = vmul.f32 %v108, 0.2
  %v153 = vmul.f32 %v109, 0.2
  %v154 = vsel %vm110, %v88, %v132
  %v155 = vsel %vm111, %v89, %v133
  %v156 = vsel %vm112, %v90, %v134
  %v157 = vsel %vm113, %v91, %v135
  %v158 = vsel %vm114, %v92, %v136
  %v159 = vsel %vm115, %v93, %v137
  %v160 = vsel %vm116, %v94, %v138
  %v161 = vsel %vm117, %v95, %v139
  %v162 = vsel %vm118, %v96, %v140
  %v163 = vsel %vm119, %v97, %v141
  %v164 = vsel %vm120, %v98, %v142
  %v165 = vsel %vm121, %v99, %v143
  %v166 = vsel %vm122, %v100, %v144
  %v167 = vsel %vm123, %v101, %v145
  %v168 = vsel %vm124, %v102, %v146
  %v169 = vsel %vm125, %v103, %v147
  %v170 = vsel %vm126, %v104, %v148
  %v171 = vsel %vm127, %v105, %v149
  %v172 = vsel %vm128, %v106, %v150
  %v173 = vsel %vm129, %v107, %v151
  %v174 = vsel %vm130, %v108, %v152
  %v175 = vsel %vm131, %v109, %v153
  %v176 = vpack.c.bf16 %v154, %v154
  %v177 = vpack.c.bf16 %v155, %v155
  %v178 = vpack.c.bf16 %v156, %v156
  %v179 = vpack.c.bf16 %v157, %v157
  %v180 = vpack.c.bf16 %v158, %v158
  %v181 = vpack.c.bf16 %v159, %v159
  %v182 = vpack.c.bf16 %v160, %v160
  %v183 = vpack.c.bf16 %v161, %v161
  %v184 = vpack.c.bf16 %v162, %v162
  %v185 = vpack.c.bf16 %v163, %v163
  %v186 = vpack.c.bf16 %v164, %v164
  %v187 = vpack.c.bf16 %v165, %v165
  %v188 = vpack.c.bf16 %v166, %v166
  %v189 = vpack.c.bf16 %v167, %v167
  %v190 = vpack.c.bf16 %v168, %v168
  %v191 = vpack.c.bf16 %v169, %v169
  %v192 = vpack.c.bf16 %v170, %v170
  %v193 = vpack.c.bf16 %v171, %v171
  %v194 = vpack.c.bf16 %v172, %v172
  %v195 = vpack.c.bf16 %v173, %v173
  %v196 = vpack.c.bf16 %v174, %v174
  %v197 = vpack.c.bf16 %v175, %v175
  %198 = vst [vmem:[%s3] sm:$0xf] %v176
  %199 = vst [vmem:[%s3 + $0x4] sm:$0xf] %v177
  %200 = vst [vmem:[%s3 + $0x8] sm:$0xf] %v178
  %201 = vst [vmem:[%s3 + $0xc] sm:$0xf] %v179
  %202 = vst [vmem:[%s3 + $0x10] sm:$0xf] %v180
  %203 = vst [vmem:[%s3 + $0x14] sm:$0xf] %v181
  %204 = vst [vmem:[%s3 + $0x18] sm:$0xf] %v182
  %205 = vst [vmem:[%s3 + $0x1c] sm:$0xf] %v183
  %206 = vst [vmem:[%s3 + $0x20] sm:$0xf] %v184
  %207 = vst [vmem:[%s3 + $0x24] sm:$0xf] %v185
  %208 = vst [vmem:[%s3 + $0x28] sm:$0xf] %v186
  %209 = vst [vmem:[%s3 + $0x2c] sm:$0xf] %v187
  %210 = vst [vmem:[%s3 + $0x30] sm:$0xf] %v188
  %211 = vst [vmem:[%s3 + $0x34] sm:$0xf] %v189
  %212 = vst [vmem:[%s3 + $0x38] sm:$0xf] %v190
  %213 = vst [vmem:[%s3 + $0x3c] sm:$0xf] %v191
  %214 = vst [vmem:[%s3 + $0x40] sm:$0xf] %v192
  %215 = vst [vmem:[%s3 + $0x44] sm:$0xf] %v193
  %216 = vst [vmem:[%s3 + $0x48] sm:$0xf] %v194
  %217 = vst [vmem:[%s3 + $0x4c] sm:$0xf] %v195
  %218 = vst [vmem:[%s3 + $0x50] sm:$0xf] %v196
  %219 = vst [vmem:[%s3 + $0x54] sm:$0xf] %v197
  // Predicated region
  $region14: #{discriminator_forward.12} parent=0 // pred_check
    _
  $region15: #{discriminator_forward.12} parent=0 // pred_check_branch
    %221 = sbr.rel (0) target = $region17
  $region16: #{discriminator_forward.12} parent=0 // pred_region
    _
  $region17: #{discriminator_forward.12} parent=0 // pred_fallthru
    _
  // Predicated region
  $region18: #{discriminator_forward.12} parent=0 // pred_check
    _
  $region19: #{discriminator_forward.12} parent=0 // pred_check_branch
    %223 = sbr.rel (0) target = $region21
  $region20: #{discriminator_forward.12} parent=0 // pred_region
    _
  $region21: #{discriminator_forward.12} parent=0 // pred_fallthru
    _

// kernel: discriminator_forward.11
$region0: #{discriminator_forward.11}
  #allocation0 [shape = 'u32[]', space=smem, size = 0x4, offset = 0x4, fixed_abs, tag = 'smem constant byte address 0x4 - core index']
  #allocation1 [shape = 'u32[72,128]{1,0:T(1,128)}', space=vmem, size = 0x9000, scoped, tag = 'internal scratch']
  %s0 = inlined_call_operand.vmem [shape: bf16[176,64], index: 0, kind: input, shape index: {}]
  %s1 = inlined_call_operand.vmem [shape: bf16[4,64,128], index: 1, kind: input, shape index: {}]
  %s2 = inlined_call_operand.vmem [shape: f32[1,128], index: 2, kind: input, shape index: {}]
  %s3 = inlined_call_operand.vmem [shape: f32[176,1], index: 3, kind: input, shape index: {}]
  %s4 = inlined_call_operand.vmem [shape: bf16[176,128], index: 4, kind: output, shape index: {0}]
  %s5 = inlined_call_operand.vmem [shape: f32[8,128], index: 5, kind: output, shape index: {1}]
  %s6 = inlined_call_operand.vmem [shape: f32[8,128], index: 6, kind: output, shape index: {2}]
  %7 = xla_tuple %s4, %s5, %s6
  %s8 = sld [smem:[#allocation0]]
  $region42: #{discriminator_forward.11} parent=0
    _
  %s10 = ssub.s32 1, %s8
  %s11 = scalar_select 0, %s10, %s8
  // Predicated region
  $region2: #{discriminator_forward.11} parent=0 // pred_check
    _
  $region3: #{discriminator_forward.11} parent=0 // pred_check_branch
    %13 = sbr.rel (0) target = $region5
  $region4: #{discriminator_forward.11} parent=0 // pred_region
    _
  $region5: #{discriminator_forward.11} parent=0 // pred_fallthru
    _
  // Predicated region
  $region6: #{discriminator_forward.11} parent=0 // pred_check
    _
  $region7: #{discriminator_forward.11} parent=0 // pred_check_branch
    %15 = sbr.rel (0) target = $region9
  $region8: #{discriminator_forward.11} parent=0 // pred_region
    _
  $region9: #{discriminator_forward.11} parent=0 // pred_fallthru
    _
  // Predicated region
  $region10: #{discriminator_forward.11} parent=0 // pred_check
    _
  $region11: #{discriminator_forward.11} parent=0 // pred_check_branch
    %17 = sbr.rel (0) target = $region13
  $region12: #{discriminator_forward.11} parent=0 // pred_region
    _
  $region13: #{discriminator_forward.11} parent=0 // pred_fallthru
    _
  // Predicated region
  $region14: #{discriminator_forward.11} parent=0 // pred_check
    _
  $region15: #{discriminator_forward.11} parent=0 // pred_check_branch
    %19 = sbr.rel (0) target = $region17
  $region16: #{discriminator_forward.11} parent=0 // pred_region
    _
  $region17: #{discriminator_forward.11} parent=0 // pred_fallthru
    _
  %v21 = vld [vmem:[%s0] sm:$0xf]
  %v22 = vld [vmem:[%s0 + $0x4] sm:$0xf]
  %v23 = vld [vmem:[%s0 + $0x8] sm:$0xf]
  %v24 = vld [vmem:[%s0 + $0xc] sm:$0xf]
  %v25 = vld [vmem:[%s0 + $0x10] sm:$0xf]
  %v26 = vld [vmem:[%s0 + $0x14] sm:$0xf]
  %v27 = vld [vmem:[%s0 + $0x18] sm:$0xf]
  %v28 = vld [vmem:[%s0 + $0x1c] sm:$0xf]
  %v29 = vld [vmem:[%s0 + $0x20] sm:$0xf]
  %v30 = vld [vmem:[%s0 + $0x24] sm:$0xf]
  %v31 = vld [vmem:[%s0 + $0x28] sm:$0xf]
  %v32 = vld [vmem:[%s0 + $0x2c] sm:$0xf]
  %v33 = vld [vmem:[%s0 + $0x30] sm:$0xf]
  %v34 = vld [vmem:[%s0 + $0x34] sm:$0xf]
  %v35 = vld [vmem:[%s0 + $0x38] sm:$0xf]
  %v36 = vld [vmem:[%s0 + $0x3c] sm:$0xf]
  %v37 = vld [vmem:[%s0 + $0x40] sm:$0xf]
  %v38 = vld [vmem:[%s0 + $0x44] sm:$0xf]
  %v39 = vld [vmem:[%s0 + $0x48] sm:$0xf]
  %v40 = vld [vmem:[%s0 + $0x4c] sm:$0xf]
  %v41 = vld [vmem:[%s0 + $0x50] sm:$0xf]
  %v42 = vld [vmem:[%s0 + $0x54] sm:$0xf]
  %v43 = vld [vmem:[%s1] sm:$0xf]
  %v44 = vld [vmem:[%s1 + $0x4] sm:$0xf]
  %v45 = vld [vmem:[%s1 + $0x8] sm:$0xf]
  %v46 = vld [vmem:[%s1 + $0xc] sm:$0xf]
  %v47 = vld [vmem:[%s1 + $0x10] sm:$0xf]
  %v48 = vld [vmem:[%s1 + $0x14] sm:$0xf]
  %v49 = vld [vmem:[%s1 + $0x18] sm:$0xf]
  %v50 = vld [vmem:[%s1 + $0x1c] sm:$0xf]
  %s51 = scalar_lea.vmem %s1, 32
  %v52 = vld [vmem:[%s51] sm:$0xf]
  %v53 = vld [vmem:[%s51 + $0x4] sm:$0xf]
  %v54 = vld [vmem:[%s51 + $0x8] sm:$0xf]
  %v55 = vld [vmem:[%s51 + $0xc] sm:$0xf]
  %v56 = vld [vmem:[%s51 + $0x10] sm:$0xf]
  %v57 = vld [vmem:[%s51 + $0x14] sm:$0xf]
  %v58 = vld [vmem:[%s51 + $0x18] sm:$0xf]
  %v59 = vld [vmem:[%s51 + $0x1c] sm:$0xf]
  %v82 = vunpack.c.l.b16 %v21
  %v83 = vunpack.c.l.b16 %v22
  %v84 = vunpack.c.l.b16 %v23
  %v85 = vunpack.c.l.b16 %v24
  %v86 = vunpack.c.l.b16 %v25
  %v87 = vunpack.c.l.b16 %v26
  %v88 = vunpack.c.l.b16 %v27
  %v89 = vunpack.c.l.b16 %v28
  %v90 = vunpack.c.l.b16 %v29
  %v91 = vunpack.c.l.b16 %v30
  %v92 = vunpack.c.l.b16 %v31
  %v93 = vunpack.c.l.b16 %v32
  %v94 = vunpack.c.l.b16 %v33
  %v95 = vunpack.c.l.b16 %v34
  %v96 = vunpack.c.l.b16 %v35
  %v97 = vunpack.c.l.b16 %v36
  %v98 = vunpack.c.l.b16 %v37
  %v99 = vunpack.c.l.b16 %v38
  %v100 = vunpack.c.l.b16 %v39
  %v101 = vunpack.c.l.b16 %v40
  %v102 = vunpack.c.l.b16 %v41
  %v103 = vunpack.c.l.b16 %v42
  %v104 = vpack.c.b16 %v83, %v82
  %v105 = vpack.c.b16 %v85, %v84
  %v106 = vpack.c.b16 %v87, %v86
  %v107 = vpack.c.b16 %v89, %v88
  %v108 = vpack.c.b16 %v91, %v90
  %v109 = vpack.c.b16 %v93, %v92
  %v110 = vpack.c.b16 %v95, %v94
  %v111 = vpack.c.b16 %v97, %v96
  %v112 = vpack.c.b16 %v99, %v98
  %v113 = vpack.c.b16 %v101, %v100
  %v114 = vpack.c.b16 %v103, %v102
  %v123 = vunpack.c.l.b16 %v52
  %v124 = vunpack.c.l.b16 %v53
  %v125 = vunpack.c.l.b16 %v54
  %v126 = vunpack.c.l.b16 %v55
  %v127 = vunpack.c.l.b16 %v56
  %v128 = vunpack.c.l.b16 %v57
  %v129 = vunpack.c.l.b16 %v58
  %v130 = vunpack.c.l.b16 %v59
  %v131 = vpack.c.b16 %v124, %v123
  %v132 = vpack.c.b16 %v126, %v125
  %v133 = vpack.c.b16 %v128, %v127
  %v134 = vpack.c.b16 %v130, %v129
  %vm139 = vcmask 523264
  %v141 = vsel %vm139, %v104, 0
  %v144 = vsel %vm139, %v105, 0
  %v147 = vsel %vm139, %v106, 0
  %v150 = vsel %vm139, %v107, 0
  %v153 = vsel %vm139, %v108, 0
  %v156 = vsel %vm139, %v109, 0
  %v159 = vsel %vm139, %v110, 0
  %v162 = vsel %vm139, %v111, 0
  %v165 = vsel %vm139, %v112, 0
  %v168 = vsel %vm139, %v113, 0
  %v171 = vsel %vm139, %v114, 0
  %173 = vmatpush.bf16.msra.mxu0 0
  %174 = vmatpush.bf16.msra.mxu0 0
  %175 = vmatpush.bf16.msra.mxu0 0
  %176 = vmatpush.bf16.msra.mxu0 0
  %177 = vmatpush.bf16.msra.mxu0 %v134
  %178 = vmatpush.bf16.msra.mxu0 %v133
  %179 = vmatpush.bf16.msra.mxu0 %v132
  %180 = vmatpush.bf16.msra.mxu0 %v131
  %181 = vmatmul.bf16.gmra.mxu0 %v141
  %v182 = vpop.f32.mrf.mxu0
  %v183 = vadd.f32 0.0, %v182
  %v184 = vpop.f32.mrf.mxu0
  %v185 = vadd.f32 0.0, %v184
  %186 = vmatmul.bf16.gmra.mxu0 %v144
  %v187 = vpop.f32.mrf.mxu0
  %v188 = vadd.f32 0.0, %v187
  %v189 = vpop.f32.mrf.mxu0
  %v190 = vadd.f32 0.0, %v189
  %191 = vmatmul.bf16.gmra.mxu0 %v147
  %v192 = vpop.f32.mrf.mxu0
  %v193 = vadd.f32 0.0, %v192
  %v194 = vpop.f32.mrf.mxu0
  %v195 = vadd.f32 0.0, %v194
  %196 = vmatmul.bf16.gmra.mxu0 %v150
  %v197 = vpop.f32.mrf.mxu0
  %v198 = vadd.f32 0.0, %v197
  %v199 = vpop.f32.mrf.mxu0
  %v200 = vadd.f32 0.0, %v199
  %201 = vmatmul.bf16.gmra.mxu0 %v153
  %v202 = vpop.f32.mrf.mxu0
  %v203 = vadd.f32 0.0, %v202
  %v204 = vpop.f32.mrf.mxu0
  %v205 = vadd.f32 0.0, %v204
  %206 = vmatmul.bf16.gmra.mxu0 %v156
  %v207 = vpop.f32.mrf.mxu0
  %v208 = vadd.f32 0.0, %v207
  %v209 = vpop.f32.mrf.mxu0
  %v210 = vadd.f32 0.0, %v209
  %211 = vmatmul.bf16.gmra.mxu0 %v159
  %v212 = vpop.f32.mrf.mxu0
  %v213 = vadd.f32 0.0, %v212
  %v214 = vpop.f32.mrf.mxu0
  %v215 = vadd.f32 0.0, %v214
  %216 = vmatmul.bf16.gmra.mxu0 %v162
  %v217 = vpop.f32.mrf.mxu0
  %v218 = vadd.f32 0.0, %v217
  %v219 = vpop.f32.mrf.mxu0
  %v220 = vadd.f32 0.0, %v219
  %221 = vmatmul.bf16.gmra.mxu0 %v165
  %v222 = vpop.f32.mrf.mxu0
  %v223 = vadd.f32 0.0, %v222
  %v224 = vpop.f32.mrf.mxu0
  %v225 = vadd.f32 0.0, %v224
  %226 = vmatmul.bf16.gmra.mxu0 %v168
  %v227 = vpop.f32.mrf.mxu0
  %v228 = vadd.f32 0.0, %v227
  %v229 = vpop.f32.mrf.mxu0
  %v230 = vadd.f32 0.0, %v229
  %231 = vmatmul.bf16.gmra.mxu0 %v171
  %v232 = vpop.f32.mrf.mxu0
  %v233 = vadd.f32 0.0, %v232
  %v234 = vpop.f32.mrf.mxu0
  %v235 = vadd.f32 0.0, %v234
  %236 = vdwg.mxu0
  %v237 = vrot.slane %v183, 1
  %v238 = vrot.slane %v185, 1
  %v239 = vrot.slane %v188, 1
  %v240 = vrot.slane %v190, 1
  %v241 = vrot.slane %v193, 1
  %v242 = vrot.slane %v195, 1
  %v243 = vrot.slane %v198, 1
  %v244 = vrot.slane %v200, 1
  %v245 = vrot.slane %v203, 1
  %v246 = vrot.slane %v205, 1
  %v247 = vrot.slane %v208, 1
  %v248 = vrot.slane %v210, 1
  %v249 = vrot.slane %v213, 1
  %v250 = vrot.slane %v215, 1
  %v251 = vrot.slane %v218, 1
  %v252 = vrot.slane %v220, 1
  %v253 = vrot.slane %v223, 1
  %v254 = vrot.slane %v225, 1
  %v255 = vrot.slane %v228, 1
  %v256 = vrot.slane %v230, 1
  %v257 = vrot.slane %v233, 1
  %v258 = vrot.slane %v235, 1
  %v259 = vlaneseq
  %v260 = vshrl.u32 %v259, 7
  %vm261 = vcmp.lt.s32.totalorder %v260, 7
  %v262 = vsel %vm261, %v257, %v258
  %v263 = vsel %vm261, %v256, %v257
  %v264 = vsel %vm261, %v255, %v256
  %v265 = vsel %vm261, %v254, %v255
  %v266 = vsel %vm261, %v253, %v254
  %v267 = vsel %vm261, %v252, %v253
  %v268 = vsel %vm261, %v251, %v252
  %v269 = vsel %vm261, %v250, %v251
  %v270 = vsel %vm261, %v249, %v250
  %v271 = vsel %vm261, %v248, %v249
  %v272 = vsel %vm261, %v247, %v248
  %v273 = vsel %vm261, %v246, %v247
  %v274 = vsel %vm261, %v245, %v246
  %v275 = vsel %vm261, %v244, %v245
  %v276 = vsel %vm261, %v243, %v244
  %v277 = vsel %vm261, %v242, %v243
  %v278 = vsel %vm261, %v241, %v242
  %v279 = vsel %vm261, %v240, %v241
  %v280 = vsel %vm261, %v239, %v240
  %v281 = vsel %vm261, %v238, %v239
  %v282 = vsel %vm261, %v237, %v238
  %v283 = vsel %vm261, %v258, %v237
  %v292 = vunpack.c.l.b16 %v43
  %v293 = vunpack.c.l.b16 %v44
  %v294 = vunpack.c.l.b16 %v45
  %v295 = vunpack.c.l.b16 %v46
  %v296 = vunpack.c.l.b16 %v47
  %v297 = vunpack.c.l.b16 %v48
  %v298 = vunpack.c.l.b16 %v49
  %v299 = vunpack.c.l.b16 %v50
  %v300 = vpack.c.b16 %v293, %v292
  %v301 = vpack.c.b16 %v295, %v294
  %v302 = vpack.c.b16 %v297, %v296
  %v303 = vpack.c.b16 %v299, %v298
  %308 = vmatpush.bf16.msra.mxu0 0
  %309 = vmatpush.bf16.msra.mxu0 0
  %310 = vmatpush.bf16.msra.mxu0 0
  %311 = vmatpush.bf16.msra.mxu0 0
  %312 = vmatpush.bf16.msra.mxu0 %v303
  %313 = vmatpush.bf16.msra.mxu0 %v302
  %314 = vmatpush.bf16.msra.mxu0 %v301
  %315 = vmatpush.bf16.msra.mxu0 %v300
  %316 = vmatmul.bf16.gmra.mxu0 %v141
  %v317 = vpop.f32.mrf.mxu0
  %v318 = vadd.f32 %v282, %v317
  %v319 = vpop.f32.mrf.mxu0
  %v320 = vadd.f32 %v281, %v319
  %321 = vmatmul.bf16.gmra.mxu0 %v144
  %v322 = vpop.f32.mrf.mxu0
  %v323 = vadd.f32 %v280, %v322
  %v324 = vpop.f32.mrf.mxu0
  %v325 = vadd.f32 %v279, %v324
  %326 = vmatmul.bf16.gmra.mxu0 %v147
  %v327 = vpop.f32.mrf.mxu0
  %v328 = vadd.f32 %v278, %v327
  %v329 = vpop.f32.mrf.mxu0
  %v330 = vadd.f32 %v277, %v329
  %331 = vmatmul.bf16.gmra.mxu0 %v150
  %v332 = vpop.f32.mrf.mxu0
  %v333 = vadd.f32 %v276, %v332
  %v334 = vpop.f32.mrf.mxu0
  %v335 = vadd.f32 %v275, %v334
  %336 = vmatmul.bf16.gmra.mxu0 %v153
  %v337 = vpop.f32.mrf.mxu0
  %v338 = vadd.f32 %v274, %v337
  %v339 = vpop.f32.mrf.mxu0
  %v340 = vadd.f32 %v273, %v339
  %341 = vmatmul.bf16.gmra.mxu0 %v156
  %v342 = vpop.f32.mrf.mxu0
  %v343 = vadd.f32 %v272, %v342
  %v344 = vpop.f32.mrf.mxu0
  %v345 = vadd.f32 %v271, %v344
  %346 = vmatmul.bf16.gmra.mxu0 %v159
  %v347 = vpop.f32.mrf.mxu0
  %v348 = vadd.f32 %v270, %v347
  %v349 = vpop.f32.mrf.mxu0
  %v350 = vadd.f32 %v269, %v349
  %351 = vmatmul.bf16.gmra.mxu0 %v162
  %v352 = vpop.f32.mrf.mxu0
  %v353 = vadd.f32 %v268, %v352
  %v354 = vpop.f32.mrf.mxu0
  %v355 = vadd.f32 %v267, %v354
  %356 = vmatmul.bf16.gmra.mxu0 %v165
  %v357 = vpop.f32.mrf.mxu0
  %v358 = vadd.f32 %v266, %v357
  %v359 = vpop.f32.mrf.mxu0
  %v360 = vadd.f32 %v265, %v359
  %361 = vmatmul.bf16.gmra.mxu0 %v168
  %v362 = vpop.f32.mrf.mxu0
  %v363 = vadd.f32 %v264, %v362
  %v364 = vpop.f32.mrf.mxu0
  %v365 = vadd.f32 %v263, %v364
  %366 = vmatmul.bf16.gmra.mxu0 %v171
  %v367 = vpop.f32.mrf.mxu0
  %v368 = vadd.f32 %v262, %v367
  %v369 = vpop.f32.mrf.mxu0
  %v370 = vadd.f32 %v283, %v369
  %371 = vdwg.mxu0
  %s372 = scalar_lea.vmem %s1, 64
  %v373 = vld [vmem:[%s372] sm:$0xf]
  %v374 = vld [vmem:[%s372 + $0x4] sm:$0xf]
  %v375 = vld [vmem:[%s372 + $0x8] sm:$0xf]
  %v376 = vld [vmem:[%s372 + $0xc] sm:$0xf]
  %v377 = vld [vmem:[%s372 + $0x10] sm:$0xf]
  %v378 = vld [vmem:[%s372 + $0x14] sm:$0xf]
  %v379 = vld [vmem:[%s372 + $0x18] sm:$0xf]
  %v380 = vld [vmem:[%s372 + $0x1c] sm:$0xf]
  %v389 = vunpack.c.l.b16 %v373
  %v390 = vunpack.c.l.b16 %v374
  %v391 = vunpack.c.l.b16 %v375
  %v392 = vunpack.c.l.b16 %v376
  %v393 = vunpack.c.l.b16 %v377
  %v394 = vunpack.c.l.b16 %v378
  %v395 = vunpack.c.l.b16 %v379
  %v396 = vunpack.c.l.b16 %v380
  %v397 = vpack.c.b16 %v390, %v389
  %v398 = vpack.c.b16 %v392, %v391
  %v399 = vpack.c.b16 %v394, %v393
  %v400 = vpack.c.b16 %v396, %v395
  %405 = vmatpush.bf16.msra.mxu0 0
  %406 = vmatpush.bf16.msra.mxu0 0
  %407 = vmatpush.bf16.msra.mxu0 0
  %408 = vmatpush.bf16.msra.mxu0 0
  %409 = vmatpush.bf16.msra.mxu0 %v400
  %410 = vmatpush.bf16.msra.mxu0 %v399
  %411 = vmatpush.bf16.msra.mxu0 %v398
  %412 = vmatpush.bf16.msra.mxu0 %v397
  %413 = vmatmul.bf16.gmra.mxu0 %v141
  %v414 = vpop.f32.mrf.mxu0
  %v415 = vadd.f32 0.0, %v414
  %v416 = vpop.f32.mrf.mxu0
  %v417 = vadd.f32 0.0, %v416
  %418 = vmatmul.bf16.gmra.mxu0 %v144
  %v419 = vpop.f32.mrf.mxu0
  %v420 = vadd.f32 0.0, %v419
  %v421 = vpop.f32.mrf.mxu0
  %v422 = vadd.f32 0.0, %v421
  %423 = vmatmul.bf16.gmra.mxu0 %v147
  %v424 = vpop.f32.mrf.mxu0
  %v425 = vadd.f32 0.0, %v424
  %v426 = vpop.f32.mrf.mxu0
  %v427 = vadd.f32 0.0, %v426
  %428 = vmatmul.bf16.gmra.mxu0 %v150
  %v429 = vpop.f32.mrf.mxu0
  %v430 = vadd.f32 0.0, %v429
  %v431 = vpop.f32.mrf.mxu0
  %v432 = vadd.f32 0.0, %v431
  %433 = vmatmul.bf16.gmra.mxu0 %v153
  %v434 = vpop.f32.mrf.mxu0
  %v435 = vadd.f32 0.0, %v434
  %v436 = vpop.f32.mrf.mxu0
  %v437 = vadd.f32 0.0, %v436
  %438 = vmatmul.bf16.gmra.mxu0 %v156
  %v439 = vpop.f32.mrf.mxu0
  %v440 = vadd.f32 0.0, %v439
  %v441 = vpop.f32.mrf.mxu0
  %v442 = vadd.f32 0.0, %v441
  %443 = vmatmul.bf16.gmra.mxu0 %v159
  %v444 = vpop.f32.mrf.mxu0
  %v445 = vadd.f32 0.0, %v444
  %v446 = vpop.f32.mrf.mxu0
  %v447 = vadd.f32 0.0, %v446
  %448 = vmatmul.bf16.gmra.mxu0 %v162
  %v449 = vpop.f32.mrf.mxu0
  %v450 = vadd.f32 0.0, %v449
  %v451 = vpop.f32.mrf.mxu0
  %v452 = vadd.f32 0.0, %v451
  %453 = vmatmul.bf16.gmra.mxu0 %v165
  %v454 = vpop.f32.mrf.mxu0
  %v455 = vadd.f32 0.0, %v454
  %v456 = vpop.f32.mrf.mxu0
  %v457 = vadd.f32 0.0, %v456
  %458 = vmatmul.bf16.gmra.mxu0 %v168
  %v459 = vpop.f32.mrf.mxu0
  %v460 = vadd.f32 0.0, %v459
  %v461 = vpop.f32.mrf.mxu0
  %v462 = vadd.f32 0.0, %v461
  %463 = vmatmul.bf16.gmra.mxu0 %v171
  %v464 = vpop.f32.mrf.mxu0
  %v465 = vadd.f32 0.0, %v464
  %v466 = vpop.f32.mrf.mxu0
  %v467 = vadd.f32 0.0, %v466
  %468 = vdwg.mxu0
  %v469 = vrot.slane %v415, 1
  %v470 = vrot.slane %v417, 1
  %v471 = vrot.slane %v420, 1
  %v472 = vrot.slane %v422, 1
  %v473 = vrot.slane %v425, 1
  %v474 = vrot.slane %v427, 1
  %v475 = vrot.slane %v430, 1
  %v476 = vrot.slane %v432, 1
  %v477 = vrot.slane %v435, 1
  %v478 = vrot.slane %v437, 1
  %v479 = vrot.slane %v440, 1
  %v480 = vrot.slane %v442, 1
  %v481 = vrot.slane %v445, 1
  %v482 = vrot.slane %v447, 1
  %v483 = vrot.slane %v450, 1
  %v484 = vrot.slane %v452, 1
  %v485 = vrot.slane %v455, 1
  %v486 = vrot.slane %v457, 1
  %v487 = vrot.slane %v460, 1
  %v488 = vrot.slane %v462, 1
  %v489 = vrot.slane %v465, 1
  %v490 = vrot.slane %v467, 1
  %v491 = vsel %vm261, %v489, %v490
  %v492 = vsel %vm261, %v488, %v489
  %v493 = vsel %vm261, %v487, %v488
  %v494 = vsel %vm261, %v486, %v487
  %v495 = vsel %vm261, %v485, %v486
  %v496 = vsel %vm261, %v484, %v485
  %v497 = vsel %vm261, %v483, %v484
  %v498 = vsel %vm261, %v482, %v483
  %v499 = vsel %vm261, %v481, %v482
  %v500 = vsel %vm261, %v480, %v481
  %v501 = vsel %vm261, %v479, %v480
  %v502 = vsel %vm261, %v478, %v479
  %v503 = vsel %vm261, %v477, %v478
  %v504 = vsel %vm261, %v476, %v477
  %v505 = vsel %vm261, %v475, %v476
  %v506 = vsel %vm261, %v474, %v475
  %v507 = vsel %vm261, %v473, %v474
  %v508 = vsel %vm261, %v472, %v473
  %v509 = vsel %vm261, %v471, %v472
  %v510 = vsel %vm261, %v470, %v471
  %v511 = vsel %vm261, %v469, %v470
  %v512 = vsel %vm261, %v490, %v469
  %v513 = vadd.f32 %v318, %v510
  %v514 = vadd.f32 %v320, %v509
  %v515 = vadd.f32 %v323, %v508
  %v516 = vadd.f32 %v325, %v507
  %v517 = vadd.f32 %v328, %v506
  %v518 = vadd.f32 %v330, %v505
  %v519 = vadd.f32 %v333, %v504
  %v520 = vadd.f32 %v335, %v503
  %v521 = vadd.f32 %v338, %v502
  %v522 = vadd.f32 %v340, %v501
  %v523 = vadd.f32 %v343, %v500
  %v524 = vadd.f32 %v345, %v499
  %v525 = vadd.f32 %v348, %v498
  %v526 = vadd.f32 %v350, %v497
  %v527 = vadd.f32 %v353, %v496
  %v528 = vadd.f32 %v355, %v495
  %v529 = vadd.f32 %v358, %v494
  %v530 = vadd.f32 %v360, %v493
  %v531 = vadd.f32 %v363, %v492
  %v532 = vadd.f32 %v365, %v491
  %v533 = vadd.f32 %v368, %v512
  %v534 = vadd.f32 %v370, %v511
  %s535 = scalar_lea.vmem %s1, 96
  %v536 = vld [vmem:[%s535] sm:$0xf]
  %v537 = vld [vmem:[%s535 + $0x4] sm:$0xf]
  %v538 = vld [vmem:[%s535 + $0x8] sm:$0xf]
  %v539 = vld [vmem:[%s535 + $0xc] sm:$0xf]
  %v540 = vld [vmem:[%s535 + $0x10] sm:$0xf]
  %v541 = vld [vmem:[%s535 + $0x14] sm:$0xf]
  %v542 = vld [vmem:[%s535 + $0x18] sm:$0xf]
  %v543 = vld [vmem:[%s535 + $0x1c] sm:$0xf]
  %v552 = vunpack.c.l.b16 %v536
  %v553 = vunpack.c.l.b16 %v537
  %v554 = vunpack.c.l.b16 %v538
  %v555 = vunpack.c.l.b16 %v539
  %v556 = vunpack.c.l.b16 %v540
  %v557 = vunpack.c.l.b16 %v541
  %v558 = vunpack.c.l.b16 %v542
  %v559 = vunpack.c.l.b16 %v543
  %v560 = vpack.c.b16 %v553, %v552
  %v561 = vpack.c.b16 %v555, %v554
  %v562 = vpack.c.b16 %v557, %v556
  %v563 = vpack.c.b16 %v559, %v558
  %568 = vmatpush.bf16.msra.mxu0 0
  %569 = vmatpush.bf16.msra.mxu0 0
  %570 = vmatpush.bf16.msra.mxu0 0
  %571 = vmatpush.bf16.msra.mxu0 0
  %572 = vmatpush.bf16.msra.mxu0 %v563
  %573 = vmatpush.bf16.msra.mxu0 %v562
  %574 = vmatpush.bf16.msra.mxu0 %v561
  %575 = vmatpush.bf16.msra.mxu0 %v560
  %576 = vmatmul.bf16.gmra.mxu0 %v141
  %v577 = vpop.f32.mrf.mxu0
  %v578 = vadd.f32 0.0, %v577
  %v579 = vpop.f32.mrf.mxu0
  %v580 = vadd.f32 0.0, %v579
  %581 = vmatmul.bf16.gmra.mxu0 %v144
  %v582 = vpop.f32.mrf.mxu0
  %v583 = vadd.f32 0.0, %v582
  %v584 = vpop.f32.mrf.mxu0
  %v585 = vadd.f32 0.0, %v584
  %586 = vmatmul.bf16.gmra.mxu0 %v147
  %v587 = vpop.f32.mrf.mxu0
  %v588 = vadd.f32 0.0, %v587
  %v589 = vpop.f32.mrf.mxu0
  %v590 = vadd.f32 0.0, %v589
  %591 = vmatmul.bf16.gmra.mxu0 %v150
  %v592 = vpop.f32.mrf.mxu0
  %v593 = vadd.f32 0.0, %v592
  %v594 = vpop.f32.mrf.mxu0
  %v595 = vadd.f32 0.0, %v594
  %596 = vmatmul.bf16.gmra.mxu0 %v153
  %v597 = vpop.f32.mrf.mxu0
  %v598 = vadd.f32 0.0, %v597
  %v599 = vpop.f32.mrf.mxu0
  %v600 = vadd.f32 0.0, %v599
  %601 = vmatmul.bf16.gmra.mxu0 %v156
  %v602 = vpop.f32.mrf.mxu0
  %v603 = vadd.f32 0.0, %v602
  %v604 = vpop.f32.mrf.mxu0
  %v605 = vadd.f32 0.0, %v604
  %606 = vmatmul.bf16.gmra.mxu0 %v159
  %v607 = vpop.f32.mrf.mxu0
  %v608 = vadd.f32 0.0, %v607
  %v609 = vpop.f32.mrf.mxu0
  %v610 = vadd.f32 0.0, %v609
  %611 = vmatmul.bf16.gmra.mxu0 %v162
  %v612 = vpop.f32.mrf.mxu0
  %v613 = vadd.f32 0.0, %v612
  %v614 = vpop.f32.mrf.mxu0
  %v615 = vadd.f32 0.0, %v614
  %616 = vmatmul.bf16.gmra.mxu0 %v165
  %v617 = vpop.f32.mrf.mxu0
  %v618 = vadd.f32 0.0, %v617
  %v619 = vpop.f32.mrf.mxu0
  %v620 = vadd.f32 0.0, %v619
  %621 = vmatmul.bf16.gmra.mxu0 %v168
  %v622 = vpop.f32.mrf.mxu0
  %v623 = vadd.f32 0.0, %v622
  %v624 = vpop.f32.mrf.mxu0
  %v625 = vadd.f32 0.0, %v624
  %626 = vmatmul.bf16.gmra.mxu0 %v171
  %v627 = vpop.f32.mrf.mxu0
  %v628 = vadd.f32 0.0, %v627
  %v629 = vpop.f32.mrf.mxu0
  %v630 = vadd.f32 0.0, %v629
  %631 = vdwg.mxu0
  %v632 = vrot.slane %v578, 2
  %v633 = vrot.slane %v580, 2
  %v634 = vrot.slane %v583, 2
  %v635 = vrot.slane %v585, 2
  %v636 = vrot.slane %v588, 2
  %v637 = vrot.slane %v590, 2
  %v638 = vrot.slane %v593, 2
  %v639 = vrot.slane %v595, 2
  %v640 = vrot.slane %v598, 2
  %v641 = vrot.slane %v600, 2
  %v642 = vrot.slane %v603, 2
  %v643 = vrot.slane %v605, 2
  %v644 = vrot.slane %v608, 2
  %v645 = vrot.slane %v610, 2
  %v646 = vrot.slane %v613, 2
  %v647 = vrot.slane %v615, 2
  %v648 = vrot.slane %v618, 2
  %v649 = vrot.slane %v620, 2
  %v650 = vrot.slane %v623, 2
  %v651 = vrot.slane %v625, 2
  %v652 = vrot.slane %v628, 2
  %v653 = vrot.slane %v630, 2
  %vm654 = vcmp.lt.s32.totalorder %v260, 6
  %v655 = vsel %vm654, %v652, %v653
  %v656 = vsel %vm654, %v651, %v652
  %v657 = vsel %vm654, %v650, %v651
  %v658 = vsel %vm654, %v649, %v650
  %v659 = vsel %vm654, %v648, %v649
  %v660 = vsel %vm654, %v647, %v648
  %v661 = vsel %vm654, %v646, %v647
  %v662 = vsel %vm654, %v645, %v646
  %v663 = vsel %vm654, %v644, %v645
  %v664 = vsel %vm654, %v643, %v644
  %v665 = vsel %vm654, %v642, %v643
  %v666 = vsel %vm654, %v641, %v642
  %v667 = vsel %vm654, %v640, %v641
  %v668 = vsel %vm654, %v639, %v640
  %v669 = vsel %vm654, %v638, %v639
  %v670 = vsel %vm654, %v637, %v638
  %v671 = vsel %vm654, %v636, %v637
  %v672 = vsel %vm654, %v635, %v636
  %v673 = vsel %vm654, %v634, %v635
  %v674 = vsel %vm654, %v633, %v634
  %v675 = vsel %vm654, %v632, %v633
  %v676 = vsel %vm654, %v653, %v632
  %v677 = vadd.f32 %v513, %v674
  %v678 = vadd.f32 %v514, %v673
  %v679 = vadd.f32 %v515, %v672
  %v680 = vadd.f32 %v516, %v671
  %v681 = vadd.f32 %v517, %v670
  %v682 = vadd.f32 %v518, %v669
  %v683 = vadd.f32 %v519, %v668
  %v684 = vadd.f32 %v520, %v667
  %v685 = vadd.f32 %v521, %v666
  %v686 = vadd.f32 %v522, %v665
  %v687 = vadd.f32 %v523, %v664
  %v688 = vadd.f32 %v524, %v663
  %v689 = vadd.f32 %v525, %v662
  %v690 = vadd.f32 %v526, %v661
  %v691 = vadd.f32 %v527, %v660
  %v692 = vadd.f32 %v528, %v659
  %v693 = vadd.f32 %v529, %v658
  %v694 = vadd.f32 %v530, %v657
  %v695 = vadd.f32 %v531, %v656
  %v696 = vadd.f32 %v532, %v655
  %v697 = vadd.f32 %v533, %v676
  %v698 = vadd.f32 %v534, %v675
  %v699 = vld [vmem:[%s2] sm:$0x1]
  %v701 = vperm.slane %v699, 0
  %v703 = vadd.f32 %v677, %v701
  %v704 = vadd.f32 %v678, %v701
  %v705 = vadd.f32 %v679, %v701
  %v706 = vadd.f32 %v680, %v701
  %v707 = vadd.f32 %v681, %v701
  %v708 = vadd.f32 %v682, %v701
  %v709 = vadd.f32 %v683, %v701
  %v710 = vadd.f32 %v684, %v701
  %v711 = vadd.f32 %v685, %v701
  %v712 = vadd.f32 %v686, %v701
  %v713 = vadd.f32 %v687, %v701
  %v714 = vadd.f32 %v688, %v701
  %v715 = vadd.f32 %v689, %v701
  %v716 = vadd.f32 %v690, %v701
  %v717 = vadd.f32 %v691, %v701
  %v718 = vadd.f32 %v692, %v701
  %v719 = vadd.f32 %v693, %v701
  %v720 = vadd.f32 %v694, %v701
  %v721 = vadd.f32 %v695, %v701
  %v722 = vadd.f32 %v696, %v701
  %v723 = vadd.f32 %v697, %v701
  %v724 = vadd.f32 %v698, %v701
  %v725 = vld [vmem:[%s3] sm:$0xff]
  %v726 = vld [vmem:[%s3 + $0x8] sm:$0xff]
  %v727 = vld [vmem:[%s3 + $0x10] sm:$0xff]
  %v728 = vld [vmem:[%s3 + $0x18] sm:$0xff]
  %v729 = vld [vmem:[%s3 + $0x20] sm:$0xff]
  %v730 = vld [vmem:[%s3 + $0x28] sm:$0xff]
  %v731 = vld [vmem:[%s3 + $0x30] sm:$0xff]
  %v732 = vld [vmem:[%s3 + $0x38] sm:$0xff]
  %v733 = vld [vmem:[%s3 + $0x40] sm:$0xff]
  %v734 = vld [vmem:[%s3 + $0x48] sm:$0xff]
  %v735 = vld [vmem:[%s3 + $0x50] sm:$0xff]
  %v736 = vld [vmem:[%s3 + $0x58] sm:$0xff]
  %v737 = vld [vmem:[%s3 + $0x60] sm:$0xff]
  %v738 = vld [vmem:[%s3 + $0x68] sm:$0xff]
  %v739 = vld [vmem:[%s3 + $0x70] sm:$0xff]
  %v740 = vld [vmem:[%s3 + $0x78] sm:$0xff]
  %v741 = vld [vmem:[%s3 + $0x80] sm:$0xff]
  %v742 = vld [vmem:[%s3 + $0x88] sm:$0xff]
  %v743 = vld [vmem:[%s3 + $0x90] sm:$0xff]
  %v744 = vld [vmem:[%s3 + $0x98] sm:$0xff]
  %v745 = vld [vmem:[%s3 + $0xa0] sm:$0xff]
  %v746 = vld [vmem:[%s3 + $0xa8] sm:$0xff]
  %748 = vset.pattern.permute.xlu0 0
  %749 = vperm.xlu0 %748, %v725
  %v750 = vpop.permute.xlu0 %749
  %753 = vset.pattern.permute.xlu0 0
  %754 = vperm.xlu0 %753, %v726
  %v755 = vpop.permute.xlu0 %754
  %758 = vset.pattern.permute.xlu0 0
  %759 = vperm.xlu0 %758, %v727
  %v760 = vpop.permute.xlu0 %759
  %763 = vset.pattern.permute.xlu0 0
  %764 = vperm.xlu0 %763, %v728
  %v765 = vpop.permute.xlu0 %764
  %768 = vset.pattern.permute.xlu0 0
  %769 = vperm.xlu0 %768, %v729
  %v770 = vpop.permute.xlu0 %769
  %773 = vset.pattern.permute.xlu0 0
  %774 = vperm.xlu0 %773, %v730
  %v775 = vpop.permute.xlu0 %774
  %778 = vset.pattern.permute.xlu0 0
  %779 = vperm.xlu0 %778, %v731
  %v780 = vpop.permute.xlu0 %779
  %783 = vset.pattern.permute.xlu0 0
  %784 = vperm.xlu0 %783, %v732
  %v785 = vpop.permute.xlu0 %784
  %788 = vset.pattern.permute.xlu0 0
  %789 = vperm.xlu0 %788, %v733
  %v790 = vpop.permute.xlu0 %789
  %793 = vset.pattern.permute.xlu0 0
  %794 = vperm.xlu0 %793, %v734
  %v795 = vpop.permute.xlu0 %794
  %798 = vset.pattern.permute.xlu0 0
  %799 = vperm.xlu0 %798, %v735
  %v800 = vpop.permute.xlu0 %799
  %803 = vset.pattern.permute.xlu0 0
  %804 = vperm.xlu0 %803, %v736
  %v805 = vpop.permute.xlu0 %804
  %808 = vset.pattern.permute.xlu0 0
  %809 = vperm.xlu0 %808, %v737
  %v810 = vpop.permute.xlu0 %809
  %813 = vset.pattern.permute.xlu0 0
  %814 = vperm.xlu0 %813, %v738
  %v815 = vpop.permute.xlu0 %814
  %818 = vset.pattern.permute.xlu0 0
  %819 = vperm.xlu0 %818, %v739
  %v820 = vpop.permute.xlu0 %819
  %823 = vset.pattern.permute.xlu0 0
  %824 = vperm.xlu0 %823, %v740
  %v825 = vpop.permute.xlu0 %824
  %828 = vset.pattern.permute.xlu0 0
  %829 = vperm.xlu0 %828, %v741
  %v830 = vpop.permute.xlu0 %829
  %833 = vset.pattern.permute.xlu0 0
  %834 = vperm.xlu0 %833, %v742
  %v835 = vpop.permute.xlu0 %834
  %838 = vset.pattern.permute.xlu0 0
  %839 = vperm.xlu0 %838, %v743
  %v840 = vpop.permute.xlu0 %839
  %843 = vset.pattern.permute.xlu0 0
  %844 = vperm.xlu0 %843, %v744
  %v845 = vpop.permute.xlu0 %844
  %848 = vset.pattern.permute.xlu0 0
  %849 = vperm.xlu0 %848, %v745
  %v850 = vpop.permute.xlu0 %849
  %853 = vset.pattern.permute.xlu0 0
  %854 = vperm.xlu0 %853, %v746
  %v855 = vpop.permute.xlu0 %854
  %v857 = vmul.f32 %v703, %v750
  %v858 = vmul.f32 %v704, %v755
  %v859 = vmul.f32 %v705, %v760
  %v860 = vmul.f32 %v706, %v765
  %v861 = vmul.f32 %v707, %v770
  %v862 = vmul.f32 %v708, %v775
  %v863 = vmul.f32 %v709, %v780
  %v864 = vmul.f32 %v710, %v785
  %v865 = vmul.f32 %v711, %v790
  %v866 = vmul.f32 %v712, %v795
  %v867 = vmul.f32 %v713, %v800
  %v868 = vmul.f32 %v714, %v805
  %v869 = vmul.f32 %v715, %v810
  %v870 = vmul.f32 %v716, %v815
  %v871 = vmul.f32 %v717, %v820
  %v872 = vmul.f32 %v718, %v825
  %v873 = vmul.f32 %v719, %v830
  %v874 = vmul.f32 %v720, %v835
  %v875 = vmul.f32 %v721, %v840
  %v876 = vmul.f32 %v722, %v845
  %v877 = vmul.f32 %v723, %v850
  %v878 = vmul.f32 %v724, %v855
  %v879 = vadd.f32 %v857, %v858
  %v880 = vadd.f32 %v879, %v859
  %v881 = vadd.f32 %v880, %v860
  %v882 = vadd.f32 %v881, %v861
  %v883 = vadd.f32 %v882, %v862
  %v884 = vadd.f32 %v883, %v863
  %v885 = vadd.f32 %v884, %v864
  %v886 = vadd.f32 %v885, %v865
  %v887 = vadd.f32 %v886, %v866
  %v888 = vadd.f32 %v887, %v867
  %v889 = vadd.f32 %v888, %v868
  %v890 = vadd.f32 %v889, %v869
  %v891 = vadd.f32 %v890, %v870
  %v892 = vadd.f32 %v891, %v871
  %v893 = vadd.f32 %v892, %v872
  %v894 = vadd.f32 %v893, %v873
  %v895 = vadd.f32 %v894, %v874
  %v896 = vadd.f32 %v895, %v875
  %v897 = vadd.f32 %v896, %v876
  %v898 = vadd.f32 %v897, %v877
  %v899 = vadd.f32 %v898, %v878
  %v900 = vrot.slane %v899, 4
  %v901 = vadd.f32 %v899, %v900
  %v902 = vrot.slane %v901, 2
  %v903 = vadd.f32 %v901, %v902
  %v904 = vrot.slane %v903, 1
  %v905 = vadd.f32 %v903, %v904
  %906 = vst [vmem:[%s5] sm:$0xff] %v905
  %v907 = vmul.f32 %v703, %v857
  %v908 = vmul.f32 %v704, %v858
  %v909 = vmul.f32 %v705, %v859
  %v910 = vmul.f32 %v706, %v860
  %v911 = vmul.f32 %v707, %v861
  %v912 = vmul.f32 %v708, %v862
  %v913 = vmul.f32 %v709, %v863
  %v914 = vmul.f32 %v710, %v864
  %v915 = vmul.f32 %v711, %v865
  %v916 = vmul.f32 %v712, %v866
  %v917 = vmul.f32 %v713, %v867
  %v918 = vmul.f32 %v714, %v868
  %v919 = vmul.f32 %v715, %v869
  %v920 = vmul.f32 %v716, %v870
  %v921 = vmul.f32 %v717, %v871
  %v922 = vmul.f32 %v718, %v872
  %v923 = vmul.f32 %v719, %v873
  %v924 = vmul.f32 %v720, %v874
  %v925 = vmul.f32 %v721, %v875
  %v926 = vmul.f32 %v722, %v876
  %v927 = vmul.f32 %v723, %v877
  %v928 = vmul.f32 %v724, %v878
  %v929 = vadd.f32 %v907, %v908
  %v930 = vadd.f32 %v929, %v909
  %v931 = vadd.f32 %v930, %v910
  %v932 = vadd.f32 %v931, %v911
  %v933 = vadd.f32 %v932, %v912
  %v934 = vadd.f32 %v933, %v913
  %v935 = vadd.f32 %v934, %v914
  %v936 = vadd.f32 %v935, %v915
  %v937 = vadd.f32 %v936, %v916
  %v938 = vadd.f32 %v937, %v917
  %v939 = vadd.f32 %v938, %v918
  %v940 = vadd.f32 %v939, %v919
  %v941 = vadd.f32 %v940, %v920
  %v942 = vadd.f32 %v941, %v921
  %v943 = vadd.f32 %v942, %v922
  %v944 = vadd.f32 %v943, %v923
  %v945 = vadd.f32 %v944, %v924
  %v946 = vadd.f32 %v945, %v925
  %v947 = vadd.f32 %v946, %v926
  %v948 = vadd.f32 %v947, %v927
  %v949 = vadd.f32 %v948, %v928
  %v950 = vrot.slane %v949, 4
  %v951 = vadd.f32 %v949, %v950
  %v952 = vrot.slane %v951, 2
  %v953 = vadd.f32 %v951, %v952
  %v954 = vrot.slane %v953, 1
  %v955 = vadd.f32 %v953, %v954
  %956 = vst [vmem:[%s6] sm:$0xff] %v955
  %v957 = vpack.c.bf16 %v703, %v703
  %v958 = vpack.c.bf16 %v704, %v704
  %v959 = vpack.c.bf16 %v705, %v705
  %v960 = vpack.c.bf16 %v706, %v706
  %v961 = vpack.c.bf16 %v707, %v707
  %v962 = vpack.c.bf16 %v708, %v708
  %v963 = vpack.c.bf16 %v709, %v709
  %v964 = vpack.c.bf16 %v710, %v710
  %v965 = vpack.c.bf16 %v711, %v711
  %v966 = vpack.c.bf16 %v712, %v712
  %v967 = vpack.c.bf16 %v713, %v713
  %v968 = vpack.c.bf16 %v714, %v714
  %v969 = vpack.c.bf16 %v715, %v715
  %v970 = vpack.c.bf16 %v716, %v716
  %v971 = vpack.c.bf16 %v717, %v717
  %v972 = vpack.c.bf16 %v718, %v718
  %v973 = vpack.c.bf16 %v719, %v719
  %v974 = vpack.c.bf16 %v720, %v720
  %v975 = vpack.c.bf16 %v721, %v721
  %v976 = vpack.c.bf16 %v722, %v722
  %v977 = vpack.c.bf16 %v723, %v723
  %v978 = vpack.c.bf16 %v724, %v724
  %979 = vst [vmem:[%s4] sm:$0xf] %v957
  %980 = vst [vmem:[%s4 + $0x4] sm:$0xf] %v958
  %981 = vst [vmem:[%s4 + $0x8] sm:$0xf] %v959
  %982 = vst [vmem:[%s4 + $0xc] sm:$0xf] %v960
  %983 = vst [vmem:[%s4 + $0x10] sm:$0xf] %v961
  %984 = vst [vmem:[%s4 + $0x14] sm:$0xf] %v962
  %985 = vst [vmem:[%s4 + $0x18] sm:$0xf] %v963
  %986 = vst [vmem:[%s4 + $0x1c] sm:$0xf] %v964
  %987 = vst [vmem:[%s4 + $0x20] sm:$0xf] %v965
  %988 = vst [vmem:[%s4 + $0x24] sm:$0xf] %v966
  %989 = vst [vmem:[%s4 + $0x28] sm:$0xf] %v967
  %990 = vst [vmem:[%s4 + $0x2c] sm:$0xf] %v968
  %991 = vst [vmem:[%s4 + $0x30] sm:$0xf] %v969
  %992 = vst [vmem:[%s4 + $0x34] sm:$0xf] %v970
  %993 = vst [vmem:[%s4 + $0x38] sm:$0xf] %v971
  %994 = vst [vmem:[%s4 + $0x3c] sm:$0xf] %v972
  %995 = vst [vmem:[%s4 + $0x40] sm:$0xf] %v973
  %996 = vst [vmem:[%s4 + $0x44] sm:$0xf] %v974
  %997 = vst [vmem:[%s4 + $0x48] sm:$0xf] %v975
  %998 = vst [vmem:[%s4 + $0x4c] sm:$0xf] %v976
  %999 = vst [vmem:[%s4 + $0x50] sm:$0xf] %v977
  %1000 = vst [vmem:[%s4 + $0x54] sm:$0xf] %v978
  // Predicated region
  $region18: #{discriminator_forward.11} parent=0 // pred_check
    _
  $region19: #{discriminator_forward.11} parent=0 // pred_check_branch
    %1002 = sbr.rel (0) target = $region21
  $region20: #{discriminator_forward.11} parent=0 // pred_region
    _
  $region21: #{discriminator_forward.11} parent=0 // pred_fallthru
    _
  // Predicated region
  $region22: #{discriminator_forward.11} parent=0 // pred_check
    _
  $region23: #{discriminator_forward.11} parent=0 // pred_check_branch
    %1004 = sbr.rel (0) target = $region25
  $region24: #{discriminator_forward.11} parent=0 // pred_region
    _
  $region25: #{discriminator_forward.11} parent=0 // pred_fallthru
    _
  // Predicated region
  $region26: #{discriminator_forward.11} parent=0 // pred_check
    _
  $region27: #{discriminator_forward.11} parent=0 // pred_check_branch
    %1006 = sbr.rel (0) target = $region29
  $region28: #{discriminator_forward.11} parent=0 // pred_region
    _
  $region29: #{discriminator_forward.11} parent=0 // pred_fallthru
    _
  // Predicated region
  $region30: #{discriminator_forward.11} parent=0 // pred_check
    _
  $region31: #{discriminator_forward.11} parent=0 // pred_check_branch
    %1008 = sbr.rel (0) target = $region33
  $region32: #{discriminator_forward.11} parent=0 // pred_region
    _
  $region33: #{discriminator_forward.11} parent=0 // pred_fallthru
    _
  // Predicated region
  $region34: #{discriminator_forward.11} parent=0 // pred_check
    _
  $region35: #{discriminator_forward.11} parent=0 // pred_check_branch
    %1010 = sbr.rel (0) target = $region37
  $region36: #{discriminator_forward.11} parent=0 // pred_region
    _
  $region37: #{discriminator_forward.11} parent=0 // pred_fallthru
    _
  // Predicated region
  $region38: #{discriminator_forward.11} parent=0 // pred_check
    _
  $region39: #{discriminator_forward.11} parent=0 // pred_check_branch
    %1012 = sbr.rel (0) target = $region41
  $region40: #{discriminator_forward.11} parent=0 // pred_region
    _
  $region41: #{discriminator_forward.11} parent=0 // pred_fallthru
    _

// kernel: discriminator_forward.14
$region0: #{discriminator_forward.14}
  #allocation0 [shape = 'u32[]', space=smem, size = 0x4, offset = 0x4, fixed_abs, tag = 'smem constant byte address 0x4 - core index']
  #allocation1 [shape = 'u32[72,128]{1,0:T(1,128)}', space=vmem, size = 0x9000, scoped, tag = 'internal scratch']
  %s0 = inlined_call_operand.vmem [shape: bf16[64,128], index: 0, kind: input, shape index: {}]
  %s1 = inlined_call_operand.vmem [shape: f32[1,128], index: 1, kind: input, shape index: {}]
  %s2 = inlined_call_operand.vmem [shape: f32[1,128], index: 2, kind: input, shape index: {}]
  %s3 = inlined_call_operand.vmem [shape: bf16[64,128], index: 3, kind: output, shape index: {}]
  %s4 = sld [smem:[#allocation0]]
  $region22: #{discriminator_forward.14} parent=0
    _
  %s6 = ssub.s32 1, %s4
  %s7 = scalar_select 0, %s6, %s4
  // Predicated region
  $region2: #{discriminator_forward.14} parent=0 // pred_check
    _
  $region3: #{discriminator_forward.14} parent=0 // pred_check_branch
    %9 = sbr.rel (0) target = $region5
  $region4: #{discriminator_forward.14} parent=0 // pred_region
    _
  $region5: #{discriminator_forward.14} parent=0 // pred_fallthru
    _
  // Predicated region
  $region6: #{discriminator_forward.14} parent=0 // pred_check
    _
  $region7: #{discriminator_forward.14} parent=0 // pred_check_branch
    %11 = sbr.rel (0) target = $region9
  $region8: #{discriminator_forward.14} parent=0 // pred_region
    _
  $region9: #{discriminator_forward.14} parent=0 // pred_fallthru
    _
  // Predicated region
  $region10: #{discriminator_forward.14} parent=0 // pred_check
    _
  $region11: #{discriminator_forward.14} parent=0 // pred_check_branch
    %13 = sbr.rel (0) target = $region13
  $region12: #{discriminator_forward.14} parent=0 // pred_region
    _
  $region13: #{discriminator_forward.14} parent=0 // pred_fallthru
    _
  %v14 = vld [vmem:[%s0] sm:$0xf]
  %v15 = vld [vmem:[%s0 + $0x4] sm:$0xf]
  %v16 = vld [vmem:[%s0 + $0x8] sm:$0xf]
  %v17 = vld [vmem:[%s0 + $0xc] sm:$0xf]
  %v18 = vld [vmem:[%s0 + $0x10] sm:$0xf]
  %v19 = vld [vmem:[%s0 + $0x14] sm:$0xf]
  %v20 = vld [vmem:[%s0 + $0x18] sm:$0xf]
  %v21 = vld [vmem:[%s0 + $0x1c] sm:$0xf]
  %v22 = vunpack.c.l.bf16 %v14
  %v23 = vunpack.c.l.bf16 %v15
  %v24 = vunpack.c.l.bf16 %v16
  %v25 = vunpack.c.l.bf16 %v17
  %v26 = vunpack.c.l.bf16 %v18
  %v27 = vunpack.c.l.bf16 %v19
  %v28 = vunpack.c.l.bf16 %v20
  %v29 = vunpack.c.l.bf16 %v21
  %v30 = vld [vmem:[%s1] sm:$0x1]
  %v32 = vperm.slane %v30, 0
  %v34 = vmul.f32 %v22, %v32
  %v35 = vmul.f32 %v23, %v32
  %v36 = vmul.f32 %v24, %v32
  %v37 = vmul.f32 %v25, %v32
  %v38 = vmul.f32 %v26, %v32
  %v39 = vmul.f32 %v27, %v32
  %v40 = vmul.f32 %v28, %v32
  %v41 = vmul.f32 %v29, %v32
  %v42 = vld [vmem:[%s2] sm:$0x1]
  %v44 = vperm.slane %v42, 0
  %v46 = vadd.f32 %v34, %v44
  %v47 = vadd.f32 %v35, %v44
  %v48 = vadd.f32 %v36, %v44
  %v49 = vadd.f32 %v37, %v44
  %v50 = vadd.f32 %v38, %v44
  %v51 = vadd.f32 %v39, %v44
  %v52 = vadd.f32 %v40, %v44
  %v53 = vadd.f32 %v41, %v44
  %vm54 = vcmp.ge.f32.partialorder %v46, 0.0
  %vm55 = vcmp.ge.f32.partialorder %v47, 0.0
  %vm56 = vcmp.ge.f32.partialorder %v48, 0.0
  %vm57 = vcmp.ge.f32.partialorder %v49, 0.0
  %vm58 = vcmp.ge.f32.partialorder %v50, 0.0
  %vm59 = vcmp.ge.f32.partialorder %v51, 0.0
  %vm60 = vcmp.ge.f32.partialorder %v52, 0.0
  %vm61 = vcmp.ge.f32.partialorder %v53, 0.0
  %v62 = vmul.f32 %v46, 0.2
  %v63 = vmul.f32 %v47, 0.2
  %v64 = vmul.f32 %v48, 0.2
  %v65 = vmul.f32 %v49, 0.2
  %v66 = vmul.f32 %v50, 0.2
  %v67 = vmul.f32 %v51, 0.2
  %v68 = vmul.f32 %v52, 0.2
  %v69 = vmul.f32 %v53, 0.2
  %v70 = vsel %vm54, %v46, %v62
  %v71 = vsel %vm55, %v47, %v63
  %v72 = vsel %vm56, %v48, %v64
  %v73 = vsel %vm57, %v49, %v65
  %v74 = vsel %vm58, %v50, %v66
  %v75 = vsel %vm59, %v51, %v67
  %v76 = vsel %vm60, %v52, %v68
  %v77 = vsel %vm61, %v53, %v69
  %v78 = vpack.c.bf16 %v70, %v70
  %v79 = vpack.c.bf16 %v71, %v71
  %v80 = vpack.c.bf16 %v72, %v72
  %v81 = vpack.c.bf16 %v73, %v73
  %v82 = vpack.c.bf16 %v74, %v74
  %v83 = vpack.c.bf16 %v75, %v75
  %v84 = vpack.c.bf16 %v76, %v76
  %v85 = vpack.c.bf16 %v77, %v77
  %86 = vst [vmem:[%s3] sm:$0xf] %v78
  %87 = vst [vmem:[%s3 + $0x4] sm:$0xf] %v79
  %88 = vst [vmem:[%s3 + $0x8] sm:$0xf] %v80
  %89 = vst [vmem:[%s3 + $0xc] sm:$0xf] %v81
  %90 = vst [vmem:[%s3 + $0x10] sm:$0xf] %v82
  %91 = vst [vmem:[%s3 + $0x14] sm:$0xf] %v83
  %92 = vst [vmem:[%s3 + $0x18] sm:$0xf] %v84
  %93 = vst [vmem:[%s3 + $0x1c] sm:$0xf] %v85
  // Predicated region
  $region14: #{discriminator_forward.14} parent=0 // pred_check
    _
  $region15: #{discriminator_forward.14} parent=0 // pred_check_branch
    %95 = sbr.rel (0) target = $region17
  $region16: #{discriminator_forward.14} parent=0 // pred_region
    _
  $region17: #{discriminator_forward.14} parent=0 // pred_fallthru
    _
  // Predicated region
  $region18: #{discriminator_forward.14} parent=0 // pred_check
    _
  $region19: #{discriminator_forward.14} parent=0 // pred_check_branch
    %97 = sbr.rel (0) target = $region21
  $region20: #{discriminator_forward.14} parent=0 // pred_region
    _
  $region21: #{discriminator_forward.14} parent=0 // pred_fallthru
    _

// kernel: discriminator_forward.13
$region0: #{discriminator_forward.13}
  #allocation0 [shape = 'u32[]', space=smem, size = 0x4, offset = 0x4, fixed_abs, tag = 'smem constant byte address 0x4 - core index']
  #allocation1 [shape = 'u32[72,128]{1,0:T(1,128)}', space=vmem, size = 0x9000, scoped, tag = 'internal scratch']
  %s0 = inlined_call_operand.vmem [shape: bf16[64,128], index: 0, kind: input, shape index: {}]
  %s1 = inlined_call_operand.vmem [shape: bf16[4,128,128], index: 1, kind: input, shape index: {}]
  %s2 = inlined_call_operand.vmem [shape: f32[1,128], index: 2, kind: input, shape index: {}]
  %s3 = inlined_call_operand.vmem [shape: f32[64,1], index: 3, kind: input, shape index: {}]
  %s4 = inlined_call_operand.vmem [shape: bf16[64,128], index: 4, kind: output, shape index: {0}]
  %s5 = inlined_call_operand.vmem [shape: f32[8,128], index: 5, kind: output, shape index: {1}]
  %s6 = inlined_call_operand.vmem [shape: f32[8,128], index: 6, kind: output, shape index: {2}]
  %7 = xla_tuple %s4, %s5, %s6
  %s8 = sld [smem:[#allocation0]]
  $region42: #{discriminator_forward.13} parent=0
    _
  %s10 = ssub.s32 1, %s8
  %s11 = scalar_select 0, %s10, %s8
  // Predicated region
  $region2: #{discriminator_forward.13} parent=0 // pred_check
    _
  $region3: #{discriminator_forward.13} parent=0 // pred_check_branch
    %13 = sbr.rel (0) target = $region5
  $region4: #{discriminator_forward.13} parent=0 // pred_region
    _
  $region5: #{discriminator_forward.13} parent=0 // pred_fallthru
    _
  // Predicated region
  $region6: #{discriminator_forward.13} parent=0 // pred_check
    _
  $region7: #{discriminator_forward.13} parent=0 // pred_check_branch
    %15 = sbr.rel (0) target = $region9
  $region8: #{discriminator_forward.13} parent=0 // pred_region
    _
  $region9: #{discriminator_forward.13} parent=0 // pred_fallthru
    _
  // Predicated region
  $region10: #{discriminator_forward.13} parent=0 // pred_check
    _
  $region11: #{discriminator_forward.13} parent=0 // pred_check_branch
    %17 = sbr.rel (0) target = $region13
  $region12: #{discriminator_forward.13} parent=0 // pred_region
    _
  $region13: #{discriminator_forward.13} parent=0 // pred_fallthru
    _
  // Predicated region
  $region14: #{discriminator_forward.13} parent=0 // pred_check
    _
  $region15: #{discriminator_forward.13} parent=0 // pred_check_branch
    %19 = sbr.rel (0) target = $region17
  $region16: #{discriminator_forward.13} parent=0 // pred_region
    _
  $region17: #{discriminator_forward.13} parent=0 // pred_fallthru
    _
  %v20 = vld [vmem:[%s0] sm:$0xf]
  %v21 = vld [vmem:[%s0 + $0x4] sm:$0xf]
  %v22 = vld [vmem:[%s0 + $0x8] sm:$0xf]
  %v23 = vld [vmem:[%s0 + $0xc] sm:$0xf]
  %v24 = vld [vmem:[%s0 + $0x10] sm:$0xf]
  %v25 = vld [vmem:[%s0 + $0x14] sm:$0xf]
  %v26 = vld [vmem:[%s0 + $0x18] sm:$0xf]
  %v27 = vld [vmem:[%s0 + $0x1c] sm:$0xf]
  %v28 = vld [vmem:[%s1] sm:$0xf]
  %v29 = vld [vmem:[%s1 + $0x4] sm:$0xf]
  %v30 = vld [vmem:[%s1 + $0x8] sm:$0xf]
  %v31 = vld [vmem:[%s1 + $0xc] sm:$0xf]
  %v32 = vld [vmem:[%s1 + $0x10] sm:$0xf]
  %v33 = vld [vmem:[%s1 + $0x14] sm:$0xf]
  %v34 = vld [vmem:[%s1 + $0x18] sm:$0xf]
  %v35 = vld [vmem:[%s1 + $0x1c] sm:$0xf]
  %v36 = vld [vmem:[%s1 + $0x20] sm:$0xf]
  %v37 = vld [vmem:[%s1 + $0x24] sm:$0xf]
  %v38 = vld [vmem:[%s1 + $0x28] sm:$0xf]
  %v39 = vld [vmem:[%s1 + $0x2c] sm:$0xf]
  %v40 = vld [vmem:[%s1 + $0x30] sm:$0xf]
  %v41 = vld [vmem:[%s1 + $0x34] sm:$0xf]
  %v42 = vld [vmem:[%s1 + $0x38] sm:$0xf]
  %v43 = vld [vmem:[%s1 + $0x3c] sm:$0xf]
  %s44 = scalar_lea.vmem %s1, 64
  %v45 = vld [vmem:[%s44] sm:$0xf]
  %v46 = vld [vmem:[%s44 + $0x4] sm:$0xf]
  %v47 = vld [vmem:[%s44 + $0x8] sm:$0xf]
  %v48 = vld [vmem:[%s44 + $0xc] sm:$0xf]
  %v49 = vld [vmem:[%s44 + $0x10] sm:$0xf]
  %v50 = vld [vmem:[%s44 + $0x14] sm:$0xf]
  %v51 = vld [vmem:[%s44 + $0x18] sm:$0xf]
  %v52 = vld [vmem:[%s44 + $0x1c] sm:$0xf]
  %v53 = vld [vmem:[%s44 + $0x20] sm:$0xf]
  %v54 = vld [vmem:[%s44 + $0x24] sm:$0xf]
  %v55 = vld [vmem:[%s44 + $0x28] sm:$0xf]
  %v56 = vld [vmem:[%s44 + $0x2c] sm:$0xf]
  %v57 = vld [vmem:[%s44 + $0x30] sm:$0xf]
  %v58 = vld [vmem:[%s44 + $0x34] sm:$0xf]
  %v59 = vld [vmem:[%s44 + $0x38] sm:$0xf]
  %v60 = vld [vmem:[%s44 + $0x3c] sm:$0xf]
  %v69 = vunpack.c.l.b16 %v20
  %v70 = vunpack.c.l.b16 %v21
  %v71 = vunpack.c.l.b16 %v22
  %v72 = vunpack.c.l.b16 %v23
  %v73 = vunpack.c.l.b16 %v24
  %v74 = vunpack.c.l.b16 %v25
  %v75 = vunpack.c.l.b16 %v26
  %v76 = vunpack.c.l.b16 %v27
  %v77 = vpack.c.b16 %v70, %v69
  %v78 = vpack.c.b16 %v72, %v71
  %v79 = vpack.c.b16 %v74, %v73
  %v80 = vpack.c.b16 %v76, %v75
  %v101 = vunpack.c.l.b16 %v45
  %v102 = vunpack.c.l.b16 %v46
  %v103 = vunpack.c.l.b16 %v47
  %v104 = vunpack.c.l.b16 %v48
  %v105 = vunpack.c.l.b16 %v49
  %v106 = vunpack.c.l.b16 %v50
  %v107 = vunpack.c.l.b16 %v51
  %v108 = vunpack.c.l.b16 %v52
  %v109 = vunpack.c.l.b16 %v53
  %v110 = vunpack.c.l.b16 %v54
  %v111 = vunpack.c.l.b16 %v55
  %v112 = vunpack.c.l.b16 %v56
  %v113 = vunpack.c.l.b16 %v57
  %v114 = vunpack.c.l.b16 %v58
  %v115 = vunpack.c.l.b16 %v59
  %v116 = vunpack.c.l.b16 %v60
  %v117 = vpack.c.b16 %v102, %v101
  %v118 = vpack.c.b16 %v104, %v103
  %v119 = vpack.c.b16 %v106, %v105
  %v120 = vpack.c.b16 %v108, %v107
  %v121 = vpack.c.b16 %v110, %v109
  %v122 = vpack.c.b16 %v112, %v111
  %v123 = vpack.c.b16 %v114, %v113
  %v124 = vpack.c.b16 %v116, %v115
  %133 = vmatpush.bf16.msra.mxu0 %v124
  %134 = vmatpush.bf16.msra.mxu0 %v123
  %135 = vmatpush.bf16.msra.mxu0 %v122
  %136 = vmatpush.bf16.msra.mxu0 %v121
  %137 = vmatpush.bf16.msra.mxu0 %v120
  %138 = vmatpush.bf16.msra.mxu0 %v119
  %139 = vmatpush.bf16.msra.mxu0 %v118
  %140 = vmatpush.bf16.msra.mxu0 %v117
  %141 = vmatmul.bf16.gmra.mxu0 %v77
  %v142 = vpop.f32.mrf.mxu0
  %v143 = vadd.f32 0.0, %v142
  %v144 = vpop.f32.mrf.mxu0
  %v145 = vadd.f32 0.0, %v144
  %146 = vmatmul.bf16.gmra.mxu0 %v78
  %v147 = vpop.f32.mrf.mxu0
  %v148 = vadd.f32 0.0, %v147
  %v149 = vpop.f32.mrf.mxu0
  %v150 = vadd.f32 0.0, %v149
  %151 = vmatmul.bf16.gmra.mxu0 %v79
  %v152 = vpop.f32.mrf.mxu0
  %v153 = vadd.f32 0.0, %v152
  %v154 = vpop.f32.mrf.mxu0
  %v155 = vadd.f32 0.0, %v154
  %156 = vmatmul.bf16.gmra.mxu0 %v80
  %v157 = vpop.f32.mrf.mxu0
  %v158 = vadd.f32 0.0, %v157
  %v159 = vpop.f32.mrf.mxu0
  %v160 = vadd.f32 0.0, %v159
  %161 = vdwg.mxu0
  %v162 = vrot.slane %v143, 1
  %v163 = vrot.slane %v145, 1
  %v164 = vrot.slane %v148, 1
  %v165 = vrot.slane %v150, 1
  %v166 = vrot.slane %v153, 1
  %v167 = vrot.slane %v155, 1
  %v168 = vrot.slane %v158, 1
  %v169 = vrot.slane %v160, 1
  %v170 = vlaneseq
  %v171 = vshrl.u32 %v170, 7
  %vm172 = vcmp.lt.s32.totalorder %v171, 7
  %v173 = vsel %vm172, %v168, %v169
  %v174 = vsel %vm172, %v167, %v168
  %v175 = vsel %vm172, %v166, %v167
  %v176 = vsel %vm172, %v165, %v166
  %v177 = vsel %vm172, %v164, %v165
  %v178 = vsel %vm172, %v163, %v164
  %v179 = vsel %vm172, %v162, %v163
  %v180 = vsel %vm172, %v169, %v162
  %v197 = vunpack.c.l.b16 %v28
  %v198 = vunpack.c.l.b16 %v29
  %v199 = vunpack.c.l.b16 %v30
  %v200 = vunpack.c.l.b16 %v31
  %v201 = vunpack.c.l.b16 %v32
  %v202 = vunpack.c.l.b16 %v33
  %v203 = vunpack.c.l.b16 %v34
  %v204 = vunpack.c.l.b16 %v35
  %v205 = vunpack.c.l.b16 %v36
  %v206 = vunpack.c.l.b16 %v37
  %v207 = vunpack.c.l.b16 %v38
  %v208 = vunpack.c.l.b16 %v39
  %v209 = vunpack.c.l.b16 %v40
  %v210 = vunpack.c.l.b16 %v41
  %v211 = vunpack.c.l.b16 %v42
  %v212 = vunpack.c.l.b16 %v43
  %v213 = vpack.c.b16 %v198, %v197
  %v214 = vpack.c.b16 %v200, %v199
  %v215 = vpack.c.b16 %v202, %v201
  %v216 = vpack.c.b16 %v204, %v203
  %v217 = vpack.c.b16 %v206, %v205
  %v218 = vpack.c.b16 %v208, %v207
  %v219 = vpack.c.b16 %v210, %v209
  %v220 = vpack.c.b16 %v212, %v211
  %229 = vmatpush.bf16.msra.mxu0 %v220
  %230 = vmatpush.bf16.msra.mxu0 %v219
  %231 = vmatpush.bf16.msra.mxu0 %v218
  %232 = vmatpush.bf16.msra.mxu0 %v217
  %233 = vmatpush.bf16.msra.mxu0 %v216
  %234 = vmatpush.bf16.msra.mxu0 %v215
  %235 = vmatpush.bf16.msra.mxu0 %v214
  %236 = vmatpush.bf16.msra.mxu0 %v213
  %237 = vmatmul.bf16.gmra.mxu0 %v77
  %v238 = vpop.f32.mrf.mxu0
  %v239 = vadd.f32 %v179, %v238
  %v240 = vpop.f32.mrf.mxu0
  %v241 = vadd.f32 %v178, %v240
  %242 = vmatmul.bf16.gmra.mxu0 %v78
  %v243 = vpop.f32.mrf.mxu0
  %v244 = vadd.f32 %v177, %v243
  %v245 = vpop.f32.mrf.mxu0
  %v246 = vadd.f32 %v176, %v245
  %247 = vmatmul.bf16.gmra.mxu0 %v79
  %v248 = vpop.f32.mrf.mxu0
  %v249 = vadd.f32 %v175, %v248
  %v250 = vpop.f32.mrf.mxu0
  %v251 = vadd.f32 %v174, %v250
  %252 = vmatmul.bf16.gmra.mxu0 %v80
  %v253 = vpop.f32.mrf.mxu0
  %v254 = vadd.f32 %v173, %v253
  %v255 = vpop.f32.mrf.mxu0
  %v256 = vadd.f32 %v180, %v255
  %257 = vdwg.mxu0
  %s258 = scalar_lea.vmem %s1, 128
  %v259 = vld [vmem:[%s258] sm:$0xf]
  %v260 = vld [vmem:[%s258 + $0x4] sm:$0xf]
  %v261 = vld [vmem:[%s258 + $0x8] sm:$0xf]
  %v262 = vld [vmem:[%s258 + $0xc] sm:$0xf]
  %v263 = vld [vmem:[%s258 + $0x10] sm:$0xf]
  %v264 = vld [vmem:[%s258 + $0x14] sm:$0xf]
  %v265 = vld [vmem:[%s258 + $0x18] sm:$0xf]
  %v266 = vld [vmem:[%s258 + $0x1c] sm:$0xf]
  %v267 = vld [vmem:[%s258 + $0x20] sm:$0xf]
  %v268 = vld [vmem:[%s258 + $0x24] sm:$0xf]
  %v269 = vld [vmem:[%s258 + $0x28] sm:$0xf]
  %v270 = vld [vmem:[%s258 + $0x2c] sm:$0xf]
  %v271 = vld [vmem:[%s258 + $0x30] sm:$0xf]
  %v272 = vld [vmem:[%s258 + $0x34] sm:$0xf]
  %v273 = vld [vmem:[%s258 + $0x38] sm:$0xf]
  %v274 = vld [vmem:[%s258 + $0x3c] sm:$0xf]
  %v291 = vunpack.c.l.b16 %v259
  %v292 = vunpack.c.l.b16 %v260
  %v293 = vunpack.c.l.b16 %v261
  %v294 = vunpack.c.l.b16 %v262
  %v295 = vunpack.c.l.b16 %v263
  %v296 = vunpack.c.l.b16 %v264
  %v297 = vunpack.c.l.b16 %v265
  %v298 = vunpack.c.l.b16 %v266
  %v299 = vunpack.c.l.b16 %v267
  %v300 = vunpack.c.l.b16 %v268
  %v301 = vunpack.c.l.b16 %v269
  %v302 = vunpack.c.l.b16 %v270
  %v303 = vunpack.c.l.b16 %v271
  %v304 = vunpack.c.l.b16 %v272
  %v305 = vunpack.c.l.b16 %v273
  %v306 = vunpack.c.l.b16 %v274
  %v307 = vpack.c.b16 %v292, %v291
  %v308 = vpack.c.b16 %v294, %v293
  %v309 = vpack.c.b16 %v296, %v295
  %v310 = vpack.c.b16 %v298, %v297
  %v311 = vpack.c.b16 %v300, %v299
  %v312 = vpack.c.b16 %v302, %v301
  %v313 = vpack.c.b16 %v304, %v303
  %v314 = vpack.c.b16 %v306, %v305
  %323 = vmatpush.bf16.msra.mxu0 %v314
  %324 = vmatpush.bf16.msra.mxu0 %v313
  %325 = vmatpush.bf16.msra.mxu0 %v312
  %326 = vmatpush.bf16.msra.mxu0 %v311
  %327 = vmatpush.bf16.msra.mxu0 %v310
  %328 = vmatpush.bf16.msra.mxu0 %v309
  %329 = vmatpush.bf16.msra.mxu0 %v308
  %330 = vmatpush.bf16.msra.mxu0 %v307
  %331 = vmatmul.bf16.gmra.mxu0 %v77
  %v332 = vpop.f32.mrf.mxu0
  %v333 = vadd.f32 0.0, %v332
  %v334 = vpop.f32.mrf.mxu0
  %v335 = vadd.f32 0.0, %v334
  %336 = vmatmul.bf16.gmra.mxu0 %v78
  %v337 = vpop.f32.mrf.mxu0
  %v338 = vadd.f32 0.0, %v337
  %v339 = vpop.f32.mrf.mxu0
  %v340 = vadd.f32 0.0, %v339
  %341 = vmatmul.bf16.gmra.mxu0 %v79
  %v342 = vpop.f32.mrf.mxu0
  %v343 = vadd.f32 0.0, %v342
  %v344 = vpop.f32.mrf.mxu0
  %v345 = vadd.f32 0.0, %v344
  %346 = vmatmul.bf16.gmra.mxu0 %v80
  %v347 = vpop.f32.mrf.mxu0
  %v348 = vadd.f32 0.0, %v347
  %v349 = vpop.f32.mrf.mxu0
  %v350 = vadd.f32 0.0, %v349
  %351 = vdwg.mxu0
  %v352 = vrot.slane %v333, 5
  %v353 = vrot.slane %v335, 5
  %v354 = vrot.slane %v338, 5
  %v355 = vrot.slane %v340, 5
  %v356 = vrot.slane %v343, 5
  %v357 = vrot.slane %v345, 5
  %v358 = vrot.slane %v348, 5
  %v359 = vrot.slane %v350, 5
  %vm360 = vcmp.lt.s32.totalorder %v171, 3
  %v361 = vsel %vm360, %v358, %v359
  %v362 = vsel %vm360, %v357, %v358
  %v363 = vsel %vm360, %v356, %v357
  %v364 = vsel %vm360, %v355, %v356
  %v365 = vsel %vm360, %v354, %v355
  %v366 = vsel %vm360, %v353, %v354
  %v367 = vsel %vm360, %v352, %v353
  %v368 = vsel %vm360, %v359, %v352
  %v369 = vadd.f32 %v239, %v367
  %v370 = vadd.f32 %v241, %v366
  %v371 = vadd.f32 %v244, %v365
  %v372 = vadd.f32 %v246, %v364
  %v373 = vadd.f32 %v249, %v363
  %v374 = vadd.f32 %v251, %v362
  %v375 = vadd.f32 %v254, %v361
  %v376 = vadd.f32 %v256, %v368
  %s377 = scalar_lea.vmem %s1, 192
  %v378 = vld [vmem:[%s377] sm:$0xf]
  %v379 = vld [vmem:[%s377 + $0x4] sm:$0xf]
  %v380 = vld [vmem:[%s377 + $0x8] sm:$0xf]
  %v381 = vld [vmem:[%s377 + $0xc] sm:$0xf]
  %v382 = vld [vmem:[%s377 + $0x10] sm:$0xf]
  %v383 = vld [vmem:[%s377 + $0x14] sm:$0xf]
  %v384 = vld [vmem:[%s377 + $0x18] sm:$0xf]
  %v385 = vld [vmem:[%s377 + $0x1c] sm:$0xf]
  %v386 = vld [vmem:[%s377 + $0x20] sm:$0xf]
  %v387 = vld [vmem:[%s377 + $0x24] sm:$0xf]
  %v388 = vld [vmem:[%s377 + $0x28] sm:$0xf]
  %v389 = vld [vmem:[%s377 + $0x2c] sm:$0xf]
  %v390 = vld [vmem:[%s377 + $0x30] sm:$0xf]
  %v391 = vld [vmem:[%s377 + $0x34] sm:$0xf]
  %v392 = vld [vmem:[%s377 + $0x38] sm:$0xf]
  %v393 = vld [vmem:[%s377 + $0x3c] sm:$0xf]
  %v410 = vunpack.c.l.b16 %v378
  %v411 = vunpack.c.l.b16 %v379
  %v412 = vunpack.c.l.b16 %v380
  %v413 = vunpack.c.l.b16 %v381
  %v414 = vunpack.c.l.b16 %v382
  %v415 = vunpack.c.l.b16 %v383
  %v416 = vunpack.c.l.b16 %v384
  %v417 = vunpack.c.l.b16 %v385
  %v418 = vunpack.c.l.b16 %v386
  %v419 = vunpack.c.l.b16 %v387
  %v420 = vunpack.c.l.b16 %v388
  %v421 = vunpack.c.l.b16 %v389
  %v422 = vunpack.c.l.b16 %v390
  %v423 = vunpack.c.l.b16 %v391
  %v424 = vunpack.c.l.b16 %v392
  %v425 = vunpack.c.l.b16 %v393
  %v426 = vpack.c.b16 %v411, %v410
  %v427 = vpack.c.b16 %v413, %v412
  %v428 = vpack.c.b16 %v415, %v414
  %v429 = vpack.c.b16 %v417, %v416
  %v430 = vpack.c.b16 %v419, %v418
  %v431 = vpack.c.b16 %v421, %v420
  %v432 = vpack.c.b16 %v423, %v422
  %v433 = vpack.c.b16 %v425, %v424
  %442 = vmatpush.bf16.msra.mxu0 %v433
  %443 = vmatpush.bf16.msra.mxu0 %v432
  %444 = vmatpush.bf16.msra.mxu0 %v431
  %445 = vmatpush.bf16.msra.mxu0 %v430
  %446 = vmatpush.bf16.msra.mxu0 %v429
  %447 = vmatpush.bf16.msra.mxu0 %v428
  %448 = vmatpush.bf16.msra.mxu0 %v427
  %449 = vmatpush.bf16.msra.mxu0 %v426
  %450 = vmatmul.bf16.gmra.mxu0 %v77
  %v451 = vpop.f32.mrf.mxu0
  %v452 = vadd.f32 0.0, %v451
  %v453 = vpop.f32.mrf.mxu0
  %v454 = vadd.f32 0.0, %v453
  %455 = vmatmul.bf16.gmra.mxu0 %v78
  %v456 = vpop.f32.mrf.mxu0
  %v457 = vadd.f32 0.0, %v456
  %v458 = vpop.f32.mrf.mxu0
  %v459 = vadd.f32 0.0, %v458
  %460 = vmatmul.bf16.gmra.mxu0 %v79
  %v461 = vpop.f32.mrf.mxu0
  %v462 = vadd.f32 0.0, %v461
  %v463 = vpop.f32.mrf.mxu0
  %v464 = vadd.f32 0.0, %v463
  %465 = vmatmul.bf16.gmra.mxu0 %v80
  %v466 = vpop.f32.mrf.mxu0
  %v467 = vadd.f32 0.0, %v466
  %v468 = vpop.f32.mrf.mxu0
  %v469 = vadd.f32 0.0, %v468
  %470 = vdwg.mxu0
  %v471 = vrot.slane %v452, 6
  %v472 = vrot.slane %v454, 6
  %v473 = vrot.slane %v457, 6
  %v474 = vrot.slane %v459, 6
  %v475 = vrot.slane %v462, 6
  %v476 = vrot.slane %v464, 6
  %v477 = vrot.slane %v467, 6
  %v478 = vrot.slane %v469, 6
  %vm479 = vcmp.lt.s32.totalorder %v171, 2
  %v480 = vsel %vm479, %v477, %v478
  %v481 = vsel %vm479, %v476, %v477
  %v482 = vsel %vm479, %v475, %v476
  %v483 = vsel %vm479, %v474, %v475
  %v484 = vsel %vm479, %v473, %v474
  %v485 = vsel %vm479, %v472, %v473
  %v486 = vsel %vm479, %v471, %v472
  %v487 = vsel %vm479, %v478, %v471
  %v488 = vadd.f32 %v369, %v486
  %v489 = vadd.f32 %v370, %v485
  %v490 = vadd.f32 %v371, %v484
  %v491 = vadd.f32 %v372, %v483
  %v492 = vadd.f32 %v373, %v482
  %v493 = vadd.f32 %v374, %v481
  %v494 = vadd.f32 %v375, %v480
  %v495 = vadd.f32 %v376, %v487
  %v496 = vld [vmem:[%s2] sm:$0x1]
  %v498 = vperm.slane %v496, 0
  %v500 = vadd.f32 %v488, %v498
  %v501 = vadd.f32 %v489, %v498
  %v502 = vadd.f32 %v490, %v498
  %v503 = vadd.f32 %v491, %v498
  %v504 = vadd.f32 %v492, %v498
  %v505 = vadd.f32 %v493, %v498
  %v506 = vadd.f32 %v494, %v498
  %v507 = vadd.f32 %v495, %v498
  %v508 = vld [vmem:[%s3] sm:$0xff]
  %v509 = vld [vmem:[%s3 + $0x8] sm:$0xff]
  %v510 = vld [vmem:[%s3 + $0x10] sm:$0xff]
  %v511 = vld [vmem:[%s3 + $0x18] sm:$0xff]
  %v512 = vld [vmem:[%s3 + $0x20] sm:$0xff]
  %v513 = vld [vmem:[%s3 + $0x28] sm:$0xff]
  %v514 = vld [vmem:[%s3 + $0x30] sm:$0xff]
  %v515 = vld [vmem:[%s3 + $0x38] sm:$0xff]
  %517 = vset.pattern.permute.xlu0 0
  %518 = vperm.xlu0 %517, %v508
  %v519 = vpop.permute.xlu0 %518
  %522 = vset.pattern.permute.xlu0 0
  %523 = vperm.xlu0 %522, %v509
  %v524 = vpop.permute.xlu0 %523
  %527 = vset.pattern.permute.xlu0 0
  %528 = vperm.xlu0 %527, %v510
  %v529 = vpop.permute.xlu0 %528
  %532 = vset.pattern.permute.xlu0 0
  %533 = vperm.xlu0 %532, %v511
  %v534 = vpop.permute.xlu0 %533
  %537 = vset.pattern.permute.xlu0 0
  %538 = vperm.xlu0 %537, %v512
  %v539 = vpop.permute.xlu0 %538
  %542 = vset.pattern.permute.xlu0 0
  %543 = vperm.xlu0 %542, %v513
  %v544 = vpop.permute.xlu0 %543
  %547 = vset.pattern.permute.xlu0 0
  %548 = vperm.xlu0 %547, %v514
  %v549 = vpop.permute.xlu0 %548
  %552 = vset.pattern.permute.xlu0 0
  %553 = vperm.xlu0 %552, %v515
  %v554 = vpop.permute.xlu0 %553
  %v556 = vmul.f32 %v500, %v519
  %v557 = vmul.f32 %v501, %v524
  %v558 = vmul.f32 %v502, %v529
  %v559 = vmul.f32 %v503, %v534
  %v560 = vmul.f32 %v504, %v539
  %v561 = vmul.f32 %v505, %v544
  %v562 = vmul.f32 %v506, %v549
  %v563 = vmul.f32 %v507, %v554
  %v564 = vadd.f32 %v556, %v557
  %v565 = vadd.f32 %v564, %v558
  %v566 = vadd.f32 %v565, %v559
  %v567 = vadd.f32 %v566, %v560
  %v568 = vadd.f32 %v567, %v561
  %v569 = vadd.f32 %v568, %v562
  %v570 = vadd.f32 %v569, %v563
  %v571 = vrot.slane %v570, 4
  %v572 = vadd.f32 %v570, %v571
  %v573 = vrot.slane %v572, 2
  %v574 = vadd.f32 %v572, %v573
  %v575 = vrot.slane %v574, 1
  %v576 = vadd.f32 %v574, %v575
  %577 = vst [vmem:[%s5] sm:$0xff] %v576
  %v578 = vmul.f32 %v500, %v556
  %v579 = vmul.f32 %v501, %v557
  %v580 = vmul.f32 %v502, %v558
  %v581 = vmul.f32 %v503, %v559
  %v582 = vmul.f32 %v504, %v560
  %v583 = vmul.f32 %v505, %v561
  %v584 = vmul.f32 %v506, %v562
  %v585 = vmul.f32 %v507, %v563
  %v586 = vadd.f32 %v578, %v579
  %v587 = vadd.f32 %v586, %v580
  %v588 = vadd.f32 %v587, %v581
  %v589 = vadd.f32 %v588, %v582
  %v590 = vadd.f32 %v589, %v583
  %v591 = vadd.f32 %v590, %v584
  %v592 = vadd.f32 %v591, %v585
  %v593 = vrot.slane %v592, 4
  %v594 = vadd.f32 %v592, %v593
  %v595 = vrot.slane %v594, 2
  %v596 = vadd.f32 %v594, %v595
  %v597 = vrot.slane %v596, 1
  %v598 = vadd.f32 %v596, %v597
  %599 = vst [vmem:[%s6] sm:$0xff] %v598
  %v600 = vpack.c.bf16 %v500, %v500
  %v601 = vpack.c.bf16 %v501, %v501
  %v602 = vpack.c.bf16 %v502, %v502
  %v603 = vpack.c.bf16 %v503, %v503
  %v604 = vpack.c.bf16 %v504, %v504
  %v605 = vpack.c.bf16 %v505, %v505
  %v606 = vpack.c.bf16 %v506, %v506
  %v607 = vpack.c.bf16 %v507, %v507
  %608 = vst [vmem:[%s4] sm:$0xf] %v600
  %609 = vst [vmem:[%s4 + $0x4] sm:$0xf] %v601
  %610 = vst [vmem:[%s4 + $0x8] sm:$0xf] %v602
  %611 = vst [vmem:[%s4 + $0xc] sm:$0xf] %v603
  %612 = vst [vmem:[%s4 + $0x10] sm:$0xf] %v604
  %613 = vst [vmem:[%s4 + $0x14] sm:$0xf] %v605
  %614 = vst [vmem:[%s4 + $0x18] sm:$0xf] %v606
  %615 = vst [vmem:[%s4 + $0x1c] sm:$0xf] %v607
  // Predicated region
  $region18: #{discriminator_forward.13} parent=0 // pred_check
    _
  $region19: #{discriminator_forward.13} parent=0 // pred_check_branch
    %617 = sbr.rel (0) target = $region21
  $region20: #{discriminator_forward.13} parent=0 // pred_region
    _
  $region21: #{discriminator_forward.13} parent=0 // pred_fallthru
    _
  // Predicated region
  $region22: #{discriminator_forward.13} parent=0 // pred_check
    _
  $region23: #{discriminator_forward.13} parent=0 // pred_check_branch
    %619 = sbr.rel (0) target = $region25
  $region24: #{discriminator_forward.13} parent=0 // pred_region
    _
  $region25: #{discriminator_forward.13} parent=0 // pred_fallthru
    _
  // Predicated region
  $region26: #{discriminator_forward.13} parent=0 // pred_check
    _
  $region27: #{discriminator_forward.13} parent=0 // pred_check_branch
    %621 = sbr.rel (0) target = $region29
  $region28: #{discriminator_forward.13} parent=0 // pred_region
    _
  $region29: #{discriminator_forward.13} parent=0 // pred_fallthru
    _
  // Predicated region
  $region30: #{discriminator_forward.13} parent=0 // pred_check
    _
  $region31: #{discriminator_forward.13} parent=0 // pred_check_branch
    %623 = sbr.rel (0) target = $region33
  $region32: #{discriminator_forward.13} parent=0 // pred_region
    _
  $region33: #{discriminator_forward.13} parent=0 // pred_fallthru
    _
  // Predicated region
  $region34: #{discriminator_forward.13} parent=0 // pred_check
    _
  $region35: #{discriminator_forward.13} parent=0 // pred_check_branch
    %625 = sbr.rel (0) target = $region37
  $region36: #{discriminator_forward.13} parent=0 // pred_region
    _
  $region37: #{discriminator_forward.13} parent=0 // pred_fallthru
    _
  // Predicated region
  $region38: #{discriminator_forward.13} parent=0 // pred_check
    _
  $region39: #{discriminator_forward.13} parent=0 // pred_check_branch
    %627 = sbr.rel (0) target = $region41
  $region40: #{discriminator_forward.13} parent=0 // pred_region
    _
  $region41: #{discriminator_forward.13} parent=0 // pred_fallthru
    _

// kernel: discriminator_forward.15
$region0: #{discriminator_forward.15}
  #allocation0 [shape = 'u32[]', space=smem, size = 0x4, offset = 0x4, fixed_abs, tag = 'smem constant byte address 0x4 - core index']
  #allocation1 [shape = 'u32[72,128]{1,0:T(1,128)}', space=vmem, size = 0x9000, scoped, tag = 'internal scratch']
  %s0 = inlined_call_operand.vmem [shape: bf16[8,1024], index: 0, kind: input, shape index: {}]
  %s1 = inlined_call_operand.vmem [shape: bf16[1024,128], index: 1, kind: input, shape index: {}]
  %s2 = inlined_call_operand.vmem [shape: f32[1,128], index: 2, kind: input, shape index: {}]
  %s3 = inlined_call_operand.vmem [shape: f32[8,128], index: 3, kind: output, shape index: {}]
  %s4 = sld [smem:[#allocation0]]
  $region22: #{discriminator_forward.15} parent=0
    _
  %s6 = ssub.s32 1, %s4
  %s7 = scalar_select 0, %s6, %s4
  // Predicated region
  $region2: #{discriminator_forward.15} parent=0 // pred_check
    _
  $region3: #{discriminator_forward.15} parent=0 // pred_check_branch
    %9 = sbr.rel (0) target = $region5
  $region4: #{discriminator_forward.15} parent=0 // pred_region
    _
  $region5: #{discriminator_forward.15} parent=0 // pred_fallthru
    _
  // Predicated region
  $region6: #{discriminator_forward.15} parent=0 // pred_check
    _
  $region7: #{discriminator_forward.15} parent=0 // pred_check_branch
    %11 = sbr.rel (0) target = $region9
  $region8: #{discriminator_forward.15} parent=0 // pred_region
    _
  $region9: #{discriminator_forward.15} parent=0 // pred_fallthru
    _
  // Predicated region
  $region10: #{discriminator_forward.15} parent=0 // pred_check
    _
  $region11: #{discriminator_forward.15} parent=0 // pred_check_branch
    %13 = sbr.rel (0) target = $region13
  $region12: #{discriminator_forward.15} parent=0 // pred_region
    _
  $region13: #{discriminator_forward.15} parent=0 // pred_fallthru
    _
  %v14 = vld [vmem:[%s0] sm:$0xff]
  %v15 = vld [vmem:[%s0 + $0x8] sm:$0xff]
  %v16 = vld [vmem:[%s0 + $0x10] sm:$0xff]
  %v17 = vld [vmem:[%s0 + $0x18] sm:$0xff]
  %v18 = vld [vmem:[%s1] sm:$0xf]
  %v19 = vld [vmem:[%s1 + $0x4] sm:$0xf]
  %v20 = vld [vmem:[%s1 + $0x8] sm:$0xf]
  %v21 = vld [vmem:[%s1 + $0xc] sm:$0xf]
  %v22 = vld [vmem:[%s1 + $0x10] sm:$0xf]
  %v23 = vld [vmem:[%s1 + $0x14] sm:$0xf]
  %v24 = vld [vmem:[%s1 + $0x18] sm:$0xf]
  %v25 = vld [vmem:[%s1 + $0x1c] sm:$0xf]
  %v26 = vld [vmem:[%s1 + $0x20] sm:$0xf]
  %v27 = vld [vmem:[%s1 + $0x24] sm:$0xf]
  %v28 = vld [vmem:[%s1 + $0x28] sm:$0xf]
  %v29 = vld [vmem:[%s1 + $0x2c] sm:$0xf]
  %v30 = vld [vmem:[%s1 + $0x30] sm:$0xf]
  %v31 = vld [vmem:[%s1 + $0x34] sm:$0xf]
  %v32 = vld [vmem:[%s1 + $0x38] sm:$0xf]
  %v33 = vld [vmem:[%s1 + $0x3c] sm:$0xf]
  %v34 = vld [vmem:[%s1 + $0x40] sm:$0xf]
  %v35 = vld [vmem:[%s1 + $0x44] sm:$0xf]
  %v36 = vld [vmem:[%s1 + $0x48] sm:$0xf]
  %v37 = vld [vmem:[%s1 + $0x4c] sm:$0xf]
  %v38 = vld [vmem:[%s1 + $0x50] sm:$0xf]
  %v39 = vld [vmem:[%s1 + $0x54] sm:$0xf]
  %v40 = vld [vmem:[%s1 + $0x58] sm:$0xf]
  %v41 = vld [vmem:[%s1 + $0x5c] sm:$0xf]
  %v42 = vld [vmem:[%s1 + $0x60] sm:$0xf]
  %v43 = vld [vmem:[%s1 + $0x64] sm:$0xf]
  %v44 = vld [vmem:[%s1 + $0x68] sm:$0xf]
  %v45 = vld [vmem:[%s1 + $0x6c] sm:$0xf]
  %v46 = vld [vmem:[%s1 + $0x70] sm:$0xf]
  %v47 = vld [vmem:[%s1 + $0x74] sm:$0xf]
  %v48 = vld [vmem:[%s1 + $0x78] sm:$0xf]
  %v49 = vld [vmem:[%s1 + $0x7c] sm:$0xf]
  %v50 = vld [vmem:[%s1 + $0x80] sm:$0xf]
  %v51 = vld [vmem:[%s1 + $0x84] sm:$0xf]
  %v52 = vld [vmem:[%s1 + $0x88] sm:$0xf]
  %v53 = vld [vmem:[%s1 + $0x8c] sm:$0xf]
  %v54 = vld [vmem:[%s1 + $0x90] sm:$0xf]
  %v55 = vld [vmem:[%s1 + $0x94] sm:$0xf]
  %v56 = vld [vmem:[%s1 + $0x98] sm:$0xf]
  %v57 = vld [vmem:[%s1 + $0x9c] sm:$0xf]
  %v58 = vld [vmem:[%s1 + $0xa0] sm:$0xf]
  %v59 = vld [vmem:[%s1 + $0xa4] sm:$0xf]
  %v60 = vld [vmem:[%s1 + $0xa8] sm:$0xf]
  %v61 = vld [vmem:[%s1 + $0xac] sm:$0xf]
  %v62 = vld [vmem:[%s1 + $0xb0] sm:$0xf]
  %v63 = vld [vmem:[%s1 + $0xb4] sm:$0xf]
  %v64 = vld [vmem:[%s1 + $0xb8] sm:$0xf]
  %v65 = vld [vmem:[%s1 + $0xbc] sm:$0xf]
  %v66 = vld [vmem:[%s1 + $0xc0] sm:$0xf]
  %v67 = vld [vmem:[%s1 + $0xc4] sm:$0xf]
  %v68 = vld [vmem:[%s1 + $0xc8] sm:$0xf]
  %v69 = vld [vmem:[%s1 + $0xcc] sm:$0xf]
  %v70 = vld [vmem:[%s1 + $0xd0] sm:$0xf]
  %v71 = vld [vmem:[%s1 + $0xd4] sm:$0xf]
  %v72 = vld [vmem:[%s1 + $0xd8] sm:$0xf]
  %v73 = vld [vmem:[%s1 + $0xdc] sm:$0xf]
  %v74 = vld [vmem:[%s1 + $0xe0] sm:$0xf]
  %v75 = vld [vmem:[%s1 + $0xe4] sm:$0xf]
  %v76 = vld [vmem:[%s1 + $0xe8] sm:$0xf]
  %v77 = vld [vmem:[%s1 + $0xec] sm:$0xf]
  %v78 = vld [vmem:[%s1 + $0xf0] sm:$0xf]
  %v79 = vld [vmem:[%s1 + $0xf4] sm:$0xf]
  %v80 = vld [vmem:[%s1 + $0xf8] sm:$0xf]
  %v81 = vld [vmem:[%s1 + $0xfc] sm:$0xf]
  %v82 = vld [vmem:[%s1 + $0x100] sm:$0xf]
  %v83 = vld [vmem:[%s1 + $0x104] sm:$0xf]
  %v84 = vld [vmem:[%s1 + $0x108] sm:$0xf]
  %v85 = vld [vmem:[%s1 + $0x10c] sm:$0xf]
  %v86 = vld [vmem:[%s1 + $0x110] sm:$0xf]
  %v87 = vld [vmem:[%s1 + $0x114] sm:$0xf]
  %v88 = vld [vmem:[%s1 + $0x118] sm:$0xf]
  %v89 = vld [vmem:[%s1 + $0x11c] sm:$0xf]
  %v90 = vld [vmem:[%s1 + $0x120] sm:$0xf]
  %v91 = vld [vmem:[%s1 + $0x124] sm:$0xf]
  %v92 = vld [vmem:[%s1 + $0x128] sm:$0xf]
  %v93 = vld [vmem:[%s1 + $0x12c] sm:$0xf]
  %v94 = vld [vmem:[%s1 + $0x130] sm:$0xf]
  %v95 = vld [vmem:[%s1 + $0x134] sm:$0xf]
  %v96 = vld [vmem:[%s1 + $0x138] sm:$0xf]
  %v97 = vld [vmem:[%s1 + $0x13c] sm:$0xf]
  %v98 = vld [vmem:[%s1 + $0x140] sm:$0xf]
  %v99 = vld [vmem:[%s1 + $0x144] sm:$0xf]
  %v100 = vld [vmem:[%s1 + $0x148] sm:$0xf]
  %v101 = vld [vmem:[%s1 + $0x14c] sm:$0xf]
  %v102 = vld [vmem:[%s1 + $0x150] sm:$0xf]
  %v103 = vld [vmem:[%s1 + $0x154] sm:$0xf]
  %v104 = vld [vmem:[%s1 + $0x158] sm:$0xf]
  %v105 = vld [vmem:[%s1 + $0x15c] sm:$0xf]
  %v106 = vld [vmem:[%s1 + $0x160] sm:$0xf]
  %v107 = vld [vmem:[%s1 + $0x164] sm:$0xf]
  %v108 = vld [vmem:[%s1 + $0x168] sm:$0xf]
  %v109 = vld [vmem:[%s1 + $0x16c] sm:$0xf]
  %v110 = vld [vmem:[%s1 + $0x170] sm:$0xf]
  %v111 = vld [vmem:[%s1 + $0x174] sm:$0xf]
  %v112 = vld [vmem:[%s1 + $0x178] sm:$0xf]
  %v113 = vld [vmem:[%s1 + $0x17c] sm:$0xf]
  %v114 = vld [vmem:[%s1 + $0x180] sm:$0xf]
  %v115 = vld [vmem:[%s1 + $0x184] sm:$0xf]
  %v116 = vld [vmem:[%s1 + $0x188] sm:$0xf]
  %v117 = vld [vmem:[%s1 + $0x18c] sm:$0xf]
  %v118 = vld [vmem:[%s1 + $0x190] sm:$0xf]
  %v119 = vld [vmem:[%s1 + $0x194] sm:$0xf]
  %v120 = vld [vmem:[%s1 + $0x198] sm:$0xf]
  %v121 = vld [vmem:[%s1 + $0x19c] sm:$0xf]
  %v122 = vld [vmem:[%s1 + $0x1a0] sm:$0xf]
  %v123 = vld [vmem:[%s1 + $0x1a4] sm:$0xf]
  %v124 = vld [vmem:[%s1 + $0x1a8] sm:$0xf]
  %v125 = vld [vmem:[%s1 + $0x1ac] sm:$0xf]
  %v126 = vld [vmem:[%s1 + $0x1b0] sm:$0xf]
  %v127 = vld [vmem:[%s1 + $0x1b4] sm:$0xf]
  %v128 = vld [vmem:[%s1 + $0x1b8] sm:$0xf]
  %v129 = vld [vmem:[%s1 + $0x1bc] sm:$0xf]
  %v130 = vld [vmem:[%s1 + $0x1c0] sm:$0xf]
  %v131 = vld [vmem:[%s1 + $0x1c4] sm:$0xf]
  %v132 = vld [vmem:[%s1 + $0x1c8] sm:$0xf]
  %v133 = vld [vmem:[%s1 + $0x1cc] sm:$0xf]
  %v134 = vld [vmem:[%s1 + $0x1d0] sm:$0xf]
  %v135 = vld [vmem:[%s1 + $0x1d4] sm:$0xf]
  %v136 = vld [vmem:[%s1 + $0x1d8] sm:$0xf]
  %v137 = vld [vmem:[%s1 + $0x1dc] sm:$0xf]
  %v138 = vld [vmem:[%s1 + $0x1e0] sm:$0xf]
  %v139 = vld [vmem:[%s1 + $0x1e4] sm:$0xf]
  %v140 = vld [vmem:[%s1 + $0x1e8] sm:$0xf]
  %v141 = vld [vmem:[%s1 + $0x1ec] sm:$0xf]
  %v142 = vld [vmem:[%s1 + $0x1f0] sm:$0xf]
  %v143 = vld [vmem:[%s1 + $0x1f4] sm:$0xf]
  %v144 = vld [vmem:[%s1 + $0x1f8] sm:$0xf]
  %v145 = vld [vmem:[%s1 + $0x1fc] sm:$0xf]
  %v146 = vld [vmem:[%s2] sm:$0x1]
  %v148 = vperm.slane %v146, 0
  %v154 = vunpack.c.l.b16 %v14
  %v155 = vunpack.c.h.b16 %v14
  %v156 = vunpack.c.l.b16 %v15
  %v157 = vunpack.c.h.b16 %v15
  %v158 = vunpack.c.l.b16 %v16
  %v159 = vunpack.c.h.b16 %v16
  %v160 = vunpack.c.l.b16 %v17
  %v161 = vunpack.c.h.b16 %v17
  %v162 = vpack.c.b16 %v154, %v154
  %v163 = vpack.c.b16 %v155, %v155
  %v164 = vpack.c.b16 %v156, %v156
  %v165 = vpack.c.b16 %v157, %v157
  %v166 = vpack.c.b16 %v158, %v158
  %v167 = vpack.c.b16 %v159, %v159
  %v168 = vpack.c.b16 %v160, %v160
  %v169 = vpack.c.b16 %v161, %v161
  %v306 = vunpack.c.l.b16 %v18
  %v307 = vunpack.c.l.b16 %v19
  %v308 = vunpack.c.l.b16 %v20
  %v309 = vunpack.c.l.b16 %v21
  %v310 = vunpack.c.l.b16 %v22
  %v311 = vunpack.c.l.b16 %v23
  %v312 = vunpack.c.l.b16 %v24
  %v313 = vunpack.c.l.b16 %v25
  %v314 = vunpack.c.l.b16 %v26
  %v315 = vunpack.c.l.b16 %v27
  %v316 = vunpack.c.l.b16 %v28
  %v317 = vunpack.c.l.b16 %v29
  %v318 = vunpack.c.l.b16 %v30
  %v319 = vunpack.c.l.b16 %v31
  %v320 = vunpack.c.l.b16 %v32
  %v321 = vunpack.c.l.b16 %v33
  %v322 = vunpack.c.l.b16 %v34
  %v323 = vunpack.c.l.b16 %v35
  %v324 = vunpack.c.l.b16 %v36
  %v325 = vunpack.c.l.b16 %v37
  %v326 = vunpack.c.l.b16 %v38
  %v327 = vunpack.c.l.b16 %v39
  %v328 = vunpack.c.l.b16 %v40
  %v329 = vunpack.c.l.b16 %v41
  %v330 = vunpack.c.l.b16 %v42
  %v331 = vunpack.c.l.b16 %v43
  %v332 = vunpack.c.l.b16 %v44
  %v333 = vunpack.c.l.b16 %v45
  %v334 = vunpack.c.l.b16 %v46
  %v335 = vunpack.c.l.b16 %v47
  %v336 = vunpack.c.l.b16 %v48
  %v337 = vunpack.c.l.b16 %v49
  %v338 = vunpack.c.l.b16 %v50
  %v339 = vunpack.c.l.b16 %v51
  %v340 = vunpack.c.l.b16 %v52
  %v341 = vunpack.c.l.b16 %v53
  %v342 = vunpack.c.l.b16 %v54
  %v343 = vunpack.c.l.b16 %v55
  %v344 = vunpack.c.l.b16 %v56
  %v345 = vunpack.c.l.b16 %v57
  %v346 = vunpack.c.l.b16 %v58
  %v347 = vunpack.c.l.b16 %v59
  %v348 = vunpack.c.l.b16 %v60
  %v349 = vunpack.c.l.b16 %v61
  %v350 = vunpack.c.l.b16 %v62
  %v351 = vunpack.c.l.b16 %v63
  %v352 = vunpack.c.l.b16 %v64
  %v353 = vunpack.c.l.b16 %v65
  %v354 = vunpack.c.l.b16 %v66
  %v355 = vunpack.c.l.b16 %v67
  %v356 = vunpack.c.l.b16 %v68
  %v357 = vunpack.c.l.b16 %v69
  %v358 = vunpack.c.l.b16 %v70
  %v359 = vunpack.c.l.b16 %v71
  %v360 = vunpack.c.l.b16 %v72
  %v361 = vunpack.c.l.b16 %v73
  %v362 = vunpack.c.l.b16 %v74
  %v363 = vunpack.c.l.b16 %v75
  %v364 = vunpack.c.l.b16 %v76
  %v365 = vunpack.c.l.b16 %v77
  %v366 = vunpack.c.l.b16 %v78
  %v367 = vunpack.c.l.b16 %v79
  %v368 = vunpack.c.l.b16 %v80
  %v369 = vunpack.c.l.b16 %v81
  %v370 = vunpack.c.l.b16 %v82
  %v371 = vunpack.c.l.b16 %v83
  %v372 = vunpack.c.l.b16 %v84
  %v373 = vunpack.c.l.b16 %v85
  %v374 = vunpack.c.l.b16 %v86
  %v375 = vunpack.c.l.b16 %v87
  %v376 = vunpack.c.l.b16 %v88
  %v377 = vunpack.c.l.b16 %v89
  %v378 = vunpack.c.l.b16 %v90
  %v379 = vunpack.c.l.b16 %v91
  %v380 = vunpack.c.l.b16 %v92
  %v381 = vunpack.c.l.b16 %v93
  %v382 = vunpack.c.l.b16 %v94
  %v383 = vunpack.c.l.b16 %v95
  %v384 = vunpack.c.l.b16 %v96
  %v385 = vunpack.c.l.b16 %v97
  %v386 = vunpack.c.l.b16 %v98
  %v387 = vunpack.c.l.b16 %v99
  %v388 = vunpack.c.l.b16 %v100
  %v389 = vunpack.c.l.b16 %v101
  %v390 = vunpack.c.l.b16 %v102
  %v391 = vunpack.c.l.b16 %v103
  %v392 = vunpack.c.l.b16 %v104
  %v393 = vunpack.c.l.b16 %v105
  %v394 = vunpack.c.l.b16 %v106
  %v395 = vunpack.c.l.b16 %v107
  %v396 = vunpack.c.l.b16 %v108
  %v397 = vunpack.c.l.b16 %v109
  %v398 = vunpack.c.l.b16 %v110
  %v399 = vunpack.c.l.b16 %v111
  %v400 = vunpack.c.l.b16 %v112
  %v401 = vunpack.c.l.b16 %v113
  %v402 = vunpack.c.l.b16 %v114
  %v403 = vunpack.c.l.b16 %v115
  %v404 = vunpack.c.l.b16 %v116
  %v405 = vunpack.c.l.b16 %v117
  %v406 = vunpack.c.l.b16 %v118
  %v407 = vunpack.c.l.b16 %v119
  %v408 = vunpack.c.l.b16 %v120
  %v409 = vunpack.c.l.b16 %v121
  %v410 = vunpack.c.l.b16 %v122
  %v411 = vunpack.c.l.b16 %v123
  %v412 = vunpack.c.l.b16 %v124
  %v413 = vunpack.c.l.b16 %v125
  %v414 = vunpack.c.l.b16 %v126
  %v415 = vunpack.c.l.b16 %v127
  %v416 = vunpack.c.l.b16 %v128
  %v417 = vunpack.c.l.b16 %v129
  %v418 = vunpack.c.l.b16 %v130
  %v419 = vunpack.c.l.b16 %v131
  %v420 = vunpack.c.l.b16 %v132
  %v421 = vunpack.c.l.b16 %v133
  %v422 = vunpack.c.l.b16 %v134
  %v423 = vunpack.c.l.b16 %v135
  %v424 = vunpack.c.l.b16 %v136
  %v425 = vunpack.c.l.b16 %v137
  %v426 = vunpack.c.l.b16 %v138
  %v427 = vunpack.c.l.b16 %v139
  %v428 = vunpack.c.l.b16 %v140
  %v429 = vunpack.c.l.b16 %v141
  %v430 = vunpack.c.l.b16 %v142
  %v431 = vunpack.c.l.b16 %v143
  %v432 = vunpack.c.l.b16 %v144
  %v433 = vunpack.c.l.b16 %v145
  %v434 = vpack.c.b16 %v307, %v306
  %v435 = vpack.c.b16 %v309, %v308
  %v436 = vpack.c.b16 %v311, %v310
  %v437 = vpack.c.b16 %v313, %v312
  %v438 = vpack.c.b16 %v315, %v314
  %v439 = vpack.c.b16 %v317, %v316
  %v440 = vpack.c.b16 %v319, %v318
  %v441 = vpack.c.b16 %v321, %v320
  %v442 = vpack.c.b16 %v323, %v322
  %v443 = vpack.c.b16 %v325, %v324
  %v444 = vpack.c.b16 %v327, %v326
  %v445 = vpack.c.b16 %v329, %v328
  %v446 = vpack.c.b16 %v331, %v330
  %v447 = vpack.c.b16 %v333, %v332
  %v448 = vpack.c.b16 %v335, %v334
  %v449 = vpack.c.b16 %v337, %v336
  %v450 = vpack.c.b16 %v339, %v338
  %v451 = vpack.c.b16 %v341, %v340
  %v452 = vpack.c.b16 %v343, %v342
  %v453 = vpack.c.b16 %v345, %v344
  %v454 = vpack.c.b16 %v347, %v346
  %v455 = vpack.c.b16 %v349, %v348
  %v456 = vpack.c.b16 %v351, %v350
  %v457 = vpack.c.b16 %v353, %v352
  %v458 = vpack.c.b16 %v355, %v354
  %v459 = vpack.c.b16 %v357, %v356
  %v460 = vpack.c.b16 %v359, %v358
  %v461 = vpack.c.b16 %v361, %v360
  %v462 = vpack.c.b16 %v363, %v362
  %v463 = vpack.c.b16 %v365, %v364
  %v464 = vpack.c.b16 %v367, %v366
  %v465 = vpack.c.b16 %v369, %v368
  %v466 = vpack.c.b16 %v371, %v370
  %v467 = vpack.c.b16 %v373, %v372
  %v468 = vpack.c.b16 %v375, %v374
  %v469 = vpack.c.b16 %v377, %v376
  %v470 = vpack.c.b16 %v379, %v378
  %v471 = vpack.c.b16 %v381, %v380
  %v472 = vpack.c.b16 %v383, %v382
  %v473 = vpack.c.b16 %v385, %v384
  %v474 = vpack.c.b16 %v387, %v386
  %v475 = vpack.c.b16 %v389, %v388
  %v476 = vpack.c.b16 %v391, %v390
  %v477 = vpack.c.b16 %v393, %v392
  %v478 = vpack.c.b16 %v395, %v394
  %v479 = vpack.c.b16 %v397, %v396
  %v480 = vpack.c.b16 %v399, %v398
  %v481 = vpack.c.b16 %v401, %v400
  %v482 = vpack.c.b16 %v403, %v402
  %v483 = vpack.c.b16 %v405, %v404
  %v484 = vpack.c.b16 %v407, %v406
  %v485 = vpack.c.b16 %v409, %v408
  %v486 = vpack.c.b16 %v411, %v410
  %v487 = vpack.c.b16 %v413, %v412
  %v488 = vpack.c.b16 %v415, %v414
  %v489 = vpack.c.b16 %v417, %v416
  %v490 = vpack.c.b16 %v419, %v418
  %v491 = vpack.c.b16 %v421, %v420
  %v492 = vpack.c.b16 %v423, %v422
  %v493 = vpack.c.b16 %v425, %v424
  %v494 = vpack.c.b16 %v427, %v426
  %v495 = vpack.c.b16 %v429, %v428
  %v496 = vpack.c.b16 %v431, %v430
  %v497 = vpack.c.b16 %v433, %v432
  %562 = vmatpush.bf16.msra.mxu0 %v441
  %563 = vmatpush.bf16.msra.mxu0 %v440
  %564 = vmatpush.bf16.msra.mxu0 %v439
  %565 = vmatpush.bf16.msra.mxu0 %v438
  %566 = vmatpush.bf16.msra.mxu0 %v437
  %567 = vmatpush.bf16.msra.mxu0 %v436
  %568 = vmatpush.bf16.msra.mxu0 %v435
  %569 = vmatpush.bf16.msra.mxu0 %v434
  %570 = vmatmul.bf16.gmra.mxu0 %v162
  %v571 = vpop.f32.mrf.mxu0
  %v572 = vadd.f32 %v148, %v571
  %v573 = vpop.f32.mrf.mxu0
  %574 = vdwg.mxu0
  %575 = vmatpush.bf16.msra.mxu0 %v449
  %576 = vmatpush.bf16.msra.mxu0 %v448
  %577 = vmatpush.bf16.msra.mxu0 %v447
  %578 = vmatpush.bf16.msra.mxu0 %v446
  %579 = vmatpush.bf16.msra.mxu0 %v445
  %580 = vmatpush.bf16.msra.mxu0 %v444
  %581 = vmatpush.bf16.msra.mxu0 %v443
  %582 = vmatpush.bf16.msra.mxu0 %v442
  %583 = vmatmul.bf16.gmra.mxu0 %v163
  %v584 = vpop.f32.mrf.mxu0
  %v585 = vadd.f32 %v572, %v584
  %v586 = vpop.f32.mrf.mxu0
  %587 = vdwg.mxu0
  %588 = vmatpush.bf16.msra.mxu0 %v457
  %589 = vmatpush.bf16.msra.mxu0 %v456
  %590 = vmatpush.bf16.msra.mxu0 %v455
  %591 = vmatpush.bf16.msra.mxu0 %v454
  %592 = vmatpush.bf16.msra.mxu0 %v453
  %593 = vmatpush.bf16.msra.mxu0 %v452
  %594 = vmatpush.bf16.msra.mxu0 %v451
  %595 = vmatpush.bf16.msra.mxu0 %v450
  %596 = vmatmul.bf16.gmra.mxu0 %v164
  %v597 = vpop.f32.mrf.mxu0
  %v598 = vadd.f32 %v585, %v597
  %v599 = vpop.f32.mrf.mxu0
  %600 = vdwg.mxu0
  %601 = vmatpush.bf16.msra.mxu0 %v465
  %602 = vmatpush.bf16.msra.mxu0 %v464
  %603 = vmatpush.bf16.msra.mxu0 %v463
  %604 = vmatpush.bf16.msra.mxu0 %v462
  %605 = vmatpush.bf16.msra.mxu0 %v461
  %606 = vmatpush.bf16.msra.mxu0 %v460
  %607 = vmatpush.bf16.msra.mxu0 %v459
  %608 = vmatpush.bf16.msra.mxu0 %v458
  %609 = vmatmul.bf16.gmra.mxu0 %v165
  %v610 = vpop.f32.mrf.mxu0
  %v611 = vadd.f32 %v598, %v610
  %v612 = vpop.f32.mrf.mxu0
  %613 = vdwg.mxu0
  %614 = vmatpush.bf16.msra.mxu0 %v473
  %615 = vmatpush.bf16.msra.mxu0 %v472
  %616 = vmatpush.bf16.msra.mxu0 %v471
  %617 = vmatpush.bf16.msra.mxu0 %v470
  %618 = vmatpush.bf16.msra.mxu0 %v469
  %619 = vmatpush.bf16.msra.mxu0 %v468
  %620 = vmatpush.bf16.msra.mxu0 %v467
  %621 = vmatpush.bf16.msra.mxu0 %v466
  %622 = vmatmul.bf16.gmra.mxu0 %v166
  %v623 = vpop.f32.mrf.mxu0
  %v624 = vadd.f32 %v611, %v623
  %v625 = vpop.f32.mrf.mxu0
  %626 = vdwg.mxu0
  %627 = vmatpush.bf16.msra.mxu0 %v481
  %628 = vmatpush.bf16.msra.mxu0 %v480
  %629 = vmatpush.bf16.msra.mxu0 %v479
  %630 = vmatpush.bf16.msra.mxu0 %v478
  %631 = vmatpush.bf16.msra.mxu0 %v477
  %632 = vmatpush.bf16.msra.mxu0 %v476
  %633 = vmatpush.bf16.msra.mxu0 %v475
  %634 = vmatpush.bf16.msra.mxu0 %v474
  %635 = vmatmul.bf16.gmra.mxu0 %v167
  %v636 = vpop.f32.mrf.mxu0
  %v637 = vadd.f32 %v624, %v636
  %v638 = vpop.f32.mrf.mxu0
  %639 = vdwg.mxu0
  %640 = vmatpush.bf16.msra.mxu0 %v489
  %641 = vmatpush.bf16.msra.mxu0 %v488
  %642 = vmatpush.bf16.msra.mxu0 %v487
  %643 = vmatpush.bf16.msra.mxu0 %v486
  %644 = vmatpush.bf16.msra.mxu0 %v485
  %645 = vmatpush.bf16.msra.mxu0 %v484
  %646 = vmatpush.bf16.msra.mxu0 %v483
  %647 = vmatpush.bf16.msra.mxu0 %v482
  %648 = vmatmul.bf16.gmra.mxu0 %v168
  %v649 = vpop.f32.mrf.mxu0
  %v650 = vadd.f32 %v637, %v649
  %v651 = vpop.f32.mrf.mxu0
  %652 = vdwg.mxu0
  %653 = vmatpush.bf16.msra.mxu0 %v497
  %654 = vmatpush.bf16.msra.mxu0 %v496
  %655 = vmatpush.bf16.msra.mxu0 %v495
  %656 = vmatpush.bf16.msra.mxu0 %v494
  %657 = vmatpush.bf16.msra.mxu0 %v493
  %658 = vmatpush.bf16.msra.mxu0 %v492
  %659 = vmatpush.bf16.msra.mxu0 %v491
  %660 = vmatpush.bf16.msra.mxu0 %v490
  %661 = vmatmul.bf16.gmra.mxu0 %v169
  %v662 = vpop.f32.mrf.mxu0
  %v663 = vadd.f32 %v650, %v662
  %v664 = vpop.f32.mrf.mxu0
  %665 = vdwg.mxu0
  %v666 = vxor.u32 %v663, 2147483648
  %v667 = vmul.f32 %v666, 1.442695
  %v668 = vpow.pop %v667
  %v669 = vadd.f32 %v668, 1.0
  %v670 = vrcp.pop %v669
  %v671 = vmul.f32 %v669, %v670
  %v672 = vsub.f32 1.0, %v671
  %v673 = vmul.f32 %v670, %v672
  %v674 = vadd.f32 %v670, %v673
  %vm675 = vweird.f32 %v669
  %vm676 = vweird.f32 %v670
  %vm677 = vmor %vm675, %vm676
  %v678 = vsel %vm677, %v670, %v674
  %v679 = vand.u32 2147483647, %v669
  %vm680 = vcmp.eq.f32.partialorder %v679, 8.507059e+37
  %v681 = vand.u32 %v669, 2147483648
  %v682 = vor.u32 1.1754944e-38, %v681
  %v683 = vsel %vm680, %v682, %v678
  %v684 = vmul.f32 1.0, %v683
  %685 = vst [vmem:[%s3] sm:$0xff] %v684
  // Predicated region
  $region14: #{discriminator_forward.15} parent=0 // pred_check
    _
  $region15: #{discriminator_forward.15} parent=0 // pred_check_branch
    %687 = sbr.rel (0) target = $region17
  $region16: #{discriminator_forward.15} parent=0 // pred_region
    _
  $region17: #{discriminator_forward.15} parent=0 // pred_fallthru
    _
  // Predicated region
  $region18: #{discriminator_forward.15} parent=0 // pred_check
    _
  $region19: #{discriminator_forward.15} parent=0 // pred_check_branch
    %689 = sbr.rel (0) target = $region21
  $region20: #{discriminator_forward.15} parent=0 // pred_region
    _
  $region21: #{discriminator_forward.15} parent=0 // pred_fallthru
    _

</llo_original>
